<compile_context>
chip_gen: v6e
topology: v6e:2x2x1
jax: 0.10.0
libtpu: 0.0.40
codegen_flags: <defaults>
</compile_context>

<pallas_src>
from functools import partial

import jax
import jax.numpy as jnp
from jax.experimental import pallas as pl
from jax.experimental.pallas import tpu as pltpu

EPS = 1e-5     # PyTorch default eps for InstanceNorm2d and BatchNorm2d
KPAD = 16      # convInt K zero-padded to a full sublane tile (f32:8 / bf16:16)


def net_kernel(x_ref, wint_ref, bint_ref, w1_ref, w2_ref, wpred_ref, bpred_ref,
               out_ref, *, B, N, mm_dtype, mm_precision):
    C = w1_ref.shape[-1]
    KP = x_ref.shape[-1]
    nblocks = w1_ref.shape[0]
    f32 = jnp.float32

    def conv1x1(t, w):
        # 1x1 conv == [B*N, C] @ [C, C] on the MXU.  The 2-D collapse is
        # (8,128)-tile preserving (N % 8 == 0, C % 128 == 0) => view change,
        # not a copy.  Conv biases are dropped entirely: InstanceNorm subtracts
        # any per-(b,c) constant, so they are an exact algebraic no-op.
        o = jnp.dot(t.reshape(B * N, C).astype(mm_dtype), w,
                    preferred_element_type=f32, precision=mm_precision)
        return o.reshape(B, N, C)

    def inorm_bnorm_relu(t):
        # InstanceNorm2d over N per (b, c), two-pass biased variance (matches
        # PyTorch; the centered tensor is reused for the output so this costs
        # the same number of full-activation passes as the one-pass form).
        mu = jnp.mean(t, axis=1, keepdims=True)                  # [B,1,C]
        d = t - mu
        var = jnp.mean(d * d, axis=1, keepdims=True)             # [B,1,C]
        inv = jax.lax.rsqrt(var + EPS)                           # IN scale
        # BatchNorm2d(affine=False) with TRAIN-mode batch statistics only:
        # the IN output has exactly zero per-channel mean over (B,N) and
        # per-(b,c) second moment var/(var+eps), so BN collapses to a
        # per-channel rescale -- no reduction over the full activation.
        ratio = var * inv * inv                                  # var/(var+eps)
        bn_scale = jax.lax.rsqrt(jnp.mean(ratio, axis=0, keepdims=True) + EPS)
        return jnp.maximum(d * (inv * bn_scale), 0.0)            # relu

    # ---- convInt: Conv2d(1, C, (1,5)), valid.  The 5-tap kernel and x are
    # zero-padded to KPAD in the wrapper, so this is a single aligned MXU push
    # instead of 5 serial lane-extract + VPU-FMA steps at the head of the
    # dependence chain. ----
    x2 = x_ref[...].reshape(B * N, KP).astype(mm_dtype)
    h = jnp.dot(x2, wint_ref[...], preferred_element_type=f32,
                precision=mm_precision).reshape(B, N, C)
    h = h + bint_ref[...]      # bint kept: it feeds the residual path

    # ---- 5 x ResNetBlock (static unroll; no relu after the residual add) ----
    for blk in range(nblocks):
        identity = h
        t = inorm_bnorm_relu(conv1x1(h, w1_ref[blk]))
        t = inorm_bnorm_relu(conv1x1(t, w2_ref[blk]))
        h = t + identity

    # ---- convInlierPredictor (C -> 1): a width-1 MXU push is ~1/128 utilized,
    # so use a VPU multiply + lane reduction straight into the lane-dense
    # (B, N) output, then tanh -> relu.  (When the production row grid lands,
    # keep the output tile's last dim a multiple of 128 to avoid masked vst.)
    logits = jnp.sum(h * wpred_ref[...], axis=-1) + bpred_ref[...]   # [B, N]
    out_ref[...] = jnp.maximum(jnp.tanh(logits), 0.0)


def net_forward(x_nchw, params, *, use_bf16_matmul=True):
    """x_nchw: [B, 1, N, KW] float32 (PyTorch NCHW).  Returns [B, N] float32."""
    B, cin, N, KW = x_nchw.shape
    wint, bint, W1, _B1, W2, _B2, wpred, bpred = params   # b1/b2 unused (IN no-op)
    nb, _, C = W1.shape
    assert cin == 1 and KW == wint.shape[0]
    # The "free reshape" / VMEM-estimate claims depend on tile alignment.
    assert N % 8 == 0, "N must be a multiple of 8 (sublane tile)"
    assert C % 128 == 0, "channels must be a multiple of 128 (lane tile)"

    mm_dtype = jnp.bfloat16 if use_bf16_matmul else jnp.float32
    # Exact-f32 path: request fp32 MXU contraction; bf16 path: default.
    mm_precision = None if use_bf16_matmul else jax.lax.Precision.HIGHEST

    # convInt operands zero-padded to an aligned K so the 1x5 conv is one MXU
    # push (KPAD=16 covers both f32 (8) and bf16 (16) sublane tiles; the extra
    # HBM traffic is B*N*(KPAD-KW)*4 bytes -- negligible).
    x = jnp.pad(x_nchw.reshape(B, N, KW), ((0, 0), (0, 0), (0, KPAD - KW)))
    wint_p = jnp.pad(wint, ((0, KPAD - KW), (0, 0))).astype(mm_dtype)

    W1m = W1.astype(mm_dtype)   # MXU inputs (f32 accumulation)
    W2m = W2.astype(mm_dtype)

    # Whole-problem-resident kernel with a generation-aware VMEM budget
    # (v5e/v6e: 128 MiB physical; v7x: 64 MiB per TensorCore).
    try:
        vmem_cap = pltpu.get_tpu_info().vmem_capacity_bytes
    except Exception:
        vmem_cap = 64 * 1024 * 1024               # conservative (v7x per-core)
    budget = int(vmem_cap) * 3 // 4               # headroom for compiler scratch
    act_bytes = B * N * C * 4
    est = (12 * act_bytes                                        # live f32 temps
           + 2 * nb * C * C * (2 if use_bf16_matmul else 4)      # W1/W2
           + B * N * 128 * 4                                     # x (lane-padded)
           + 64 * 1024)                                          # small params/slack
    if est > budget:
        # TODO(synk): row grid over N tiles (>=256-row matmul M, >=512-row DMA
        # tiles) with a two-pass BatchNorm exchanging per-channel sum/sum^2 via
        # VMEM/CMEM scratch; also enables a "parallel" axis for v7x's 2 TCs.
        raise ValueError(
            f"B*N={B * N} too large for the single-shot VMEM-resident kernel")
    vmem_limit = int(min(max(4 * est, 16 * 1024 * 1024), budget))

    out = pl.pallas_call(
        partial(net_kernel, B=B, N=N, mm_dtype=mm_dtype,
                mm_precision=mm_precision),
        out_shape=jax.ShapeDtypeStruct((B, N), jnp.float32),
        in_specs=[pl.BlockSpec(memory_space=pltpu.MemorySpace.VMEM)] * 7,
        out_specs=pl.BlockSpec(memory_space=pltpu.MemorySpace.VMEM),
        compiler_params=pltpu.CompilerParams(vmem_limit_bytes=vmem_limit),
    )(x, wint_p, bint, W1m, W2m, wpred, bpred)
    return out


def net_reference(x_nchw, params):
    """Pure-JAX (XLA) reference implementing the literal PyTorch math,
    including the conv biases that the kernel drops (they cancel in IN)."""
    B, _, N, KW = x_nchw.shape
    x = x_nchw.reshape(B, N, KW).astype(jnp.float32)
    wint, bint, W1, B1, W2, B2, wpred, bpred = params
    C = W1.shape[-1]
    hp = jax.lax.Precision.HIGHEST

    def inorm(t):
        mu = jnp.mean(t, axis=1, keepdims=True)
        var = jnp.mean((t - mu) ** 2, axis=1, keepdims=True)
        return (t - mu) / jnp.sqrt(var + EPS)

    def bnorm(t):
        mu = jnp.mean(t, axis=(0, 1), keepdims=True)
        var = jnp.mean((t - mu) ** 2, axis=(0, 1), keepdims=True)
        return (t - mu) / jnp.sqrt(var + EPS)

    h = jnp.einsum('bnk,kc->bnc', x, wint, precision=hp) + bint.reshape(1, 1, C)
    for blk in range(W1.shape[0]):
        identity = h
        t = jnp.einsum('bnc,cd->bnd', h, W1[blk], precision=hp) + B1[blk].reshape(1, 1, C)
        t = jax.nn.relu(bnorm(inorm(t)))
        t = jnp.einsum('bnc,cd->bnd', t, W2[blk], precision=hp) + B2[blk].reshape(1, 1, C)
        t = jax.nn.relu(bnorm(inorm(t)))
        h = t + identity
    logits = jnp.einsum('bnc,c->bn', h, wpred.reshape(C), precision=hp) + bpred.reshape(())
    return jax.nn.relu(jnp.tanh(logits))


def make_params(key, C=128, nblocks=5, kw=5):
    """Deterministic synthetic parameters in PyTorch layout, transposed to the
    kernel's [Cin, Cout] matmul layout."""
    ks = jax.random.split(key, 8)
    scale = 1.0 / (C ** 0.5)

    w_int = jax.random.normal(ks[0], (C, 1, 1, kw), jnp.float32) * 0.3   # Conv2d(1,C,(1,5))
    b_int = jax.random.normal(ks[1], (C,), jnp.float32) * 0.1
    W1 = jax.random.normal(ks[2], (nblocks, C, C), jnp.float32) * scale  # conv1 per block
    B1 = jax.random.normal(ks[3], (nblocks, C), jnp.float32) * 0.1
    W2 = jax.random.normal(ks[4], (nblocks, C, C), jnp.float32) * scale  # conv2 per block
    B2 = jax.random.normal(ks[5], (nblocks, C), jnp.float32) * 0.1
    w_pred = jax.random.normal(ks[6], (1, C, 1, 1), jnp.float32) * scale # Conv2d(C,1,(1,1))
    b_pred = jax.random.normal(ks[7], (1,), jnp.float32) * 0.1

    wint_k = jnp.transpose(w_int.reshape(C, kw))        # [kw, C]
    bint_k = b_int.reshape(1, C)
    W1_k = jnp.transpose(W1, (0, 2, 1))                 # [nb, Cin, Cout]
    W2_k = jnp.transpose(W2, (0, 2, 1))
    wpred_k = w_pred.reshape(1, C)                      # [1, C]
    bpred_k = b_pred.reshape(1, 1)
    return (wint_k, bint_k, W1_k, B1, W2_k, B2, wpred_k, bpred_k)


if __name__ == "__main__":
    key = jax.random.PRNGKey(0)
    kx, kp = jax.random.split(key)

    B, N, C, NBLOCKS, KW = 2, 16, 128, 5, 5
    x = jax.random.normal(kx, (B, 1, N, KW), jnp.float32)   # NCHW, W=5 matches (1,5) kernel
    params = make_params(kp, C=C, nblocks=NBLOCKS, kw=KW)

    y_ref = net_reference(x, params)

    # Exact-math path (fp32 MXU contraction) against the literal-PyTorch
    # reference.  Tolerance tightened 100x vs the previous revision (2e-2 ->
    # 2e-4); measured error is expected ~1e-5 across the 11 chained matmuls.
    y_f32 = net_forward(x, params, use_bf16_matmul=False)
    jax.block_until_ready((y_f32, y_ref))
    assert y_f32.shape == (B, N)
    assert float(jnp.max(jnp.abs(y_f32 - y_ref))) < 2e-4

    # Default (bf16 MXU inputs, f32 accumulation) path.
    y = net_forward(x, params)
    jax.block_until_ready(y)
    assert y.shape == (B, N)
    assert bool(jnp.all(jnp.isfinite(y)))
    assert bool(jnp.all(y >= 0.0)) and bool(jnp.all(y <= 1.0))  # relu(tanh(.)) range
    print("KERNEL_OK")
</pallas_src>

<mosaic_0001>
module attributes {stable_mosaic.version = 11 : i64} {
  func.func @net_kernel(%arg0: memref<2x16x16xf32, #tpu.memory_space<vmem>>, %arg1: memref<16x128xf32, #tpu.memory_space<vmem>>, %arg2: memref<1x128xf32, #tpu.memory_space<vmem>>, %arg3: memref<5x128x128xf32, #tpu.memory_space<vmem>>, %arg4: memref<5x128x128xf32, #tpu.memory_space<vmem>>, %arg5: memref<1x128xf32, #tpu.memory_space<vmem>>, %arg6: memref<1x1xf32, #tpu.memory_space<vmem>>, %arg7: memref<2x16xf32, #tpu.memory_space<vmem>>) attributes {dimension_semantics = [], scalar_prefetch = 0 : i64, scratch_operands = 0 : i64, tpu.core_type = #tpu.core_type<tc>} {
    %c0 = arith.constant 0 : index
    %c0_0 = arith.constant 0 : index
    %c0_1 = arith.constant 0 : index
    %0 = vector.load %arg0[%c0, %c0_0, %c0_1] : memref<2x16x16xf32, #tpu.memory_space<vmem>>, vector<2x16x16xf32>
    %1 = vector.shape_cast %0 : vector<2x16x16xf32> to vector<32x16xf32>
    %c0_2 = arith.constant 0 : index
    %c0_3 = arith.constant 0 : index
    %2 = vector.load %arg1[%c0_2, %c0_3] : memref<16x128xf32, #tpu.memory_space<vmem>>, vector<16x128xf32>
    %cst = arith.constant dense<0.000000e+00> : vector<32x128xf32>
    %3 = tpu.matmul %1, %2, %cst {dimension_numbers = #tpu.dot_dimension_numbers<[1], [0], [0], [1], [0, 0, 1, 1], [], []>, precision = #tpu.contract_precision<fp32>} : vector<32x16xf32>, vector<16x128xf32>, vector<32x128xf32> -> vector<32x128xf32>
    %4 = vector.shape_cast %3 : vector<32x128xf32> to vector<2x16x128xf32>
    %c0_4 = arith.constant 0 : index
    %c0_5 = arith.constant 0 : index
    %5 = vector.load %arg2[%c0_4, %c0_5] : memref<1x128xf32, #tpu.memory_space<vmem>>, vector<1x128xf32>
    %6 = vector.shape_cast %5 : vector<1x128xf32> to vector<1x1x128xf32>
    %7 = vector.broadcast %6 : vector<1x1x128xf32> to vector<2x16x128xf32>
    %8 = arith.addf %4, %7 : vector<2x16x128xf32>
    %c0_6 = arith.constant 0 : index
    %c0_7 = arith.constant 0 : index
    %c0_8 = arith.constant 0 : index
    %9 = vector.load %arg3[%c0_6, %c0_7, %c0_8] : memref<5x128x128xf32, #tpu.memory_space<vmem>>, vector<1x128x128xf32>
    %10 = vector.shape_cast %9 : vector<1x128x128xf32> to vector<128x128xf32>
    %11 = vector.shape_cast %8 : vector<2x16x128xf32> to vector<32x128xf32>
    %cst_9 = arith.constant dense<0.000000e+00> : vector<32x128xf32>
    %12 = tpu.matmul %11, %10, %cst_9 {dimension_numbers = #tpu.dot_dimension_numbers<[1], [0], [0], [1], [0, 0, 1, 1], [], []>, precision = #tpu.contract_precision<fp32>} : vector<32x128xf32>, vector<128x128xf32>, vector<32x128xf32> -> vector<32x128xf32>
    %13 = vector.shape_cast %12 : vector<32x128xf32> to vector<2x16x128xf32>
    %cst_10 = arith.constant dense<0.000000e+00> : vector<2x128xf32>
    %14 = vector.multi_reduction <add>, %13, %cst_10 [1] : vector<2x16x128xf32> to vector<2x128xf32>
    %15 = vector.shape_cast %14 : vector<2x128xf32> to vector<2x1x128xf32>
    %cst_11 = arith.constant 1.600000e+01 : f32
    %16 = vector.broadcast %cst_11 : f32 to vector<2x1x128xf32>
    %17 = arith.divf %15, %16 : vector<2x1x128xf32>
    %18 = vector.broadcast %17 : vector<2x1x128xf32> to vector<2x16x128xf32>
    %19 = arith.subf %13, %18 : vector<2x16x128xf32>
    %20 = arith.mulf %19, %19 : vector<2x16x128xf32>
    %cst_12 = arith.constant dense<0.000000e+00> : vector<2x128xf32>
    %21 = vector.multi_reduction <add>, %20, %cst_12 [1] : vector<2x16x128xf32> to vector<2x128xf32>
    %22 = vector.shape_cast %21 : vector<2x128xf32> to vector<2x1x128xf32>
    %cst_13 = arith.constant 1.600000e+01 : f32
    %23 = vector.broadcast %cst_13 : f32 to vector<2x1x128xf32>
    %24 = arith.divf %22, %23 : vector<2x1x128xf32>
    %cst_14 = arith.constant 9.99999974E-6 : f32
    %25 = vector.broadcast %cst_14 : f32 to vector<2x1x128xf32>
    %26 = arith.addf %24, %25 : vector<2x1x128xf32>
    %27 = math.rsqrt %26 : vector<2x1x128xf32>
    %28 = arith.mulf %24, %27 : vector<2x1x128xf32>
    %29 = arith.mulf %28, %27 : vector<2x1x128xf32>
    %cst_15 = arith.constant dense<0.000000e+00> : vector<1x128xf32>
    %30 = vector.multi_reduction <add>, %29, %cst_15 [0] : vector<2x1x128xf32> to vector<1x128xf32>
    %31 = vector.shape_cast %30 : vector<1x128xf32> to vector<1x1x128xf32>
    %cst_16 = arith.constant 2.000000e+00 : f32
    %32 = vector.broadcast %cst_16 : f32 to vector<1x1x128xf32>
    %33 = arith.divf %31, %32 : vector<1x1x128xf32>
    %cst_17 = arith.constant 9.99999974E-6 : f32
    %34 = vector.broadcast %cst_17 : f32 to vector<1x1x128xf32>
    %35 = arith.addf %33, %34 : vector<1x1x128xf32>
    %36 = math.rsqrt %35 : vector<1x1x128xf32>
    %37 = vector.broadcast %36 : vector<1x1x128xf32> to vector<2x1x128xf32>
    %38 = arith.mulf %27, %37 : vector<2x1x128xf32>
    %39 = vector.broadcast %38 : vector<2x1x128xf32> to vector<2x16x128xf32>
    %40 = arith.mulf %19, %39 : vector<2x16x128xf32>
    %cst_18 = arith.constant 0.000000e+00 : f32
    %41 = vector.broadcast %cst_18 : f32 to vector<2x16x128xf32>
    %42 = arith.maximumf %40, %41 : vector<2x16x128xf32>
    %c0_19 = arith.constant 0 : index
    %c0_20 = arith.constant 0 : index
    %c0_21 = arith.constant 0 : index
    %43 = vector.load %arg4[%c0_19, %c0_20, %c0_21] : memref<5x128x128xf32, #tpu.memory_space<vmem>>, vector<1x128x128xf32>
    %44 = vector.shape_cast %43 : vector<1x128x128xf32> to vector<128x128xf32>
    %45 = vector.shape_cast %42 : vector<2x16x128xf32> to vector<32x128xf32>
    %cst_22 = arith.constant dense<0.000000e+00> : vector<32x128xf32>
    %46 = tpu.matmul %45, %44, %cst_22 {dimension_numbers = #tpu.dot_dimension_numbers<[1], [0], [0], [1], [0, 0, 1, 1], [], []>, precision = #tpu.contract_precision<fp32>} : vector<32x128xf32>, vector<128x128xf32>, vector<32x128xf32> -> vector<32x128xf32>
    %47 = vector.shape_cast %46 : vector<32x128xf32> to vector<2x16x128xf32>
    %cst_23 = arith.constant dense<0.000000e+00> : vector<2x128xf32>
    %48 = vector.multi_reduction <add>, %47, %cst_23 [1] : vector<2x16x128xf32> to vector<2x128xf32>
    %49 = vector.shape_cast %48 : vector<2x128xf32> to vector<2x1x128xf32>
    %cst_24 = arith.constant 1.600000e+01 : f32
    %50 = vector.broadcast %cst_24 : f32 to vector<2x1x128xf32>
    %51 = arith.divf %49, %50 : vector<2x1x128xf32>
    %52 = vector.broadcast %51 : vector<2x1x128xf32> to vector<2x16x128xf32>
    %53 = arith.subf %47, %52 : vector<2x16x128xf32>
    %54 = arith.mulf %53, %53 : vector<2x16x128xf32>
    %cst_25 = arith.constant dense<0.000000e+00> : vector<2x128xf32>
    %55 = vector.multi_reduction <add>, %54, %cst_25 [1] : vector<2x16x128xf32> to vector<2x128xf32>
    %56 = vector.shape_cast %55 : vector<2x128xf32> to vector<2x1x128xf32>
    %cst_26 = arith.constant 1.600000e+01 : f32
    %57 = vector.broadcast %cst_26 : f32 to vector<2x1x128xf32>
    %58 = arith.divf %56, %57 : vector<2x1x128xf32>
    %cst_27 = arith.constant 9.99999974E-6 : f32
    %59 = vector.broadcast %cst_27 : f32 to vector<2x1x128xf32>
    %60 = arith.addf %58, %59 : vector<2x1x128xf32>
    %61 = math.rsqrt %60 : vector<2x1x128xf32>
    %62 = arith.mulf %58, %61 : vector<2x1x128xf32>
    %63 = arith.mulf %62, %61 : vector<2x1x128xf32>
    %cst_28 = arith.constant dense<0.000000e+00> : vector<1x128xf32>
    %64 = vector.multi_reduction <add>, %63, %cst_28 [0] : vector<2x1x128xf32> to vector<1x128xf32>
    %65 = vector.shape_cast %64 : vector<1x128xf32> to vector<1x1x128xf32>
    %cst_29 = arith.constant 2.000000e+00 : f32
    %66 = vector.broadcast %cst_29 : f32 to vector<1x1x128xf32>
    %67 = arith.divf %65, %66 : vector<1x1x128xf32>
    %cst_30 = arith.constant 9.99999974E-6 : f32
    %68 = vector.broadcast %cst_30 : f32 to vector<1x1x128xf32>
    %69 = arith.addf %67, %68 : vector<1x1x128xf32>
    %70 = math.rsqrt %69 : vector<1x1x128xf32>
    %71 = vector.broadcast %70 : vector<1x1x128xf32> to vector<2x1x128xf32>
    %72 = arith.mulf %61, %71 : vector<2x1x128xf32>
    %73 = vector.broadcast %72 : vector<2x1x128xf32> to vector<2x16x128xf32>
    %74 = arith.mulf %53, %73 : vector<2x16x128xf32>
    %cst_31 = arith.constant 0.000000e+00 : f32
    %75 = vector.broadcast %cst_31 : f32 to vector<2x16x128xf32>
    %76 = arith.maximumf %74, %75 : vector<2x16x128xf32>
    %77 = arith.addf %76, %8 : vector<2x16x128xf32>
    %c1 = arith.constant 1 : index
    %c0_32 = arith.constant 0 : index
    %c0_33 = arith.constant 0 : index
    %78 = vector.load %arg3[%c1, %c0_32, %c0_33] : memref<5x128x128xf32, #tpu.memory_space<vmem>>, vector<1x128x128xf32>
    %79 = vector.shape_cast %78 : vector<1x128x128xf32> to vector<128x128xf32>
    %80 = vector.shape_cast %77 : vector<2x16x128xf32> to vector<32x128xf32>
    %cst_34 = arith.constant dense<0.000000e+00> : vector<32x128xf32>
    %81 = tpu.matmul %80, %79, %cst_34 {dimension_numbers = #tpu.dot_dimension_numbers<[1], [0], [0], [1], [0, 0, 1, 1], [], []>, precision = #tpu.contract_precision<fp32>} : vector<32x128xf32>, vector<128x128xf32>, vector<32x128xf32> -> vector<32x128xf32>
    %82 = vector.shape_cast %81 : vector<32x128xf32> to vector<2x16x128xf32>
    %cst_35 = arith.constant dense<0.000000e+00> : vector<2x128xf32>
    %83 = vector.multi_reduction <add>, %82, %cst_35 [1] : vector<2x16x128xf32> to vector<2x128xf32>
    %84 = vector.shape_cast %83 : vector<2x128xf32> to vector<2x1x128xf32>
    %cst_36 = arith.constant 1.600000e+01 : f32
    %85 = vector.broadcast %cst_36 : f32 to vector<2x1x128xf32>
    %86 = arith.divf %84, %85 : vector<2x1x128xf32>
    %87 = vector.broadcast %86 : vector<2x1x128xf32> to vector<2x16x128xf32>
    %88 = arith.subf %82, %87 : vector<2x16x128xf32>
    %89 = arith.mulf %88, %88 : vector<2x16x128xf32>
    %cst_37 = arith.constant dense<0.000000e+00> : vector<2x128xf32>
    %90 = vector.multi_reduction <add>, %89, %cst_37 [1] : vector<2x16x128xf32> to vector<2x128xf32>
    %91 = vector.shape_cast %90 : vector<2x128xf32> to vector<2x1x128xf32>
    %cst_38 = arith.constant 1.600000e+01 : f32
    %92 = vector.broadcast %cst_38 : f32 to vector<2x1x128xf32>
    %93 = arith.divf %91, %92 : vector<2x1x128xf32>
    %cst_39 = arith.constant 9.99999974E-6 : f32
    %94 = vector.broadcast %cst_39 : f32 to vector<2x1x128xf32>
    %95 = arith.addf %93, %94 : vector<2x1x128xf32>
    %96 = math.rsqrt %95 : vector<2x1x128xf32>
    %97 = arith.mulf %93, %96 : vector<2x1x128xf32>
    %98 = arith.mulf %97, %96 : vector<2x1x128xf32>
    %cst_40 = arith.constant dense<0.000000e+00> : vector<1x128xf32>
    %99 = vector.multi_reduction <add>, %98, %cst_40 [0] : vector<2x1x128xf32> to vector<1x128xf32>
    %100 = vector.shape_cast %99 : vector<1x128xf32> to vector<1x1x128xf32>
    %cst_41 = arith.constant 2.000000e+00 : f32
    %101 = vector.broadcast %cst_41 : f32 to vector<1x1x128xf32>
    %102 = arith.divf %100, %101 : vector<1x1x128xf32>
    %cst_42 = arith.constant 9.99999974E-6 : f32
    %103 = vector.broadcast %cst_42 : f32 to vector<1x1x128xf32>
    %104 = arith.addf %102, %103 : vector<1x1x128xf32>
    %105 = math.rsqrt %104 : vector<1x1x128xf32>
    %106 = vector.broadcast %105 : vector<1x1x128xf32> to vector<2x1x128xf32>
    %107 = arith.mulf %96, %106 : vector<2x1x128xf32>
    %108 = vector.broadcast %107 : vector<2x1x128xf32> to vector<2x16x128xf32>
    %109 = arith.mulf %88, %108 : vector<2x16x128xf32>
    %cst_43 = arith.constant 0.000000e+00 : f32
    %110 = vector.broadcast %cst_43 : f32 to vector<2x16x128xf32>
    %111 = arith.maximumf %109, %110 : vector<2x16x128xf32>
    %c1_44 = arith.constant 1 : index
    %c0_45 = arith.constant 0 : index
    %c0_46 = arith.constant 0 : index
    %112 = vector.load %arg4[%c1_44, %c0_45, %c0_46] : memref<5x128x128xf32, #tpu.memory_space<vmem>>, vector<1x128x128xf32>
    %113 = vector.shape_cast %112 : vector<1x128x128xf32> to vector<128x128xf32>
    %114 = vector.shape_cast %111 : vector<2x16x128xf32> to vector<32x128xf32>
    %cst_47 = arith.constant dense<0.000000e+00> : vector<32x128xf32>
    %115 = tpu.matmul %114, %113, %cst_47 {dimension_numbers = #tpu.dot_dimension_numbers<[1], [0], [0], [1], [0, 0, 1, 1], [], []>, precision = #tpu.contract_precision<fp32>} : vector<32x128xf32>, vector<128x128xf32>, vector<32x128xf32> -> vector<32x128xf32>
    %116 = vector.shape_cast %115 : vector<32x128xf32> to vector<2x16x128xf32>
    %cst_48 = arith.constant dense<0.000000e+00> : vector<2x128xf32>
    %117 = vector.multi_reduction <add>, %116, %cst_48 [1] : vector<2x16x128xf32> to vector<2x128xf32>
    %118 = vector.shape_cast %117 : vector<2x128xf32> to vector<2x1x128xf32>
    %cst_49 = arith.constant 1.600000e+01 : f32
    %119 = vector.broadcast %cst_49 : f32 to vector<2x1x128xf32>
    %120 = arith.divf %118, %119 : vector<2x1x128xf32>
    %121 = vector.broadcast %120 : vector<2x1x128xf32> to vector<2x16x128xf32>
    %122 = arith.subf %116, %121 : vector<2x16x128xf32>
    %123 = arith.mulf %122, %122 : vector<2x16x128xf32>
    %cst_50 = arith.constant dense<0.000000e+00> : vector<2x128xf32>
    %124 = vector.multi_reduction <add>, %123, %cst_50 [1] : vector<2x16x128xf32> to vector<2x128xf32>
    %125 = vector.shape_cast %124 : vector<2x128xf32> to vector<2x1x128xf32>
    %cst_51 = arith.constant 1.600000e+01 : f32
    %126 = vector.broadcast %cst_51 : f32 to vector<2x1x128xf32>
    %127 = arith.divf %125, %126 : vector<2x1x128xf32>
    %cst_52 = arith.constant 9.99999974E-6 : f32
    %128 = vector.broadcast %cst_52 : f32 to vector<2x1x128xf32>
    %129 = arith.addf %127, %128 : vector<2x1x128xf32>
    %130 = math.rsqrt %129 : vector<2x1x128xf32>
    %131 = arith.mulf %127, %130 : vector<2x1x128xf32>
    %132 = arith.mulf %131, %130 : vector<2x1x128xf32>
    %cst_53 = arith.constant dense<0.000000e+00> : vector<1x128xf32>
    %133 = vector.multi_reduction <add>, %132, %cst_53 [0] : vector<2x1x128xf32> to vector<1x128xf32>
    %134 = vector.shape_cast %133 : vector<1x128xf32> to vector<1x1x128xf32>
    %cst_54 = arith.constant 2.000000e+00 : f32
    %135 = vector.broadcast %cst_54 : f32 to vector<1x1x128xf32>
    %136 = arith.divf %134, %135 : vector<1x1x128xf32>
    %cst_55 = arith.constant 9.99999974E-6 : f32
    %137 = vector.broadcast %cst_55 : f32 to vector<1x1x128xf32>
    %138 = arith.addf %136, %137 : vector<1x1x128xf32>
    %139 = math.rsqrt %138 : vector<1x1x128xf32>
    %140 = vector.broadcast %139 : vector<1x1x128xf32> to vector<2x1x128xf32>
    %141 = arith.mulf %130, %140 : vector<2x1x128xf32>
    %142 = vector.broadcast %141 : vector<2x1x128xf32> to vector<2x16x128xf32>
    %143 = arith.mulf %122, %142 : vector<2x16x128xf32>
    %cst_56 = arith.constant 0.000000e+00 : f32
    %144 = vector.broadcast %cst_56 : f32 to vector<2x16x128xf32>
    %145 = arith.maximumf %143, %144 : vector<2x16x128xf32>
    %146 = arith.addf %145, %77 : vector<2x16x128xf32>
    %c2 = arith.constant 2 : index
    %c0_57 = arith.constant 0 : index
    %c0_58 = arith.constant 0 : index
    %147 = vector.load %arg3[%c2, %c0_57, %c0_58] : memref<5x128x128xf32, #tpu.memory_space<vmem>>, vector<1x128x128xf32>
    %148 = vector.shape_cast %147 : vector<1x128x128xf32> to vector<128x128xf32>
    %149 = vector.shape_cast %146 : vector<2x16x128xf32> to vector<32x128xf32>
    %cst_59 = arith.constant dense<0.000000e+00> : vector<32x128xf32>
    %150 = tpu.matmul %149, %148, %cst_59 {dimension_numbers = #tpu.dot_dimension_numbers<[1], [0], [0], [1], [0, 0, 1, 1], [], []>, precision = #tpu.contract_precision<fp32>} : vector<32x128xf32>, vector<128x128xf32>, vector<32x128xf32> -> vector<32x128xf32>
    %151 = vector.shape_cast %150 : vector<32x128xf32> to vector<2x16x128xf32>
    %cst_60 = arith.constant dense<0.000000e+00> : vector<2x128xf32>
    %152 = vector.multi_reduction <add>, %151, %cst_60 [1] : vector<2x16x128xf32> to vector<2x128xf32>
    %153 = vector.shape_cast %152 : vector<2x128xf32> to vector<2x1x128xf32>
    %cst_61 = arith.constant 1.600000e+01 : f32
    %154 = vector.broadcast %cst_61 : f32 to vector<2x1x128xf32>
    %155 = arith.divf %153, %154 : vector<2x1x128xf32>
    %156 = vector.broadcast %155 : vector<2x1x128xf32> to vector<2x16x128xf32>
    %157 = arith.subf %151, %156 : vector<2x16x128xf32>
    %158 = arith.mulf %157, %157 : vector<2x16x128xf32>
    %cst_62 = arith.constant dense<0.000000e+00> : vector<2x128xf32>
    %159 = vector.multi_reduction <add>, %158, %cst_62 [1] : vector<2x16x128xf32> to vector<2x128xf32>
    %160 = vector.shape_cast %159 : vector<2x128xf32> to vector<2x1x128xf32>
    %cst_63 = arith.constant 1.600000e+01 : f32
    %161 = vector.broadcast %cst_63 : f32 to vector<2x1x128xf32>
    %162 = arith.divf %160, %161 : vector<2x1x128xf32>
    %cst_64 = arith.constant 9.99999974E-6 : f32
    %163 = vector.broadcast %cst_64 : f32 to vector<2x1x128xf32>
    %164 = arith.addf %162, %163 : vector<2x1x128xf32>
    %165 = math.rsqrt %164 : vector<2x1x128xf32>
    %166 = arith.mulf %162, %165 : vector<2x1x128xf32>
    %167 = arith.mulf %166, %165 : vector<2x1x128xf32>
    %cst_65 = arith.constant dense<0.000000e+00> : vector<1x128xf32>
    %168 = vector.multi_reduction <add>, %167, %cst_65 [0] : vector<2x1x128xf32> to vector<1x128xf32>
    %169 = vector.shape_cast %168 : vector<1x128xf32> to vector<1x1x128xf32>
    %cst_66 = arith.constant 2.000000e+00 : f32
    %170 = vector.broadcast %cst_66 : f32 to vector<1x1x128xf32>
    %171 = arith.divf %169, %170 : vector<1x1x128xf32>
    %cst_67 = arith.constant 9.99999974E-6 : f32
    %172 = vector.broadcast %cst_67 : f32 to vector<1x1x128xf32>
    %173 = arith.addf %171, %172 : vector<1x1x128xf32>
    %174 = math.rsqrt %173 : vector<1x1x128xf32>
    %175 = vector.broadcast %174 : vector<1x1x128xf32> to vector<2x1x128xf32>
    %176 = arith.mulf %165, %175 : vector<2x1x128xf32>
    %177 = vector.broadcast %176 : vector<2x1x128xf32> to vector<2x16x128xf32>
    %178 = arith.mulf %157, %177 : vector<2x16x128xf32>
    %cst_68 = arith.constant 0.000000e+00 : f32
    %179 = vector.broadcast %cst_68 : f32 to vector<2x16x128xf32>
    %180 = arith.maximumf %178, %179 : vector<2x16x128xf32>
    %c2_69 = arith.constant 2 : index
    %c0_70 = arith.constant 0 : index
    %c0_71 = arith.constant 0 : index
    %181 = vector.load %arg4[%c2_69, %c0_70, %c0_71] : memref<5x128x128xf32, #tpu.memory_space<vmem>>, vector<1x128x128xf32>
    %182 = vector.shape_cast %181 : vector<1x128x128xf32> to vector<128x128xf32>
    %183 = vector.shape_cast %180 : vector<2x16x128xf32> to vector<32x128xf32>
    %cst_72 = arith.constant dense<0.000000e+00> : vector<32x128xf32>
    %184 = tpu.matmul %183, %182, %cst_72 {dimension_numbers = #tpu.dot_dimension_numbers<[1], [0], [0], [1], [0, 0, 1, 1], [], []>, precision = #tpu.contract_precision<fp32>} : vector<32x128xf32>, vector<128x128xf32>, vector<32x128xf32> -> vector<32x128xf32>
    %185 = vector.shape_cast %184 : vector<32x128xf32> to vector<2x16x128xf32>
    %cst_73 = arith.constant dense<0.000000e+00> : vector<2x128xf32>
    %186 = vector.multi_reduction <add>, %185, %cst_73 [1] : vector<2x16x128xf32> to vector<2x128xf32>
    %187 = vector.shape_cast %186 : vector<2x128xf32> to vector<2x1x128xf32>
    %cst_74 = arith.constant 1.600000e+01 : f32
    %188 = vector.broadcast %cst_74 : f32 to vector<2x1x128xf32>
    %189 = arith.divf %187, %188 : vector<2x1x128xf32>
    %190 = vector.broadcast %189 : vector<2x1x128xf32> to vector<2x16x128xf32>
    %191 = arith.subf %185, %190 : vector<2x16x128xf32>
    %192 = arith.mulf %191, %191 : vector<2x16x128xf32>
    %cst_75 = arith.constant dense<0.000000e+00> : vector<2x128xf32>
    %193 = vector.multi_reduction <add>, %192, %cst_75 [1] : vector<2x16x128xf32> to vector<2x128xf32>
    %194 = vector.shape_cast %193 : vector<2x128xf32> to vector<2x1x128xf32>
    %cst_76 = arith.constant 1.600000e+01 : f32
    %195 = vector.broadcast %cst_76 : f32 to vector<2x1x128xf32>
    %196 = arith.divf %194, %195 : vector<2x1x128xf32>
    %cst_77 = arith.constant 9.99999974E-6 : f32
    %197 = vector.broadcast %cst_77 : f32 to vector<2x1x128xf32>
    %198 = arith.addf %196, %197 : vector<2x1x128xf32>
    %199 = math.rsqrt %198 : vector<2x1x128xf32>
    %200 = arith.mulf %196, %199 : vector<2x1x128xf32>
    %201 = arith.mulf %200, %199 : vector<2x1x128xf32>
    %cst_78 = arith.constant dense<0.000000e+00> : vector<1x128xf32>
    %202 = vector.multi_reduction <add>, %201, %cst_78 [0] : vector<2x1x128xf32> to vector<1x128xf32>
    %203 = vector.shape_cast %202 : vector<1x128xf32> to vector<1x1x128xf32>
    %cst_79 = arith.constant 2.000000e+00 : f32
    %204 = vector.broadcast %cst_79 : f32 to vector<1x1x128xf32>
    %205 = arith.divf %203, %204 : vector<1x1x128xf32>
    %cst_80 = arith.constant 9.99999974E-6 : f32
    %206 = vector.broadcast %cst_80 : f32 to vector<1x1x128xf32>
    %207 = arith.addf %205, %206 : vector<1x1x128xf32>
    %208 = math.rsqrt %207 : vector<1x1x128xf32>
    %209 = vector.broadcast %208 : vector<1x1x128xf32> to vector<2x1x128xf32>
    %210 = arith.mulf %199, %209 : vector<2x1x128xf32>
    %211 = vector.broadcast %210 : vector<2x1x128xf32> to vector<2x16x128xf32>
    %212 = arith.mulf %191, %211 : vector<2x16x128xf32>
    %cst_81 = arith.constant 0.000000e+00 : f32
    %213 = vector.broadcast %cst_81 : f32 to vector<2x16x128xf32>
    %214 = arith.maximumf %212, %213 : vector<2x16x128xf32>
    %215 = arith.addf %214, %146 : vector<2x16x128xf32>
    %c3 = arith.constant 3 : index
    %c0_82 = arith.constant 0 : index
    %c0_83 = arith.constant 0 : index
    %216 = vector.load %arg3[%c3, %c0_82, %c0_83] : memref<5x128x128xf32, #tpu.memory_space<vmem>>, vector<1x128x128xf32>
    %217 = vector.shape_cast %216 : vector<1x128x128xf32> to vector<128x128xf32>
    %218 = vector.shape_cast %215 : vector<2x16x128xf32> to vector<32x128xf32>
    %cst_84 = arith.constant dense<0.000000e+00> : vector<32x128xf32>
    %219 = tpu.matmul %218, %217, %cst_84 {dimension_numbers = #tpu.dot_dimension_numbers<[1], [0], [0], [1], [0, 0, 1, 1], [], []>, precision = #tpu.contract_precision<fp32>} : vector<32x128xf32>, vector<128x128xf32>, vector<32x128xf32> -> vector<32x128xf32>
    %220 = vector.shape_cast %219 : vector<32x128xf32> to vector<2x16x128xf32>
    %cst_85 = arith.constant dense<0.000000e+00> : vector<2x128xf32>
    %221 = vector.multi_reduction <add>, %220, %cst_85 [1] : vector<2x16x128xf32> to vector<2x128xf32>
    %222 = vector.shape_cast %221 : vector<2x128xf32> to vector<2x1x128xf32>
    %cst_86 = arith.constant 1.600000e+01 : f32
    %223 = vector.broadcast %cst_86 : f32 to vector<2x1x128xf32>
    %224 = arith.divf %222, %223 : vector<2x1x128xf32>
    %225 = vector.broadcast %224 : vector<2x1x128xf32> to vector<2x16x128xf32>
    %226 = arith.subf %220, %225 : vector<2x16x128xf32>
    %227 = arith.mulf %226, %226 : vector<2x16x128xf32>
    %cst_87 = arith.constant dense<0.000000e+00> : vector<2x128xf32>
    %228 = vector.multi_reduction <add>, %227, %cst_87 [1] : vector<2x16x128xf32> to vector<2x128xf32>
    %229 = vector.shape_cast %228 : vector<2x128xf32> to vector<2x1x128xf32>
    %cst_88 = arith.constant 1.600000e+01 : f32
    %230 = vector.broadcast %cst_88 : f32 to vector<2x1x128xf32>
    %231 = arith.divf %229, %230 : vector<2x1x128xf32>
    %cst_89 = arith.constant 9.99999974E-6 : f32
    %232 = vector.broadcast %cst_89 : f32 to vector<2x1x128xf32>
    %233 = arith.addf %231, %232 : vector<2x1x128xf32>
    %234 = math.rsqrt %233 : vector<2x1x128xf32>
    %235 = arith.mulf %231, %234 : vector<2x1x128xf32>
    %236 = arith.mulf %235, %234 : vector<2x1x128xf32>
    %cst_90 = arith.constant dense<0.000000e+00> : vector<1x128xf32>
    %237 = vector.multi_reduction <add>, %236, %cst_90 [0] : vector<2x1x128xf32> to vector<1x128xf32>
    %238 = vector.shape_cast %237 : vector<1x128xf32> to vector<1x1x128xf32>
    %cst_91 = arith.constant 2.000000e+00 : f32
    %239 = vector.broadcast %cst_91 : f32 to vector<1x1x128xf32>
    %240 = arith.divf %238, %239 : vector<1x1x128xf32>
    %cst_92 = arith.constant 9.99999974E-6 : f32
    %241 = vector.broadcast %cst_92 : f32 to vector<1x1x128xf32>
    %242 = arith.addf %240, %241 : vector<1x1x128xf32>
    %243 = math.rsqrt %242 : vector<1x1x128xf32>
    %244 = vector.broadcast %243 : vector<1x1x128xf32> to vector<2x1x128xf32>
    %245 = arith.mulf %234, %244 : vector<2x1x128xf32>
    %246 = vector.broadcast %245 : vector<2x1x128xf32> to vector<2x16x128xf32>
    %247 = arith.mulf %226, %246 : vector<2x16x128xf32>
    %cst_93 = arith.constant 0.000000e+00 : f32
    %248 = vector.broadcast %cst_93 : f32 to vector<2x16x128xf32>
    %249 = arith.maximumf %247, %248 : vector<2x16x128xf32>
    %c3_94 = arith.constant 3 : index
    %c0_95 = arith.constant 0 : index
    %c0_96 = arith.constant 0 : index
    %250 = vector.load %arg4[%c3_94, %c0_95, %c0_96] : memref<5x128x128xf32, #tpu.memory_space<vmem>>, vector<1x128x128xf32>
    %251 = vector.shape_cast %250 : vector<1x128x128xf32> to vector<128x128xf32>
    %252 = vector.shape_cast %249 : vector<2x16x128xf32> to vector<32x128xf32>
    %cst_97 = arith.constant dense<0.000000e+00> : vector<32x128xf32>
    %253 = tpu.matmul %252, %251, %cst_97 {dimension_numbers = #tpu.dot_dimension_numbers<[1], [0], [0], [1], [0, 0, 1, 1], [], []>, precision = #tpu.contract_precision<fp32>} : vector<32x128xf32>, vector<128x128xf32>, vector<32x128xf32> -> vector<32x128xf32>
    %254 = vector.shape_cast %253 : vector<32x128xf32> to vector<2x16x128xf32>
    %cst_98 = arith.constant dense<0.000000e+00> : vector<2x128xf32>
    %255 = vector.multi_reduction <add>, %254, %cst_98 [1] : vector<2x16x128xf32> to vector<2x128xf32>
    %256 = vector.shape_cast %255 : vector<2x128xf32> to vector<2x1x128xf32>
    %cst_99 = arith.constant 1.600000e+01 : f32
    %257 = vector.broadcast %cst_99 : f32 to vector<2x1x128xf32>
    %258 = arith.divf %256, %257 : vector<2x1x128xf32>
    %259 = vector.broadcast %258 : vector<2x1x128xf32> to vector<2x16x128xf32>
    %260 = arith.subf %254, %259 : vector<2x16x128xf32>
    %261 = arith.mulf %260, %260 : vector<2x16x128xf32>
    %cst_100 = arith.constant dense<0.000000e+00> : vector<2x128xf32>
    %262 = vector.multi_reduction <add>, %261, %cst_100 [1] : vector<2x16x128xf32> to vector<2x128xf32>
    %263 = vector.shape_cast %262 : vector<2x128xf32> to vector<2x1x128xf32>
    %cst_101 = arith.constant 1.600000e+01 : f32
    %264 = vector.broadcast %cst_101 : f32 to vector<2x1x128xf32>
    %265 = arith.divf %263, %264 : vector<2x1x128xf32>
    %cst_102 = arith.constant 9.99999974E-6 : f32
    %266 = vector.broadcast %cst_102 : f32 to vector<2x1x128xf32>
    %267 = arith.addf %265, %266 : vector<2x1x128xf32>
    %268 = math.rsqrt %267 : vector<2x1x128xf32>
    %269 = arith.mulf %265, %268 : vector<2x1x128xf32>
    %270 = arith.mulf %269, %268 : vector<2x1x128xf32>
    %cst_103 = arith.constant dense<0.000000e+00> : vector<1x128xf32>
    %271 = vector.multi_reduction <add>, %270, %cst_103 [0] : vector<2x1x128xf32> to vector<1x128xf32>
    %272 = vector.shape_cast %271 : vector<1x128xf32> to vector<1x1x128xf32>
    %cst_104 = arith.constant 2.000000e+00 : f32
    %273 = vector.broadcast %cst_104 : f32 to vector<1x1x128xf32>
    %274 = arith.divf %272, %273 : vector<1x1x128xf32>
    %cst_105 = arith.constant 9.99999974E-6 : f32
    %275 = vector.broadcast %cst_105 : f32 to vector<1x1x128xf32>
    %276 = arith.addf %274, %275 : vector<1x1x128xf32>
    %277 = math.rsqrt %276 : vector<1x1x128xf32>
    %278 = vector.broadcast %277 : vector<1x1x128xf32> to vector<2x1x128xf32>
    %279 = arith.mulf %268, %278 : vector<2x1x128xf32>
    %280 = vector.broadcast %279 : vector<2x1x128xf32> to vector<2x16x128xf32>
    %281 = arith.mulf %260, %280 : vector<2x16x128xf32>
    %cst_106 = arith.constant 0.000000e+00 : f32
    %282 = vector.broadcast %cst_106 : f32 to vector<2x16x128xf32>
    %283 = arith.maximumf %281, %282 : vector<2x16x128xf32>
    %284 = arith.addf %283, %215 : vector<2x16x128xf32>
    %c4 = arith.constant 4 : index
    %c0_107 = arith.constant 0 : index
    %c0_108 = arith.constant 0 : index
    %285 = vector.load %arg3[%c4, %c0_107, %c0_108] : memref<5x128x128xf32, #tpu.memory_space<vmem>>, vector<1x128x128xf32>
    %286 = vector.shape_cast %285 : vector<1x128x128xf32> to vector<128x128xf32>
    %287 = vector.shape_cast %284 : vector<2x16x128xf32> to vector<32x128xf32>
    %cst_109 = arith.constant dense<0.000000e+00> : vector<32x128xf32>
    %288 = tpu.matmul %287, %286, %cst_109 {dimension_numbers = #tpu.dot_dimension_numbers<[1], [0], [0], [1], [0, 0, 1, 1], [], []>, precision = #tpu.contract_precision<fp32>} : vector<32x128xf32>, vector<128x128xf32>, vector<32x128xf32> -> vector<32x128xf32>
    %289 = vector.shape_cast %288 : vector<32x128xf32> to vector<2x16x128xf32>
    %cst_110 = arith.constant dense<0.000000e+00> : vector<2x128xf32>
    %290 = vector.multi_reduction <add>, %289, %cst_110 [1] : vector<2x16x128xf32> to vector<2x128xf32>
    %291 = vector.shape_cast %290 : vector<2x128xf32> to vector<2x1x128xf32>
    %cst_111 = arith.constant 1.600000e+01 : f32
    %292 = vector.broadcast %cst_111 : f32 to vector<2x1x128xf32>
    %293 = arith.divf %291, %292 : vector<2x1x128xf32>
    %294 = vector.broadcast %293 : vector<2x1x128xf32> to vector<2x16x128xf32>
    %295 = arith.subf %289, %294 : vector<2x16x128xf32>
    %296 = arith.mulf %295, %295 : vector<2x16x128xf32>
    %cst_112 = arith.constant dense<0.000000e+00> : vector<2x128xf32>
    %297 = vector.multi_reduction <add>, %296, %cst_112 [1] : vector<2x16x128xf32> to vector<2x128xf32>
    %298 = vector.shape_cast %297 : vector<2x128xf32> to vector<2x1x128xf32>
    %cst_113 = arith.constant 1.600000e+01 : f32
    %299 = vector.broadcast %cst_113 : f32 to vector<2x1x128xf32>
    %300 = arith.divf %298, %299 : vector<2x1x128xf32>
    %cst_114 = arith.constant 9.99999974E-6 : f32
    %301 = vector.broadcast %cst_114 : f32 to vector<2x1x128xf32>
    %302 = arith.addf %300, %301 : vector<2x1x128xf32>
    %303 = math.rsqrt %302 : vector<2x1x128xf32>
    %304 = arith.mulf %300, %303 : vector<2x1x128xf32>
    %305 = arith.mulf %304, %303 : vector<2x1x128xf32>
    %cst_115 = arith.constant dense<0.000000e+00> : vector<1x128xf32>
    %306 = vector.multi_reduction <add>, %305, %cst_115 [0] : vector<2x1x128xf32> to vector<1x128xf32>
    %307 = vector.shape_cast %306 : vector<1x128xf32> to vector<1x1x128xf32>
    %cst_116 = arith.constant 2.000000e+00 : f32
    %308 = vector.broadcast %cst_116 : f32 to vector<1x1x128xf32>
    %309 = arith.divf %307, %308 : vector<1x1x128xf32>
    %cst_117 = arith.constant 9.99999974E-6 : f32
    %310 = vector.broadcast %cst_117 : f32 to vector<1x1x128xf32>
    %311 = arith.addf %309, %310 : vector<1x1x128xf32>
    %312 = math.rsqrt %311 : vector<1x1x128xf32>
    %313 = vector.broadcast %312 : vector<1x1x128xf32> to vector<2x1x128xf32>
    %314 = arith.mulf %303, %313 : vector<2x1x128xf32>
    %315 = vector.broadcast %314 : vector<2x1x128xf32> to vector<2x16x128xf32>
    %316 = arith.mulf %295, %315 : vector<2x16x128xf32>
    %cst_118 = arith.constant 0.000000e+00 : f32
    %317 = vector.broadcast %cst_118 : f32 to vector<2x16x128xf32>
    %318 = arith.maximumf %316, %317 : vector<2x16x128xf32>
    %c4_119 = arith.constant 4 : index
    %c0_120 = arith.constant 0 : index
    %c0_121 = arith.constant 0 : index
    %319 = vector.load %arg4[%c4_119, %c0_120, %c0_121] : memref<5x128x128xf32, #tpu.memory_space<vmem>>, vector<1x128x128xf32>
    %320 = vector.shape_cast %319 : vector<1x128x128xf32> to vector<128x128xf32>
    %321 = vector.shape_cast %318 : vector<2x16x128xf32> to vector<32x128xf32>
    %cst_122 = arith.constant dense<0.000000e+00> : vector<32x128xf32>
    %322 = tpu.matmul %321, %320, %cst_122 {dimension_numbers = #tpu.dot_dimension_numbers<[1], [0], [0], [1], [0, 0, 1, 1], [], []>, precision = #tpu.contract_precision<fp32>} : vector<32x128xf32>, vector<128x128xf32>, vector<32x128xf32> -> vector<32x128xf32>
    %323 = vector.shape_cast %322 : vector<32x128xf32> to vector<2x16x128xf32>
    %cst_123 = arith.constant dense<0.000000e+00> : vector<2x128xf32>
    %324 = vector.multi_reduction <add>, %323, %cst_123 [1] : vector<2x16x128xf32> to vector<2x128xf32>
    %325 = vector.shape_cast %324 : vector<2x128xf32> to vector<2x1x128xf32>
    %cst_124 = arith.constant 1.600000e+01 : f32
    %326 = vector.broadcast %cst_124 : f32 to vector<2x1x128xf32>
    %327 = arith.divf %325, %326 : vector<2x1x128xf32>
    %328 = vector.broadcast %327 : vector<2x1x128xf32> to vector<2x16x128xf32>
    %329 = arith.subf %323, %328 : vector<2x16x128xf32>
    %330 = arith.mulf %329, %329 : vector<2x16x128xf32>
    %cst_125 = arith.constant dense<0.000000e+00> : vector<2x128xf32>
    %331 = vector.multi_reduction <add>, %330, %cst_125 [1] : vector<2x16x128xf32> to vector<2x128xf32>
    %332 = vector.shape_cast %331 : vector<2x128xf32> to vector<2x1x128xf32>
    %cst_126 = arith.constant 1.600000e+01 : f32
    %333 = vector.broadcast %cst_126 : f32 to vector<2x1x128xf32>
    %334 = arith.divf %332, %333 : vector<2x1x128xf32>
    %cst_127 = arith.constant 9.99999974E-6 : f32
    %335 = vector.broadcast %cst_127 : f32 to vector<2x1x128xf32>
    %336 = arith.addf %334, %335 : vector<2x1x128xf32>
    %337 = math.rsqrt %336 : vector<2x1x128xf32>
    %338 = arith.mulf %334, %337 : vector<2x1x128xf32>
    %339 = arith.mulf %338, %337 : vector<2x1x128xf32>
    %cst_128 = arith.constant dense<0.000000e+00> : vector<1x128xf32>
    %340 = vector.multi_reduction <add>, %339, %cst_128 [0] : vector<2x1x128xf32> to vector<1x128xf32>
    %341 = vector.shape_cast %340 : vector<1x128xf32> to vector<1x1x128xf32>
    %cst_129 = arith.constant 2.000000e+00 : f32
    %342 = vector.broadcast %cst_129 : f32 to vector<1x1x128xf32>
    %343 = arith.divf %341, %342 : vector<1x1x128xf32>
    %cst_130 = arith.constant 9.99999974E-6 : f32
    %344 = vector.broadcast %cst_130 : f32 to vector<1x1x128xf32>
    %345 = arith.addf %343, %344 : vector<1x1x128xf32>
    %346 = math.rsqrt %345 : vector<1x1x128xf32>
    %347 = vector.broadcast %346 : vector<1x1x128xf32> to vector<2x1x128xf32>
    %348 = arith.mulf %337, %347 : vector<2x1x128xf32>
    %349 = vector.broadcast %348 : vector<2x1x128xf32> to vector<2x16x128xf32>
    %350 = arith.mulf %329, %349 : vector<2x16x128xf32>
    %cst_131 = arith.constant 0.000000e+00 : f32
    %351 = vector.broadcast %cst_131 : f32 to vector<2x16x128xf32>
    %352 = arith.maximumf %350, %351 : vector<2x16x128xf32>
    %353 = arith.addf %352, %284 : vector<2x16x128xf32>
    %c0_132 = arith.constant 0 : index
    %c0_133 = arith.constant 0 : index
    %354 = vector.load %arg5[%c0_132, %c0_133] : memref<1x128xf32, #tpu.memory_space<vmem>>, vector<1x128xf32>
    %355 = vector.shape_cast %354 : vector<1x128xf32> to vector<1x1x128xf32>
    %356 = vector.broadcast %355 : vector<1x1x128xf32> to vector<2x16x128xf32>
    %357 = arith.mulf %353, %356 : vector<2x16x128xf32>
    %cst_134 = arith.constant dense<0.000000e+00> : vector<2x16xf32>
    %358 = vector.multi_reduction <add>, %357, %cst_134 [2] : vector<2x16x128xf32> to vector<2x16xf32>
    %c0_135 = arith.constant 0 : index
    %c0_136 = arith.constant 0 : index
    %359 = vector.load %arg6[%c0_135, %c0_136] : memref<1x1xf32, #tpu.memory_space<vmem>>, vector<1x1xf32>
    %360 = vector.broadcast %359 : vector<1x1xf32> to vector<2x16xf32>
    %361 = arith.addf %358, %360 : vector<2x16xf32>
    %362 = math.tanh %361 : vector<2x16xf32>
    %cst_137 = arith.constant 0.000000e+00 : f32
    %363 = vector.broadcast %cst_137 : f32 to vector<2x16xf32>
    %364 = arith.maximumf %362, %363 : vector<2x16xf32>
    %c0_138 = arith.constant 0 : index
    %c0_139 = arith.constant 0 : index
    %365 = vector.load %arg7[%c0_138, %c0_139] : memref<2x16xf32, #tpu.memory_space<vmem>>, vector<2x16xf32>
    tpu.vector_store %arg7[%c0_138, %c0_139], %364 {strides = array<i32>} : memref<2x16xf32, #tpu.memory_space<vmem>>, vector<2x16xf32>,
    return
  }
}

</mosaic_0001>

<llo_original>
// kernel: tpu_custom_call.1
$region0: #{tpu_custom_call.1}
  #allocation0 [shape = 'u32[]', space=smem, size = 0x4, offset = 0x4, fixed_abs, tag = 'smem constant byte address 0x4 - core index']
  #allocation1 [shape = 'u32[144,128]{1,0:T(1,128)}', space=vmem, size = 0x12000, scoped, tag = 'internal scratch']
  #allocation2 [shape = 'f32[1,1]{1,0:T(1,128)S(1)}', space=vmem, size = 0x200, scoped, tag = 'scoped memory for tpu_custom_call.1']
  %s0 = inlined_call_operand.hbm [shape: f32[2,16,16], index: 0, kind: input, shape index: {}]
  %s1 = inlined_call_operand.hbm [shape: f32[16,128], index: 1, kind: input, shape index: {}]
  %s2 = inlined_call_operand.vmem [shape: f32[1,128], index: 2, kind: input, shape index: {}]
  %s3 = inlined_call_operand.hbm [shape: f32[5,128,128], index: 3, kind: input, shape index: {}]
  %s4 = inlined_call_operand.hbm [shape: f32[5,128,128], index: 4, kind: input, shape index: {}]
  %s5 = inlined_call_operand.vmem [shape: f32[1,128], index: 5, kind: input, shape index: {}]
  %s6 = inlined_call_operand.<no memory space> [shape: f32[1,1], index: 6, kind: input, shape index: {}]
  %s7 = inlined_call_operand.hbm [shape: f32[2,16], index: 7, kind: output, shape index: {}]
  %s8 = sld [smem:[#allocation0]]
  $region54: #{tpu_custom_call.1} parent=0
    _
  %s10 = ssub.s32 1, %s8
  %s11 = scalar_select 0, %s10, %s8
  %v12 = vstv %s6
  %13 = vst [vmem:[#allocation2] sm:$0x1] %v12
  $region1: #{tpu_custom_call.1} parent=0
    #allocation3 [shape = 'u8[16384]{0}', space=vmem, size = 0x4000, scoped, tag = 'input window, operand 0, single buffered']
    #allocation4 [shape = 's32[1]{0}', space=sflag, size = 0x4, scoped, tag = 'scoped memory for tpu_custom_call.1']
    #allocation5 [shape = 's32[1]{0}', space=sflag, size = 0x4, scoped, tag = 'scoped memory for tpu_custom_call.1']
    #allocation6 [shape = 'u8[8192]{0}', space=vmem, size = 0x2000, scoped, tag = 'input window, operand 1, single buffered']
    #allocation7 [shape = 's32[1]{0}', space=sflag, size = 0x4, scoped, tag = 'scoped memory for tpu_custom_call.1']
    #allocation8 [shape = 'u8[327680]{0}', space=vmem, size = 0x50000, scoped, tag = 'input window, operand 3, single buffered']
    #allocation9 [shape = 'u8[327680]{0}', space=vmem, size = 0x50000, scoped, tag = 'input window, operand 4, single buffered']
    #allocation10 [shape = 's32[1]{0}', space=sflag, size = 0x4, scoped, tag = 'scoped memory for tpu_custom_call.1']
    #allocation11 [shape = 'u8[1024]{0}', space=vmem, size = 0x400, scoped, tag = 'output window, operand 0, single buffered']
    %14 = vsyncpa [#allocation4], 0
    %15 = vsyncpa [#allocation7], 0
    %16 = vsyncpa [#allocation10], 0
    %17 = vsyncpa [#allocation5], 0
    // Predicated region
    $region2: #{tpu_custom_call.1} parent=1 // pred_check
      _
    $region3: #{tpu_custom_call.1} parent=1 // pred_check_branch
      %19 = sbr.rel (0) target = $region5
    $region4: #{tpu_custom_call.1} parent=1 // pred_region
      %s21 = ssub.s32 512, 512
      %22 = vsyncadd [#allocation4], %s21
      %s23 = sshll.u32 [#allocation3], 4
      %s24 = int_to_ptr.vmem [resolvable:$true] %s23
      %29 = dma.hbm_to_vmem [thread:$0]  %s0, 512, %s24, [#allocation4], 128, 128, 8
    $region5: #{tpu_custom_call.1} parent=1 // pred_fallthru
      _
    // Predicated region
    $region6: #{tpu_custom_call.1} parent=1 // pred_check
      _
    $region7: #{tpu_custom_call.1} parent=1 // pred_check_branch
      %31 = sbr.rel (0) target = $region9
    $region8: #{tpu_custom_call.1} parent=1 // pred_region
      %s33 = ssub.s32 256, 256
      %34 = vsyncadd [#allocation7], %s33
      %s35 = sshll.u32 [#allocation6], 4
      %s36 = int_to_ptr.vmem [resolvable:$true] %s35
      %41 = dma.hbm_to_vmem [thread:$0]  %s1, 256, %s36, [#allocation7], 128, 128, 8
    $region9: #{tpu_custom_call.1} parent=1 // pred_fallthru
      _
    // Predicated region
    $region10: #{tpu_custom_call.1} parent=1 // pred_check
      _
    $region11: #{tpu_custom_call.1} parent=1 // pred_check_branch
      %43 = sbr.rel (0) target = $region13
    $region12: #{tpu_custom_call.1} parent=1 // pred_region
      _
    $region13: #{tpu_custom_call.1} parent=1 // pred_fallthru
      _
    // Predicated region
    $region14: #{tpu_custom_call.1} parent=1 // pred_check
      _
    $region15: #{tpu_custom_call.1} parent=1 // pred_check_branch
      %45 = sbr.rel (0) target = $region17
    $region16: #{tpu_custom_call.1} parent=1 // pred_region
      %s47 = ssub.s32 10240, 10240
      %48 = vsyncadd [#allocation7], %s47
      %s49 = sshll.u32 [#allocation8], 4
      %s50 = int_to_ptr.vmem [resolvable:$true] %s49
      %55 = dma.hbm_to_vmem [thread:$0]  %s3, 10240, %s50, [#allocation7], 128, 128, 8
    $region17: #{tpu_custom_call.1} parent=1 // pred_fallthru
      _
    // Predicated region
    $region18: #{tpu_custom_call.1} parent=1 // pred_check
      _
    $region19: #{tpu_custom_call.1} parent=1 // pred_check_branch
      %57 = sbr.rel (0) target = $region21
    $region20: #{tpu_custom_call.1} parent=1 // pred_region
      %s59 = ssub.s32 10240, 10240
      %60 = vsyncadd [#allocation10], %s59
      %s61 = sshll.u32 [#allocation9], 4
      %s62 = int_to_ptr.vmem [resolvable:$true] %s61
      %67 = dma.hbm_to_vmem [thread:$0]  %s4, 10240, %s62, [#allocation10], 128, 128, 8
    $region21: #{tpu_custom_call.1} parent=1 // pred_fallthru
      _
    // Predicated region
    $region22: #{tpu_custom_call.1} parent=1 // pred_check
      _
    $region23: #{tpu_custom_call.1} parent=1 // pred_check_branch
      %69 = sbr.rel (0) target = $region25
    $region24: #{tpu_custom_call.1} parent=1 // pred_region
      _
    $region25: #{tpu_custom_call.1} parent=1 // pred_fallthru
      _
    // Predicated region
    $region26: #{tpu_custom_call.1} parent=1 // pred_check
      _
    $region27: #{tpu_custom_call.1} parent=1 // pred_check_branch
      %71 = sbr.rel (0) target = $region29
    $region28: #{tpu_custom_call.1} parent=1 // pred_region
      _
    $region29: #{tpu_custom_call.1} parent=1 // pred_fallthru
      _
    // Predicated region
    $region30: #{tpu_custom_call.1} parent=1 // pred_check
      _
    $region31: #{tpu_custom_call.1} parent=1 // pred_check_branch
      %73 = sbr.rel (0) target = $region33
    $region32: #{tpu_custom_call.1} parent=1 // pred_region
      %74 = dma.done [#allocation4], 512
    $region33: #{tpu_custom_call.1} parent=1 // pred_fallthru
      _
    // Predicated region
    $region34: #{tpu_custom_call.1} parent=1 // pred_check
      _
    $region35: #{tpu_custom_call.1} parent=1 // pred_check_branch
      %76 = sbr.rel (0) target = $region37
    $region36: #{tpu_custom_call.1} parent=1 // pred_region
      %77 = dma.done [#allocation7], 256
    $region37: #{tpu_custom_call.1} parent=1 // pred_fallthru
      _
    // Predicated region
    $region38: #{tpu_custom_call.1} parent=1 // pred_check
      _
    $region39: #{tpu_custom_call.1} parent=1 // pred_check_branch
      %79 = sbr.rel (0) target = $region41
    $region40: #{tpu_custom_call.1} parent=1 // pred_region
      %80 = dma.done [#allocation7], 10240
    $region41: #{tpu_custom_call.1} parent=1 // pred_fallthru
      _
    // Predicated region
    $region42: #{tpu_custom_call.1} parent=1 // pred_check
      _
    $region43: #{tpu_custom_call.1} parent=1 // pred_check_branch
      %82 = sbr.rel (0) target = $region45
    $region44: #{tpu_custom_call.1} parent=1 // pred_region
      %83 = dma.done [#allocation10], 10240
    $region45: #{tpu_custom_call.1} parent=1 // pred_fallthru
      _
    %v84 = vld [vmem:[#allocation3] sm:$0xff]
    %v85 = vld [vmem:[#allocation3 + $0x8] sm:$0xff]
    %v86 = vld [vmem:[#allocation3 + $0x10] sm:$0xff]
    %v87 = vld [vmem:[#allocation3 + $0x18] sm:$0xff]
    %v88 = vld [vmem:[#allocation6] sm:$0xff]
    %v89 = vld [vmem:[#allocation6 + $0x8] sm:$0xff]
    %vm90 = vcmask 130048
    %v92 = vsel %vm90, %v84, 0
    %v95 = vsel %vm90, %v85, 0
    %v98 = vsel %vm90, %v86, 0
    %v101 = vsel %vm90, %v87, 0
    %103 = vmatprep.subr.mxu0 0.0
    %104 = vmatpush1.msra.mxu0 0.0
    %105 = vmatprep.subr.mxu0 0.0
    %106 = vmatpush1.msra.mxu0 0.0
    %107 = vmatprep.subr.mxu0 0.0
    %108 = vmatpush1.msra.mxu0 0.0
    %109 = vmatprep.subr.mxu0 0.0
    %110 = vmatpush1.msra.mxu0 0.0
    %111 = vmatprep.subr.mxu0 0.0
    %112 = vmatpush1.msra.mxu0 0.0
    %113 = vmatprep.subr.mxu0 0.0
    %114 = vmatpush1.msra.mxu0 0.0
    %115 = vmatprep.subr.mxu0 0.0
    %116 = vmatpush1.msra.mxu0 0.0
    %117 = vmatprep.subr.mxu0 0.0
    %118 = vmatpush1.msra.mxu0 0.0
    %119 = vmatprep.subr.mxu0 0.0
    %120 = vmatpush1.msra.mxu0 0.0
    %121 = vmatprep.subr.mxu0 0.0
    %122 = vmatpush1.msra.mxu0 0.0
    %123 = vmatprep.subr.mxu0 0.0
    %124 = vmatpush1.msra.mxu0 0.0
    %125 = vmatprep.subr.mxu0 0.0
    %126 = vmatpush1.msra.mxu0 0.0
    %127 = vmatprep.subr.mxu0 0.0
    %128 = vmatpush1.msra.mxu0 0.0
    %129 = vmatprep.subr.mxu0 0.0
    %130 = vmatpush1.msra.mxu0 0.0
    %131 = vmatprep.subr.mxu0 0.0
    %v132 = vand.u32 %v89, 4294901760
    %133 = vmatpush1.msra.mxu0 %v132
    %134 = vmatprep.subr.mxu0 0.0
    %v135 = vand.u32 %v88, 4294901760
    %136 = vmatpush1.msra.mxu0 %v135
    %137 = vmatprep.subr.mxu0 0.0
    %138 = vmatpush2.msra.mxu0 0.0
    %139 = vmatprep.subr.mxu0 0.0
    %140 = vmatpush2.msra.mxu0 0.0
    %141 = vmatprep.subr.mxu0 0.0
    %142 = vmatpush2.msra.mxu0 0.0
    %143 = vmatprep.subr.mxu0 0.0
    %144 = vmatpush2.msra.mxu0 0.0
    %145 = vmatprep.subr.mxu0 0.0
    %146 = vmatpush2.msra.mxu0 0.0
    %147 = vmatprep.subr.mxu0 0.0
    %148 = vmatpush2.msra.mxu0 0.0
    %149 = vmatprep.subr.mxu0 0.0
    %150 = vmatpush2.msra.mxu0 0.0
    %151 = vmatprep.subr.mxu0 0.0
    %152 = vmatpush2.msra.mxu0 0.0
    %153 = vmatprep.subr.mxu0 0.0
    %154 = vmatpush2.msra.mxu0 0.0
    %155 = vmatprep.subr.mxu0 0.0
    %156 = vmatpush2.msra.mxu0 0.0
    %157 = vmatprep.subr.mxu0 0.0
    %158 = vmatpush2.msra.mxu0 0.0
    %159 = vmatprep.subr.mxu0 0.0
    %160 = vmatpush2.msra.mxu0 0.0
    %161 = vmatprep.subr.mxu0 0.0
    %162 = vmatpush2.msra.mxu0 0.0
    %163 = vmatprep.subr.mxu0 0.0
    %164 = vmatpush2.msra.mxu0 0.0
    %165 = vmatprep.subr.mxu0 0.0
    %166 = vmatpush2.msra.mxu0 0.0
    %167 = vmatprep.subr.mxu0 0.0
    %168 = vmatpush2.msra.mxu0 0.0
    %169 = vmatprep.mubr.f32.mxu0 0.0
    %v170 = vand.u32 %v92, 4294901760
    %v171 = vsub.f32 %v92, %v170
    %v172 = vand.u32 %v171, 4294901760
    %v173 = vsub.f32 %v171, %v172
    %v174 = vand.u32 %v173, 4294901760
    %175 = vmatmul.mubr.f32.gmra.mxu0 %v174
    %v176 = vpop.f32.mrf.mxu0
    %v177 = vadd.f32 0.0, %v176
    %v178 = vpop.f32.mrf.mxu0
    %179 = vmatprep.mubr.f32.mxu0 0.0
    %v180 = vand.u32 %v95, 4294901760
    %v181 = vsub.f32 %v95, %v180
    %v182 = vand.u32 %v181, 4294901760
    %v183 = vsub.f32 %v181, %v182
    %v184 = vand.u32 %v183, 4294901760
    %185 = vmatmul.mubr.f32.gmra.mxu0 %v184
    %v186 = vpop.f32.mrf.mxu0
    %v187 = vadd.f32 0.0, %v186
    %v188 = vpop.f32.mrf.mxu0
    %189 = vmatprep.mubr.f32.mxu0 0.0
    %v190 = vand.u32 %v98, 4294901760
    %v191 = vsub.f32 %v98, %v190
    %v192 = vand.u32 %v191, 4294901760
    %v193 = vsub.f32 %v191, %v192
    %v194 = vand.u32 %v193, 4294901760
    %195 = vmatmul.mubr.f32.gmra.mxu0 %v194
    %v196 = vpop.f32.mrf.mxu0
    %v197 = vadd.f32 0.0, %v196
    %v198 = vpop.f32.mrf.mxu0
    %199 = vmatprep.mubr.f32.mxu0 0.0
    %v200 = vand.u32 %v101, 4294901760
    %v201 = vsub.f32 %v101, %v200
    %v202 = vand.u32 %v201, 4294901760
    %v203 = vsub.f32 %v201, %v202
    %v204 = vand.u32 %v203, 4294901760
    %205 = vmatmul.mubr.f32.gmra.mxu0 %v204
    %v206 = vpop.f32.mrf.mxu0
    %v207 = vadd.f32 0.0, %v206
    %v208 = vpop.f32.mrf.mxu0
    %209 = vdwg.mxu0
    %210 = vmatprep.subr.mxu0 0.0
    %211 = vmatpush1.msra.mxu0 0.0
    %212 = vmatprep.subr.mxu0 0.0
    %213 = vmatpush1.msra.mxu0 0.0
    %214 = vmatprep.subr.mxu0 0.0
    %215 = vmatpush1.msra.mxu0 0.0
    %216 = vmatprep.subr.mxu0 0.0
    %217 = vmatpush1.msra.mxu0 0.0
    %218 = vmatprep.subr.mxu0 0.0
    %219 = vmatpush1.msra.mxu0 0.0
    %220 = vmatprep.subr.mxu0 0.0
    %221 = vmatpush1.msra.mxu0 0.0
    %222 = vmatprep.subr.mxu0 0.0
    %223 = vmatpush1.msra.mxu0 0.0
    %224 = vmatprep.subr.mxu0 0.0
    %225 = vmatpush1.msra.mxu0 0.0
    %226 = vmatprep.subr.mxu0 0.0
    %227 = vmatpush1.msra.mxu0 0.0
    %228 = vmatprep.subr.mxu0 0.0
    %229 = vmatpush1.msra.mxu0 0.0
    %230 = vmatprep.subr.mxu0 0.0
    %231 = vmatpush1.msra.mxu0 0.0
    %232 = vmatprep.subr.mxu0 0.0
    %233 = vmatpush1.msra.mxu0 0.0
    %234 = vmatprep.subr.mxu0 0.0
    %235 = vmatpush1.msra.mxu0 0.0
    %236 = vmatprep.subr.mxu0 0.0
    %237 = vmatpush1.msra.mxu0 0.0
    %238 = vmatprep.subr.mxu0 0.0
    %v239 = vand.u32 %v89, 4294901760
    %v240 = vsub.f32 %v89, %v239
    %v241 = vand.u32 %v240, 4294901760
    %v242 = vsub.f32 %v240, %v241
    %v243 = vand.u32 %v242, 4294901760
    %244 = vmatpush1.msra.mxu0 %v243
    %245 = vmatprep.subr.mxu0 0.0
    %v246 = vand.u32 %v88, 4294901760
    %v247 = vsub.f32 %v88, %v246
    %v248 = vand.u32 %v247, 4294901760
    %v249 = vsub.f32 %v247, %v248
    %v250 = vand.u32 %v249, 4294901760
    %251 = vmatpush1.msra.mxu0 %v250
    %252 = vmatprep.subr.mxu0 0.0
    %253 = vmatpush2.msra.mxu0 0.0
    %254 = vmatprep.subr.mxu0 0.0
    %255 = vmatpush2.msra.mxu0 0.0
    %256 = vmatprep.subr.mxu0 0.0
    %257 = vmatpush2.msra.mxu0 0.0
    %258 = vmatprep.subr.mxu0 0.0
    %259 = vmatpush2.msra.mxu0 0.0
    %260 = vmatprep.subr.mxu0 0.0
    %261 = vmatpush2.msra.mxu0 0.0
    %262 = vmatprep.subr.mxu0 0.0
    %263 = vmatpush2.msra.mxu0 0.0
    %264 = vmatprep.subr.mxu0 0.0
    %265 = vmatpush2.msra.mxu0 0.0
    %266 = vmatprep.subr.mxu0 0.0
    %267 = vmatpush2.msra.mxu0 0.0
    %268 = vmatprep.subr.mxu0 0.0
    %269 = vmatpush2.msra.mxu0 0.0
    %270 = vmatprep.subr.mxu0 0.0
    %271 = vmatpush2.msra.mxu0 0.0
    %272 = vmatprep.subr.mxu0 0.0
    %273 = vmatpush2.msra.mxu0 0.0
    %274 = vmatprep.subr.mxu0 0.0
    %275 = vmatpush2.msra.mxu0 0.0
    %276 = vmatprep.subr.mxu0 0.0
    %277 = vmatpush2.msra.mxu0 0.0
    %278 = vmatprep.subr.mxu0 0.0
    %279 = vmatpush2.msra.mxu0 0.0
    %280 = vmatprep.subr.mxu0 0.0
    %281 = vmatpush2.msra.mxu0 0.0
    %282 = vmatprep.subr.mxu0 0.0
    %283 = vmatpush2.msra.mxu0 0.0
    %284 = vmatprep.mubr.f32.mxu0 0.0
    %v285 = vand.u32 %v92, 4294901760
    %286 = vmatmul.mubr.f32.gmra.mxu0 %v285
    %v287 = vpop.f32.mrf.mxu0
    %v288 = vadd.f32 %v177, %v287
    %v289 = vpop.f32.mrf.mxu0
    %290 = vmatprep.mubr.f32.mxu0 0.0
    %v291 = vand.u32 %v95, 4294901760
    %292 = vmatmul.mubr.f32.gmra.mxu0 %v291
    %v293 = vpop.f32.mrf.mxu0
    %v294 = vadd.f32 %v187, %v293
    %v295 = vpop.f32.mrf.mxu0
    %296 = vmatprep.mubr.f32.mxu0 0.0
    %v297 = vand.u32 %v98, 4294901760
    %298 = vmatmul.mubr.f32.gmra.mxu0 %v297
    %v299 = vpop.f32.mrf.mxu0
    %v300 = vadd.f32 %v197, %v299
    %v301 = vpop.f32.mrf.mxu0
    %302 = vmatprep.mubr.f32.mxu0 0.0
    %v303 = vand.u32 %v101, 4294901760
    %304 = vmatmul.mubr.f32.gmra.mxu0 %v303
    %v305 = vpop.f32.mrf.mxu0
    %v306 = vadd.f32 %v207, %v305
    %v307 = vpop.f32.mrf.mxu0
    %308 = vdwg.mxu0
    %309 = vmatprep.subr.mxu0 0.0
    %310 = vmatpush1.msra.mxu0 0.0
    %311 = vmatprep.subr.mxu0 0.0
    %312 = vmatpush1.msra.mxu0 0.0
    %313 = vmatprep.subr.mxu0 0.0
    %314 = vmatpush1.msra.mxu0 0.0
    %315 = vmatprep.subr.mxu0 0.0
    %316 = vmatpush1.msra.mxu0 0.0
    %317 = vmatprep.subr.mxu0 0.0
    %318 = vmatpush1.msra.mxu0 0.0
    %319 = vmatprep.subr.mxu0 0.0
    %320 = vmatpush1.msra.mxu0 0.0
    %321 = vmatprep.subr.mxu0 0.0
    %322 = vmatpush1.msra.mxu0 0.0
    %323 = vmatprep.subr.mxu0 0.0
    %324 = vmatpush1.msra.mxu0 0.0
    %325 = vmatprep.subr.mxu0 0.0
    %326 = vmatpush1.msra.mxu0 0.0
    %327 = vmatprep.subr.mxu0 0.0
    %328 = vmatpush1.msra.mxu0 0.0
    %329 = vmatprep.subr.mxu0 0.0
    %330 = vmatpush1.msra.mxu0 0.0
    %331 = vmatprep.subr.mxu0 0.0
    %332 = vmatpush1.msra.mxu0 0.0
    %333 = vmatprep.subr.mxu0 0.0
    %334 = vmatpush1.msra.mxu0 0.0
    %335 = vmatprep.subr.mxu0 0.0
    %336 = vmatpush1.msra.mxu0 0.0
    %337 = vmatprep.subr.mxu0 0.0
    %v338 = vand.u32 %v89, 4294901760
    %v339 = vsub.f32 %v89, %v338
    %340 = vmatpush1.msra.mxu0 %v339
    %341 = vmatprep.subr.mxu0 0.0
    %v342 = vand.u32 %v88, 4294901760
    %v343 = vsub.f32 %v88, %v342
    %344 = vmatpush1.msra.mxu0 %v343
    %345 = vmatprep.subr.mxu0 0.0
    %346 = vmatpush2.msra.mxu0 0.0
    %347 = vmatprep.subr.mxu0 0.0
    %348 = vmatpush2.msra.mxu0 0.0
    %349 = vmatprep.subr.mxu0 0.0
    %350 = vmatpush2.msra.mxu0 0.0
    %351 = vmatprep.subr.mxu0 0.0
    %352 = vmatpush2.msra.mxu0 0.0
    %353 = vmatprep.subr.mxu0 0.0
    %354 = vmatpush2.msra.mxu0 0.0
    %355 = vmatprep.subr.mxu0 0.0
    %356 = vmatpush2.msra.mxu0 0.0
    %357 = vmatprep.subr.mxu0 0.0
    %358 = vmatpush2.msra.mxu0 0.0
    %359 = vmatprep.subr.mxu0 0.0
    %360 = vmatpush2.msra.mxu0 0.0
    %361 = vmatprep.subr.mxu0 0.0
    %362 = vmatpush2.msra.mxu0 0.0
    %363 = vmatprep.subr.mxu0 0.0
    %364 = vmatpush2.msra.mxu0 0.0
    %365 = vmatprep.subr.mxu0 0.0
    %366 = vmatpush2.msra.mxu0 0.0
    %367 = vmatprep.subr.mxu0 0.0
    %368 = vmatpush2.msra.mxu0 0.0
    %369 = vmatprep.subr.mxu0 0.0
    %370 = vmatpush2.msra.mxu0 0.0
    %371 = vmatprep.subr.mxu0 0.0
    %372 = vmatpush2.msra.mxu0 0.0
    %373 = vmatprep.subr.mxu0 0.0
    %374 = vmatpush2.msra.mxu0 0.0
    %375 = vmatprep.subr.mxu0 0.0
    %376 = vmatpush2.msra.mxu0 0.0
    %377 = vmatprep.mubr.f32.mxu0 0.0
    %v378 = vand.u32 %v92, 4294901760
    %v379 = vsub.f32 %v92, %v378
    %380 = vmatmul.mubr.f32.gmra.mxu0 %v379
    %v381 = vpop.f32.mrf.mxu0
    %v382 = vadd.f32 %v288, %v381
    %v383 = vpop.f32.mrf.mxu0
    %384 = vmatprep.mubr.f32.mxu0 0.0
    %v385 = vand.u32 %v95, 4294901760
    %v386 = vsub.f32 %v95, %v385
    %387 = vmatmul.mubr.f32.gmra.mxu0 %v386
    %v388 = vpop.f32.mrf.mxu0
    %v389 = vadd.f32 %v294, %v388
    %v390 = vpop.f32.mrf.mxu0
    %391 = vmatprep.mubr.f32.mxu0 0.0
    %v392 = vand.u32 %v98, 4294901760
    %v393 = vsub.f32 %v98, %v392
    %394 = vmatmul.mubr.f32.gmra.mxu0 %v393
    %v395 = vpop.f32.mrf.mxu0
    %v396 = vadd.f32 %v300, %v395
    %v397 = vpop.f32.mrf.mxu0
    %398 = vmatprep.mubr.f32.mxu0 0.0
    %v399 = vand.u32 %v101, 4294901760
    %v400 = vsub.f32 %v101, %v399
    %401 = vmatmul.mubr.f32.gmra.mxu0 %v400
    %v402 = vpop.f32.mrf.mxu0
    %v403 = vadd.f32 %v306, %v402
    %v404 = vpop.f32.mrf.mxu0
    %405 = vdwg.mxu0
    %406 = vmatprep.subr.mxu0 0.0
    %407 = vmatpush1.msra.mxu0 0.0
    %408 = vmatprep.subr.mxu0 0.0
    %409 = vmatpush1.msra.mxu0 0.0
    %410 = vmatprep.subr.mxu0 0.0
    %411 = vmatpush1.msra.mxu0 0.0
    %412 = vmatprep.subr.mxu0 0.0
    %413 = vmatpush1.msra.mxu0 0.0
    %414 = vmatprep.subr.mxu0 0.0
    %415 = vmatpush1.msra.mxu0 0.0
    %416 = vmatprep.subr.mxu0 0.0
    %417 = vmatpush1.msra.mxu0 0.0
    %418 = vmatprep.subr.mxu0 0.0
    %419 = vmatpush1.msra.mxu0 0.0
    %420 = vmatprep.subr.mxu0 0.0
    %421 = vmatpush1.msra.mxu0 0.0
    %422 = vmatprep.subr.mxu0 0.0
    %423 = vmatpush1.msra.mxu0 0.0
    %424 = vmatprep.subr.mxu0 0.0
    %425 = vmatpush1.msra.mxu0 0.0
    %426 = vmatprep.subr.mxu0 0.0
    %427 = vmatpush1.msra.mxu0 0.0
    %428 = vmatprep.subr.mxu0 0.0
    %429 = vmatpush1.msra.mxu0 0.0
    %430 = vmatprep.subr.mxu0 0.0
    %431 = vmatpush1.msra.mxu0 0.0
    %432 = vmatprep.subr.mxu0 0.0
    %433 = vmatpush1.msra.mxu0 0.0
    %434 = vmatprep.subr.mxu0 0.0
    %v435 = vand.u32 %v89, 4294901760
    %436 = vmatpush1.msra.mxu0 %v435
    %437 = vmatprep.subr.mxu0 0.0
    %v438 = vand.u32 %v88, 4294901760
    %439 = vmatpush1.msra.mxu0 %v438
    %440 = vmatprep.subr.mxu0 0.0
    %441 = vmatpush2.msra.mxu0 0.0
    %442 = vmatprep.subr.mxu0 0.0
    %443 = vmatpush2.msra.mxu0 0.0
    %444 = vmatprep.subr.mxu0 0.0
    %445 = vmatpush2.msra.mxu0 0.0
    %446 = vmatprep.subr.mxu0 0.0
    %447 = vmatpush2.msra.mxu0 0.0
    %448 = vmatprep.subr.mxu0 0.0
    %449 = vmatpush2.msra.mxu0 0.0
    %450 = vmatprep.subr.mxu0 0.0
    %451 = vmatpush2.msra.mxu0 0.0
    %452 = vmatprep.subr.mxu0 0.0
    %453 = vmatpush2.msra.mxu0 0.0
    %454 = vmatprep.subr.mxu0 0.0
    %455 = vmatpush2.msra.mxu0 0.0
    %456 = vmatprep.subr.mxu0 0.0
    %457 = vmatpush2.msra.mxu0 0.0
    %458 = vmatprep.subr.mxu0 0.0
    %459 = vmatpush2.msra.mxu0 0.0
    %460 = vmatprep.subr.mxu0 0.0
    %461 = vmatpush2.msra.mxu0 0.0
    %462 = vmatprep.subr.mxu0 0.0
    %463 = vmatpush2.msra.mxu0 0.0
    %464 = vmatprep.subr.mxu0 0.0
    %465 = vmatpush2.msra.mxu0 0.0
    %466 = vmatprep.subr.mxu0 0.0
    %467 = vmatpush2.msra.mxu0 0.0
    %468 = vmatprep.subr.mxu0 0.0
    %469 = vmatpush2.msra.mxu0 0.0
    %470 = vmatprep.subr.mxu0 0.0
    %471 = vmatpush2.msra.mxu0 0.0
    %472 = vmatprep.mubr.f32.mxu0 0.0
    %v473 = vand.u32 %v92, 4294901760
    %v474 = vsub.f32 %v92, %v473
    %v475 = vand.u32 %v474, 4294901760
    %476 = vmatmul.mubr.f32.gmra.mxu0 %v475
    %v477 = vpop.f32.mrf.mxu0
    %v478 = vadd.f32 %v382, %v477
    %v479 = vpop.f32.mrf.mxu0
    %480 = vmatprep.mubr.f32.mxu0 0.0
    %v481 = vand.u32 %v95, 4294901760
    %v482 = vsub.f32 %v95, %v481
    %v483 = vand.u32 %v482, 4294901760
    %484 = vmatmul.mubr.f32.gmra.mxu0 %v483
    %v485 = vpop.f32.mrf.mxu0
    %v486 = vadd.f32 %v389, %v485
    %v487 = vpop.f32.mrf.mxu0
    %488 = vmatprep.mubr.f32.mxu0 0.0
    %v489 = vand.u32 %v98, 4294901760
    %v490 = vsub.f32 %v98, %v489
    %v491 = vand.u32 %v490, 4294901760
    %492 = vmatmul.mubr.f32.gmra.mxu0 %v491
    %v493 = vpop.f32.mrf.mxu0
    %v494 = vadd.f32 %v396, %v493
    %v495 = vpop.f32.mrf.mxu0
    %496 = vmatprep.mubr.f32.mxu0 0.0
    %v497 = vand.u32 %v101, 4294901760
    %v498 = vsub.f32 %v101, %v497
    %v499 = vand.u32 %v498, 4294901760
    %500 = vmatmul.mubr.f32.gmra.mxu0 %v499
    %v501 = vpop.f32.mrf.mxu0
    %v502 = vadd.f32 %v403, %v501
    %v503 = vpop.f32.mrf.mxu0
    %504 = vdwg.mxu0
    %505 = vmatprep.subr.mxu0 0.0
    %506 = vmatpush1.msra.mxu0 0.0
    %507 = vmatprep.subr.mxu0 0.0
    %508 = vmatpush1.msra.mxu0 0.0
    %509 = vmatprep.subr.mxu0 0.0
    %510 = vmatpush1.msra.mxu0 0.0
    %511 = vmatprep.subr.mxu0 0.0
    %512 = vmatpush1.msra.mxu0 0.0
    %513 = vmatprep.subr.mxu0 0.0
    %514 = vmatpush1.msra.mxu0 0.0
    %515 = vmatprep.subr.mxu0 0.0
    %516 = vmatpush1.msra.mxu0 0.0
    %517 = vmatprep.subr.mxu0 0.0
    %518 = vmatpush1.msra.mxu0 0.0
    %519 = vmatprep.subr.mxu0 0.0
    %520 = vmatpush1.msra.mxu0 0.0
    %521 = vmatprep.subr.mxu0 0.0
    %522 = vmatpush1.msra.mxu0 0.0
    %523 = vmatprep.subr.mxu0 0.0
    %524 = vmatpush1.msra.mxu0 0.0
    %525 = vmatprep.subr.mxu0 0.0
    %526 = vmatpush1.msra.mxu0 0.0
    %527 = vmatprep.subr.mxu0 0.0
    %528 = vmatpush1.msra.mxu0 0.0
    %529 = vmatprep.subr.mxu0 0.0
    %530 = vmatpush1.msra.mxu0 0.0
    %531 = vmatprep.subr.mxu0 0.0
    %532 = vmatpush1.msra.mxu0 0.0
    %533 = vmatprep.subr.mxu0 0.0
    %v534 = vand.u32 %v89, 4294901760
    %v535 = vsub.f32 %v89, %v534
    %v536 = vand.u32 %v535, 4294901760
    %537 = vmatpush1.msra.mxu0 %v536
    %538 = vmatprep.subr.mxu0 0.0
    %v539 = vand.u32 %v88, 4294901760
    %v540 = vsub.f32 %v88, %v539
    %v541 = vand.u32 %v540, 4294901760
    %542 = vmatpush1.msra.mxu0 %v541
    %543 = vmatprep.subr.mxu0 0.0
    %544 = vmatpush2.msra.mxu0 0.0
    %545 = vmatprep.subr.mxu0 0.0
    %546 = vmatpush2.msra.mxu0 0.0
    %547 = vmatprep.subr.mxu0 0.0
    %548 = vmatpush2.msra.mxu0 0.0
    %549 = vmatprep.subr.mxu0 0.0
    %550 = vmatpush2.msra.mxu0 0.0
    %551 = vmatprep.subr.mxu0 0.0
    %552 = vmatpush2.msra.mxu0 0.0
    %553 = vmatprep.subr.mxu0 0.0
    %554 = vmatpush2.msra.mxu0 0.0
    %555 = vmatprep.subr.mxu0 0.0
    %556 = vmatpush2.msra.mxu0 0.0
    %557 = vmatprep.subr.mxu0 0.0
    %558 = vmatpush2.msra.mxu0 0.0
    %559 = vmatprep.subr.mxu0 0.0
    %560 = vmatpush2.msra.mxu0 0.0
    %561 = vmatprep.subr.mxu0 0.0
    %562 = vmatpush2.msra.mxu0 0.0
    %563 = vmatprep.subr.mxu0 0.0
    %564 = vmatpush2.msra.mxu0 0.0
    %565 = vmatprep.subr.mxu0 0.0
    %566 = vmatpush2.msra.mxu0 0.0
    %567 = vmatprep.subr.mxu0 0.0
    %568 = vmatpush2.msra.mxu0 0.0
    %569 = vmatprep.subr.mxu0 0.0
    %570 = vmatpush2.msra.mxu0 0.0
    %571 = vmatprep.subr.mxu0 0.0
    %572 = vmatpush2.msra.mxu0 0.0
    %573 = vmatprep.subr.mxu0 0.0
    %574 = vmatpush2.msra.mxu0 0.0
    %575 = vmatprep.mubr.f32.mxu0 0.0
    %v576 = vand.u32 %v92, 4294901760
    %577 = vmatmul.mubr.f32.gmra.mxu0 %v576
    %v578 = vpop.f32.mrf.mxu0
    %v579 = vadd.f32 %v478, %v578
    %v580 = vpop.f32.mrf.mxu0
    %581 = vmatprep.mubr.f32.mxu0 0.0
    %v582 = vand.u32 %v95, 4294901760
    %583 = vmatmul.mubr.f32.gmra.mxu0 %v582
    %v584 = vpop.f32.mrf.mxu0
    %v585 = vadd.f32 %v486, %v584
    %v586 = vpop.f32.mrf.mxu0
    %587 = vmatprep.mubr.f32.mxu0 0.0
    %v588 = vand.u32 %v98, 4294901760
    %589 = vmatmul.mubr.f32.gmra.mxu0 %v588
    %v590 = vpop.f32.mrf.mxu0
    %v591 = vadd.f32 %v494, %v590
    %v592 = vpop.f32.mrf.mxu0
    %593 = vmatprep.mubr.f32.mxu0 0.0
    %v594 = vand.u32 %v101, 4294901760
    %595 = vmatmul.mubr.f32.gmra.mxu0 %v594
    %v596 = vpop.f32.mrf.mxu0
    %v597 = vadd.f32 %v502, %v596
    %v598 = vpop.f32.mrf.mxu0
    %599 = vdwg.mxu0
    %600 = vmatprep.subr.mxu0 0.0
    %601 = vmatpush1.msra.mxu0 0.0
    %602 = vmatprep.subr.mxu0 0.0
    %603 = vmatpush1.msra.mxu0 0.0
    %604 = vmatprep.subr.mxu0 0.0
    %605 = vmatpush1.msra.mxu0 0.0
    %606 = vmatprep.subr.mxu0 0.0
    %607 = vmatpush1.msra.mxu0 0.0
    %608 = vmatprep.subr.mxu0 0.0
    %609 = vmatpush1.msra.mxu0 0.0
    %610 = vmatprep.subr.mxu0 0.0
    %611 = vmatpush1.msra.mxu0 0.0
    %612 = vmatprep.subr.mxu0 0.0
    %613 = vmatpush1.msra.mxu0 0.0
    %614 = vmatprep.subr.mxu0 0.0
    %615 = vmatpush1.msra.mxu0 0.0
    %616 = vmatprep.subr.mxu0 0.0
    %617 = vmatpush1.msra.mxu0 0.0
    %618 = vmatprep.subr.mxu0 0.0
    %619 = vmatpush1.msra.mxu0 0.0
    %620 = vmatprep.subr.mxu0 0.0
    %621 = vmatpush1.msra.mxu0 0.0
    %622 = vmatprep.subr.mxu0 0.0
    %623 = vmatpush1.msra.mxu0 0.0
    %624 = vmatprep.subr.mxu0 0.0
    %625 = vmatpush1.msra.mxu0 0.0
    %626 = vmatprep.subr.mxu0 0.0
    %627 = vmatpush1.msra.mxu0 0.0
    %628 = vmatprep.subr.mxu0 0.0
    %v629 = vand.u32 %v89, 4294901760
    %630 = vmatpush1.msra.mxu0 %v629
    %631 = vmatprep.subr.mxu0 0.0
    %v632 = vand.u32 %v88, 4294901760
    %633 = vmatpush1.msra.mxu0 %v632
    %634 = vmatprep.subr.mxu0 0.0
    %635 = vmatpush2.msra.mxu0 0.0
    %636 = vmatprep.subr.mxu0 0.0
    %637 = vmatpush2.msra.mxu0 0.0
    %638 = vmatprep.subr.mxu0 0.0
    %639 = vmatpush2.msra.mxu0 0.0
    %640 = vmatprep.subr.mxu0 0.0
    %641 = vmatpush2.msra.mxu0 0.0
    %642 = vmatprep.subr.mxu0 0.0
    %643 = vmatpush2.msra.mxu0 0.0
    %644 = vmatprep.subr.mxu0 0.0
    %645 = vmatpush2.msra.mxu0 0.0
    %646 = vmatprep.subr.mxu0 0.0
    %647 = vmatpush2.msra.mxu0 0.0
    %648 = vmatprep.subr.mxu0 0.0
    %649 = vmatpush2.msra.mxu0 0.0
    %650 = vmatprep.subr.mxu0 0.0
    %651 = vmatpush2.msra.mxu0 0.0
    %652 = vmatprep.subr.mxu0 0.0
    %653 = vmatpush2.msra.mxu0 0.0
    %654 = vmatprep.subr.mxu0 0.0
    %655 = vmatpush2.msra.mxu0 0.0
    %656 = vmatprep.subr.mxu0 0.0
    %657 = vmatpush2.msra.mxu0 0.0
    %658 = vmatprep.subr.mxu0 0.0
    %659 = vmatpush2.msra.mxu0 0.0
    %660 = vmatprep.subr.mxu0 0.0
    %661 = vmatpush2.msra.mxu0 0.0
    %662 = vmatprep.subr.mxu0 0.0
    %663 = vmatpush2.msra.mxu0 0.0
    %664 = vmatprep.subr.mxu0 0.0
    %665 = vmatpush2.msra.mxu0 0.0
    %666 = vmatprep.mubr.f32.mxu0 0.0
    %v667 = vand.u32 %v92, 4294901760
    %668 = vmatmul.mubr.f32.gmra.mxu0 %v667
    %v669 = vpop.f32.mrf.mxu0
    %v670 = vadd.f32 %v579, %v669
    %v671 = vpop.f32.mrf.mxu0
    %672 = vmatprep.mubr.f32.mxu0 0.0
    %v673 = vand.u32 %v95, 4294901760
    %674 = vmatmul.mubr.f32.gmra.mxu0 %v673
    %v675 = vpop.f32.mrf.mxu0
    %v676 = vadd.f32 %v585, %v675
    %v677 = vpop.f32.mrf.mxu0
    %678 = vmatprep.mubr.f32.mxu0 0.0
    %v679 = vand.u32 %v98, 4294901760
    %680 = vmatmul.mubr.f32.gmra.mxu0 %v679
    %v681 = vpop.f32.mrf.mxu0
    %v682 = vadd.f32 %v591, %v681
    %v683 = vpop.f32.mrf.mxu0
    %684 = vmatprep.mubr.f32.mxu0 0.0
    %v685 = vand.u32 %v101, 4294901760
    %686 = vmatmul.mubr.f32.gmra.mxu0 %v685
    %v687 = vpop.f32.mrf.mxu0
    %v688 = vadd.f32 %v597, %v687
    %v689 = vpop.f32.mrf.mxu0
    %690 = vdwg.mxu0
    %v691 = vld [vmem:[%s2] sm:$0x1]
    %v693 = vlaneseq
    %v694 = vshrl.u32 %v693, 7
    %v695 = vsub.s32 0, %v694
    %v696 = vrot.slane %v691, %v695
    %v698 = vadd.f32 %v670, %v696
    %v699 = vadd.f32 %v676, %v696
    %v700 = vadd.f32 %v682, %v696
    %v701 = vadd.f32 %v688, %v696
    %v702 = vld [vmem:[#allocation8] sm:$0xff]
    %v703 = vld [vmem:[#allocation8 + $0x8] sm:$0xff]
    %v704 = vld [vmem:[#allocation8 + $0x10] sm:$0xff]
    %v705 = vld [vmem:[#allocation8 + $0x18] sm:$0xff]
    %v706 = vld [vmem:[#allocation8 + $0x20] sm:$0xff]
    %v707 = vld [vmem:[#allocation8 + $0x28] sm:$0xff]
    %v708 = vld [vmem:[#allocation8 + $0x30] sm:$0xff]
    %v709 = vld [vmem:[#allocation8 + $0x38] sm:$0xff]
    %v710 = vld [vmem:[#allocation8 + $0x40] sm:$0xff]
    %v711 = vld [vmem:[#allocation8 + $0x48] sm:$0xff]
    %v712 = vld [vmem:[#allocation8 + $0x50] sm:$0xff]
    %v713 = vld [vmem:[#allocation8 + $0x58] sm:$0xff]
    %v714 = vld [vmem:[#allocation8 + $0x60] sm:$0xff]
    %v715 = vld [vmem:[#allocation8 + $0x68] sm:$0xff]
    %v716 = vld [vmem:[#allocation8 + $0x70] sm:$0xff]
    %v717 = vld [vmem:[#allocation8 + $0x78] sm:$0xff]
    %718 = vmatprep.subr.mxu0 0.0
    %v719 = vand.u32 %v717, 4294901760
    %720 = vmatpush1.msra.mxu0 %v719
    %721 = vmatprep.subr.mxu0 0.0
    %v722 = vand.u32 %v716, 4294901760
    %723 = vmatpush1.msra.mxu0 %v722
    %724 = vmatprep.subr.mxu0 0.0
    %v725 = vand.u32 %v715, 4294901760
    %726 = vmatpush1.msra.mxu0 %v725
    %727 = vmatprep.subr.mxu0 0.0
    %v728 = vand.u32 %v714, 4294901760
    %729 = vmatpush1.msra.mxu0 %v728
    %730 = vmatprep.subr.mxu0 0.0
    %v731 = vand.u32 %v713, 4294901760
    %732 = vmatpush1.msra.mxu0 %v731
    %733 = vmatprep.subr.mxu0 0.0
    %v734 = vand.u32 %v712, 4294901760
    %735 = vmatpush1.msra.mxu0 %v734
    %736 = vmatprep.subr.mxu0 0.0
    %v737 = vand.u32 %v711, 4294901760
    %738 = vmatpush1.msra.mxu0 %v737
    %739 = vmatprep.subr.mxu0 0.0
    %v740 = vand.u32 %v710, 4294901760
    %741 = vmatpush1.msra.mxu0 %v740
    %742 = vmatprep.subr.mxu0 0.0
    %v743 = vand.u32 %v709, 4294901760
    %744 = vmatpush1.msra.mxu0 %v743
    %745 = vmatprep.subr.mxu0 0.0
    %v746 = vand.u32 %v708, 4294901760
    %747 = vmatpush1.msra.mxu0 %v746
    %748 = vmatprep.subr.mxu0 0.0
    %v749 = vand.u32 %v707, 4294901760
    %750 = vmatpush1.msra.mxu0 %v749
    %751 = vmatprep.subr.mxu0 0.0
    %v752 = vand.u32 %v706, 4294901760
    %753 = vmatpush1.msra.mxu0 %v752
    %754 = vmatprep.subr.mxu0 0.0
    %v755 = vand.u32 %v705, 4294901760
    %756 = vmatpush1.msra.mxu0 %v755
    %757 = vmatprep.subr.mxu0 0.0
    %v758 = vand.u32 %v704, 4294901760
    %759 = vmatpush1.msra.mxu0 %v758
    %760 = vmatprep.subr.mxu0 0.0
    %v761 = vand.u32 %v703, 4294901760
    %762 = vmatpush1.msra.mxu0 %v761
    %763 = vmatprep.subr.mxu0 0.0
    %v764 = vand.u32 %v702, 4294901760
    %765 = vmatpush1.msra.mxu0 %v764
    %766 = vmatprep.subr.mxu0 0.0
    %767 = vmatpush2.msra.mxu0 0.0
    %768 = vmatprep.subr.mxu0 0.0
    %769 = vmatpush2.msra.mxu0 0.0
    %770 = vmatprep.subr.mxu0 0.0
    %771 = vmatpush2.msra.mxu0 0.0
    %772 = vmatprep.subr.mxu0 0.0
    %773 = vmatpush2.msra.mxu0 0.0
    %774 = vmatprep.subr.mxu0 0.0
    %775 = vmatpush2.msra.mxu0 0.0
    %776 = vmatprep.subr.mxu0 0.0
    %777 = vmatpush2.msra.mxu0 0.0
    %778 = vmatprep.subr.mxu0 0.0
    %779 = vmatpush2.msra.mxu0 0.0
    %780 = vmatprep.subr.mxu0 0.0
    %781 = vmatpush2.msra.mxu0 0.0
    %782 = vmatprep.subr.mxu0 0.0
    %783 = vmatpush2.msra.mxu0 0.0
    %784 = vmatprep.subr.mxu0 0.0
    %785 = vmatpush2.msra.mxu0 0.0
    %786 = vmatprep.subr.mxu0 0.0
    %787 = vmatpush2.msra.mxu0 0.0
    %788 = vmatprep.subr.mxu0 0.0
    %789 = vmatpush2.msra.mxu0 0.0
    %790 = vmatprep.subr.mxu0 0.0
    %791 = vmatpush2.msra.mxu0 0.0
    %792 = vmatprep.subr.mxu0 0.0
    %793 = vmatpush2.msra.mxu0 0.0
    %794 = vmatprep.subr.mxu0 0.0
    %795 = vmatpush2.msra.mxu0 0.0
    %796 = vmatprep.subr.mxu0 0.0
    %797 = vmatpush2.msra.mxu0 0.0
    %798 = vmatprep.mubr.f32.mxu0 0.0
    %v799 = vand.u32 %v698, 4294901760
    %v800 = vsub.f32 %v698, %v799
    %v801 = vand.u32 %v800, 4294901760
    %v802 = vsub.f32 %v800, %v801
    %v803 = vand.u32 %v802, 4294901760
    %804 = vmatmul.mubr.f32.gmra.mxu0 %v803
    %v805 = vpop.f32.mrf.mxu0
    %v806 = vadd.f32 0.0, %v805
    %v807 = vpop.f32.mrf.mxu0
    %808 = vmatprep.mubr.f32.mxu0 0.0
    %v809 = vand.u32 %v699, 4294901760
    %v810 = vsub.f32 %v699, %v809
    %v811 = vand.u32 %v810, 4294901760
    %v812 = vsub.f32 %v810, %v811
    %v813 = vand.u32 %v812, 4294901760
    %814 = vmatmul.mubr.f32.gmra.mxu0 %v813
    %v815 = vpop.f32.mrf.mxu0
    %v816 = vadd.f32 0.0, %v815
    %v817 = vpop.f32.mrf.mxu0
    %818 = vmatprep.mubr.f32.mxu0 0.0
    %v819 = vand.u32 %v700, 4294901760
    %v820 = vsub.f32 %v700, %v819
    %v821 = vand.u32 %v820, 4294901760
    %v822 = vsub.f32 %v820, %v821
    %v823 = vand.u32 %v822, 4294901760
    %824 = vmatmul.mubr.f32.gmra.mxu0 %v823
    %v825 = vpop.f32.mrf.mxu0
    %v826 = vadd.f32 0.0, %v825
    %v827 = vpop.f32.mrf.mxu0
    %828 = vmatprep.mubr.f32.mxu0 0.0
    %v829 = vand.u32 %v701, 4294901760
    %v830 = vsub.f32 %v701, %v829
    %v831 = vand.u32 %v830, 4294901760
    %v832 = vsub.f32 %v830, %v831
    %v833 = vand.u32 %v832, 4294901760
    %834 = vmatmul.mubr.f32.gmra.mxu0 %v833
    %v835 = vpop.f32.mrf.mxu0
    %v836 = vadd.f32 0.0, %v835
    %v837 = vpop.f32.mrf.mxu0
    %838 = vdwg.mxu0
    %839 = vmatprep.subr.mxu0 0.0
    %v840 = vand.u32 %v717, 4294901760
    %v841 = vsub.f32 %v717, %v840
    %v842 = vand.u32 %v841, 4294901760
    %v843 = vsub.f32 %v841, %v842
    %v844 = vand.u32 %v843, 4294901760
    %845 = vmatpush1.msra.mxu0 %v844
    %846 = vmatprep.subr.mxu0 0.0
    %v847 = vand.u32 %v716, 4294901760
    %v848 = vsub.f32 %v716, %v847
    %v849 = vand.u32 %v848, 4294901760
    %v850 = vsub.f32 %v848, %v849
    %v851 = vand.u32 %v850, 4294901760
    %852 = vmatpush1.msra.mxu0 %v851
    %853 = vmatprep.subr.mxu0 0.0
    %v854 = vand.u32 %v715, 4294901760
    %v855 = vsub.f32 %v715, %v854
    %v856 = vand.u32 %v855, 4294901760
    %v857 = vsub.f32 %v855, %v856
    %v858 = vand.u32 %v857, 4294901760
    %859 = vmatpush1.msra.mxu0 %v858
    %860 = vmatprep.subr.mxu0 0.0
    %v861 = vand.u32 %v714, 4294901760
    %v862 = vsub.f32 %v714, %v861
    %v863 = vand.u32 %v862, 4294901760
    %v864 = vsub.f32 %v862, %v863
    %v865 = vand.u32 %v864, 4294901760
    %866 = vmatpush1.msra.mxu0 %v865
    %867 = vmatprep.subr.mxu0 0.0
    %v868 = vand.u32 %v713, 4294901760
    %v869 = vsub.f32 %v713, %v868
    %v870 = vand.u32 %v869, 4294901760
    %v871 = vsub.f32 %v869, %v870
    %v872 = vand.u32 %v871, 4294901760
    %873 = vmatpush1.msra.mxu0 %v872
    %874 = vmatprep.subr.mxu0 0.0
    %v875 = vand.u32 %v712, 4294901760
    %v876 = vsub.f32 %v712, %v875
    %v877 = vand.u32 %v876, 4294901760
    %v878 = vsub.f32 %v876, %v877
    %v879 = vand.u32 %v878, 4294901760
    %880 = vmatpush1.msra.mxu0 %v879
    %881 = vmatprep.subr.mxu0 0.0
    %v882 = vand.u32 %v711, 4294901760
    %v883 = vsub.f32 %v711, %v882
    %v884 = vand.u32 %v883, 4294901760
    %v885 = vsub.f32 %v883, %v884
    %v886 = vand.u32 %v885, 4294901760
    %887 = vmatpush1.msra.mxu0 %v886
    %888 = vmatprep.subr.mxu0 0.0
    %v889 = vand.u32 %v710, 4294901760
    %v890 = vsub.f32 %v710, %v889
    %v891 = vand.u32 %v890, 4294901760
    %v892 = vsub.f32 %v890, %v891
    %v893 = vand.u32 %v892, 4294901760
    %894 = vmatpush1.msra.mxu0 %v893
    %895 = vmatprep.subr.mxu0 0.0
    %v896 = vand.u32 %v709, 4294901760
    %v897 = vsub.f32 %v709, %v896
    %v898 = vand.u32 %v897, 4294901760
    %v899 = vsub.f32 %v897, %v898
    %v900 = vand.u32 %v899, 4294901760
    %901 = vmatpush1.msra.mxu0 %v900
    %902 = vmatprep.subr.mxu0 0.0
    %v903 = vand.u32 %v708, 4294901760
    %v904 = vsub.f32 %v708, %v903
    %v905 = vand.u32 %v904, 4294901760
    %v906 = vsub.f32 %v904, %v905
    %v907 = vand.u32 %v906, 4294901760
    %908 = vmatpush1.msra.mxu0 %v907
    %909 = vmatprep.subr.mxu0 0.0
    %v910 = vand.u32 %v707, 4294901760
    %v911 = vsub.f32 %v707, %v910
    %v912 = vand.u32 %v911, 4294901760
    %v913 = vsub.f32 %v911, %v912
    %v914 = vand.u32 %v913, 4294901760
    %915 = vmatpush1.msra.mxu0 %v914
    %916 = vmatprep.subr.mxu0 0.0
    %v917 = vand.u32 %v706, 4294901760
    %v918 = vsub.f32 %v706, %v917
    %v919 = vand.u32 %v918, 4294901760
    %v920 = vsub.f32 %v918, %v919
    %v921 = vand.u32 %v920, 4294901760
    %922 = vmatpush1.msra.mxu0 %v921
    %923 = vmatprep.subr.mxu0 0.0
    %v924 = vand.u32 %v705, 4294901760
    %v925 = vsub.f32 %v705, %v924
    %v926 = vand.u32 %v925, 4294901760
    %v927 = vsub.f32 %v925, %v926
    %v928 = vand.u32 %v927, 4294901760
    %929 = vmatpush1.msra.mxu0 %v928
    %930 = vmatprep.subr.mxu0 0.0
    %v931 = vand.u32 %v704, 4294901760
    %v932 = vsub.f32 %v704, %v931
    %v933 = vand.u32 %v932, 4294901760
    %v934 = vsub.f32 %v932, %v933
    %v935 = vand.u32 %v934, 4294901760
    %936 = vmatpush1.msra.mxu0 %v935
    %937 = vmatprep.subr.mxu0 0.0
    %v938 = vand.u32 %v703, 4294901760
    %v939 = vsub.f32 %v703, %v938
    %v940 = vand.u32 %v939, 4294901760
    %v941 = vsub.f32 %v939, %v940
    %v942 = vand.u32 %v941, 4294901760
    %943 = vmatpush1.msra.mxu0 %v942
    %944 = vmatprep.subr.mxu0 0.0
    %v945 = vand.u32 %v702, 4294901760
    %v946 = vsub.f32 %v702, %v945
    %v947 = vand.u32 %v946, 4294901760
    %v948 = vsub.f32 %v946, %v947
    %v949 = vand.u32 %v948, 4294901760
    %950 = vmatpush1.msra.mxu0 %v949
    %951 = vmatprep.subr.mxu0 0.0
    %952 = vmatpush2.msra.mxu0 0.0
    %953 = vmatprep.subr.mxu0 0.0
    %954 = vmatpush2.msra.mxu0 0.0
    %955 = vmatprep.subr.mxu0 0.0
    %956 = vmatpush2.msra.mxu0 0.0
    %957 = vmatprep.subr.mxu0 0.0
    %958 = vmatpush2.msra.mxu0 0.0
    %959 = vmatprep.subr.mxu0 0.0
    %960 = vmatpush2.msra.mxu0 0.0
    %961 = vmatprep.subr.mxu0 0.0
    %962 = vmatpush2.msra.mxu0 0.0
    %963 = vmatprep.subr.mxu0 0.0
    %964 = vmatpush2.msra.mxu0 0.0
    %965 = vmatprep.subr.mxu0 0.0
    %966 = vmatpush2.msra.mxu0 0.0
    %967 = vmatprep.subr.mxu0 0.0
    %968 = vmatpush2.msra.mxu0 0.0
    %969 = vmatprep.subr.mxu0 0.0
    %970 = vmatpush2.msra.mxu0 0.0
    %971 = vmatprep.subr.mxu0 0.0
    %972 = vmatpush2.msra.mxu0 0.0
    %973 = vmatprep.subr.mxu0 0.0
    %974 = vmatpush2.msra.mxu0 0.0
    %975 = vmatprep.subr.mxu0 0.0
    %976 = vmatpush2.msra.mxu0 0.0
    %977 = vmatprep.subr.mxu0 0.0
    %978 = vmatpush2.msra.mxu0 0.0
    %979 = vmatprep.subr.mxu0 0.0
    %980 = vmatpush2.msra.mxu0 0.0
    %981 = vmatprep.subr.mxu0 0.0
    %982 = vmatpush2.msra.mxu0 0.0
    %983 = vmatprep.mubr.f32.mxu0 0.0
    %v984 = vand.u32 %v698, 4294901760
    %985 = vmatmul.mubr.f32.gmra.mxu0 %v984
    %v986 = vpop.f32.mrf.mxu0
    %v987 = vadd.f32 %v806, %v986
    %v988 = vpop.f32.mrf.mxu0
    %989 = vmatprep.mubr.f32.mxu0 0.0
    %v990 = vand.u32 %v699, 4294901760
    %991 = vmatmul.mubr.f32.gmra.mxu0 %v990
    %v992 = vpop.f32.mrf.mxu0
    %v993 = vadd.f32 %v816, %v992
    %v994 = vpop.f32.mrf.mxu0
    %995 = vmatprep.mubr.f32.mxu0 0.0
    %v996 = vand.u32 %v700, 4294901760
    %997 = vmatmul.mubr.f32.gmra.mxu0 %v996
    %v998 = vpop.f32.mrf.mxu0
    %v999 = vadd.f32 %v826, %v998
    %v1000 = vpop.f32.mrf.mxu0
    %1001 = vmatprep.mubr.f32.mxu0 0.0
    %v1002 = vand.u32 %v701, 4294901760
    %1003 = vmatmul.mubr.f32.gmra.mxu0 %v1002
    %v1004 = vpop.f32.mrf.mxu0
    %v1005 = vadd.f32 %v836, %v1004
    %v1006 = vpop.f32.mrf.mxu0
    %1007 = vdwg.mxu0
    %1008 = vmatprep.subr.mxu0 0.0
    %v1009 = vand.u32 %v717, 4294901760
    %v1010 = vsub.f32 %v717, %v1009
    %1011 = vmatpush1.msra.mxu0 %v1010
    %1012 = vmatprep.subr.mxu0 0.0
    %v1013 = vand.u32 %v716, 4294901760
    %v1014 = vsub.f32 %v716, %v1013
    %1015 = vmatpush1.msra.mxu0 %v1014
    %1016 = vmatprep.subr.mxu0 0.0
    %v1017 = vand.u32 %v715, 4294901760
    %v1018 = vsub.f32 %v715, %v1017
    %1019 = vmatpush1.msra.mxu0 %v1018
    %1020 = vmatprep.subr.mxu0 0.0
    %v1021 = vand.u32 %v714, 4294901760
    %v1022 = vsub.f32 %v714, %v1021
    %1023 = vmatpush1.msra.mxu0 %v1022
    %1024 = vmatprep.subr.mxu0 0.0
    %v1025 = vand.u32 %v713, 4294901760
    %v1026 = vsub.f32 %v713, %v1025
    %1027 = vmatpush1.msra.mxu0 %v1026
    %1028 = vmatprep.subr.mxu0 0.0
    %v1029 = vand.u32 %v712, 4294901760
    %v1030 = vsub.f32 %v712, %v1029
    %1031 = vmatpush1.msra.mxu0 %v1030
    %1032 = vmatprep.subr.mxu0 0.0
    %v1033 = vand.u32 %v711, 4294901760
    %v1034 = vsub.f32 %v711, %v1033
    %1035 = vmatpush1.msra.mxu0 %v1034
    %1036 = vmatprep.subr.mxu0 0.0
    %v1037 = vand.u32 %v710, 4294901760
    %v1038 = vsub.f32 %v710, %v1037
    %1039 = vmatpush1.msra.mxu0 %v1038
    %1040 = vmatprep.subr.mxu0 0.0
    %v1041 = vand.u32 %v709, 4294901760
    %v1042 = vsub.f32 %v709, %v1041
    %1043 = vmatpush1.msra.mxu0 %v1042
    %1044 = vmatprep.subr.mxu0 0.0
    %v1045 = vand.u32 %v708, 4294901760
    %v1046 = vsub.f32 %v708, %v1045
    %1047 = vmatpush1.msra.mxu0 %v1046
    %1048 = vmatprep.subr.mxu0 0.0
    %v1049 = vand.u32 %v707, 4294901760
    %v1050 = vsub.f32 %v707, %v1049
    %1051 = vmatpush1.msra.mxu0 %v1050
    %1052 = vmatprep.subr.mxu0 0.0
    %v1053 = vand.u32 %v706, 4294901760
    %v1054 = vsub.f32 %v706, %v1053
    %1055 = vmatpush1.msra.mxu0 %v1054
    %1056 = vmatprep.subr.mxu0 0.0
    %v1057 = vand.u32 %v705, 4294901760
    %v1058 = vsub.f32 %v705, %v1057
    %1059 = vmatpush1.msra.mxu0 %v1058
    %1060 = vmatprep.subr.mxu0 0.0
    %v1061 = vand.u32 %v704, 4294901760
    %v1062 = vsub.f32 %v704, %v1061
    %1063 = vmatpush1.msra.mxu0 %v1062
    %1064 = vmatprep.subr.mxu0 0.0
    %v1065 = vand.u32 %v703, 4294901760
    %v1066 = vsub.f32 %v703, %v1065
    %1067 = vmatpush1.msra.mxu0 %v1066
    %1068 = vmatprep.subr.mxu0 0.0
    %v1069 = vand.u32 %v702, 4294901760
    %v1070 = vsub.f32 %v702, %v1069
    %1071 = vmatpush1.msra.mxu0 %v1070
    %1072 = vmatprep.subr.mxu0 0.0
    %1073 = vmatpush2.msra.mxu0 0.0
    %1074 = vmatprep.subr.mxu0 0.0
    %1075 = vmatpush2.msra.mxu0 0.0
    %1076 = vmatprep.subr.mxu0 0.0
    %1077 = vmatpush2.msra.mxu0 0.0
    %1078 = vmatprep.subr.mxu0 0.0
    %1079 = vmatpush2.msra.mxu0 0.0
    %1080 = vmatprep.subr.mxu0 0.0
    %1081 = vmatpush2.msra.mxu0 0.0
    %1082 = vmatprep.subr.mxu0 0.0
    %1083 = vmatpush2.msra.mxu0 0.0
    %1084 = vmatprep.subr.mxu0 0.0
    %1085 = vmatpush2.msra.mxu0 0.0
    %1086 = vmatprep.subr.mxu0 0.0
    %1087 = vmatpush2.msra.mxu0 0.0
    %1088 = vmatprep.subr.mxu0 0.0
    %1089 = vmatpush2.msra.mxu0 0.0
    %1090 = vmatprep.subr.mxu0 0.0
    %1091 = vmatpush2.msra.mxu0 0.0
    %1092 = vmatprep.subr.mxu0 0.0
    %1093 = vmatpush2.msra.mxu0 0.0
    %1094 = vmatprep.subr.mxu0 0.0
    %1095 = vmatpush2.msra.mxu0 0.0
    %1096 = vmatprep.subr.mxu0 0.0
    %1097 = vmatpush2.msra.mxu0 0.0
    %1098 = vmatprep.subr.mxu0 0.0
    %1099 = vmatpush2.msra.mxu0 0.0
    %1100 = vmatprep.subr.mxu0 0.0
    %1101 = vmatpush2.msra.mxu0 0.0
    %1102 = vmatprep.subr.mxu0 0.0
    %1103 = vmatpush2.msra.mxu0 0.0
    %1104 = vmatprep.mubr.f32.mxu0 0.0
    %v1105 = vand.u32 %v698, 4294901760
    %v1106 = vsub.f32 %v698, %v1105
    %1107 = vmatmul.mubr.f32.gmra.mxu0 %v1106
    %v1108 = vpop.f32.mrf.mxu0
    %v1109 = vadd.f32 %v987, %v1108
    %v1110 = vpop.f32.mrf.mxu0
    %1111 = vmatprep.mubr.f32.mxu0 0.0
    %v1112 = vand.u32 %v699, 4294901760
    %v1113 = vsub.f32 %v699, %v1112
    %1114 = vmatmul.mubr.f32.gmra.mxu0 %v1113
    %v1115 = vpop.f32.mrf.mxu0
    %v1116 = vadd.f32 %v993, %v1115
    %v1117 = vpop.f32.mrf.mxu0
    %1118 = vmatprep.mubr.f32.mxu0 0.0
    %v1119 = vand.u32 %v700, 4294901760
    %v1120 = vsub.f32 %v700, %v1119
    %1121 = vmatmul.mubr.f32.gmra.mxu0 %v1120
    %v1122 = vpop.f32.mrf.mxu0
    %v1123 = vadd.f32 %v999, %v1122
    %v1124 = vpop.f32.mrf.mxu0
    %1125 = vmatprep.mubr.f32.mxu0 0.0
    %v1126 = vand.u32 %v701, 4294901760
    %v1127 = vsub.f32 %v701, %v1126
    %1128 = vmatmul.mubr.f32.gmra.mxu0 %v1127
    %v1129 = vpop.f32.mrf.mxu0
    %v1130 = vadd.f32 %v1005, %v1129
    %v1131 = vpop.f32.mrf.mxu0
    %1132 = vdwg.mxu0
    %1133 = vmatprep.subr.mxu0 0.0
    %v1134 = vand.u32 %v717, 4294901760
    %1135 = vmatpush1.msra.mxu0 %v1134
    %1136 = vmatprep.subr.mxu0 0.0
    %v1137 = vand.u32 %v716, 4294901760
    %1138 = vmatpush1.msra.mxu0 %v1137
    %1139 = vmatprep.subr.mxu0 0.0
    %v1140 = vand.u32 %v715, 4294901760
    %1141 = vmatpush1.msra.mxu0 %v1140
    %1142 = vmatprep.subr.mxu0 0.0
    %v1143 = vand.u32 %v714, 4294901760
    %1144 = vmatpush1.msra.mxu0 %v1143
    %1145 = vmatprep.subr.mxu0 0.0
    %v1146 = vand.u32 %v713, 4294901760
    %1147 = vmatpush1.msra.mxu0 %v1146
    %1148 = vmatprep.subr.mxu0 0.0
    %v1149 = vand.u32 %v712, 4294901760
    %1150 = vmatpush1.msra.mxu0 %v1149
    %1151 = vmatprep.subr.mxu0 0.0
    %v1152 = vand.u32 %v711, 4294901760
    %1153 = vmatpush1.msra.mxu0 %v1152
    %1154 = vmatprep.subr.mxu0 0.0
    %v1155 = vand.u32 %v710, 4294901760
    %1156 = vmatpush1.msra.mxu0 %v1155
    %1157 = vmatprep.subr.mxu0 0.0
    %v1158 = vand.u32 %v709, 4294901760
    %1159 = vmatpush1.msra.mxu0 %v1158
    %1160 = vmatprep.subr.mxu0 0.0
    %v1161 = vand.u32 %v708, 4294901760
    %1162 = vmatpush1.msra.mxu0 %v1161
    %1163 = vmatprep.subr.mxu0 0.0
    %v1164 = vand.u32 %v707, 4294901760
    %1165 = vmatpush1.msra.mxu0 %v1164
    %1166 = vmatprep.subr.mxu0 0.0
    %v1167 = vand.u32 %v706, 4294901760
    %1168 = vmatpush1.msra.mxu0 %v1167
    %1169 = vmatprep.subr.mxu0 0.0
    %v1170 = vand.u32 %v705, 4294901760
    %1171 = vmatpush1.msra.mxu0 %v1170
    %1172 = vmatprep.subr.mxu0 0.0
    %v1173 = vand.u32 %v704, 4294901760
    %1174 = vmatpush1.msra.mxu0 %v1173
    %1175 = vmatprep.subr.mxu0 0.0
    %v1176 = vand.u32 %v703, 4294901760
    %1177 = vmatpush1.msra.mxu0 %v1176
    %1178 = vmatprep.subr.mxu0 0.0
    %v1179 = vand.u32 %v702, 4294901760
    %1180 = vmatpush1.msra.mxu0 %v1179
    %1181 = vmatprep.subr.mxu0 0.0
    %1182 = vmatpush2.msra.mxu0 0.0
    %1183 = vmatprep.subr.mxu0 0.0
    %1184 = vmatpush2.msra.mxu0 0.0
    %1185 = vmatprep.subr.mxu0 0.0
    %1186 = vmatpush2.msra.mxu0 0.0
    %1187 = vmatprep.subr.mxu0 0.0
    %1188 = vmatpush2.msra.mxu0 0.0
    %1189 = vmatprep.subr.mxu0 0.0
    %1190 = vmatpush2.msra.mxu0 0.0
    %1191 = vmatprep.subr.mxu0 0.0
    %1192 = vmatpush2.msra.mxu0 0.0
    %1193 = vmatprep.subr.mxu0 0.0
    %1194 = vmatpush2.msra.mxu0 0.0
    %1195 = vmatprep.subr.mxu0 0.0
    %1196 = vmatpush2.msra.mxu0 0.0
    %1197 = vmatprep.subr.mxu0 0.0
    %1198 = vmatpush2.msra.mxu0 0.0
    %1199 = vmatprep.subr.mxu0 0.0
    %1200 = vmatpush2.msra.mxu0 0.0
    %1201 = vmatprep.subr.mxu0 0.0
    %1202 = vmatpush2.msra.mxu0 0.0
    %1203 = vmatprep.subr.mxu0 0.0
    %1204 = vmatpush2.msra.mxu0 0.0
    %1205 = vmatprep.subr.mxu0 0.0
    %1206 = vmatpush2.msra.mxu0 0.0
    %1207 = vmatprep.subr.mxu0 0.0
    %1208 = vmatpush2.msra.mxu0 0.0
    %1209 = vmatprep.subr.mxu0 0.0
    %1210 = vmatpush2.msra.mxu0 0.0
    %1211 = vmatprep.subr.mxu0 0.0
    %1212 = vmatpush2.msra.mxu0 0.0
    %1213 = vmatprep.mubr.f32.mxu0 0.0
    %v1214 = vand.u32 %v698, 4294901760
    %v1215 = vsub.f32 %v698, %v1214
    %v1216 = vand.u32 %v1215, 4294901760
    %1217 = vmatmul.mubr.f32.gmra.mxu0 %v1216
    %v1218 = vpop.f32.mrf.mxu0
    %v1219 = vadd.f32 %v1109, %v1218
    %v1220 = vpop.f32.mrf.mxu0
    %1221 = vmatprep.mubr.f32.mxu0 0.0
    %v1222 = vand.u32 %v699, 4294901760
    %v1223 = vsub.f32 %v699, %v1222
    %v1224 = vand.u32 %v1223, 4294901760
    %1225 = vmatmul.mubr.f32.gmra.mxu0 %v1224
    %v1226 = vpop.f32.mrf.mxu0
    %v1227 = vadd.f32 %v1116, %v1226
    %v1228 = vpop.f32.mrf.mxu0
    %1229 = vmatprep.mubr.f32.mxu0 0.0
    %v1230 = vand.u32 %v700, 4294901760
    %v1231 = vsub.f32 %v700, %v1230
    %v1232 = vand.u32 %v1231, 4294901760
    %1233 = vmatmul.mubr.f32.gmra.mxu0 %v1232
    %v1234 = vpop.f32.mrf.mxu0
    %v1235 = vadd.f32 %v1123, %v1234
    %v1236 = vpop.f32.mrf.mxu0
    %1237 = vmatprep.mubr.f32.mxu0 0.0
    %v1238 = vand.u32 %v701, 4294901760
    %v1239 = vsub.f32 %v701, %v1238
    %v1240 = vand.u32 %v1239, 4294901760
    %1241 = vmatmul.mubr.f32.gmra.mxu0 %v1240
    %v1242 = vpop.f32.mrf.mxu0
    %v1243 = vadd.f32 %v1130, %v1242
    %v1244 = vpop.f32.mrf.mxu0
    %1245 = vdwg.mxu0
    %1246 = vmatprep.subr.mxu0 0.0
    %v1247 = vand.u32 %v717, 4294901760
    %v1248 = vsub.f32 %v717, %v1247
    %v1249 = vand.u32 %v1248, 4294901760
    %1250 = vmatpush1.msra.mxu0 %v1249
    %1251 = vmatprep.subr.mxu0 0.0
    %v1252 = vand.u32 %v716, 4294901760
    %v1253 = vsub.f32 %v716, %v1252
    %v1254 = vand.u32 %v1253, 4294901760
    %1255 = vmatpush1.msra.mxu0 %v1254
    %1256 = vmatprep.subr.mxu0 0.0
    %v1257 = vand.u32 %v715, 4294901760
    %v1258 = vsub.f32 %v715, %v1257
    %v1259 = vand.u32 %v1258, 4294901760
    %1260 = vmatpush1.msra.mxu0 %v1259
    %1261 = vmatprep.subr.mxu0 0.0
    %v1262 = vand.u32 %v714, 4294901760
    %v1263 = vsub.f32 %v714, %v1262
    %v1264 = vand.u32 %v1263, 4294901760
    %1265 = vmatpush1.msra.mxu0 %v1264
    %1266 = vmatprep.subr.mxu0 0.0
    %v1267 = vand.u32 %v713, 4294901760
    %v1268 = vsub.f32 %v713, %v1267
    %v1269 = vand.u32 %v1268, 4294901760
    %1270 = vmatpush1.msra.mxu0 %v1269
    %1271 = vmatprep.subr.mxu0 0.0
    %v1272 = vand.u32 %v712, 4294901760
    %v1273 = vsub.f32 %v712, %v1272
    %v1274 = vand.u32 %v1273, 4294901760
    %1275 = vmatpush1.msra.mxu0 %v1274
    %1276 = vmatprep.subr.mxu0 0.0
    %v1277 = vand.u32 %v711, 4294901760
    %v1278 = vsub.f32 %v711, %v1277
    %v1279 = vand.u32 %v1278, 4294901760
    %1280 = vmatpush1.msra.mxu0 %v1279
    %1281 = vmatprep.subr.mxu0 0.0
    %v1282 = vand.u32 %v710, 4294901760
    %v1283 = vsub.f32 %v710, %v1282
    %v1284 = vand.u32 %v1283, 4294901760
    %1285 = vmatpush1.msra.mxu0 %v1284
    %1286 = vmatprep.subr.mxu0 0.0
    %v1287 = vand.u32 %v709, 4294901760
    %v1288 = vsub.f32 %v709, %v1287
    %v1289 = vand.u32 %v1288, 4294901760
    %1290 = vmatpush1.msra.mxu0 %v1289
    %1291 = vmatprep.subr.mxu0 0.0
    %v1292 = vand.u32 %v708, 4294901760
    %v1293 = vsub.f32 %v708, %v1292
    %v1294 = vand.u32 %v1293, 4294901760
    %1295 = vmatpush1.msra.mxu0 %v1294
    %1296 = vmatprep.subr.mxu0 0.0
    %v1297 = vand.u32 %v707, 4294901760
    %v1298 = vsub.f32 %v707, %v1297
    %v1299 = vand.u32 %v1298, 4294901760
    %1300 = vmatpush1.msra.mxu0 %v1299
    %1301 = vmatprep.subr.mxu0 0.0
    %v1302 = vand.u32 %v706, 4294901760
    %v1303 = vsub.f32 %v706, %v1302
    %v1304 = vand.u32 %v1303, 4294901760
    %1305 = vmatpush1.msra.mxu0 %v1304
    %1306 = vmatprep.subr.mxu0 0.0
    %v1307 = vand.u32 %v705, 4294901760
    %v1308 = vsub.f32 %v705, %v1307
    %v1309 = vand.u32 %v1308, 4294901760
    %1310 = vmatpush1.msra.mxu0 %v1309
    %1311 = vmatprep.subr.mxu0 0.0
    %v1312 = vand.u32 %v704, 4294901760
    %v1313 = vsub.f32 %v704, %v1312
    %v1314 = vand.u32 %v1313, 4294901760
    %1315 = vmatpush1.msra.mxu0 %v1314
    %1316 = vmatprep.subr.mxu0 0.0
    %v1317 = vand.u32 %v703, 4294901760
    %v1318 = vsub.f32 %v703, %v1317
    %v1319 = vand.u32 %v1318, 4294901760
    %1320 = vmatpush1.msra.mxu0 %v1319
    %1321 = vmatprep.subr.mxu0 0.0
    %v1322 = vand.u32 %v702, 4294901760
    %v1323 = vsub.f32 %v702, %v1322
    %v1324 = vand.u32 %v1323, 4294901760
    %1325 = vmatpush1.msra.mxu0 %v1324
    %1326 = vmatprep.subr.mxu0 0.0
    %1327 = vmatpush2.msra.mxu0 0.0
    %1328 = vmatprep.subr.mxu0 0.0
    %1329 = vmatpush2.msra.mxu0 0.0
    %1330 = vmatprep.subr.mxu0 0.0
    %1331 = vmatpush2.msra.mxu0 0.0
    %1332 = vmatprep.subr.mxu0 0.0
    %1333 = vmatpush2.msra.mxu0 0.0
    %1334 = vmatprep.subr.mxu0 0.0
    %1335 = vmatpush2.msra.mxu0 0.0
    %1336 = vmatprep.subr.mxu0 0.0
    %1337 = vmatpush2.msra.mxu0 0.0
    %1338 = vmatprep.subr.mxu0 0.0
    %1339 = vmatpush2.msra.mxu0 0.0
    %1340 = vmatprep.subr.mxu0 0.0
    %1341 = vmatpush2.msra.mxu0 0.0
    %1342 = vmatprep.subr.mxu0 0.0
    %1343 = vmatpush2.msra.mxu0 0.0
    %1344 = vmatprep.subr.mxu0 0.0
    %1345 = vmatpush2.msra.mxu0 0.0
    %1346 = vmatprep.subr.mxu0 0.0
    %1347 = vmatpush2.msra.mxu0 0.0
    %1348 = vmatprep.subr.mxu0 0.0
    %1349 = vmatpush2.msra.mxu0 0.0
    %1350 = vmatprep.subr.mxu0 0.0
    %1351 = vmatpush2.msra.mxu0 0.0
    %1352 = vmatprep.subr.mxu0 0.0
    %1353 = vmatpush2.msra.mxu0 0.0
    %1354 = vmatprep.subr.mxu0 0.0
    %1355 = vmatpush2.msra.mxu0 0.0
    %1356 = vmatprep.subr.mxu0 0.0
    %1357 = vmatpush2.msra.mxu0 0.0
    %1358 = vmatprep.mubr.f32.mxu0 0.0
    %v1359 = vand.u32 %v698, 4294901760
    %1360 = vmatmul.mubr.f32.gmra.mxu0 %v1359
    %v1361 = vpop.f32.mrf.mxu0
    %v1362 = vadd.f32 %v1219, %v1361
    %v1363 = vpop.f32.mrf.mxu0
    %1364 = vmatprep.mubr.f32.mxu0 0.0
    %v1365 = vand.u32 %v699, 4294901760
    %1366 = vmatmul.mubr.f32.gmra.mxu0 %v1365
    %v1367 = vpop.f32.mrf.mxu0
    %v1368 = vadd.f32 %v1227, %v1367
    %v1369 = vpop.f32.mrf.mxu0
    %1370 = vmatprep.mubr.f32.mxu0 0.0
    %v1371 = vand.u32 %v700, 4294901760
    %1372 = vmatmul.mubr.f32.gmra.mxu0 %v1371
    %v1373 = vpop.f32.mrf.mxu0
    %v1374 = vadd.f32 %v1235, %v1373
    %v1375 = vpop.f32.mrf.mxu0
    %1376 = vmatprep.mubr.f32.mxu0 0.0
    %v1377 = vand.u32 %v701, 4294901760
    %1378 = vmatmul.mubr.f32.gmra.mxu0 %v1377
    %v1379 = vpop.f32.mrf.mxu0
    %v1380 = vadd.f32 %v1243, %v1379
    %v1381 = vpop.f32.mrf.mxu0
    %1382 = vdwg.mxu0
    %1383 = vmatprep.subr.mxu0 0.0
    %v1384 = vand.u32 %v717, 4294901760
    %1385 = vmatpush1.msra.mxu0 %v1384
    %1386 = vmatprep.subr.mxu0 0.0
    %v1387 = vand.u32 %v716, 4294901760
    %1388 = vmatpush1.msra.mxu0 %v1387
    %1389 = vmatprep.subr.mxu0 0.0
    %v1390 = vand.u32 %v715, 4294901760
    %1391 = vmatpush1.msra.mxu0 %v1390
    %1392 = vmatprep.subr.mxu0 0.0
    %v1393 = vand.u32 %v714, 4294901760
    %1394 = vmatpush1.msra.mxu0 %v1393
    %1395 = vmatprep.subr.mxu0 0.0
    %v1396 = vand.u32 %v713, 4294901760
    %1397 = vmatpush1.msra.mxu0 %v1396
    %1398 = vmatprep.subr.mxu0 0.0
    %v1399 = vand.u32 %v712, 4294901760
    %1400 = vmatpush1.msra.mxu0 %v1399
    %1401 = vmatprep.subr.mxu0 0.0
    %v1402 = vand.u32 %v711, 4294901760
    %1403 = vmatpush1.msra.mxu0 %v1402
    %1404 = vmatprep.subr.mxu0 0.0
    %v1405 = vand.u32 %v710, 4294901760
    %1406 = vmatpush1.msra.mxu0 %v1405
    %1407 = vmatprep.subr.mxu0 0.0
    %v1408 = vand.u32 %v709, 4294901760
    %1409 = vmatpush1.msra.mxu0 %v1408
    %1410 = vmatprep.subr.mxu0 0.0
    %v1411 = vand.u32 %v708, 4294901760
    %1412 = vmatpush1.msra.mxu0 %v1411
    %1413 = vmatprep.subr.mxu0 0.0
    %v1414 = vand.u32 %v707, 4294901760
    %1415 = vmatpush1.msra.mxu0 %v1414
    %1416 = vmatprep.subr.mxu0 0.0
    %v1417 = vand.u32 %v706, 4294901760
    %1418 = vmatpush1.msra.mxu0 %v1417
    %1419 = vmatprep.subr.mxu0 0.0
    %v1420 = vand.u32 %v705, 4294901760
    %1421 = vmatpush1.msra.mxu0 %v1420
    %1422 = vmatprep.subr.mxu0 0.0
    %v1423 = vand.u32 %v704, 4294901760
    %1424 = vmatpush1.msra.mxu0 %v1423
    %1425 = vmatprep.subr.mxu0 0.0
    %v1426 = vand.u32 %v703, 4294901760
    %1427 = vmatpush1.msra.mxu0 %v1426
    %1428 = vmatprep.subr.mxu0 0.0
    %v1429 = vand.u32 %v702, 4294901760
    %1430 = vmatpush1.msra.mxu0 %v1429
    %1431 = vmatprep.subr.mxu0 0.0
    %1432 = vmatpush2.msra.mxu0 0.0
    %1433 = vmatprep.subr.mxu0 0.0
    %1434 = vmatpush2.msra.mxu0 0.0
    %1435 = vmatprep.subr.mxu0 0.0
    %1436 = vmatpush2.msra.mxu0 0.0
    %1437 = vmatprep.subr.mxu0 0.0
    %1438 = vmatpush2.msra.mxu0 0.0
    %1439 = vmatprep.subr.mxu0 0.0
    %1440 = vmatpush2.msra.mxu0 0.0
    %1441 = vmatprep.subr.mxu0 0.0
    %1442 = vmatpush2.msra.mxu0 0.0
    %1443 = vmatprep.subr.mxu0 0.0
    %1444 = vmatpush2.msra.mxu0 0.0
    %1445 = vmatprep.subr.mxu0 0.0
    %1446 = vmatpush2.msra.mxu0 0.0
    %1447 = vmatprep.subr.mxu0 0.0
    %1448 = vmatpush2.msra.mxu0 0.0
    %1449 = vmatprep.subr.mxu0 0.0
    %1450 = vmatpush2.msra.mxu0 0.0
    %1451 = vmatprep.subr.mxu0 0.0
    %1452 = vmatpush2.msra.mxu0 0.0
    %1453 = vmatprep.subr.mxu0 0.0
    %1454 = vmatpush2.msra.mxu0 0.0
    %1455 = vmatprep.subr.mxu0 0.0
    %1456 = vmatpush2.msra.mxu0 0.0
    %1457 = vmatprep.subr.mxu0 0.0
    %1458 = vmatpush2.msra.mxu0 0.0
    %1459 = vmatprep.subr.mxu0 0.0
    %1460 = vmatpush2.msra.mxu0 0.0
    %1461 = vmatprep.subr.mxu0 0.0
    %1462 = vmatpush2.msra.mxu0 0.0
    %1463 = vmatprep.mubr.f32.mxu0 0.0
    %v1464 = vand.u32 %v698, 4294901760
    %1465 = vmatmul.mubr.f32.gmra.mxu0 %v1464
    %v1466 = vpop.f32.mrf.mxu0
    %v1467 = vadd.f32 %v1362, %v1466
    %v1468 = vpop.f32.mrf.mxu0
    %1469 = vmatprep.mubr.f32.mxu0 0.0
    %v1470 = vand.u32 %v699, 4294901760
    %1471 = vmatmul.mubr.f32.gmra.mxu0 %v1470
    %v1472 = vpop.f32.mrf.mxu0
    %v1473 = vadd.f32 %v1368, %v1472
    %v1474 = vpop.f32.mrf.mxu0
    %1475 = vmatprep.mubr.f32.mxu0 0.0
    %v1476 = vand.u32 %v700, 4294901760
    %1477 = vmatmul.mubr.f32.gmra.mxu0 %v1476
    %v1478 = vpop.f32.mrf.mxu0
    %v1479 = vadd.f32 %v1374, %v1478
    %v1480 = vpop.f32.mrf.mxu0
    %1481 = vmatprep.mubr.f32.mxu0 0.0
    %v1482 = vand.u32 %v701, 4294901760
    %1483 = vmatmul.mubr.f32.gmra.mxu0 %v1482
    %v1484 = vpop.f32.mrf.mxu0
    %v1485 = vadd.f32 %v1380, %v1484
    %v1486 = vpop.f32.mrf.mxu0
    %1487 = vdwg.mxu0
    %v1488 = vadd.f32 %v1467, %v1473
    %v1489 = vrot.slane %v1488, 4
    %v1490 = vadd.f32 %v1488, %v1489
    %v1491 = vrot.slane %v1490, 2
    %v1492 = vadd.f32 %v1490, %v1491
    %v1493 = vrot.slane %v1492, 1
    %v1494 = vadd.f32 %v1492, %v1493
    %v1495 = vadd.f32 %v1479, %v1485
    %v1496 = vrot.slane %v1495, 4
    %v1497 = vadd.f32 %v1495, %v1496
    %v1498 = vrot.slane %v1497, 2
    %v1499 = vadd.f32 %v1497, %v1498
    %v1500 = vrot.slane %v1499, 1
    %v1501 = vadd.f32 %v1499, %v1500
    %v1502 = vrcp.pop 16.0
    %v1503 = vmul.f32 %v1494, %v1502
    %v1504 = vmul.f32 %v1501, %v1502
    %v1505 = vsub.f32 %v1467, %v1503
    %v1506 = vsub.f32 %v1473, %v1503
    %v1507 = vsub.f32 %v1479, %v1504
    %v1508 = vsub.f32 %v1485, %v1504
    %v1509 = vmul.f32 %v1505, %v1505
    %v1510 = vmul.f32 %v1506, %v1506
    %v1511 = vmul.f32 %v1507, %v1507
    %v1512 = vmul.f32 %v1508, %v1508
    %v1513 = vadd.f32 %v1509, %v1510
    %v1514 = vrot.slane %v1513, 4
    %v1515 = vadd.f32 %v1513, %v1514
    %v1516 = vrot.slane %v1515, 2
    %v1517 = vadd.f32 %v1515, %v1516
    %v1518 = vrot.slane %v1517, 1
    %v1519 = vadd.f32 %v1517, %v1518
    %v1520 = vadd.f32 %v1511, %v1512
    %v1521 = vrot.slane %v1520, 4
    %v1522 = vadd.f32 %v1520, %v1521
    %v1523 = vrot.slane %v1522, 2
    %v1524 = vadd.f32 %v1522, %v1523
    %v1525 = vrot.slane %v1524, 1
    %v1526 = vadd.f32 %v1524, %v1525
    %v1527 = vmul.f32 %v1519, %v1502
    %v1528 = vmul.f32 %v1526, %v1502
    %v1529 = vadd.f32 %v1527, 1e-05
    %v1530 = vadd.f32 %v1528, 1e-05
    %v1531 = vrsqrt.pop %v1529
    %v1532 = vrsqrt.pop %v1530
    %v1533 = vmul.f32 %v1527, %v1531
    %v1534 = vmul.f32 %v1528, %v1532
    %v1535 = vmul.f32 %v1533, %v1531
    %v1536 = vmul.f32 %v1534, %v1532
    %v1537 = vadd.f32 %v1535, %v1536
    %v1538 = vrcp.pop 2.0
    %v1539 = vmul.f32 %v1537, %v1538
    %v1540 = vadd.f32 %v1539, 1e-05
    %v1541 = vrsqrt.pop %v1540
    %v1542 = vmul.f32 %v1531, %v1541
    %v1543 = vmul.f32 %v1532, %v1541
    %v1544 = vmul.f32 %v1505, %v1542
    %v1545 = vmul.f32 %v1506, %v1542
    %v1546 = vmul.f32 %v1507, %v1543
    %v1547 = vmul.f32 %v1508, %v1543
    %v1548 = vmax.f32 %v1544, 0.0
    %v1549 = vmax.f32 %v1545, 0.0
    %v1550 = vmax.f32 %v1546, 0.0
    %v1551 = vmax.f32 %v1547, 0.0
    %v1552 = vld [vmem:[#allocation9] sm:$0xff]
    %v1553 = vld [vmem:[#allocation9 + $0x8] sm:$0xff]
    %v1554 = vld [vmem:[#allocation9 + $0x10] sm:$0xff]
    %v1555 = vld [vmem:[#allocation9 + $0x18] sm:$0xff]
    %v1556 = vld [vmem:[#allocation9 + $0x20] sm:$0xff]
    %v1557 = vld [vmem:[#allocation9 + $0x28] sm:$0xff]
    %v1558 = vld [vmem:[#allocation9 + $0x30] sm:$0xff]
    %v1559 = vld [vmem:[#allocation9 + $0x38] sm:$0xff]
    %v1560 = vld [vmem:[#allocation9 + $0x40] sm:$0xff]
    %v1561 = vld [vmem:[#allocation9 + $0x48] sm:$0xff]
    %v1562 = vld [vmem:[#allocation9 + $0x50] sm:$0xff]
    %v1563 = vld [vmem:[#allocation9 + $0x58] sm:$0xff]
    %v1564 = vld [vmem:[#allocation9 + $0x60] sm:$0xff]
    %v1565 = vld [vmem:[#allocation9 + $0x68] sm:$0xff]
    %v1566 = vld [vmem:[#allocation9 + $0x70] sm:$0xff]
    %v1567 = vld [vmem:[#allocation9 + $0x78] sm:$0xff]
    %1568 = vmatprep.subr.mxu0 0.0
    %v1569 = vand.u32 %v1567, 4294901760
    %1570 = vmatpush1.msra.mxu0 %v1569
    %1571 = vmatprep.subr.mxu0 0.0
    %v1572 = vand.u32 %v1566, 4294901760
    %1573 = vmatpush1.msra.mxu0 %v1572
    %1574 = vmatprep.subr.mxu0 0.0
    %v1575 = vand.u32 %v1565, 4294901760
    %1576 = vmatpush1.msra.mxu0 %v1575
    %1577 = vmatprep.subr.mxu0 0.0
    %v1578 = vand.u32 %v1564, 4294901760
    %1579 = vmatpush1.msra.mxu0 %v1578
    %1580 = vmatprep.subr.mxu0 0.0
    %v1581 = vand.u32 %v1563, 4294901760
    %1582 = vmatpush1.msra.mxu0 %v1581
    %1583 = vmatprep.subr.mxu0 0.0
    %v1584 = vand.u32 %v1562, 4294901760
    %1585 = vmatpush1.msra.mxu0 %v1584
    %1586 = vmatprep.subr.mxu0 0.0
    %v1587 = vand.u32 %v1561, 4294901760
    %1588 = vmatpush1.msra.mxu0 %v1587
    %1589 = vmatprep.subr.mxu0 0.0
    %v1590 = vand.u32 %v1560, 4294901760
    %1591 = vmatpush1.msra.mxu0 %v1590
    %1592 = vmatprep.subr.mxu0 0.0
    %v1593 = vand.u32 %v1559, 4294901760
    %1594 = vmatpush1.msra.mxu0 %v1593
    %1595 = vmatprep.subr.mxu0 0.0
    %v1596 = vand.u32 %v1558, 4294901760
    %1597 = vmatpush1.msra.mxu0 %v1596
    %1598 = vmatprep.subr.mxu0 0.0
    %v1599 = vand.u32 %v1557, 4294901760
    %1600 = vmatpush1.msra.mxu0 %v1599
    %1601 = vmatprep.subr.mxu0 0.0
    %v1602 = vand.u32 %v1556, 4294901760
    %1603 = vmatpush1.msra.mxu0 %v1602
    %1604 = vmatprep.subr.mxu0 0.0
    %v1605 = vand.u32 %v1555, 4294901760
    %1606 = vmatpush1.msra.mxu0 %v1605
    %1607 = vmatprep.subr.mxu0 0.0
    %v1608 = vand.u32 %v1554, 4294901760
    %1609 = vmatpush1.msra.mxu0 %v1608
    %1610 = vmatprep.subr.mxu0 0.0
    %v1611 = vand.u32 %v1553, 4294901760
    %1612 = vmatpush1.msra.mxu0 %v1611
    %1613 = vmatprep.subr.mxu0 0.0
    %v1614 = vand.u32 %v1552, 4294901760
    %1615 = vmatpush1.msra.mxu0 %v1614
    %1616 = vmatprep.subr.mxu0 0.0
    %1617 = vmatpush2.msra.mxu0 0.0
    %1618 = vmatprep.subr.mxu0 0.0
    %1619 = vmatpush2.msra.mxu0 0.0
    %1620 = vmatprep.subr.mxu0 0.0
    %1621 = vmatpush2.msra.mxu0 0.0
    %1622 = vmatprep.subr.mxu0 0.0
    %1623 = vmatpush2.msra.mxu0 0.0
    %1624 = vmatprep.subr.mxu0 0.0
    %1625 = vmatpush2.msra.mxu0 0.0
    %1626 = vmatprep.subr.mxu0 0.0
    %1627 = vmatpush2.msra.mxu0 0.0
    %1628 = vmatprep.subr.mxu0 0.0
    %1629 = vmatpush2.msra.mxu0 0.0
    %1630 = vmatprep.subr.mxu0 0.0
    %1631 = vmatpush2.msra.mxu0 0.0
    %1632 = vmatprep.subr.mxu0 0.0
    %1633 = vmatpush2.msra.mxu0 0.0
    %1634 = vmatprep.subr.mxu0 0.0
    %1635 = vmatpush2.msra.mxu0 0.0
    %1636 = vmatprep.subr.mxu0 0.0
    %1637 = vmatpush2.msra.mxu0 0.0
    %1638 = vmatprep.subr.mxu0 0.0
    %1639 = vmatpush2.msra.mxu0 0.0
    %1640 = vmatprep.subr.mxu0 0.0
    %1641 = vmatpush2.msra.mxu0 0.0
    %1642 = vmatprep.subr.mxu0 0.0
    %1643 = vmatpush2.msra.mxu0 0.0
    %1644 = vmatprep.subr.mxu0 0.0
    %1645 = vmatpush2.msra.mxu0 0.0
    %1646 = vmatprep.subr.mxu0 0.0
    %1647 = vmatpush2.msra.mxu0 0.0
    %1648 = vmatprep.mubr.f32.mxu0 0.0
    %v1649 = vand.u32 %v1548, 4294901760
    %v1650 = vsub.f32 %v1548, %v1649
    %v1651 = vand.u32 %v1650, 4294901760
    %v1652 = vsub.f32 %v1650, %v1651
    %v1653 = vand.u32 %v1652, 4294901760
    %1654 = vmatmul.mubr.f32.gmra.mxu0 %v1653
    %v1655 = vpop.f32.mrf.mxu0
    %v1656 = vadd.f32 0.0, %v1655
    %v1657 = vpop.f32.mrf.mxu0
    %1658 = vmatprep.mubr.f32.mxu0 0.0
    %v1659 = vand.u32 %v1549, 4294901760
    %v1660 = vsub.f32 %v1549, %v1659
    %v1661 = vand.u32 %v1660, 4294901760
    %v1662 = vsub.f32 %v1660, %v1661
    %v1663 = vand.u32 %v1662, 4294901760
    %1664 = vmatmul.mubr.f32.gmra.mxu0 %v1663
    %v1665 = vpop.f32.mrf.mxu0
    %v1666 = vadd.f32 0.0, %v1665
    %v1667 = vpop.f32.mrf.mxu0
    %1668 = vmatprep.mubr.f32.mxu0 0.0
    %v1669 = vand.u32 %v1550, 4294901760
    %v1670 = vsub.f32 %v1550, %v1669
    %v1671 = vand.u32 %v1670, 4294901760
    %v1672 = vsub.f32 %v1670, %v1671
    %v1673 = vand.u32 %v1672, 4294901760
    %1674 = vmatmul.mubr.f32.gmra.mxu0 %v1673
    %v1675 = vpop.f32.mrf.mxu0
    %v1676 = vadd.f32 0.0, %v1675
    %v1677 = vpop.f32.mrf.mxu0
    %1678 = vmatprep.mubr.f32.mxu0 0.0
    %v1679 = vand.u32 %v1551, 4294901760
    %v1680 = vsub.f32 %v1551, %v1679
    %v1681 = vand.u32 %v1680, 4294901760
    %v1682 = vsub.f32 %v1680, %v1681
    %v1683 = vand.u32 %v1682, 4294901760
    %1684 = vmatmul.mubr.f32.gmra.mxu0 %v1683
    %v1685 = vpop.f32.mrf.mxu0
    %v1686 = vadd.f32 0.0, %v1685
    %v1687 = vpop.f32.mrf.mxu0
    %1688 = vdwg.mxu0
    %1689 = vmatprep.subr.mxu0 0.0
    %v1690 = vand.u32 %v1567, 4294901760
    %v1691 = vsub.f32 %v1567, %v1690
    %v1692 = vand.u32 %v1691, 4294901760
    %v1693 = vsub.f32 %v1691, %v1692
    %v1694 = vand.u32 %v1693, 4294901760
    %1695 = vmatpush1.msra.mxu0 %v1694
    %1696 = vmatprep.subr.mxu0 0.0
    %v1697 = vand.u32 %v1566, 4294901760
    %v1698 = vsub.f32 %v1566, %v1697
    %v1699 = vand.u32 %v1698, 4294901760
    %v1700 = vsub.f32 %v1698, %v1699
    %v1701 = vand.u32 %v1700, 4294901760
    %1702 = vmatpush1.msra.mxu0 %v1701
    %1703 = vmatprep.subr.mxu0 0.0
    %v1704 = vand.u32 %v1565, 4294901760
    %v1705 = vsub.f32 %v1565, %v1704
    %v1706 = vand.u32 %v1705, 4294901760
    %v1707 = vsub.f32 %v1705, %v1706
    %v1708 = vand.u32 %v1707, 4294901760
    %1709 = vmatpush1.msra.mxu0 %v1708
    %1710 = vmatprep.subr.mxu0 0.0
    %v1711 = vand.u32 %v1564, 4294901760
    %v1712 = vsub.f32 %v1564, %v1711
    %v1713 = vand.u32 %v1712, 4294901760
    %v1714 = vsub.f32 %v1712, %v1713
    %v1715 = vand.u32 %v1714, 4294901760
    %1716 = vmatpush1.msra.mxu0 %v1715
    %1717 = vmatprep.subr.mxu0 0.0
    %v1718 = vand.u32 %v1563, 4294901760
    %v1719 = vsub.f32 %v1563, %v1718
    %v1720 = vand.u32 %v1719, 4294901760
    %v1721 = vsub.f32 %v1719, %v1720
    %v1722 = vand.u32 %v1721, 4294901760
    %1723 = vmatpush1.msra.mxu0 %v1722
    %1724 = vmatprep.subr.mxu0 0.0
    %v1725 = vand.u32 %v1562, 4294901760
    %v1726 = vsub.f32 %v1562, %v1725
    %v1727 = vand.u32 %v1726, 4294901760
    %v1728 = vsub.f32 %v1726, %v1727
    %v1729 = vand.u32 %v1728, 4294901760
    %1730 = vmatpush1.msra.mxu0 %v1729
    %1731 = vmatprep.subr.mxu0 0.0
    %v1732 = vand.u32 %v1561, 4294901760
    %v1733 = vsub.f32 %v1561, %v1732
    %v1734 = vand.u32 %v1733, 4294901760
    %v1735 = vsub.f32 %v1733, %v1734
    %v1736 = vand.u32 %v1735, 4294901760
    %1737 = vmatpush1.msra.mxu0 %v1736
    %1738 = vmatprep.subr.mxu0 0.0
    %v1739 = vand.u32 %v1560, 4294901760
    %v1740 = vsub.f32 %v1560, %v1739
    %v1741 = vand.u32 %v1740, 4294901760
    %v1742 = vsub.f32 %v1740, %v1741
    %v1743 = vand.u32 %v1742, 4294901760
    %1744 = vmatpush1.msra.mxu0 %v1743
    %1745 = vmatprep.subr.mxu0 0.0
    %v1746 = vand.u32 %v1559, 4294901760
    %v1747 = vsub.f32 %v1559, %v1746
    %v1748 = vand.u32 %v1747, 4294901760
    %v1749 = vsub.f32 %v1747, %v1748
    %v1750 = vand.u32 %v1749, 4294901760
    %1751 = vmatpush1.msra.mxu0 %v1750
    %1752 = vmatprep.subr.mxu0 0.0
    %v1753 = vand.u32 %v1558, 4294901760
    %v1754 = vsub.f32 %v1558, %v1753
    %v1755 = vand.u32 %v1754, 4294901760
    %v1756 = vsub.f32 %v1754, %v1755
    %v1757 = vand.u32 %v1756, 4294901760
    %1758 = vmatpush1.msra.mxu0 %v1757
    %1759 = vmatprep.subr.mxu0 0.0
    %v1760 = vand.u32 %v1557, 4294901760
    %v1761 = vsub.f32 %v1557, %v1760
    %v1762 = vand.u32 %v1761, 4294901760
    %v1763 = vsub.f32 %v1761, %v1762
    %v1764 = vand.u32 %v1763, 4294901760
    %1765 = vmatpush1.msra.mxu0 %v1764
    %1766 = vmatprep.subr.mxu0 0.0
    %v1767 = vand.u32 %v1556, 4294901760
    %v1768 = vsub.f32 %v1556, %v1767
    %v1769 = vand.u32 %v1768, 4294901760
    %v1770 = vsub.f32 %v1768, %v1769
    %v1771 = vand.u32 %v1770, 4294901760
    %1772 = vmatpush1.msra.mxu0 %v1771
    %1773 = vmatprep.subr.mxu0 0.0
    %v1774 = vand.u32 %v1555, 4294901760
    %v1775 = vsub.f32 %v1555, %v1774
    %v1776 = vand.u32 %v1775, 4294901760
    %v1777 = vsub.f32 %v1775, %v1776
    %v1778 = vand.u32 %v1777, 4294901760
    %1779 = vmatpush1.msra.mxu0 %v1778
    %1780 = vmatprep.subr.mxu0 0.0
    %v1781 = vand.u32 %v1554, 4294901760
    %v1782 = vsub.f32 %v1554, %v1781
    %v1783 = vand.u32 %v1782, 4294901760
    %v1784 = vsub.f32 %v1782, %v1783
    %v1785 = vand.u32 %v1784, 4294901760
    %1786 = vmatpush1.msra.mxu0 %v1785
    %1787 = vmatprep.subr.mxu0 0.0
    %v1788 = vand.u32 %v1553, 4294901760
    %v1789 = vsub.f32 %v1553, %v1788
    %v1790 = vand.u32 %v1789, 4294901760
    %v1791 = vsub.f32 %v1789, %v1790
    %v1792 = vand.u32 %v1791, 4294901760
    %1793 = vmatpush1.msra.mxu0 %v1792
    %1794 = vmatprep.subr.mxu0 0.0
    %v1795 = vand.u32 %v1552, 4294901760
    %v1796 = vsub.f32 %v1552, %v1795
    %v1797 = vand.u32 %v1796, 4294901760
    %v1798 = vsub.f32 %v1796, %v1797
    %v1799 = vand.u32 %v1798, 4294901760
    %1800 = vmatpush1.msra.mxu0 %v1799
    %1801 = vmatprep.subr.mxu0 0.0
    %1802 = vmatpush2.msra.mxu0 0.0
    %1803 = vmatprep.subr.mxu0 0.0
    %1804 = vmatpush2.msra.mxu0 0.0
    %1805 = vmatprep.subr.mxu0 0.0
    %1806 = vmatpush2.msra.mxu0 0.0
    %1807 = vmatprep.subr.mxu0 0.0
    %1808 = vmatpush2.msra.mxu0 0.0
    %1809 = vmatprep.subr.mxu0 0.0
    %1810 = vmatpush2.msra.mxu0 0.0
    %1811 = vmatprep.subr.mxu0 0.0
    %1812 = vmatpush2.msra.mxu0 0.0
    %1813 = vmatprep.subr.mxu0 0.0
    %1814 = vmatpush2.msra.mxu0 0.0
    %1815 = vmatprep.subr.mxu0 0.0
    %1816 = vmatpush2.msra.mxu0 0.0
    %1817 = vmatprep.subr.mxu0 0.0
    %1818 = vmatpush2.msra.mxu0 0.0
    %1819 = vmatprep.subr.mxu0 0.0
    %1820 = vmatpush2.msra.mxu0 0.0
    %1821 = vmatprep.subr.mxu0 0.0
    %1822 = vmatpush2.msra.mxu0 0.0
    %1823 = vmatprep.subr.mxu0 0.0
    %1824 = vmatpush2.msra.mxu0 0.0
    %1825 = vmatprep.subr.mxu0 0.0
    %1826 = vmatpush2.msra.mxu0 0.0
    %1827 = vmatprep.subr.mxu0 0.0
    %1828 = vmatpush2.msra.mxu0 0.0
    %1829 = vmatprep.subr.mxu0 0.0
    %1830 = vmatpush2.msra.mxu0 0.0
    %1831 = vmatprep.subr.mxu0 0.0
    %1832 = vmatpush2.msra.mxu0 0.0
    %1833 = vmatprep.mubr.f32.mxu0 0.0
    %v1834 = vand.u32 %v1548, 4294901760
    %1835 = vmatmul.mubr.f32.gmra.mxu0 %v1834
    %v1836 = vpop.f32.mrf.mxu0
    %v1837 = vadd.f32 %v1656, %v1836
    %v1838 = vpop.f32.mrf.mxu0
    %1839 = vmatprep.mubr.f32.mxu0 0.0
    %v1840 = vand.u32 %v1549, 4294901760
    %1841 = vmatmul.mubr.f32.gmra.mxu0 %v1840
    %v1842 = vpop.f32.mrf.mxu0
    %v1843 = vadd.f32 %v1666, %v1842
    %v1844 = vpop.f32.mrf.mxu0
    %1845 = vmatprep.mubr.f32.mxu0 0.0
    %v1846 = vand.u32 %v1550, 4294901760
    %1847 = vmatmul.mubr.f32.gmra.mxu0 %v1846
    %v1848 = vpop.f32.mrf.mxu0
    %v1849 = vadd.f32 %v1676, %v1848
    %v1850 = vpop.f32.mrf.mxu0
    %1851 = vmatprep.mubr.f32.mxu0 0.0
    %v1852 = vand.u32 %v1551, 4294901760
    %1853 = vmatmul.mubr.f32.gmra.mxu0 %v1852
    %v1854 = vpop.f32.mrf.mxu0
    %v1855 = vadd.f32 %v1686, %v1854
    %v1856 = vpop.f32.mrf.mxu0
    %1857 = vdwg.mxu0
    %1858 = vmatprep.subr.mxu0 0.0
    %v1859 = vand.u32 %v1567, 4294901760
    %v1860 = vsub.f32 %v1567, %v1859
    %1861 = vmatpush1.msra.mxu0 %v1860
    %1862 = vmatprep.subr.mxu0 0.0
    %v1863 = vand.u32 %v1566, 4294901760
    %v1864 = vsub.f32 %v1566, %v1863
    %1865 = vmatpush1.msra.mxu0 %v1864
    %1866 = vmatprep.subr.mxu0 0.0
    %v1867 = vand.u32 %v1565, 4294901760
    %v1868 = vsub.f32 %v1565, %v1867
    %1869 = vmatpush1.msra.mxu0 %v1868
    %1870 = vmatprep.subr.mxu0 0.0
    %v1871 = vand.u32 %v1564, 4294901760
    %v1872 = vsub.f32 %v1564, %v1871
    %1873 = vmatpush1.msra.mxu0 %v1872
    %1874 = vmatprep.subr.mxu0 0.0
    %v1875 = vand.u32 %v1563, 4294901760
    %v1876 = vsub.f32 %v1563, %v1875
    %1877 = vmatpush1.msra.mxu0 %v1876
    %1878 = vmatprep.subr.mxu0 0.0
    %v1879 = vand.u32 %v1562, 4294901760
    %v1880 = vsub.f32 %v1562, %v1879
    %1881 = vmatpush1.msra.mxu0 %v1880
    %1882 = vmatprep.subr.mxu0 0.0
    %v1883 = vand.u32 %v1561, 4294901760
    %v1884 = vsub.f32 %v1561, %v1883
    %1885 = vmatpush1.msra.mxu0 %v1884
    %1886 = vmatprep.subr.mxu0 0.0
    %v1887 = vand.u32 %v1560, 4294901760
    %v1888 = vsub.f32 %v1560, %v1887
    %1889 = vmatpush1.msra.mxu0 %v1888
    %1890 = vmatprep.subr.mxu0 0.0
    %v1891 = vand.u32 %v1559, 4294901760
    %v1892 = vsub.f32 %v1559, %v1891
    %1893 = vmatpush1.msra.mxu0 %v1892
    %1894 = vmatprep.subr.mxu0 0.0
    %v1895 = vand.u32 %v1558, 4294901760
    %v1896 = vsub.f32 %v1558, %v1895
    %1897 = vmatpush1.msra.mxu0 %v1896
    %1898 = vmatprep.subr.mxu0 0.0
    %v1899 = vand.u32 %v1557, 4294901760
    %v1900 = vsub.f32 %v1557, %v1899
    %1901 = vmatpush1.msra.mxu0 %v1900
    %1902 = vmatprep.subr.mxu0 0.0
    %v1903 = vand.u32 %v1556, 4294901760
    %v1904 = vsub.f32 %v1556, %v1903
    %1905 = vmatpush1.msra.mxu0 %v1904
    %1906 = vmatprep.subr.mxu0 0.0
    %v1907 = vand.u32 %v1555, 4294901760
    %v1908 = vsub.f32 %v1555, %v1907
    %1909 = vmatpush1.msra.mxu0 %v1908
    %1910 = vmatprep.subr.mxu0 0.0
    %v1911 = vand.u32 %v1554, 4294901760
    %v1912 = vsub.f32 %v1554, %v1911
    %1913 = vmatpush1.msra.mxu0 %v1912
    %1914 = vmatprep.subr.mxu0 0.0
    %v1915 = vand.u32 %v1553, 4294901760
    %v1916 = vsub.f32 %v1553, %v1915
    %1917 = vmatpush1.msra.mxu0 %v1916
    %1918 = vmatprep.subr.mxu0 0.0
    %v1919 = vand.u32 %v1552, 4294901760
    %v1920 = vsub.f32 %v1552, %v1919
    %1921 = vmatpush1.msra.mxu0 %v1920
    %1922 = vmatprep.subr.mxu0 0.0
    %1923 = vmatpush2.msra.mxu0 0.0
    %1924 = vmatprep.subr.mxu0 0.0
    %1925 = vmatpush2.msra.mxu0 0.0
    %1926 = vmatprep.subr.mxu0 0.0
    %1927 = vmatpush2.msra.mxu0 0.0
    %1928 = vmatprep.subr.mxu0 0.0
    %1929 = vmatpush2.msra.mxu0 0.0
    %1930 = vmatprep.subr.mxu0 0.0
    %1931 = vmatpush2.msra.mxu0 0.0
    %1932 = vmatprep.subr.mxu0 0.0
    %1933 = vmatpush2.msra.mxu0 0.0
    %1934 = vmatprep.subr.mxu0 0.0
    %1935 = vmatpush2.msra.mxu0 0.0
    %1936 = vmatprep.subr.mxu0 0.0
    %1937 = vmatpush2.msra.mxu0 0.0
    %1938 = vmatprep.subr.mxu0 0.0
    %1939 = vmatpush2.msra.mxu0 0.0
    %1940 = vmatprep.subr.mxu0 0.0
    %1941 = vmatpush2.msra.mxu0 0.0
    %1942 = vmatprep.subr.mxu0 0.0
    %1943 = vmatpush2.msra.mxu0 0.0
    %1944 = vmatprep.subr.mxu0 0.0
    %1945 = vmatpush2.msra.mxu0 0.0
    %1946 = vmatprep.subr.mxu0 0.0
    %1947 = vmatpush2.msra.mxu0 0.0
    %1948 = vmatprep.subr.mxu0 0.0
    %1949 = vmatpush2.msra.mxu0 0.0
    %1950 = vmatprep.subr.mxu0 0.0
    %1951 = vmatpush2.msra.mxu0 0.0
    %1952 = vmatprep.subr.mxu0 0.0
    %1953 = vmatpush2.msra.mxu0 0.0
    %1954 = vmatprep.mubr.f32.mxu0 0.0
    %v1955 = vand.u32 %v1548, 4294901760
    %v1956 = vsub.f32 %v1548, %v1955
    %1957 = vmatmul.mubr.f32.gmra.mxu0 %v1956
    %v1958 = vpop.f32.mrf.mxu0
    %v1959 = vadd.f32 %v1837, %v1958
    %v1960 = vpop.f32.mrf.mxu0
    %1961 = vmatprep.mubr.f32.mxu0 0.0
    %v1962 = vand.u32 %v1549, 4294901760
    %v1963 = vsub.f32 %v1549, %v1962
    %1964 = vmatmul.mubr.f32.gmra.mxu0 %v1963
    %v1965 = vpop.f32.mrf.mxu0
    %v1966 = vadd.f32 %v1843, %v1965
    %v1967 = vpop.f32.mrf.mxu0
    %1968 = vmatprep.mubr.f32.mxu0 0.0
    %v1969 = vand.u32 %v1550, 4294901760
    %v1970 = vsub.f32 %v1550, %v1969
    %1971 = vmatmul.mubr.f32.gmra.mxu0 %v1970
    %v1972 = vpop.f32.mrf.mxu0
    %v1973 = vadd.f32 %v1849, %v1972
    %v1974 = vpop.f32.mrf.mxu0
    %1975 = vmatprep.mubr.f32.mxu0 0.0
    %v1976 = vand.u32 %v1551, 4294901760
    %v1977 = vsub.f32 %v1551, %v1976
    %1978 = vmatmul.mubr.f32.gmra.mxu0 %v1977
    %v1979 = vpop.f32.mrf.mxu0
    %v1980 = vadd.f32 %v1855, %v1979
    %v1981 = vpop.f32.mrf.mxu0
    %1982 = vdwg.mxu0
    %1983 = vmatprep.subr.mxu0 0.0
    %v1984 = vand.u32 %v1567, 4294901760
    %1985 = vmatpush1.msra.mxu0 %v1984
    %1986 = vmatprep.subr.mxu0 0.0
    %v1987 = vand.u32 %v1566, 4294901760
    %1988 = vmatpush1.msra.mxu0 %v1987
    %1989 = vmatprep.subr.mxu0 0.0
    %v1990 = vand.u32 %v1565, 4294901760
    %1991 = vmatpush1.msra.mxu0 %v1990
    %1992 = vmatprep.subr.mxu0 0.0
    %v1993 = vand.u32 %v1564, 4294901760
    %1994 = vmatpush1.msra.mxu0 %v1993
    %1995 = vmatprep.subr.mxu0 0.0
    %v1996 = vand.u32 %v1563, 4294901760
    %1997 = vmatpush1.msra.mxu0 %v1996
    %1998 = vmatprep.subr.mxu0 0.0
    %v1999 = vand.u32 %v1562, 4294901760
    %2000 = vmatpush1.msra.mxu0 %v1999
    %2001 = vmatprep.subr.mxu0 0.0
    %v2002 = vand.u32 %v1561, 4294901760
    %2003 = vmatpush1.msra.mxu0 %v2002
    %2004 = vmatprep.subr.mxu0 0.0
    %v2005 = vand.u32 %v1560, 4294901760
    %2006 = vmatpush1.msra.mxu0 %v2005
    %2007 = vmatprep.subr.mxu0 0.0
    %v2008 = vand.u32 %v1559, 4294901760
    %2009 = vmatpush1.msra.mxu0 %v2008
    %2010 = vmatprep.subr.mxu0 0.0
    %v2011 = vand.u32 %v1558, 4294901760
    %2012 = vmatpush1.msra.mxu0 %v2011
    %2013 = vmatprep.subr.mxu0 0.0
    %v2014 = vand.u32 %v1557, 4294901760
    %2015 = vmatpush1.msra.mxu0 %v2014
    %2016 = vmatprep.subr.mxu0 0.0
    %v2017 = vand.u32 %v1556, 4294901760
    %2018 = vmatpush1.msra.mxu0 %v2017
    %2019 = vmatprep.subr.mxu0 0.0
    %v2020 = vand.u32 %v1555, 4294901760
    %2021 = vmatpush1.msra.mxu0 %v2020
    %2022 = vmatprep.subr.mxu0 0.0
    %v2023 = vand.u32 %v1554, 4294901760
    %2024 = vmatpush1.msra.mxu0 %v2023
    %2025 = vmatprep.subr.mxu0 0.0
    %v2026 = vand.u32 %v1553, 4294901760
    %2027 = vmatpush1.msra.mxu0 %v2026
    %2028 = vmatprep.subr.mxu0 0.0
    %v2029 = vand.u32 %v1552, 4294901760
    %2030 = vmatpush1.msra.mxu0 %v2029
    %2031 = vmatprep.subr.mxu0 0.0
    %2032 = vmatpush2.msra.mxu0 0.0
    %2033 = vmatprep.subr.mxu0 0.0
    %2034 = vmatpush2.msra.mxu0 0.0
    %2035 = vmatprep.subr.mxu0 0.0
    %2036 = vmatpush2.msra.mxu0 0.0
    %2037 = vmatprep.subr.mxu0 0.0
    %2038 = vmatpush2.msra.mxu0 0.0
    %2039 = vmatprep.subr.mxu0 0.0
    %2040 = vmatpush2.msra.mxu0 0.0
    %2041 = vmatprep.subr.mxu0 0.0
    %2042 = vmatpush2.msra.mxu0 0.0
    %2043 = vmatprep.subr.mxu0 0.0
    %2044 = vmatpush2.msra.mxu0 0.0
    %2045 = vmatprep.subr.mxu0 0.0
    %2046 = vmatpush2.msra.mxu0 0.0
    %2047 = vmatprep.subr.mxu0 0.0
    %2048 = vmatpush2.msra.mxu0 0.0
    %2049 = vmatprep.subr.mxu0 0.0
    %2050 = vmatpush2.msra.mxu0 0.0
    %2051 = vmatprep.subr.mxu0 0.0
    %2052 = vmatpush2.msra.mxu0 0.0
    %2053 = vmatprep.subr.mxu0 0.0
    %2054 = vmatpush2.msra.mxu0 0.0
    %2055 = vmatprep.subr.mxu0 0.0
    %2056 = vmatpush2.msra.mxu0 0.0
    %2057 = vmatprep.subr.mxu0 0.0
    %2058 = vmatpush2.msra.mxu0 0.0
    %2059 = vmatprep.subr.mxu0 0.0
    %2060 = vmatpush2.msra.mxu0 0.0
    %2061 = vmatprep.subr.mxu0 0.0
    %2062 = vmatpush2.msra.mxu0 0.0
    %2063 = vmatprep.mubr.f32.mxu0 0.0
    %v2064 = vand.u32 %v1548, 4294901760
    %v2065 = vsub.f32 %v1548, %v2064
    %v2066 = vand.u32 %v2065, 4294901760
    %2067 = vmatmul.mubr.f32.gmra.mxu0 %v2066
    %v2068 = vpop.f32.mrf.mxu0
    %v2069 = vadd.f32 %v1959, %v2068
    %v2070 = vpop.f32.mrf.mxu0
    %2071 = vmatprep.mubr.f32.mxu0 0.0
    %v2072 = vand.u32 %v1549, 4294901760
    %v2073 = vsub.f32 %v1549, %v2072
    %v2074 = vand.u32 %v2073, 4294901760
    %2075 = vmatmul.mubr.f32.gmra.mxu0 %v2074
    %v2076 = vpop.f32.mrf.mxu0
    %v2077 = vadd.f32 %v1966, %v2076
    %v2078 = vpop.f32.mrf.mxu0
    %2079 = vmatprep.mubr.f32.mxu0 0.0
    %v2080 = vand.u32 %v1550, 4294901760
    %v2081 = vsub.f32 %v1550, %v2080
    %v2082 = vand.u32 %v2081, 4294901760
    %2083 = vmatmul.mubr.f32.gmra.mxu0 %v2082
    %v2084 = vpop.f32.mrf.mxu0
    %v2085 = vadd.f32 %v1973, %v2084
    %v2086 = vpop.f32.mrf.mxu0
    %2087 = vmatprep.mubr.f32.mxu0 0.0
    %v2088 = vand.u32 %v1551, 4294901760
    %v2089 = vsub.f32 %v1551, %v2088
    %v2090 = vand.u32 %v2089, 4294901760
    %2091 = vmatmul.mubr.f32.gmra.mxu0 %v2090
    %v2092 = vpop.f32.mrf.mxu0
    %v2093 = vadd.f32 %v1980, %v2092
    %v2094 = vpop.f32.mrf.mxu0
    %2095 = vdwg.mxu0
    %2096 = vmatprep.subr.mxu0 0.0
    %v2097 = vand.u32 %v1567, 4294901760
    %v2098 = vsub.f32 %v1567, %v2097
    %v2099 = vand.u32 %v2098, 4294901760
    %2100 = vmatpush1.msra.mxu0 %v2099
    %2101 = vmatprep.subr.mxu0 0.0
    %v2102 = vand.u32 %v1566, 4294901760
    %v2103 = vsub.f32 %v1566, %v2102
    %v2104 = vand.u32 %v2103, 4294901760
    %2105 = vmatpush1.msra.mxu0 %v2104
    %2106 = vmatprep.subr.mxu0 0.0
    %v2107 = vand.u32 %v1565, 4294901760
    %v2108 = vsub.f32 %v1565, %v2107
    %v2109 = vand.u32 %v2108, 4294901760
    %2110 = vmatpush1.msra.mxu0 %v2109
    %2111 = vmatprep.subr.mxu0 0.0
    %v2112 = vand.u32 %v1564, 4294901760
    %v2113 = vsub.f32 %v1564, %v2112
    %v2114 = vand.u32 %v2113, 4294901760
    %2115 = vmatpush1.msra.mxu0 %v2114
    %2116 = vmatprep.subr.mxu0 0.0
    %v2117 = vand.u32 %v1563, 4294901760
    %v2118 = vsub.f32 %v1563, %v2117
    %v2119 = vand.u32 %v2118, 4294901760
    %2120 = vmatpush1.msra.mxu0 %v2119
    %2121 = vmatprep.subr.mxu0 0.0
    %v2122 = vand.u32 %v1562, 4294901760
    %v2123 = vsub.f32 %v1562, %v2122
    %v2124 = vand.u32 %v2123, 4294901760
    %2125 = vmatpush1.msra.mxu0 %v2124
    %2126 = vmatprep.subr.mxu0 0.0
    %v2127 = vand.u32 %v1561, 4294901760
    %v2128 = vsub.f32 %v1561, %v2127
    %v2129 = vand.u32 %v2128, 4294901760
    %2130 = vmatpush1.msra.mxu0 %v2129
    %2131 = vmatprep.subr.mxu0 0.0
    %v2132 = vand.u32 %v1560, 4294901760
    %v2133 = vsub.f32 %v1560, %v2132
    %v2134 = vand.u32 %v2133, 4294901760
    %2135 = vmatpush1.msra.mxu0 %v2134
    %2136 = vmatprep.subr.mxu0 0.0
    %v2137 = vand.u32 %v1559, 4294901760
    %v2138 = vsub.f32 %v1559, %v2137
    %v2139 = vand.u32 %v2138, 4294901760
    %2140 = vmatpush1.msra.mxu0 %v2139
    %2141 = vmatprep.subr.mxu0 0.0
    %v2142 = vand.u32 %v1558, 4294901760
    %v2143 = vsub.f32 %v1558, %v2142
    %v2144 = vand.u32 %v2143, 4294901760
    %2145 = vmatpush1.msra.mxu0 %v2144
    %2146 = vmatprep.subr.mxu0 0.0
    %v2147 = vand.u32 %v1557, 4294901760
    %v2148 = vsub.f32 %v1557, %v2147
    %v2149 = vand.u32 %v2148, 4294901760
    %2150 = vmatpush1.msra.mxu0 %v2149
    %2151 = vmatprep.subr.mxu0 0.0
    %v2152 = vand.u32 %v1556, 4294901760
    %v2153 = vsub.f32 %v1556, %v2152
    %v2154 = vand.u32 %v2153, 4294901760
    %2155 = vmatpush1.msra.mxu0 %v2154
    %2156 = vmatprep.subr.mxu0 0.0
    %v2157 = vand.u32 %v1555, 4294901760
    %v2158 = vsub.f32 %v1555, %v2157
    %v2159 = vand.u32 %v2158, 4294901760
    %2160 = vmatpush1.msra.mxu0 %v2159
    %2161 = vmatprep.subr.mxu0 0.0
    %v2162 = vand.u32 %v1554, 4294901760
    %v2163 = vsub.f32 %v1554, %v2162
    %v2164 = vand.u32 %v2163, 4294901760
    %2165 = vmatpush1.msra.mxu0 %v2164
    %2166 = vmatprep.subr.mxu0 0.0
    %v2167 = vand.u32 %v1553, 4294901760
    %v2168 = vsub.f32 %v1553, %v2167
    %v2169 = vand.u32 %v2168, 4294901760
    %2170 = vmatpush1.msra.mxu0 %v2169
    %2171 = vmatprep.subr.mxu0 0.0
    %v2172 = vand.u32 %v1552, 4294901760
    %v2173 = vsub.f32 %v1552, %v2172
    %v2174 = vand.u32 %v2173, 4294901760
    %2175 = vmatpush1.msra.mxu0 %v2174
    %2176 = vmatprep.subr.mxu0 0.0
    %2177 = vmatpush2.msra.mxu0 0.0
    %2178 = vmatprep.subr.mxu0 0.0
    %2179 = vmatpush2.msra.mxu0 0.0
    %2180 = vmatprep.subr.mxu0 0.0
    %2181 = vmatpush2.msra.mxu0 0.0
    %2182 = vmatprep.subr.mxu0 0.0
    %2183 = vmatpush2.msra.mxu0 0.0
    %2184 = vmatprep.subr.mxu0 0.0
    %2185 = vmatpush2.msra.mxu0 0.0
    %2186 = vmatprep.subr.mxu0 0.0
    %2187 = vmatpush2.msra.mxu0 0.0
    %2188 = vmatprep.subr.mxu0 0.0
    %2189 = vmatpush2.msra.mxu0 0.0
    %2190 = vmatprep.subr.mxu0 0.0
    %2191 = vmatpush2.msra.mxu0 0.0
    %2192 = vmatprep.subr.mxu0 0.0
    %2193 = vmatpush2.msra.mxu0 0.0
    %2194 = vmatprep.subr.mxu0 0.0
    %2195 = vmatpush2.msra.mxu0 0.0
    %2196 = vmatprep.subr.mxu0 0.0
    %2197 = vmatpush2.msra.mxu0 0.0
    %2198 = vmatprep.subr.mxu0 0.0
    %2199 = vmatpush2.msra.mxu0 0.0
    %2200 = vmatprep.subr.mxu0 0.0
    %2201 = vmatpush2.msra.mxu0 0.0
    %2202 = vmatprep.subr.mxu0 0.0
    %2203 = vmatpush2.msra.mxu0 0.0
    %2204 = vmatprep.subr.mxu0 0.0
    %2205 = vmatpush2.msra.mxu0 0.0
    %2206 = vmatprep.subr.mxu0 0.0
    %2207 = vmatpush2.msra.mxu0 0.0
    %2208 = vmatprep.mubr.f32.mxu0 0.0
    %v2209 = vand.u32 %v1548, 4294901760
    %2210 = vmatmul.mubr.f32.gmra.mxu0 %v2209
    %v2211 = vpop.f32.mrf.mxu0
    %v2212 = vadd.f32 %v2069, %v2211
    %v2213 = vpop.f32.mrf.mxu0
    %2214 = vmatprep.mubr.f32.mxu0 0.0
    %v2215 = vand.u32 %v1549, 4294901760
    %2216 = vmatmul.mubr.f32.gmra.mxu0 %v2215
    %v2217 = vpop.f32.mrf.mxu0
    %v2218 = vadd.f32 %v2077, %v2217
    %v2219 = vpop.f32.mrf.mxu0
    %2220 = vmatprep.mubr.f32.mxu0 0.0
    %v2221 = vand.u32 %v1550, 4294901760
    %2222 = vmatmul.mubr.f32.gmra.mxu0 %v2221
    %v2223 = vpop.f32.mrf.mxu0
    %v2224 = vadd.f32 %v2085, %v2223
    %v2225 = vpop.f32.mrf.mxu0
    %2226 = vmatprep.mubr.f32.mxu0 0.0
    %v2227 = vand.u32 %v1551, 4294901760
    %2228 = vmatmul.mubr.f32.gmra.mxu0 %v2227
    %v2229 = vpop.f32.mrf.mxu0
    %v2230 = vadd.f32 %v2093, %v2229
    %v2231 = vpop.f32.mrf.mxu0
    %2232 = vdwg.mxu0
    %2233 = vmatprep.subr.mxu0 0.0
    %v2234 = vand.u32 %v1567, 4294901760
    %2235 = vmatpush1.msra.mxu0 %v2234
    %2236 = vmatprep.subr.mxu0 0.0
    %v2237 = vand.u32 %v1566, 4294901760
    %2238 = vmatpush1.msra.mxu0 %v2237
    %2239 = vmatprep.subr.mxu0 0.0
    %v2240 = vand.u32 %v1565, 4294901760
    %2241 = vmatpush1.msra.mxu0 %v2240
    %2242 = vmatprep.subr.mxu0 0.0
    %v2243 = vand.u32 %v1564, 4294901760
    %2244 = vmatpush1.msra.mxu0 %v2243
    %2245 = vmatprep.subr.mxu0 0.0
    %v2246 = vand.u32 %v1563, 4294901760
    %2247 = vmatpush1.msra.mxu0 %v2246
    %2248 = vmatprep.subr.mxu0 0.0
    %v2249 = vand.u32 %v1562, 4294901760
    %2250 = vmatpush1.msra.mxu0 %v2249
    %2251 = vmatprep.subr.mxu0 0.0
    %v2252 = vand.u32 %v1561, 4294901760
    %2253 = vmatpush1.msra.mxu0 %v2252
    %2254 = vmatprep.subr.mxu0 0.0
    %v2255 = vand.u32 %v1560, 4294901760
    %2256 = vmatpush1.msra.mxu0 %v2255
    %2257 = vmatprep.subr.mxu0 0.0
    %v2258 = vand.u32 %v1559, 4294901760
    %2259 = vmatpush1.msra.mxu0 %v2258
    %2260 = vmatprep.subr.mxu0 0.0
    %v2261 = vand.u32 %v1558, 4294901760
    %2262 = vmatpush1.msra.mxu0 %v2261
    %2263 = vmatprep.subr.mxu0 0.0
    %v2264 = vand.u32 %v1557, 4294901760
    %2265 = vmatpush1.msra.mxu0 %v2264
    %2266 = vmatprep.subr.mxu0 0.0
    %v2267 = vand.u32 %v1556, 4294901760
    %2268 = vmatpush1.msra.mxu0 %v2267
    %2269 = vmatprep.subr.mxu0 0.0
    %v2270 = vand.u32 %v1555, 4294901760
    %2271 = vmatpush1.msra.mxu0 %v2270
    %2272 = vmatprep.subr.mxu0 0.0
    %v2273 = vand.u32 %v1554, 4294901760
    %2274 = vmatpush1.msra.mxu0 %v2273
    %2275 = vmatprep.subr.mxu0 0.0
    %v2276 = vand.u32 %v1553, 4294901760
    %2277 = vmatpush1.msra.mxu0 %v2276
    %2278 = vmatprep.subr.mxu0 0.0
    %v2279 = vand.u32 %v1552, 4294901760
    %2280 = vmatpush1.msra.mxu0 %v2279
    %2281 = vmatprep.subr.mxu0 0.0
    %2282 = vmatpush2.msra.mxu0 0.0
    %2283 = vmatprep.subr.mxu0 0.0
    %2284 = vmatpush2.msra.mxu0 0.0
    %2285 = vmatprep.subr.mxu0 0.0
    %2286 = vmatpush2.msra.mxu0 0.0
    %2287 = vmatprep.subr.mxu0 0.0
    %2288 = vmatpush2.msra.mxu0 0.0
    %2289 = vmatprep.subr.mxu0 0.0
    %2290 = vmatpush2.msra.mxu0 0.0
    %2291 = vmatprep.subr.mxu0 0.0
    %2292 = vmatpush2.msra.mxu0 0.0
    %2293 = vmatprep.subr.mxu0 0.0
    %2294 = vmatpush2.msra.mxu0 0.0
    %2295 = vmatprep.subr.mxu0 0.0
    %2296 = vmatpush2.msra.mxu0 0.0
    %2297 = vmatprep.subr.mxu0 0.0
    %2298 = vmatpush2.msra.mxu0 0.0
    %2299 = vmatprep.subr.mxu0 0.0
    %2300 = vmatpush2.msra.mxu0 0.0
    %2301 = vmatprep.subr.mxu0 0.0
    %2302 = vmatpush2.msra.mxu0 0.0
    %2303 = vmatprep.subr.mxu0 0.0
    %2304 = vmatpush2.msra.mxu0 0.0
    %2305 = vmatprep.subr.mxu0 0.0
    %2306 = vmatpush2.msra.mxu0 0.0
    %2307 = vmatprep.subr.mxu0 0.0
    %2308 = vmatpush2.msra.mxu0 0.0
    %2309 = vmatprep.subr.mxu0 0.0
    %2310 = vmatpush2.msra.mxu0 0.0
    %2311 = vmatprep.subr.mxu0 0.0
    %2312 = vmatpush2.msra.mxu0 0.0
    %2313 = vmatprep.mubr.f32.mxu0 0.0
    %v2314 = vand.u32 %v1548, 4294901760
    %2315 = vmatmul.mubr.f32.gmra.mxu0 %v2314
    %v2316 = vpop.f32.mrf.mxu0
    %v2317 = vadd.f32 %v2212, %v2316
    %v2318 = vpop.f32.mrf.mxu0
    %2319 = vmatprep.mubr.f32.mxu0 0.0
    %v2320 = vand.u32 %v1549, 4294901760
    %2321 = vmatmul.mubr.f32.gmra.mxu0 %v2320
    %v2322 = vpop.f32.mrf.mxu0
    %v2323 = vadd.f32 %v2218, %v2322
    %v2324 = vpop.f32.mrf.mxu0
    %2325 = vmatprep.mubr.f32.mxu0 0.0
    %v2326 = vand.u32 %v1550, 4294901760
    %2327 = vmatmul.mubr.f32.gmra.mxu0 %v2326
    %v2328 = vpop.f32.mrf.mxu0
    %v2329 = vadd.f32 %v2224, %v2328
    %v2330 = vpop.f32.mrf.mxu0
    %2331 = vmatprep.mubr.f32.mxu0 0.0
    %v2332 = vand.u32 %v1551, 4294901760
    %2333 = vmatmul.mubr.f32.gmra.mxu0 %v2332
    %v2334 = vpop.f32.mrf.mxu0
    %v2335 = vadd.f32 %v2230, %v2334
    %v2336 = vpop.f32.mrf.mxu0
    %2337 = vdwg.mxu0
    %v2338 = vadd.f32 %v2317, %v2323
    %v2339 = vrot.slane %v2338, 4
    %v2340 = vadd.f32 %v2338, %v2339
    %v2341 = vrot.slane %v2340, 2
    %v2342 = vadd.f32 %v2340, %v2341
    %v2343 = vrot.slane %v2342, 1
    %v2344 = vadd.f32 %v2342, %v2343
    %v2345 = vadd.f32 %v2329, %v2335
    %v2346 = vrot.slane %v2345, 4
    %v2347 = vadd.f32 %v2345, %v2346
    %v2348 = vrot.slane %v2347, 2
    %v2349 = vadd.f32 %v2347, %v2348
    %v2350 = vrot.slane %v2349, 1
    %v2351 = vadd.f32 %v2349, %v2350
    %v2352 = vmul.f32 %v2344, %v1502
    %v2353 = vmul.f32 %v2351, %v1502
    %v2354 = vsub.f32 %v2317, %v2352
    %v2355 = vsub.f32 %v2323, %v2352
    %v2356 = vsub.f32 %v2329, %v2353
    %v2357 = vsub.f32 %v2335, %v2353
    %v2358 = vmul.f32 %v2354, %v2354
    %v2359 = vmul.f32 %v2355, %v2355
    %v2360 = vmul.f32 %v2356, %v2356
    %v2361 = vmul.f32 %v2357, %v2357
    %v2362 = vadd.f32 %v2358, %v2359
    %v2363 = vrot.slane %v2362, 4
    %v2364 = vadd.f32 %v2362, %v2363
    %v2365 = vrot.slane %v2364, 2
    %v2366 = vadd.f32 %v2364, %v2365
    %v2367 = vrot.slane %v2366, 1
    %v2368 = vadd.f32 %v2366, %v2367
    %v2369 = vadd.f32 %v2360, %v2361
    %v2370 = vrot.slane %v2369, 4
    %v2371 = vadd.f32 %v2369, %v2370
    %v2372 = vrot.slane %v2371, 2
    %v2373 = vadd.f32 %v2371, %v2372
    %v2374 = vrot.slane %v2373, 1
    %v2375 = vadd.f32 %v2373, %v2374
    %v2376 = vmul.f32 %v2368, %v1502
    %v2377 = vmul.f32 %v2375, %v1502
    %v2378 = vadd.f32 %v2376, 1e-05
    %v2379 = vadd.f32 %v2377, 1e-05
    %v2380 = vrsqrt.pop %v2378
    %v2381 = vrsqrt.pop %v2379
    %v2382 = vmul.f32 %v2376, %v2380
    %v2383 = vmul.f32 %v2377, %v2381
    %v2384 = vmul.f32 %v2382, %v2380
    %v2385 = vmul.f32 %v2383, %v2381
    %v2386 = vadd.f32 %v2384, %v2385
    %v2387 = vmul.f32 %v2386, %v1538
    %v2388 = vadd.f32 %v2387, 1e-05
    %v2389 = vrsqrt.pop %v2388
    %v2390 = vmul.f32 %v2380, %v2389
    %v2391 = vmul.f32 %v2381, %v2389
    %v2392 = vmul.f32 %v2354, %v2390
    %v2393 = vmul.f32 %v2355, %v2390
    %v2394 = vmul.f32 %v2356, %v2391
    %v2395 = vmul.f32 %v2357, %v2391
    %v2396 = vmax.f32 %v2392, 0.0
    %v2397 = vmax.f32 %v2393, 0.0
    %v2398 = vmax.f32 %v2394, 0.0
    %v2399 = vmax.f32 %v2395, 0.0
    %v2400 = vadd.f32 %v2396, %v698
    %v2401 = vadd.f32 %v2397, %v699
    %v2402 = vadd.f32 %v2398, %v700
    %v2403 = vadd.f32 %v2399, %v701
    %s2404 = scalar_lea.vmem [#allocation8], 128
    %v2405 = vld [vmem:[%s2404] sm:$0xff]
    %v2406 = vld [vmem:[%s2404 + $0x8] sm:$0xff]
    %v2407 = vld [vmem:[%s2404 + $0x10] sm:$0xff]
    %v2408 = vld [vmem:[%s2404 + $0x18] sm:$0xff]
    %v2409 = vld [vmem:[%s2404 + $0x20] sm:$0xff]
    %v2410 = vld [vmem:[%s2404 + $0x28] sm:$0xff]
    %v2411 = vld [vmem:[%s2404 + $0x30] sm:$0xff]
    %v2412 = vld [vmem:[%s2404 + $0x38] sm:$0xff]
    %v2413 = vld [vmem:[%s2404 + $0x40] sm:$0xff]
    %v2414 = vld [vmem:[%s2404 + $0x48] sm:$0xff]
    %v2415 = vld [vmem:[%s2404 + $0x50] sm:$0xff]
    %v2416 = vld [vmem:[%s2404 + $0x58] sm:$0xff]
    %v2417 = vld [vmem:[%s2404 + $0x60] sm:$0xff]
    %v2418 = vld [vmem:[%s2404 + $0x68] sm:$0xff]
    %v2419 = vld [vmem:[%s2404 + $0x70] sm:$0xff]
    %v2420 = vld [vmem:[%s2404 + $0x78] sm:$0xff]
    %2421 = vmatprep.subr.mxu0 0.0
    %v2422 = vand.u32 %v2420, 4294901760
    %2423 = vmatpush1.msra.mxu0 %v2422
    %2424 = vmatprep.subr.mxu0 0.0
    %v2425 = vand.u32 %v2419, 4294901760
    %2426 = vmatpush1.msra.mxu0 %v2425
    %2427 = vmatprep.subr.mxu0 0.0
    %v2428 = vand.u32 %v2418, 4294901760
    %2429 = vmatpush1.msra.mxu0 %v2428
    %2430 = vmatprep.subr.mxu0 0.0
    %v2431 = vand.u32 %v2417, 4294901760
    %2432 = vmatpush1.msra.mxu0 %v2431
    %2433 = vmatprep.subr.mxu0 0.0
    %v2434 = vand.u32 %v2416, 4294901760
    %2435 = vmatpush1.msra.mxu0 %v2434
    %2436 = vmatprep.subr.mxu0 0.0
    %v2437 = vand.u32 %v2415, 4294901760
    %2438 = vmatpush1.msra.mxu0 %v2437
    %2439 = vmatprep.subr.mxu0 0.0
    %v2440 = vand.u32 %v2414, 4294901760
    %2441 = vmatpush1.msra.mxu0 %v2440
    %2442 = vmatprep.subr.mxu0 0.0
    %v2443 = vand.u32 %v2413, 4294901760
    %2444 = vmatpush1.msra.mxu0 %v2443
    %2445 = vmatprep.subr.mxu0 0.0
    %v2446 = vand.u32 %v2412, 4294901760
    %2447 = vmatpush1.msra.mxu0 %v2446
    %2448 = vmatprep.subr.mxu0 0.0
    %v2449 = vand.u32 %v2411, 4294901760
    %2450 = vmatpush1.msra.mxu0 %v2449
    %2451 = vmatprep.subr.mxu0 0.0
    %v2452 = vand.u32 %v2410, 4294901760
    %2453 = vmatpush1.msra.mxu0 %v2452
    %2454 = vmatprep.subr.mxu0 0.0
    %v2455 = vand.u32 %v2409, 4294901760
    %2456 = vmatpush1.msra.mxu0 %v2455
    %2457 = vmatprep.subr.mxu0 0.0
    %v2458 = vand.u32 %v2408, 4294901760
    %2459 = vmatpush1.msra.mxu0 %v2458
    %2460 = vmatprep.subr.mxu0 0.0
    %v2461 = vand.u32 %v2407, 4294901760
    %2462 = vmatpush1.msra.mxu0 %v2461
    %2463 = vmatprep.subr.mxu0 0.0
    %v2464 = vand.u32 %v2406, 4294901760
    %2465 = vmatpush1.msra.mxu0 %v2464
    %2466 = vmatprep.subr.mxu0 0.0
    %v2467 = vand.u32 %v2405, 4294901760
    %2468 = vmatpush1.msra.mxu0 %v2467
    %2469 = vmatprep.subr.mxu0 0.0
    %2470 = vmatpush2.msra.mxu0 0.0
    %2471 = vmatprep.subr.mxu0 0.0
    %2472 = vmatpush2.msra.mxu0 0.0
    %2473 = vmatprep.subr.mxu0 0.0
    %2474 = vmatpush2.msra.mxu0 0.0
    %2475 = vmatprep.subr.mxu0 0.0
    %2476 = vmatpush2.msra.mxu0 0.0
    %2477 = vmatprep.subr.mxu0 0.0
    %2478 = vmatpush2.msra.mxu0 0.0
    %2479 = vmatprep.subr.mxu0 0.0
    %2480 = vmatpush2.msra.mxu0 0.0
    %2481 = vmatprep.subr.mxu0 0.0
    %2482 = vmatpush2.msra.mxu0 0.0
    %2483 = vmatprep.subr.mxu0 0.0
    %2484 = vmatpush2.msra.mxu0 0.0
    %2485 = vmatprep.subr.mxu0 0.0
    %2486 = vmatpush2.msra.mxu0 0.0
    %2487 = vmatprep.subr.mxu0 0.0
    %2488 = vmatpush2.msra.mxu0 0.0
    %2489 = vmatprep.subr.mxu0 0.0
    %2490 = vmatpush2.msra.mxu0 0.0
    %2491 = vmatprep.subr.mxu0 0.0
    %2492 = vmatpush2.msra.mxu0 0.0
    %2493 = vmatprep.subr.mxu0 0.0
    %2494 = vmatpush2.msra.mxu0 0.0
    %2495 = vmatprep.subr.mxu0 0.0
    %2496 = vmatpush2.msra.mxu0 0.0
    %2497 = vmatprep.subr.mxu0 0.0
    %2498 = vmatpush2.msra.mxu0 0.0
    %2499 = vmatprep.subr.mxu0 0.0
    %2500 = vmatpush2.msra.mxu0 0.0
    %2501 = vmatprep.mubr.f32.mxu0 0.0
    %v2502 = vand.u32 %v2400, 4294901760
    %v2503 = vsub.f32 %v2400, %v2502
    %v2504 = vand.u32 %v2503, 4294901760
    %v2505 = vsub.f32 %v2503, %v2504
    %v2506 = vand.u32 %v2505, 4294901760
    %2507 = vmatmul.mubr.f32.gmra.mxu0 %v2506
    %v2508 = vpop.f32.mrf.mxu0
    %v2509 = vadd.f32 0.0, %v2508
    %v2510 = vpop.f32.mrf.mxu0
    %2511 = vmatprep.mubr.f32.mxu0 0.0
    %v2512 = vand.u32 %v2401, 4294901760
    %v2513 = vsub.f32 %v2401, %v2512
    %v2514 = vand.u32 %v2513, 4294901760
    %v2515 = vsub.f32 %v2513, %v2514
    %v2516 = vand.u32 %v2515, 4294901760
    %2517 = vmatmul.mubr.f32.gmra.mxu0 %v2516
    %v2518 = vpop.f32.mrf.mxu0
    %v2519 = vadd.f32 0.0, %v2518
    %v2520 = vpop.f32.mrf.mxu0
    %2521 = vmatprep.mubr.f32.mxu0 0.0
    %v2522 = vand.u32 %v2402, 4294901760
    %v2523 = vsub.f32 %v2402, %v2522
    %v2524 = vand.u32 %v2523, 4294901760
    %v2525 = vsub.f32 %v2523, %v2524
    %v2526 = vand.u32 %v2525, 4294901760
    %2527 = vmatmul.mubr.f32.gmra.mxu0 %v2526
    %v2528 = vpop.f32.mrf.mxu0
    %v2529 = vadd.f32 0.0, %v2528
    %v2530 = vpop.f32.mrf.mxu0
    %2531 = vmatprep.mubr.f32.mxu0 0.0
    %v2532 = vand.u32 %v2403, 4294901760
    %v2533 = vsub.f32 %v2403, %v2532
    %v2534 = vand.u32 %v2533, 4294901760
    %v2535 = vsub.f32 %v2533, %v2534
    %v2536 = vand.u32 %v2535, 4294901760
    %2537 = vmatmul.mubr.f32.gmra.mxu0 %v2536
    %v2538 = vpop.f32.mrf.mxu0
    %v2539 = vadd.f32 0.0, %v2538
    %v2540 = vpop.f32.mrf.mxu0
    %2541 = vdwg.mxu0
    %2542 = vmatprep.subr.mxu0 0.0
    %v2543 = vand.u32 %v2420, 4294901760
    %v2544 = vsub.f32 %v2420, %v2543
    %v2545 = vand.u32 %v2544, 4294901760
    %v2546 = vsub.f32 %v2544, %v2545
    %v2547 = vand.u32 %v2546, 4294901760
    %2548 = vmatpush1.msra.mxu0 %v2547
    %2549 = vmatprep.subr.mxu0 0.0
    %v2550 = vand.u32 %v2419, 4294901760
    %v2551 = vsub.f32 %v2419, %v2550
    %v2552 = vand.u32 %v2551, 4294901760
    %v2553 = vsub.f32 %v2551, %v2552
    %v2554 = vand.u32 %v2553, 4294901760
    %2555 = vmatpush1.msra.mxu0 %v2554
    %2556 = vmatprep.subr.mxu0 0.0
    %v2557 = vand.u32 %v2418, 4294901760
    %v2558 = vsub.f32 %v2418, %v2557
    %v2559 = vand.u32 %v2558, 4294901760
    %v2560 = vsub.f32 %v2558, %v2559
    %v2561 = vand.u32 %v2560, 4294901760
    %2562 = vmatpush1.msra.mxu0 %v2561
    %2563 = vmatprep.subr.mxu0 0.0
    %v2564 = vand.u32 %v2417, 4294901760
    %v2565 = vsub.f32 %v2417, %v2564
    %v2566 = vand.u32 %v2565, 4294901760
    %v2567 = vsub.f32 %v2565, %v2566
    %v2568 = vand.u32 %v2567, 4294901760
    %2569 = vmatpush1.msra.mxu0 %v2568
    %2570 = vmatprep.subr.mxu0 0.0
    %v2571 = vand.u32 %v2416, 4294901760
    %v2572 = vsub.f32 %v2416, %v2571
    %v2573 = vand.u32 %v2572, 4294901760
    %v2574 = vsub.f32 %v2572, %v2573
    %v2575 = vand.u32 %v2574, 4294901760
    %2576 = vmatpush1.msra.mxu0 %v2575
    %2577 = vmatprep.subr.mxu0 0.0
    %v2578 = vand.u32 %v2415, 4294901760
    %v2579 = vsub.f32 %v2415, %v2578
    %v2580 = vand.u32 %v2579, 4294901760
    %v2581 = vsub.f32 %v2579, %v2580
    %v2582 = vand.u32 %v2581, 4294901760
    %2583 = vmatpush1.msra.mxu0 %v2582
    %2584 = vmatprep.subr.mxu0 0.0
    %v2585 = vand.u32 %v2414, 4294901760
    %v2586 = vsub.f32 %v2414, %v2585
    %v2587 = vand.u32 %v2586, 4294901760
    %v2588 = vsub.f32 %v2586, %v2587
    %v2589 = vand.u32 %v2588, 4294901760
    %2590 = vmatpush1.msra.mxu0 %v2589
    %2591 = vmatprep.subr.mxu0 0.0
    %v2592 = vand.u32 %v2413, 4294901760
    %v2593 = vsub.f32 %v2413, %v2592
    %v2594 = vand.u32 %v2593, 4294901760
    %v2595 = vsub.f32 %v2593, %v2594
    %v2596 = vand.u32 %v2595, 4294901760
    %2597 = vmatpush1.msra.mxu0 %v2596
    %2598 = vmatprep.subr.mxu0 0.0
    %v2599 = vand.u32 %v2412, 4294901760
    %v2600 = vsub.f32 %v2412, %v2599
    %v2601 = vand.u32 %v2600, 4294901760
    %v2602 = vsub.f32 %v2600, %v2601
    %v2603 = vand.u32 %v2602, 4294901760
    %2604 = vmatpush1.msra.mxu0 %v2603
    %2605 = vmatprep.subr.mxu0 0.0
    %v2606 = vand.u32 %v2411, 4294901760
    %v2607 = vsub.f32 %v2411, %v2606
    %v2608 = vand.u32 %v2607, 4294901760
    %v2609 = vsub.f32 %v2607, %v2608
    %v2610 = vand.u32 %v2609, 4294901760
    %2611 = vmatpush1.msra.mxu0 %v2610
    %2612 = vmatprep.subr.mxu0 0.0
    %v2613 = vand.u32 %v2410, 4294901760
    %v2614 = vsub.f32 %v2410, %v2613
    %v2615 = vand.u32 %v2614, 4294901760
    %v2616 = vsub.f32 %v2614, %v2615
    %v2617 = vand.u32 %v2616, 4294901760
    %2618 = vmatpush1.msra.mxu0 %v2617
    %2619 = vmatprep.subr.mxu0 0.0
    %v2620 = vand.u32 %v2409, 4294901760
    %v2621 = vsub.f32 %v2409, %v2620
    %v2622 = vand.u32 %v2621, 4294901760
    %v2623 = vsub.f32 %v2621, %v2622
    %v2624 = vand.u32 %v2623, 4294901760
    %2625 = vmatpush1.msra.mxu0 %v2624
    %2626 = vmatprep.subr.mxu0 0.0
    %v2627 = vand.u32 %v2408, 4294901760
    %v2628 = vsub.f32 %v2408, %v2627
    %v2629 = vand.u32 %v2628, 4294901760
    %v2630 = vsub.f32 %v2628, %v2629
    %v2631 = vand.u32 %v2630, 4294901760
    %2632 = vmatpush1.msra.mxu0 %v2631
    %2633 = vmatprep.subr.mxu0 0.0
    %v2634 = vand.u32 %v2407, 4294901760
    %v2635 = vsub.f32 %v2407, %v2634
    %v2636 = vand.u32 %v2635, 4294901760
    %v2637 = vsub.f32 %v2635, %v2636
    %v2638 = vand.u32 %v2637, 4294901760
    %2639 = vmatpush1.msra.mxu0 %v2638
    %2640 = vmatprep.subr.mxu0 0.0
    %v2641 = vand.u32 %v2406, 4294901760
    %v2642 = vsub.f32 %v2406, %v2641
    %v2643 = vand.u32 %v2642, 4294901760
    %v2644 = vsub.f32 %v2642, %v2643
    %v2645 = vand.u32 %v2644, 4294901760
    %2646 = vmatpush1.msra.mxu0 %v2645
    %2647 = vmatprep.subr.mxu0 0.0
    %v2648 = vand.u32 %v2405, 4294901760
    %v2649 = vsub.f32 %v2405, %v2648
    %v2650 = vand.u32 %v2649, 4294901760
    %v2651 = vsub.f32 %v2649, %v2650
    %v2652 = vand.u32 %v2651, 4294901760
    %2653 = vmatpush1.msra.mxu0 %v2652
    %2654 = vmatprep.subr.mxu0 0.0
    %2655 = vmatpush2.msra.mxu0 0.0
    %2656 = vmatprep.subr.mxu0 0.0
    %2657 = vmatpush2.msra.mxu0 0.0
    %2658 = vmatprep.subr.mxu0 0.0
    %2659 = vmatpush2.msra.mxu0 0.0
    %2660 = vmatprep.subr.mxu0 0.0
    %2661 = vmatpush2.msra.mxu0 0.0
    %2662 = vmatprep.subr.mxu0 0.0
    %2663 = vmatpush2.msra.mxu0 0.0
    %2664 = vmatprep.subr.mxu0 0.0
    %2665 = vmatpush2.msra.mxu0 0.0
    %2666 = vmatprep.subr.mxu0 0.0
    %2667 = vmatpush2.msra.mxu0 0.0
    %2668 = vmatprep.subr.mxu0 0.0
    %2669 = vmatpush2.msra.mxu0 0.0
    %2670 = vmatprep.subr.mxu0 0.0
    %2671 = vmatpush2.msra.mxu0 0.0
    %2672 = vmatprep.subr.mxu0 0.0
    %2673 = vmatpush2.msra.mxu0 0.0
    %2674 = vmatprep.subr.mxu0 0.0
    %2675 = vmatpush2.msra.mxu0 0.0
    %2676 = vmatprep.subr.mxu0 0.0
    %2677 = vmatpush2.msra.mxu0 0.0
    %2678 = vmatprep.subr.mxu0 0.0
    %2679 = vmatpush2.msra.mxu0 0.0
    %2680 = vmatprep.subr.mxu0 0.0
    %2681 = vmatpush2.msra.mxu0 0.0
    %2682 = vmatprep.subr.mxu0 0.0
    %2683 = vmatpush2.msra.mxu0 0.0
    %2684 = vmatprep.subr.mxu0 0.0
    %2685 = vmatpush2.msra.mxu0 0.0
    %2686 = vmatprep.mubr.f32.mxu0 0.0
    %v2687 = vand.u32 %v2400, 4294901760
    %2688 = vmatmul.mubr.f32.gmra.mxu0 %v2687
    %v2689 = vpop.f32.mrf.mxu0
    %v2690 = vadd.f32 %v2509, %v2689
    %v2691 = vpop.f32.mrf.mxu0
    %2692 = vmatprep.mubr.f32.mxu0 0.0
    %v2693 = vand.u32 %v2401, 4294901760
    %2694 = vmatmul.mubr.f32.gmra.mxu0 %v2693
    %v2695 = vpop.f32.mrf.mxu0
    %v2696 = vadd.f32 %v2519, %v2695
    %v2697 = vpop.f32.mrf.mxu0
    %2698 = vmatprep.mubr.f32.mxu0 0.0
    %v2699 = vand.u32 %v2402, 4294901760
    %2700 = vmatmul.mubr.f32.gmra.mxu0 %v2699
    %v2701 = vpop.f32.mrf.mxu0
    %v2702 = vadd.f32 %v2529, %v2701
    %v2703 = vpop.f32.mrf.mxu0
    %2704 = vmatprep.mubr.f32.mxu0 0.0
    %v2705 = vand.u32 %v2403, 4294901760
    %2706 = vmatmul.mubr.f32.gmra.mxu0 %v2705
    %v2707 = vpop.f32.mrf.mxu0
    %v2708 = vadd.f32 %v2539, %v2707
    %v2709 = vpop.f32.mrf.mxu0
    %2710 = vdwg.mxu0
    %2711 = vmatprep.subr.mxu0 0.0
    %v2712 = vand.u32 %v2420, 4294901760
    %v2713 = vsub.f32 %v2420, %v2712
    %2714 = vmatpush1.msra.mxu0 %v2713
    %2715 = vmatprep.subr.mxu0 0.0
    %v2716 = vand.u32 %v2419, 4294901760
    %v2717 = vsub.f32 %v2419, %v2716
    %2718 = vmatpush1.msra.mxu0 %v2717
    %2719 = vmatprep.subr.mxu0 0.0
    %v2720 = vand.u32 %v2418, 4294901760
    %v2721 = vsub.f32 %v2418, %v2720
    %2722 = vmatpush1.msra.mxu0 %v2721
    %2723 = vmatprep.subr.mxu0 0.0
    %v2724 = vand.u32 %v2417, 4294901760
    %v2725 = vsub.f32 %v2417, %v2724
    %2726 = vmatpush1.msra.mxu0 %v2725
    %2727 = vmatprep.subr.mxu0 0.0
    %v2728 = vand.u32 %v2416, 4294901760
    %v2729 = vsub.f32 %v2416, %v2728
    %2730 = vmatpush1.msra.mxu0 %v2729
    %2731 = vmatprep.subr.mxu0 0.0
    %v2732 = vand.u32 %v2415, 4294901760
    %v2733 = vsub.f32 %v2415, %v2732
    %2734 = vmatpush1.msra.mxu0 %v2733
    %2735 = vmatprep.subr.mxu0 0.0
    %v2736 = vand.u32 %v2414, 4294901760
    %v2737 = vsub.f32 %v2414, %v2736
    %2738 = vmatpush1.msra.mxu0 %v2737
    %2739 = vmatprep.subr.mxu0 0.0
    %v2740 = vand.u32 %v2413, 4294901760
    %v2741 = vsub.f32 %v2413, %v2740
    %2742 = vmatpush1.msra.mxu0 %v2741
    %2743 = vmatprep.subr.mxu0 0.0
    %v2744 = vand.u32 %v2412, 4294901760
    %v2745 = vsub.f32 %v2412, %v2744
    %2746 = vmatpush1.msra.mxu0 %v2745
    %2747 = vmatprep.subr.mxu0 0.0
    %v2748 = vand.u32 %v2411, 4294901760
    %v2749 = vsub.f32 %v2411, %v2748
    %2750 = vmatpush1.msra.mxu0 %v2749
    %2751 = vmatprep.subr.mxu0 0.0
    %v2752 = vand.u32 %v2410, 4294901760
    %v2753 = vsub.f32 %v2410, %v2752
    %2754 = vmatpush1.msra.mxu0 %v2753
    %2755 = vmatprep.subr.mxu0 0.0
    %v2756 = vand.u32 %v2409, 4294901760
    %v2757 = vsub.f32 %v2409, %v2756
    %2758 = vmatpush1.msra.mxu0 %v2757
    %2759 = vmatprep.subr.mxu0 0.0
    %v2760 = vand.u32 %v2408, 4294901760
    %v2761 = vsub.f32 %v2408, %v2760
    %2762 = vmatpush1.msra.mxu0 %v2761
    %2763 = vmatprep.subr.mxu0 0.0
    %v2764 = vand.u32 %v2407, 4294901760
    %v2765 = vsub.f32 %v2407, %v2764
    %2766 = vmatpush1.msra.mxu0 %v2765
    %2767 = vmatprep.subr.mxu0 0.0
    %v2768 = vand.u32 %v2406, 4294901760
    %v2769 = vsub.f32 %v2406, %v2768
    %2770 = vmatpush1.msra.mxu0 %v2769
    %2771 = vmatprep.subr.mxu0 0.0
    %v2772 = vand.u32 %v2405, 4294901760
    %v2773 = vsub.f32 %v2405, %v2772
    %2774 = vmatpush1.msra.mxu0 %v2773
    %2775 = vmatprep.subr.mxu0 0.0
    %2776 = vmatpush2.msra.mxu0 0.0
    %2777 = vmatprep.subr.mxu0 0.0
    %2778 = vmatpush2.msra.mxu0 0.0
    %2779 = vmatprep.subr.mxu0 0.0
    %2780 = vmatpush2.msra.mxu0 0.0
    %2781 = vmatprep.subr.mxu0 0.0
    %2782 = vmatpush2.msra.mxu0 0.0
    %2783 = vmatprep.subr.mxu0 0.0
    %2784 = vmatpush2.msra.mxu0 0.0
    %2785 = vmatprep.subr.mxu0 0.0
    %2786 = vmatpush2.msra.mxu0 0.0
    %2787 = vmatprep.subr.mxu0 0.0
    %2788 = vmatpush2.msra.mxu0 0.0
    %2789 = vmatprep.subr.mxu0 0.0
    %2790 = vmatpush2.msra.mxu0 0.0
    %2791 = vmatprep.subr.mxu0 0.0
    %2792 = vmatpush2.msra.mxu0 0.0
    %2793 = vmatprep.subr.mxu0 0.0
    %2794 = vmatpush2.msra.mxu0 0.0
    %2795 = vmatprep.subr.mxu0 0.0
    %2796 = vmatpush2.msra.mxu0 0.0
    %2797 = vmatprep.subr.mxu0 0.0
    %2798 = vmatpush2.msra.mxu0 0.0
    %2799 = vmatprep.subr.mxu0 0.0
    %2800 = vmatpush2.msra.mxu0 0.0
    %2801 = vmatprep.subr.mxu0 0.0
    %2802 = vmatpush2.msra.mxu0 0.0
    %2803 = vmatprep.subr.mxu0 0.0
    %2804 = vmatpush2.msra.mxu0 0.0
    %2805 = vmatprep.subr.mxu0 0.0
    %2806 = vmatpush2.msra.mxu0 0.0
    %2807 = vmatprep.mubr.f32.mxu0 0.0
    %v2808 = vand.u32 %v2400, 4294901760
    %v2809 = vsub.f32 %v2400, %v2808
    %2810 = vmatmul.mubr.f32.gmra.mxu0 %v2809
    %v2811 = vpop.f32.mrf.mxu0
    %v2812 = vadd.f32 %v2690, %v2811
    %v2813 = vpop.f32.mrf.mxu0
    %2814 = vmatprep.mubr.f32.mxu0 0.0
    %v2815 = vand.u32 %v2401, 4294901760
    %v2816 = vsub.f32 %v2401, %v2815
    %2817 = vmatmul.mubr.f32.gmra.mxu0 %v2816
    %v2818 = vpop.f32.mrf.mxu0
    %v2819 = vadd.f32 %v2696, %v2818
    %v2820 = vpop.f32.mrf.mxu0
    %2821 = vmatprep.mubr.f32.mxu0 0.0
    %v2822 = vand.u32 %v2402, 4294901760
    %v2823 = vsub.f32 %v2402, %v2822
    %2824 = vmatmul.mubr.f32.gmra.mxu0 %v2823
    %v2825 = vpop.f32.mrf.mxu0
    %v2826 = vadd.f32 %v2702, %v2825
    %v2827 = vpop.f32.mrf.mxu0
    %2828 = vmatprep.mubr.f32.mxu0 0.0
    %v2829 = vand.u32 %v2403, 4294901760
    %v2830 = vsub.f32 %v2403, %v2829
    %2831 = vmatmul.mubr.f32.gmra.mxu0 %v2830
    %v2832 = vpop.f32.mrf.mxu0
    %v2833 = vadd.f32 %v2708, %v2832
    %v2834 = vpop.f32.mrf.mxu0
    %2835 = vdwg.mxu0
    %2836 = vmatprep.subr.mxu0 0.0
    %v2837 = vand.u32 %v2420, 4294901760
    %2838 = vmatpush1.msra.mxu0 %v2837
    %2839 = vmatprep.subr.mxu0 0.0
    %v2840 = vand.u32 %v2419, 4294901760
    %2841 = vmatpush1.msra.mxu0 %v2840
    %2842 = vmatprep.subr.mxu0 0.0
    %v2843 = vand.u32 %v2418, 4294901760
    %2844 = vmatpush1.msra.mxu0 %v2843
    %2845 = vmatprep.subr.mxu0 0.0
    %v2846 = vand.u32 %v2417, 4294901760
    %2847 = vmatpush1.msra.mxu0 %v2846
    %2848 = vmatprep.subr.mxu0 0.0
    %v2849 = vand.u32 %v2416, 4294901760
    %2850 = vmatpush1.msra.mxu0 %v2849
    %2851 = vmatprep.subr.mxu0 0.0
    %v2852 = vand.u32 %v2415, 4294901760
    %2853 = vmatpush1.msra.mxu0 %v2852
    %2854 = vmatprep.subr.mxu0 0.0
    %v2855 = vand.u32 %v2414, 4294901760
    %2856 = vmatpush1.msra.mxu0 %v2855
    %2857 = vmatprep.subr.mxu0 0.0
    %v2858 = vand.u32 %v2413, 4294901760
    %2859 = vmatpush1.msra.mxu0 %v2858
    %2860 = vmatprep.subr.mxu0 0.0
    %v2861 = vand.u32 %v2412, 4294901760
    %2862 = vmatpush1.msra.mxu0 %v2861
    %2863 = vmatprep.subr.mxu0 0.0
    %v2864 = vand.u32 %v2411, 4294901760
    %2865 = vmatpush1.msra.mxu0 %v2864
    %2866 = vmatprep.subr.mxu0 0.0
    %v2867 = vand.u32 %v2410, 4294901760
    %2868 = vmatpush1.msra.mxu0 %v2867
    %2869 = vmatprep.subr.mxu0 0.0
    %v2870 = vand.u32 %v2409, 4294901760
    %2871 = vmatpush1.msra.mxu0 %v2870
    %2872 = vmatprep.subr.mxu0 0.0
    %v2873 = vand.u32 %v2408, 4294901760
    %2874 = vmatpush1.msra.mxu0 %v2873
    %2875 = vmatprep.subr.mxu0 0.0
    %v2876 = vand.u32 %v2407, 4294901760
    %2877 = vmatpush1.msra.mxu0 %v2876
    %2878 = vmatprep.subr.mxu0 0.0
    %v2879 = vand.u32 %v2406, 4294901760
    %2880 = vmatpush1.msra.mxu0 %v2879
    %2881 = vmatprep.subr.mxu0 0.0
    %v2882 = vand.u32 %v2405, 4294901760
    %2883 = vmatpush1.msra.mxu0 %v2882
    %2884 = vmatprep.subr.mxu0 0.0
    %2885 = vmatpush2.msra.mxu0 0.0
    %2886 = vmatprep.subr.mxu0 0.0
    %2887 = vmatpush2.msra.mxu0 0.0
    %2888 = vmatprep.subr.mxu0 0.0
    %2889 = vmatpush2.msra.mxu0 0.0
    %2890 = vmatprep.subr.mxu0 0.0
    %2891 = vmatpush2.msra.mxu0 0.0
    %2892 = vmatprep.subr.mxu0 0.0
    %2893 = vmatpush2.msra.mxu0 0.0
    %2894 = vmatprep.subr.mxu0 0.0
    %2895 = vmatpush2.msra.mxu0 0.0
    %2896 = vmatprep.subr.mxu0 0.0
    %2897 = vmatpush2.msra.mxu0 0.0
    %2898 = vmatprep.subr.mxu0 0.0
    %2899 = vmatpush2.msra.mxu0 0.0
    %2900 = vmatprep.subr.mxu0 0.0
    %2901 = vmatpush2.msra.mxu0 0.0
    %2902 = vmatprep.subr.mxu0 0.0
    %2903 = vmatpush2.msra.mxu0 0.0
    %2904 = vmatprep.subr.mxu0 0.0
    %2905 = vmatpush2.msra.mxu0 0.0
    %2906 = vmatprep.subr.mxu0 0.0
    %2907 = vmatpush2.msra.mxu0 0.0
    %2908 = vmatprep.subr.mxu0 0.0
    %2909 = vmatpush2.msra.mxu0 0.0
    %2910 = vmatprep.subr.mxu0 0.0
    %2911 = vmatpush2.msra.mxu0 0.0
    %2912 = vmatprep.subr.mxu0 0.0
    %2913 = vmatpush2.msra.mxu0 0.0
    %2914 = vmatprep.subr.mxu0 0.0
    %2915 = vmatpush2.msra.mxu0 0.0
    %2916 = vmatprep.mubr.f32.mxu0 0.0
    %v2917 = vand.u32 %v2400, 4294901760
    %v2918 = vsub.f32 %v2400, %v2917
    %v2919 = vand.u32 %v2918, 4294901760
    %2920 = vmatmul.mubr.f32.gmra.mxu0 %v2919
    %v2921 = vpop.f32.mrf.mxu0
    %v2922 = vadd.f32 %v2812, %v2921
    %v2923 = vpop.f32.mrf.mxu0
    %2924 = vmatprep.mubr.f32.mxu0 0.0
    %v2925 = vand.u32 %v2401, 4294901760
    %v2926 = vsub.f32 %v2401, %v2925
    %v2927 = vand.u32 %v2926, 4294901760
    %2928 = vmatmul.mubr.f32.gmra.mxu0 %v2927
    %v2929 = vpop.f32.mrf.mxu0
    %v2930 = vadd.f32 %v2819, %v2929
    %v2931 = vpop.f32.mrf.mxu0
    %2932 = vmatprep.mubr.f32.mxu0 0.0
    %v2933 = vand.u32 %v2402, 4294901760
    %v2934 = vsub.f32 %v2402, %v2933
    %v2935 = vand.u32 %v2934, 4294901760
    %2936 = vmatmul.mubr.f32.gmra.mxu0 %v2935
    %v2937 = vpop.f32.mrf.mxu0
    %v2938 = vadd.f32 %v2826, %v2937
    %v2939 = vpop.f32.mrf.mxu0
    %2940 = vmatprep.mubr.f32.mxu0 0.0
    %v2941 = vand.u32 %v2403, 4294901760
    %v2942 = vsub.f32 %v2403, %v2941
    %v2943 = vand.u32 %v2942, 4294901760
    %2944 = vmatmul.mubr.f32.gmra.mxu0 %v2943
    %v2945 = vpop.f32.mrf.mxu0
    %v2946 = vadd.f32 %v2833, %v2945
    %v2947 = vpop.f32.mrf.mxu0
    %2948 = vdwg.mxu0
    %2949 = vmatprep.subr.mxu0 0.0
    %v2950 = vand.u32 %v2420, 4294901760
    %v2951 = vsub.f32 %v2420, %v2950
    %v2952 = vand.u32 %v2951, 4294901760
    %2953 = vmatpush1.msra.mxu0 %v2952
    %2954 = vmatprep.subr.mxu0 0.0
    %v2955 = vand.u32 %v2419, 4294901760
    %v2956 = vsub.f32 %v2419, %v2955
    %v2957 = vand.u32 %v2956, 4294901760
    %2958 = vmatpush1.msra.mxu0 %v2957
    %2959 = vmatprep.subr.mxu0 0.0
    %v2960 = vand.u32 %v2418, 4294901760
    %v2961 = vsub.f32 %v2418, %v2960
    %v2962 = vand.u32 %v2961, 4294901760
    %2963 = vmatpush1.msra.mxu0 %v2962
    %2964 = vmatprep.subr.mxu0 0.0
    %v2965 = vand.u32 %v2417, 4294901760
    %v2966 = vsub.f32 %v2417, %v2965
    %v2967 = vand.u32 %v2966, 4294901760
    %2968 = vmatpush1.msra.mxu0 %v2967
    %2969 = vmatprep.subr.mxu0 0.0
    %v2970 = vand.u32 %v2416, 4294901760
    %v2971 = vsub.f32 %v2416, %v2970
    %v2972 = vand.u32 %v2971, 4294901760
    %2973 = vmatpush1.msra.mxu0 %v2972
    %2974 = vmatprep.subr.mxu0 0.0
    %v2975 = vand.u32 %v2415, 4294901760
    %v2976 = vsub.f32 %v2415, %v2975
    %v2977 = vand.u32 %v2976, 4294901760
    %2978 = vmatpush1.msra.mxu0 %v2977
    %2979 = vmatprep.subr.mxu0 0.0
    %v2980 = vand.u32 %v2414, 4294901760
    %v2981 = vsub.f32 %v2414, %v2980
    %v2982 = vand.u32 %v2981, 4294901760
    %2983 = vmatpush1.msra.mxu0 %v2982
    %2984 = vmatprep.subr.mxu0 0.0
    %v2985 = vand.u32 %v2413, 4294901760
    %v2986 = vsub.f32 %v2413, %v2985
    %v2987 = vand.u32 %v2986, 4294901760
    %2988 = vmatpush1.msra.mxu0 %v2987
    %2989 = vmatprep.subr.mxu0 0.0
    %v2990 = vand.u32 %v2412, 4294901760
    %v2991 = vsub.f32 %v2412, %v2990
    %v2992 = vand.u32 %v2991, 4294901760
    %2993 = vmatpush1.msra.mxu0 %v2992
    %2994 = vmatprep.subr.mxu0 0.0
    %v2995 = vand.u32 %v2411, 4294901760
    %v2996 = vsub.f32 %v2411, %v2995
    %v2997 = vand.u32 %v2996, 4294901760
    %2998 = vmatpush1.msra.mxu0 %v2997
    %2999 = vmatprep.subr.mxu0 0.0
    %v3000 = vand.u32 %v2410, 4294901760
    %v3001 = vsub.f32 %v2410, %v3000
    %v3002 = vand.u32 %v3001, 4294901760
    %3003 = vmatpush1.msra.mxu0 %v3002
    %3004 = vmatprep.subr.mxu0 0.0
    %v3005 = vand.u32 %v2409, 4294901760
    %v3006 = vsub.f32 %v2409, %v3005
    %v3007 = vand.u32 %v3006, 4294901760
    %3008 = vmatpush1.msra.mxu0 %v3007
    %3009 = vmatprep.subr.mxu0 0.0
    %v3010 = vand.u32 %v2408, 4294901760
    %v3011 = vsub.f32 %v2408, %v3010
    %v3012 = vand.u32 %v3011, 4294901760
    %3013 = vmatpush1.msra.mxu0 %v3012
    %3014 = vmatprep.subr.mxu0 0.0
    %v3015 = vand.u32 %v2407, 4294901760
    %v3016 = vsub.f32 %v2407, %v3015
    %v3017 = vand.u32 %v3016, 4294901760
    %3018 = vmatpush1.msra.mxu0 %v3017
    %3019 = vmatprep.subr.mxu0 0.0
    %v3020 = vand.u32 %v2406, 4294901760
    %v3021 = vsub.f32 %v2406, %v3020
    %v3022 = vand.u32 %v3021, 4294901760
    %3023 = vmatpush1.msra.mxu0 %v3022
    %3024 = vmatprep.subr.mxu0 0.0
    %v3025 = vand.u32 %v2405, 4294901760
    %v3026 = vsub.f32 %v2405, %v3025
    %v3027 = vand.u32 %v3026, 4294901760
    %3028 = vmatpush1.msra.mxu0 %v3027
    %3029 = vmatprep.subr.mxu0 0.0
    %3030 = vmatpush2.msra.mxu0 0.0
    %3031 = vmatprep.subr.mxu0 0.0
    %3032 = vmatpush2.msra.mxu0 0.0
    %3033 = vmatprep.subr.mxu0 0.0
    %3034 = vmatpush2.msra.mxu0 0.0
    %3035 = vmatprep.subr.mxu0 0.0
    %3036 = vmatpush2.msra.mxu0 0.0
    %3037 = vmatprep.subr.mxu0 0.0
    %3038 = vmatpush2.msra.mxu0 0.0
    %3039 = vmatprep.subr.mxu0 0.0
    %3040 = vmatpush2.msra.mxu0 0.0
    %3041 = vmatprep.subr.mxu0 0.0
    %3042 = vmatpush2.msra.mxu0 0.0
    %3043 = vmatprep.subr.mxu0 0.0
    %3044 = vmatpush2.msra.mxu0 0.0
    %3045 = vmatprep.subr.mxu0 0.0
    %3046 = vmatpush2.msra.mxu0 0.0
    %3047 = vmatprep.subr.mxu0 0.0
    %3048 = vmatpush2.msra.mxu0 0.0
    %3049 = vmatprep.subr.mxu0 0.0
    %3050 = vmatpush2.msra.mxu0 0.0
    %3051 = vmatprep.subr.mxu0 0.0
    %3052 = vmatpush2.msra.mxu0 0.0
    %3053 = vmatprep.subr.mxu0 0.0
    %3054 = vmatpush2.msra.mxu0 0.0
    %3055 = vmatprep.subr.mxu0 0.0
    %3056 = vmatpush2.msra.mxu0 0.0
    %3057 = vmatprep.subr.mxu0 0.0
    %3058 = vmatpush2.msra.mxu0 0.0
    %3059 = vmatprep.subr.mxu0 0.0
    %3060 = vmatpush2.msra.mxu0 0.0
    %3061 = vmatprep.mubr.f32.mxu0 0.0
    %v3062 = vand.u32 %v2400, 4294901760
    %3063 = vmatmul.mubr.f32.gmra.mxu0 %v3062
    %v3064 = vpop.f32.mrf.mxu0
    %v3065 = vadd.f32 %v2922, %v3064
    %v3066 = vpop.f32.mrf.mxu0
    %3067 = vmatprep.mubr.f32.mxu0 0.0
    %v3068 = vand.u32 %v2401, 4294901760
    %3069 = vmatmul.mubr.f32.gmra.mxu0 %v3068
    %v3070 = vpop.f32.mrf.mxu0
    %v3071 = vadd.f32 %v2930, %v3070
    %v3072 = vpop.f32.mrf.mxu0
    %3073 = vmatprep.mubr.f32.mxu0 0.0
    %v3074 = vand.u32 %v2402, 4294901760
    %3075 = vmatmul.mubr.f32.gmra.mxu0 %v3074
    %v3076 = vpop.f32.mrf.mxu0
    %v3077 = vadd.f32 %v2938, %v3076
    %v3078 = vpop.f32.mrf.mxu0
    %3079 = vmatprep.mubr.f32.mxu0 0.0
    %v3080 = vand.u32 %v2403, 4294901760
    %3081 = vmatmul.mubr.f32.gmra.mxu0 %v3080
    %v3082 = vpop.f32.mrf.mxu0
    %v3083 = vadd.f32 %v2946, %v3082
    %v3084 = vpop.f32.mrf.mxu0
    %3085 = vdwg.mxu0
    %3086 = vmatprep.subr.mxu0 0.0
    %v3087 = vand.u32 %v2420, 4294901760
    %3088 = vmatpush1.msra.mxu0 %v3087
    %3089 = vmatprep.subr.mxu0 0.0
    %v3090 = vand.u32 %v2419, 4294901760
    %3091 = vmatpush1.msra.mxu0 %v3090
    %3092 = vmatprep.subr.mxu0 0.0
    %v3093 = vand.u32 %v2418, 4294901760
    %3094 = vmatpush1.msra.mxu0 %v3093
    %3095 = vmatprep.subr.mxu0 0.0
    %v3096 = vand.u32 %v2417, 4294901760
    %3097 = vmatpush1.msra.mxu0 %v3096
    %3098 = vmatprep.subr.mxu0 0.0
    %v3099 = vand.u32 %v2416, 4294901760
    %3100 = vmatpush1.msra.mxu0 %v3099
    %3101 = vmatprep.subr.mxu0 0.0
    %v3102 = vand.u32 %v2415, 4294901760
    %3103 = vmatpush1.msra.mxu0 %v3102
    %3104 = vmatprep.subr.mxu0 0.0
    %v3105 = vand.u32 %v2414, 4294901760
    %3106 = vmatpush1.msra.mxu0 %v3105
    %3107 = vmatprep.subr.mxu0 0.0
    %v3108 = vand.u32 %v2413, 4294901760
    %3109 = vmatpush1.msra.mxu0 %v3108
    %3110 = vmatprep.subr.mxu0 0.0
    %v3111 = vand.u32 %v2412, 4294901760
    %3112 = vmatpush1.msra.mxu0 %v3111
    %3113 = vmatprep.subr.mxu0 0.0
    %v3114 = vand.u32 %v2411, 4294901760
    %3115 = vmatpush1.msra.mxu0 %v3114
    %3116 = vmatprep.subr.mxu0 0.0
    %v3117 = vand.u32 %v2410, 4294901760
    %3118 = vmatpush1.msra.mxu0 %v3117
    %3119 = vmatprep.subr.mxu0 0.0
    %v3120 = vand.u32 %v2409, 4294901760
    %3121 = vmatpush1.msra.mxu0 %v3120
    %3122 = vmatprep.subr.mxu0 0.0
    %v3123 = vand.u32 %v2408, 4294901760
    %3124 = vmatpush1.msra.mxu0 %v3123
    %3125 = vmatprep.subr.mxu0 0.0
    %v3126 = vand.u32 %v2407, 4294901760
    %3127 = vmatpush1.msra.mxu0 %v3126
    %3128 = vmatprep.subr.mxu0 0.0
    %v3129 = vand.u32 %v2406, 4294901760
    %3130 = vmatpush1.msra.mxu0 %v3129
    %3131 = vmatprep.subr.mxu0 0.0
    %v3132 = vand.u32 %v2405, 4294901760
    %3133 = vmatpush1.msra.mxu0 %v3132
    %3134 = vmatprep.subr.mxu0 0.0
    %3135 = vmatpush2.msra.mxu0 0.0
    %3136 = vmatprep.subr.mxu0 0.0
    %3137 = vmatpush2.msra.mxu0 0.0
    %3138 = vmatprep.subr.mxu0 0.0
    %3139 = vmatpush2.msra.mxu0 0.0
    %3140 = vmatprep.subr.mxu0 0.0
    %3141 = vmatpush2.msra.mxu0 0.0
    %3142 = vmatprep.subr.mxu0 0.0
    %3143 = vmatpush2.msra.mxu0 0.0
    %3144 = vmatprep.subr.mxu0 0.0
    %3145 = vmatpush2.msra.mxu0 0.0
    %3146 = vmatprep.subr.mxu0 0.0
    %3147 = vmatpush2.msra.mxu0 0.0
    %3148 = vmatprep.subr.mxu0 0.0
    %3149 = vmatpush2.msra.mxu0 0.0
    %3150 = vmatprep.subr.mxu0 0.0
    %3151 = vmatpush2.msra.mxu0 0.0
    %3152 = vmatprep.subr.mxu0 0.0
    %3153 = vmatpush2.msra.mxu0 0.0
    %3154 = vmatprep.subr.mxu0 0.0
    %3155 = vmatpush2.msra.mxu0 0.0
    %3156 = vmatprep.subr.mxu0 0.0
    %3157 = vmatpush2.msra.mxu0 0.0
    %3158 = vmatprep.subr.mxu0 0.0
    %3159 = vmatpush2.msra.mxu0 0.0
    %3160 = vmatprep.subr.mxu0 0.0
    %3161 = vmatpush2.msra.mxu0 0.0
    %3162 = vmatprep.subr.mxu0 0.0
    %3163 = vmatpush2.msra.mxu0 0.0
    %3164 = vmatprep.subr.mxu0 0.0
    %3165 = vmatpush2.msra.mxu0 0.0
    %3166 = vmatprep.mubr.f32.mxu0 0.0
    %v3167 = vand.u32 %v2400, 4294901760
    %3168 = vmatmul.mubr.f32.gmra.mxu0 %v3167
    %v3169 = vpop.f32.mrf.mxu0
    %v3170 = vadd.f32 %v3065, %v3169
    %v3171 = vpop.f32.mrf.mxu0
    %3172 = vmatprep.mubr.f32.mxu0 0.0
    %v3173 = vand.u32 %v2401, 4294901760
    %3174 = vmatmul.mubr.f32.gmra.mxu0 %v3173
    %v3175 = vpop.f32.mrf.mxu0
    %v3176 = vadd.f32 %v3071, %v3175
    %v3177 = vpop.f32.mrf.mxu0
    %3178 = vmatprep.mubr.f32.mxu0 0.0
    %v3179 = vand.u32 %v2402, 4294901760
    %3180 = vmatmul.mubr.f32.gmra.mxu0 %v3179
    %v3181 = vpop.f32.mrf.mxu0
    %v3182 = vadd.f32 %v3077, %v3181
    %v3183 = vpop.f32.mrf.mxu0
    %3184 = vmatprep.mubr.f32.mxu0 0.0
    %v3185 = vand.u32 %v2403, 4294901760
    %3186 = vmatmul.mubr.f32.gmra.mxu0 %v3185
    %v3187 = vpop.f32.mrf.mxu0
    %v3188 = vadd.f32 %v3083, %v3187
    %v3189 = vpop.f32.mrf.mxu0
    %3190 = vdwg.mxu0
    %v3191 = vadd.f32 %v3170, %v3176
    %v3192 = vrot.slane %v3191, 4
    %v3193 = vadd.f32 %v3191, %v3192
    %v3194 = vrot.slane %v3193, 2
    %v3195 = vadd.f32 %v3193, %v3194
    %v3196 = vrot.slane %v3195, 1
    %v3197 = vadd.f32 %v3195, %v3196
    %v3198 = vadd.f32 %v3182, %v3188
    %v3199 = vrot.slane %v3198, 4
    %v3200 = vadd.f32 %v3198, %v3199
    %v3201 = vrot.slane %v3200, 2
    %v3202 = vadd.f32 %v3200, %v3201
    %v3203 = vrot.slane %v3202, 1
    %v3204 = vadd.f32 %v3202, %v3203
    %v3205 = vmul.f32 %v3197, %v1502
    %v3206 = vmul.f32 %v3204, %v1502
    %v3207 = vsub.f32 %v3170, %v3205
    %v3208 = vsub.f32 %v3176, %v3205
    %v3209 = vsub.f32 %v3182, %v3206
    %v3210 = vsub.f32 %v3188, %v3206
    %v3211 = vmul.f32 %v3207, %v3207
    %v3212 = vmul.f32 %v3208, %v3208
    %v3213 = vmul.f32 %v3209, %v3209
    %v3214 = vmul.f32 %v3210, %v3210
    %v3215 = vadd.f32 %v3211, %v3212
    %v3216 = vrot.slane %v3215, 4
    %v3217 = vadd.f32 %v3215, %v3216
    %v3218 = vrot.slane %v3217, 2
    %v3219 = vadd.f32 %v3217, %v3218
    %v3220 = vrot.slane %v3219, 1
    %v3221 = vadd.f32 %v3219, %v3220
    %v3222 = vadd.f32 %v3213, %v3214
    %v3223 = vrot.slane %v3222, 4
    %v3224 = vadd.f32 %v3222, %v3223
    %v3225 = vrot.slane %v3224, 2
    %v3226 = vadd.f32 %v3224, %v3225
    %v3227 = vrot.slane %v3226, 1
    %v3228 = vadd.f32 %v3226, %v3227
    %v3229 = vmul.f32 %v3221, %v1502
    %v3230 = vmul.f32 %v3228, %v1502
    %v3231 = vadd.f32 %v3229, 1e-05
    %v3232 = vadd.f32 %v3230, 1e-05
    %v3233 = vrsqrt.pop %v3231
    %v3234 = vrsqrt.pop %v3232
    %v3235 = vmul.f32 %v3229, %v3233
    %v3236 = vmul.f32 %v3230, %v3234
    %v3237 = vmul.f32 %v3235, %v3233
    %v3238 = vmul.f32 %v3236, %v3234
    %v3239 = vadd.f32 %v3237, %v3238
    %v3240 = vmul.f32 %v3239, %v1538
    %v3241 = vadd.f32 %v3240, 1e-05
    %v3242 = vrsqrt.pop %v3241
    %v3243 = vmul.f32 %v3233, %v3242
    %v3244 = vmul.f32 %v3234, %v3242
    %v3245 = vmul.f32 %v3207, %v3243
    %v3246 = vmul.f32 %v3208, %v3243
    %v3247 = vmul.f32 %v3209, %v3244
    %v3248 = vmul.f32 %v3210, %v3244
    %v3249 = vmax.f32 %v3245, 0.0
    %v3250 = vmax.f32 %v3246, 0.0
    %v3251 = vmax.f32 %v3247, 0.0
    %v3252 = vmax.f32 %v3248, 0.0
    %s3253 = scalar_lea.vmem [#allocation9], 128
    %v3254 = vld [vmem:[%s3253] sm:$0xff]
    %v3255 = vld [vmem:[%s3253 + $0x8] sm:$0xff]
    %v3256 = vld [vmem:[%s3253 + $0x10] sm:$0xff]
    %v3257 = vld [vmem:[%s3253 + $0x18] sm:$0xff]
    %v3258 = vld [vmem:[%s3253 + $0x20] sm:$0xff]
    %v3259 = vld [vmem:[%s3253 + $0x28] sm:$0xff]
    %v3260 = vld [vmem:[%s3253 + $0x30] sm:$0xff]
    %v3261 = vld [vmem:[%s3253 + $0x38] sm:$0xff]
    %v3262 = vld [vmem:[%s3253 + $0x40] sm:$0xff]
    %v3263 = vld [vmem:[%s3253 + $0x48] sm:$0xff]
    %v3264 = vld [vmem:[%s3253 + $0x50] sm:$0xff]
    %v3265 = vld [vmem:[%s3253 + $0x58] sm:$0xff]
    %v3266 = vld [vmem:[%s3253 + $0x60] sm:$0xff]
    %v3267 = vld [vmem:[%s3253 + $0x68] sm:$0xff]
    %v3268 = vld [vmem:[%s3253 + $0x70] sm:$0xff]
    %v3269 = vld [vmem:[%s3253 + $0x78] sm:$0xff]
    %3270 = vmatprep.subr.mxu0 0.0
    %v3271 = vand.u32 %v3269, 4294901760
    %3272 = vmatpush1.msra.mxu0 %v3271
    %3273 = vmatprep.subr.mxu0 0.0
    %v3274 = vand.u32 %v3268, 4294901760
    %3275 = vmatpush1.msra.mxu0 %v3274
    %3276 = vmatprep.subr.mxu0 0.0
    %v3277 = vand.u32 %v3267, 4294901760
    %3278 = vmatpush1.msra.mxu0 %v3277
    %3279 = vmatprep.subr.mxu0 0.0
    %v3280 = vand.u32 %v3266, 4294901760
    %3281 = vmatpush1.msra.mxu0 %v3280
    %3282 = vmatprep.subr.mxu0 0.0
    %v3283 = vand.u32 %v3265, 4294901760
    %3284 = vmatpush1.msra.mxu0 %v3283
    %3285 = vmatprep.subr.mxu0 0.0
    %v3286 = vand.u32 %v3264, 4294901760
    %3287 = vmatpush1.msra.mxu0 %v3286
    %3288 = vmatprep.subr.mxu0 0.0
    %v3289 = vand.u32 %v3263, 4294901760
    %3290 = vmatpush1.msra.mxu0 %v3289
    %3291 = vmatprep.subr.mxu0 0.0
    %v3292 = vand.u32 %v3262, 4294901760
    %3293 = vmatpush1.msra.mxu0 %v3292
    %3294 = vmatprep.subr.mxu0 0.0
    %v3295 = vand.u32 %v3261, 4294901760
    %3296 = vmatpush1.msra.mxu0 %v3295
    %3297 = vmatprep.subr.mxu0 0.0
    %v3298 = vand.u32 %v3260, 4294901760
    %3299 = vmatpush1.msra.mxu0 %v3298
    %3300 = vmatprep.subr.mxu0 0.0
    %v3301 = vand.u32 %v3259, 4294901760
    %3302 = vmatpush1.msra.mxu0 %v3301
    %3303 = vmatprep.subr.mxu0 0.0
    %v3304 = vand.u32 %v3258, 4294901760
    %3305 = vmatpush1.msra.mxu0 %v3304
    %3306 = vmatprep.subr.mxu0 0.0
    %v3307 = vand.u32 %v3257, 4294901760
    %3308 = vmatpush1.msra.mxu0 %v3307
    %3309 = vmatprep.subr.mxu0 0.0
    %v3310 = vand.u32 %v3256, 4294901760
    %3311 = vmatpush1.msra.mxu0 %v3310
    %3312 = vmatprep.subr.mxu0 0.0
    %v3313 = vand.u32 %v3255, 4294901760
    %3314 = vmatpush1.msra.mxu0 %v3313
    %3315 = vmatprep.subr.mxu0 0.0
    %v3316 = vand.u32 %v3254, 4294901760
    %3317 = vmatpush1.msra.mxu0 %v3316
    %3318 = vmatprep.subr.mxu0 0.0
    %3319 = vmatpush2.msra.mxu0 0.0
    %3320 = vmatprep.subr.mxu0 0.0
    %3321 = vmatpush2.msra.mxu0 0.0
    %3322 = vmatprep.subr.mxu0 0.0
    %3323 = vmatpush2.msra.mxu0 0.0
    %3324 = vmatprep.subr.mxu0 0.0
    %3325 = vmatpush2.msra.mxu0 0.0
    %3326 = vmatprep.subr.mxu0 0.0
    %3327 = vmatpush2.msra.mxu0 0.0
    %3328 = vmatprep.subr.mxu0 0.0
    %3329 = vmatpush2.msra.mxu0 0.0
    %3330 = vmatprep.subr.mxu0 0.0
    %3331 = vmatpush2.msra.mxu0 0.0
    %3332 = vmatprep.subr.mxu0 0.0
    %3333 = vmatpush2.msra.mxu0 0.0
    %3334 = vmatprep.subr.mxu0 0.0
    %3335 = vmatpush2.msra.mxu0 0.0
    %3336 = vmatprep.subr.mxu0 0.0
    %3337 = vmatpush2.msra.mxu0 0.0
    %3338 = vmatprep.subr.mxu0 0.0
    %3339 = vmatpush2.msra.mxu0 0.0
    %3340 = vmatprep.subr.mxu0 0.0
    %3341 = vmatpush2.msra.mxu0 0.0
    %3342 = vmatprep.subr.mxu0 0.0
    %3343 = vmatpush2.msra.mxu0 0.0
    %3344 = vmatprep.subr.mxu0 0.0
    %3345 = vmatpush2.msra.mxu0 0.0
    %3346 = vmatprep.subr.mxu0 0.0
    %3347 = vmatpush2.msra.mxu0 0.0
    %3348 = vmatprep.subr.mxu0 0.0
    %3349 = vmatpush2.msra.mxu0 0.0
    %3350 = vmatprep.mubr.f32.mxu0 0.0
    %v3351 = vand.u32 %v3249, 4294901760
    %v3352 = vsub.f32 %v3249, %v3351
    %v3353 = vand.u32 %v3352, 4294901760
    %v3354 = vsub.f32 %v3352, %v3353
    %v3355 = vand.u32 %v3354, 4294901760
    %3356 = vmatmul.mubr.f32.gmra.mxu0 %v3355
    %v3357 = vpop.f32.mrf.mxu0
    %v3358 = vadd.f32 0.0, %v3357
    %v3359 = vpop.f32.mrf.mxu0
    %3360 = vmatprep.mubr.f32.mxu0 0.0
    %v3361 = vand.u32 %v3250, 4294901760
    %v3362 = vsub.f32 %v3250, %v3361
    %v3363 = vand.u32 %v3362, 4294901760
    %v3364 = vsub.f32 %v3362, %v3363
    %v3365 = vand.u32 %v3364, 4294901760
    %3366 = vmatmul.mubr.f32.gmra.mxu0 %v3365
    %v3367 = vpop.f32.mrf.mxu0
    %v3368 = vadd.f32 0.0, %v3367
    %v3369 = vpop.f32.mrf.mxu0
    %3370 = vmatprep.mubr.f32.mxu0 0.0
    %v3371 = vand.u32 %v3251, 4294901760
    %v3372 = vsub.f32 %v3251, %v3371
    %v3373 = vand.u32 %v3372, 4294901760
    %v3374 = vsub.f32 %v3372, %v3373
    %v3375 = vand.u32 %v3374, 4294901760
    %3376 = vmatmul.mubr.f32.gmra.mxu0 %v3375
    %v3377 = vpop.f32.mrf.mxu0
    %v3378 = vadd.f32 0.0, %v3377
    %v3379 = vpop.f32.mrf.mxu0
    %3380 = vmatprep.mubr.f32.mxu0 0.0
    %v3381 = vand.u32 %v3252, 4294901760
    %v3382 = vsub.f32 %v3252, %v3381
    %v3383 = vand.u32 %v3382, 4294901760
    %v3384 = vsub.f32 %v3382, %v3383
    %v3385 = vand.u32 %v3384, 4294901760
    %3386 = vmatmul.mubr.f32.gmra.mxu0 %v3385
    %v3387 = vpop.f32.mrf.mxu0
    %v3388 = vadd.f32 0.0, %v3387
    %v3389 = vpop.f32.mrf.mxu0
    %3390 = vdwg.mxu0
    %3391 = vmatprep.subr.mxu0 0.0
    %v3392 = vand.u32 %v3269, 4294901760
    %v3393 = vsub.f32 %v3269, %v3392
    %v3394 = vand.u32 %v3393, 4294901760
    %v3395 = vsub.f32 %v3393, %v3394
    %v3396 = vand.u32 %v3395, 4294901760
    %3397 = vmatpush1.msra.mxu0 %v3396
    %3398 = vmatprep.subr.mxu0 0.0
    %v3399 = vand.u32 %v3268, 4294901760
    %v3400 = vsub.f32 %v3268, %v3399
    %v3401 = vand.u32 %v3400, 4294901760
    %v3402 = vsub.f32 %v3400, %v3401
    %v3403 = vand.u32 %v3402, 4294901760
    %3404 = vmatpush1.msra.mxu0 %v3403
    %3405 = vmatprep.subr.mxu0 0.0
    %v3406 = vand.u32 %v3267, 4294901760
    %v3407 = vsub.f32 %v3267, %v3406
    %v3408 = vand.u32 %v3407, 4294901760
    %v3409 = vsub.f32 %v3407, %v3408
    %v3410 = vand.u32 %v3409, 4294901760
    %3411 = vmatpush1.msra.mxu0 %v3410
    %3412 = vmatprep.subr.mxu0 0.0
    %v3413 = vand.u32 %v3266, 4294901760
    %v3414 = vsub.f32 %v3266, %v3413
    %v3415 = vand.u32 %v3414, 4294901760
    %v3416 = vsub.f32 %v3414, %v3415
    %v3417 = vand.u32 %v3416, 4294901760
    %3418 = vmatpush1.msra.mxu0 %v3417
    %3419 = vmatprep.subr.mxu0 0.0
    %v3420 = vand.u32 %v3265, 4294901760
    %v3421 = vsub.f32 %v3265, %v3420
    %v3422 = vand.u32 %v3421, 4294901760
    %v3423 = vsub.f32 %v3421, %v3422
    %v3424 = vand.u32 %v3423, 4294901760
    %3425 = vmatpush1.msra.mxu0 %v3424
    %3426 = vmatprep.subr.mxu0 0.0
    %v3427 = vand.u32 %v3264, 4294901760
    %v3428 = vsub.f32 %v3264, %v3427
    %v3429 = vand.u32 %v3428, 4294901760
    %v3430 = vsub.f32 %v3428, %v3429
    %v3431 = vand.u32 %v3430, 4294901760
    %3432 = vmatpush1.msra.mxu0 %v3431
    %3433 = vmatprep.subr.mxu0 0.0
    %v3434 = vand.u32 %v3263, 4294901760
    %v3435 = vsub.f32 %v3263, %v3434
    %v3436 = vand.u32 %v3435, 4294901760
    %v3437 = vsub.f32 %v3435, %v3436
    %v3438 = vand.u32 %v3437, 4294901760
    %3439 = vmatpush1.msra.mxu0 %v3438
    %3440 = vmatprep.subr.mxu0 0.0
    %v3441 = vand.u32 %v3262, 4294901760
    %v3442 = vsub.f32 %v3262, %v3441
    %v3443 = vand.u32 %v3442, 4294901760
    %v3444 = vsub.f32 %v3442, %v3443
    %v3445 = vand.u32 %v3444, 4294901760
    %3446 = vmatpush1.msra.mxu0 %v3445
    %3447 = vmatprep.subr.mxu0 0.0
    %v3448 = vand.u32 %v3261, 4294901760
    %v3449 = vsub.f32 %v3261, %v3448
    %v3450 = vand.u32 %v3449, 4294901760
    %v3451 = vsub.f32 %v3449, %v3450
    %v3452 = vand.u32 %v3451, 4294901760
    %3453 = vmatpush1.msra.mxu0 %v3452
    %3454 = vmatprep.subr.mxu0 0.0
    %v3455 = vand.u32 %v3260, 4294901760
    %v3456 = vsub.f32 %v3260, %v3455
    %v3457 = vand.u32 %v3456, 4294901760
    %v3458 = vsub.f32 %v3456, %v3457
    %v3459 = vand.u32 %v3458, 4294901760
    %3460 = vmatpush1.msra.mxu0 %v3459
    %3461 = vmatprep.subr.mxu0 0.0
    %v3462 = vand.u32 %v3259, 4294901760
    %v3463 = vsub.f32 %v3259, %v3462
    %v3464 = vand.u32 %v3463, 4294901760
    %v3465 = vsub.f32 %v3463, %v3464
    %v3466 = vand.u32 %v3465, 4294901760
    %3467 = vmatpush1.msra.mxu0 %v3466
    %3468 = vmatprep.subr.mxu0 0.0
    %v3469 = vand.u32 %v3258, 4294901760
    %v3470 = vsub.f32 %v3258, %v3469
    %v3471 = vand.u32 %v3470, 4294901760
    %v3472 = vsub.f32 %v3470, %v3471
    %v3473 = vand.u32 %v3472, 4294901760
    %3474 = vmatpush1.msra.mxu0 %v3473
    %3475 = vmatprep.subr.mxu0 0.0
    %v3476 = vand.u32 %v3257, 4294901760
    %v3477 = vsub.f32 %v3257, %v3476
    %v3478 = vand.u32 %v3477, 4294901760
    %v3479 = vsub.f32 %v3477, %v3478
    %v3480 = vand.u32 %v3479, 4294901760
    %3481 = vmatpush1.msra.mxu0 %v3480
    %3482 = vmatprep.subr.mxu0 0.0
    %v3483 = vand.u32 %v3256, 4294901760
    %v3484 = vsub.f32 %v3256, %v3483
    %v3485 = vand.u32 %v3484, 4294901760
    %v3486 = vsub.f32 %v3484, %v3485
    %v3487 = vand.u32 %v3486, 4294901760
    %3488 = vmatpush1.msra.mxu0 %v3487
    %3489 = vmatprep.subr.mxu0 0.0
    %v3490 = vand.u32 %v3255, 4294901760
    %v3491 = vsub.f32 %v3255, %v3490
    %v3492 = vand.u32 %v3491, 4294901760
    %v3493 = vsub.f32 %v3491, %v3492
    %v3494 = vand.u32 %v3493, 4294901760
    %3495 = vmatpush1.msra.mxu0 %v3494
    %3496 = vmatprep.subr.mxu0 0.0
    %v3497 = vand.u32 %v3254, 4294901760
    %v3498 = vsub.f32 %v3254, %v3497
    %v3499 = vand.u32 %v3498, 4294901760
    %v3500 = vsub.f32 %v3498, %v3499
    %v3501 = vand.u32 %v3500, 4294901760
    %3502 = vmatpush1.msra.mxu0 %v3501
    %3503 = vmatprep.subr.mxu0 0.0
    %3504 = vmatpush2.msra.mxu0 0.0
    %3505 = vmatprep.subr.mxu0 0.0
    %3506 = vmatpush2.msra.mxu0 0.0
    %3507 = vmatprep.subr.mxu0 0.0
    %3508 = vmatpush2.msra.mxu0 0.0
    %3509 = vmatprep.subr.mxu0 0.0
    %3510 = vmatpush2.msra.mxu0 0.0
    %3511 = vmatprep.subr.mxu0 0.0
    %3512 = vmatpush2.msra.mxu0 0.0
    %3513 = vmatprep.subr.mxu0 0.0
    %3514 = vmatpush2.msra.mxu0 0.0
    %3515 = vmatprep.subr.mxu0 0.0
    %3516 = vmatpush2.msra.mxu0 0.0
    %3517 = vmatprep.subr.mxu0 0.0
    %3518 = vmatpush2.msra.mxu0 0.0
    %3519 = vmatprep.subr.mxu0 0.0
    %3520 = vmatpush2.msra.mxu0 0.0
    %3521 = vmatprep.subr.mxu0 0.0
    %3522 = vmatpush2.msra.mxu0 0.0
    %3523 = vmatprep.subr.mxu0 0.0
    %3524 = vmatpush2.msra.mxu0 0.0
    %3525 = vmatprep.subr.mxu0 0.0
    %3526 = vmatpush2.msra.mxu0 0.0
    %3527 = vmatprep.subr.mxu0 0.0
    %3528 = vmatpush2.msra.mxu0 0.0
    %3529 = vmatprep.subr.mxu0 0.0
    %3530 = vmatpush2.msra.mxu0 0.0
    %3531 = vmatprep.subr.mxu0 0.0
    %3532 = vmatpush2.msra.mxu0 0.0
    %3533 = vmatprep.subr.mxu0 0.0
    %3534 = vmatpush2.msra.mxu0 0.0
    %3535 = vmatprep.mubr.f32.mxu0 0.0
    %v3536 = vand.u32 %v3249, 4294901760
    %3537 = vmatmul.mubr.f32.gmra.mxu0 %v3536
    %v3538 = vpop.f32.mrf.mxu0
    %v3539 = vadd.f32 %v3358, %v3538
    %v3540 = vpop.f32.mrf.mxu0
    %3541 = vmatprep.mubr.f32.mxu0 0.0
    %v3542 = vand.u32 %v3250, 4294901760
    %3543 = vmatmul.mubr.f32.gmra.mxu0 %v3542
    %v3544 = vpop.f32.mrf.mxu0
    %v3545 = vadd.f32 %v3368, %v3544
    %v3546 = vpop.f32.mrf.mxu0
    %3547 = vmatprep.mubr.f32.mxu0 0.0
    %v3548 = vand.u32 %v3251, 4294901760
    %3549 = vmatmul.mubr.f32.gmra.mxu0 %v3548
    %v3550 = vpop.f32.mrf.mxu0
    %v3551 = vadd.f32 %v3378, %v3550
    %v3552 = vpop.f32.mrf.mxu0
    %3553 = vmatprep.mubr.f32.mxu0 0.0
    %v3554 = vand.u32 %v3252, 4294901760
    %3555 = vmatmul.mubr.f32.gmra.mxu0 %v3554
    %v3556 = vpop.f32.mrf.mxu0
    %v3557 = vadd.f32 %v3388, %v3556
    %v3558 = vpop.f32.mrf.mxu0
    %3559 = vdwg.mxu0
    %3560 = vmatprep.subr.mxu0 0.0
    %v3561 = vand.u32 %v3269, 4294901760
    %v3562 = vsub.f32 %v3269, %v3561
    %3563 = vmatpush1.msra.mxu0 %v3562
    %3564 = vmatprep.subr.mxu0 0.0
    %v3565 = vand.u32 %v3268, 4294901760
    %v3566 = vsub.f32 %v3268, %v3565
    %3567 = vmatpush1.msra.mxu0 %v3566
    %3568 = vmatprep.subr.mxu0 0.0
    %v3569 = vand.u32 %v3267, 4294901760
    %v3570 = vsub.f32 %v3267, %v3569
    %3571 = vmatpush1.msra.mxu0 %v3570
    %3572 = vmatprep.subr.mxu0 0.0
    %v3573 = vand.u32 %v3266, 4294901760
    %v3574 = vsub.f32 %v3266, %v3573
    %3575 = vmatpush1.msra.mxu0 %v3574
    %3576 = vmatprep.subr.mxu0 0.0
    %v3577 = vand.u32 %v3265, 4294901760
    %v3578 = vsub.f32 %v3265, %v3577
    %3579 = vmatpush1.msra.mxu0 %v3578
    %3580 = vmatprep.subr.mxu0 0.0
    %v3581 = vand.u32 %v3264, 4294901760
    %v3582 = vsub.f32 %v3264, %v3581
    %3583 = vmatpush1.msra.mxu0 %v3582
    %3584 = vmatprep.subr.mxu0 0.0
    %v3585 = vand.u32 %v3263, 4294901760
    %v3586 = vsub.f32 %v3263, %v3585
    %3587 = vmatpush1.msra.mxu0 %v3586
    %3588 = vmatprep.subr.mxu0 0.0
    %v3589 = vand.u32 %v3262, 4294901760
    %v3590 = vsub.f32 %v3262, %v3589
    %3591 = vmatpush1.msra.mxu0 %v3590
    %3592 = vmatprep.subr.mxu0 0.0
    %v3593 = vand.u32 %v3261, 4294901760
    %v3594 = vsub.f32 %v3261, %v3593
    %3595 = vmatpush1.msra.mxu0 %v3594
    %3596 = vmatprep.subr.mxu0 0.0
    %v3597 = vand.u32 %v3260, 4294901760
    %v3598 = vsub.f32 %v3260, %v3597
    %3599 = vmatpush1.msra.mxu0 %v3598
    %3600 = vmatprep.subr.mxu0 0.0
    %v3601 = vand.u32 %v3259, 4294901760
    %v3602 = vsub.f32 %v3259, %v3601
    %3603 = vmatpush1.msra.mxu0 %v3602
    %3604 = vmatprep.subr.mxu0 0.0
    %v3605 = vand.u32 %v3258, 4294901760
    %v3606 = vsub.f32 %v3258, %v3605
    %3607 = vmatpush1.msra.mxu0 %v3606
    %3608 = vmatprep.subr.mxu0 0.0
    %v3609 = vand.u32 %v3257, 4294901760
    %v3610 = vsub.f32 %v3257, %v3609
    %3611 = vmatpush1.msra.mxu0 %v3610
    %3612 = vmatprep.subr.mxu0 0.0
    %v3613 = vand.u32 %v3256, 4294901760
    %v3614 = vsub.f32 %v3256, %v3613
    %3615 = vmatpush1.msra.mxu0 %v3614
    %3616 = vmatprep.subr.mxu0 0.0
    %v3617 = vand.u32 %v3255, 4294901760
    %v3618 = vsub.f32 %v3255, %v3617
    %3619 = vmatpush1.msra.mxu0 %v3618
    %3620 = vmatprep.subr.mxu0 0.0
    %v3621 = vand.u32 %v3254, 4294901760
    %v3622 = vsub.f32 %v3254, %v3621
    %3623 = vmatpush1.msra.mxu0 %v3622
    %3624 = vmatprep.subr.mxu0 0.0
    %3625 = vmatpush2.msra.mxu0 0.0
    %3626 = vmatprep.subr.mxu0 0.0
    %3627 = vmatpush2.msra.mxu0 0.0
    %3628 = vmatprep.subr.mxu0 0.0
    %3629 = vmatpush2.msra.mxu0 0.0
    %3630 = vmatprep.subr.mxu0 0.0
    %3631 = vmatpush2.msra.mxu0 0.0
    %3632 = vmatprep.subr.mxu0 0.0
    %3633 = vmatpush2.msra.mxu0 0.0
    %3634 = vmatprep.subr.mxu0 0.0
    %3635 = vmatpush2.msra.mxu0 0.0
    %3636 = vmatprep.subr.mxu0 0.0
    %3637 = vmatpush2.msra.mxu0 0.0
    %3638 = vmatprep.subr.mxu0 0.0
    %3639 = vmatpush2.msra.mxu0 0.0
    %3640 = vmatprep.subr.mxu0 0.0
    %3641 = vmatpush2.msra.mxu0 0.0
    %3642 = vmatprep.subr.mxu0 0.0
    %3643 = vmatpush2.msra.mxu0 0.0
    %3644 = vmatprep.subr.mxu0 0.0
    %3645 = vmatpush2.msra.mxu0 0.0
    %3646 = vmatprep.subr.mxu0 0.0
    %3647 = vmatpush2.msra.mxu0 0.0
    %3648 = vmatprep.subr.mxu0 0.0
    %3649 = vmatpush2.msra.mxu0 0.0
    %3650 = vmatprep.subr.mxu0 0.0
    %3651 = vmatpush2.msra.mxu0 0.0
    %3652 = vmatprep.subr.mxu0 0.0
    %3653 = vmatpush2.msra.mxu0 0.0
    %3654 = vmatprep.subr.mxu0 0.0
    %3655 = vmatpush2.msra.mxu0 0.0
    %3656 = vmatprep.mubr.f32.mxu0 0.0
    %v3657 = vand.u32 %v3249, 4294901760
    %v3658 = vsub.f32 %v3249, %v3657
    %3659 = vmatmul.mubr.f32.gmra.mxu0 %v3658
    %v3660 = vpop.f32.mrf.mxu0
    %v3661 = vadd.f32 %v3539, %v3660
    %v3662 = vpop.f32.mrf.mxu0
    %3663 = vmatprep.mubr.f32.mxu0 0.0
    %v3664 = vand.u32 %v3250, 4294901760
    %v3665 = vsub.f32 %v3250, %v3664
    %3666 = vmatmul.mubr.f32.gmra.mxu0 %v3665
    %v3667 = vpop.f32.mrf.mxu0
    %v3668 = vadd.f32 %v3545, %v3667
    %v3669 = vpop.f32.mrf.mxu0
    %3670 = vmatprep.mubr.f32.mxu0 0.0
    %v3671 = vand.u32 %v3251, 4294901760
    %v3672 = vsub.f32 %v3251, %v3671
    %3673 = vmatmul.mubr.f32.gmra.mxu0 %v3672
    %v3674 = vpop.f32.mrf.mxu0
    %v3675 = vadd.f32 %v3551, %v3674
    %v3676 = vpop.f32.mrf.mxu0
    %3677 = vmatprep.mubr.f32.mxu0 0.0
    %v3678 = vand.u32 %v3252, 4294901760
    %v3679 = vsub.f32 %v3252, %v3678
    %3680 = vmatmul.mubr.f32.gmra.mxu0 %v3679
    %v3681 = vpop.f32.mrf.mxu0
    %v3682 = vadd.f32 %v3557, %v3681
    %v3683 = vpop.f32.mrf.mxu0
    %3684 = vdwg.mxu0
    %3685 = vmatprep.subr.mxu0 0.0
    %v3686 = vand.u32 %v3269, 4294901760
    %3687 = vmatpush1.msra.mxu0 %v3686
    %3688 = vmatprep.subr.mxu0 0.0
    %v3689 = vand.u32 %v3268, 4294901760
    %3690 = vmatpush1.msra.mxu0 %v3689
    %3691 = vmatprep.subr.mxu0 0.0
    %v3692 = vand.u32 %v3267, 4294901760
    %3693 = vmatpush1.msra.mxu0 %v3692
    %3694 = vmatprep.subr.mxu0 0.0
    %v3695 = vand.u32 %v3266, 4294901760
    %3696 = vmatpush1.msra.mxu0 %v3695
    %3697 = vmatprep.subr.mxu0 0.0
    %v3698 = vand.u32 %v3265, 4294901760
    %3699 = vmatpush1.msra.mxu0 %v3698
    %3700 = vmatprep.subr.mxu0 0.0
    %v3701 = vand.u32 %v3264, 4294901760
    %3702 = vmatpush1.msra.mxu0 %v3701
    %3703 = vmatprep.subr.mxu0 0.0
    %v3704 = vand.u32 %v3263, 4294901760
    %3705 = vmatpush1.msra.mxu0 %v3704
    %3706 = vmatprep.subr.mxu0 0.0
    %v3707 = vand.u32 %v3262, 4294901760
    %3708 = vmatpush1.msra.mxu0 %v3707
    %3709 = vmatprep.subr.mxu0 0.0
    %v3710 = vand.u32 %v3261, 4294901760
    %3711 = vmatpush1.msra.mxu0 %v3710
    %3712 = vmatprep.subr.mxu0 0.0
    %v3713 = vand.u32 %v3260, 4294901760
    %3714 = vmatpush1.msra.mxu0 %v3713
    %3715 = vmatprep.subr.mxu0 0.0
    %v3716 = vand.u32 %v3259, 4294901760
    %3717 = vmatpush1.msra.mxu0 %v3716
    %3718 = vmatprep.subr.mxu0 0.0
    %v3719 = vand.u32 %v3258, 4294901760
    %3720 = vmatpush1.msra.mxu0 %v3719
    %3721 = vmatprep.subr.mxu0 0.0
    %v3722 = vand.u32 %v3257, 4294901760
    %3723 = vmatpush1.msra.mxu0 %v3722
    %3724 = vmatprep.subr.mxu0 0.0
    %v3725 = vand.u32 %v3256, 4294901760
    %3726 = vmatpush1.msra.mxu0 %v3725
    %3727 = vmatprep.subr.mxu0 0.0
    %v3728 = vand.u32 %v3255, 4294901760
    %3729 = vmatpush1.msra.mxu0 %v3728
    %3730 = vmatprep.subr.mxu0 0.0
    %v3731 = vand.u32 %v3254, 4294901760
    %3732 = vmatpush1.msra.mxu0 %v3731
    %3733 = vmatprep.subr.mxu0 0.0
    %3734 = vmatpush2.msra.mxu0 0.0
    %3735 = vmatprep.subr.mxu0 0.0
    %3736 = vmatpush2.msra.mxu0 0.0
    %3737 = vmatprep.subr.mxu0 0.0
    %3738 = vmatpush2.msra.mxu0 0.0
    %3739 = vmatprep.subr.mxu0 0.0
    %3740 = vmatpush2.msra.mxu0 0.0
    %3741 = vmatprep.subr.mxu0 0.0
    %3742 = vmatpush2.msra.mxu0 0.0
    %3743 = vmatprep.subr.mxu0 0.0
    %3744 = vmatpush2.msra.mxu0 0.0
    %3745 = vmatprep.subr.mxu0 0.0
    %3746 = vmatpush2.msra.mxu0 0.0
    %3747 = vmatprep.subr.mxu0 0.0
    %3748 = vmatpush2.msra.mxu0 0.0
    %3749 = vmatprep.subr.mxu0 0.0
    %3750 = vmatpush2.msra.mxu0 0.0
    %3751 = vmatprep.subr.mxu0 0.0
    %3752 = vmatpush2.msra.mxu0 0.0
    %3753 = vmatprep.subr.mxu0 0.0
    %3754 = vmatpush2.msra.mxu0 0.0
    %3755 = vmatprep.subr.mxu0 0.0
    %3756 = vmatpush2.msra.mxu0 0.0
    %3757 = vmatprep.subr.mxu0 0.0
    %3758 = vmatpush2.msra.mxu0 0.0
    %3759 = vmatprep.subr.mxu0 0.0
    %3760 = vmatpush2.msra.mxu0 0.0
    %3761 = vmatprep.subr.mxu0 0.0
    %3762 = vmatpush2.msra.mxu0 0.0
    %3763 = vmatprep.subr.mxu0 0.0
    %3764 = vmatpush2.msra.mxu0 0.0
    %3765 = vmatprep.mubr.f32.mxu0 0.0
    %v3766 = vand.u32 %v3249, 4294901760
    %v3767 = vsub.f32 %v3249, %v3766
    %v3768 = vand.u32 %v3767, 4294901760
    %3769 = vmatmul.mubr.f32.gmra.mxu0 %v3768
    %v3770 = vpop.f32.mrf.mxu0
    %v3771 = vadd.f32 %v3661, %v3770
    %v3772 = vpop.f32.mrf.mxu0
    %3773 = vmatprep.mubr.f32.mxu0 0.0
    %v3774 = vand.u32 %v3250, 4294901760
    %v3775 = vsub.f32 %v3250, %v3774
    %v3776 = vand.u32 %v3775, 4294901760
    %3777 = vmatmul.mubr.f32.gmra.mxu0 %v3776
    %v3778 = vpop.f32.mrf.mxu0
    %v3779 = vadd.f32 %v3668, %v3778
    %v3780 = vpop.f32.mrf.mxu0
    %3781 = vmatprep.mubr.f32.mxu0 0.0
    %v3782 = vand.u32 %v3251, 4294901760
    %v3783 = vsub.f32 %v3251, %v3782
    %v3784 = vand.u32 %v3783, 4294901760
    %3785 = vmatmul.mubr.f32.gmra.mxu0 %v3784
    %v3786 = vpop.f32.mrf.mxu0
    %v3787 = vadd.f32 %v3675, %v3786
    %v3788 = vpop.f32.mrf.mxu0
    %3789 = vmatprep.mubr.f32.mxu0 0.0
    %v3790 = vand.u32 %v3252, 4294901760
    %v3791 = vsub.f32 %v3252, %v3790
    %v3792 = vand.u32 %v3791, 4294901760
    %3793 = vmatmul.mubr.f32.gmra.mxu0 %v3792
    %v3794 = vpop.f32.mrf.mxu0
    %v3795 = vadd.f32 %v3682, %v3794
    %v3796 = vpop.f32.mrf.mxu0
    %3797 = vdwg.mxu0
    %3798 = vmatprep.subr.mxu0 0.0
    %v3799 = vand.u32 %v3269, 4294901760
    %v3800 = vsub.f32 %v3269, %v3799
    %v3801 = vand.u32 %v3800, 4294901760
    %3802 = vmatpush1.msra.mxu0 %v3801
    %3803 = vmatprep.subr.mxu0 0.0
    %v3804 = vand.u32 %v3268, 4294901760
    %v3805 = vsub.f32 %v3268, %v3804
    %v3806 = vand.u32 %v3805, 4294901760
    %3807 = vmatpush1.msra.mxu0 %v3806
    %3808 = vmatprep.subr.mxu0 0.0
    %v3809 = vand.u32 %v3267, 4294901760
    %v3810 = vsub.f32 %v3267, %v3809
    %v3811 = vand.u32 %v3810, 4294901760
    %3812 = vmatpush1.msra.mxu0 %v3811
    %3813 = vmatprep.subr.mxu0 0.0
    %v3814 = vand.u32 %v3266, 4294901760
    %v3815 = vsub.f32 %v3266, %v3814
    %v3816 = vand.u32 %v3815, 4294901760
    %3817 = vmatpush1.msra.mxu0 %v3816
    %3818 = vmatprep.subr.mxu0 0.0
    %v3819 = vand.u32 %v3265, 4294901760
    %v3820 = vsub.f32 %v3265, %v3819
    %v3821 = vand.u32 %v3820, 4294901760
    %3822 = vmatpush1.msra.mxu0 %v3821
    %3823 = vmatprep.subr.mxu0 0.0
    %v3824 = vand.u32 %v3264, 4294901760
    %v3825 = vsub.f32 %v3264, %v3824
    %v3826 = vand.u32 %v3825, 4294901760
    %3827 = vmatpush1.msra.mxu0 %v3826
    %3828 = vmatprep.subr.mxu0 0.0
    %v3829 = vand.u32 %v3263, 4294901760
    %v3830 = vsub.f32 %v3263, %v3829
    %v3831 = vand.u32 %v3830, 4294901760
    %3832 = vmatpush1.msra.mxu0 %v3831
    %3833 = vmatprep.subr.mxu0 0.0
    %v3834 = vand.u32 %v3262, 4294901760
    %v3835 = vsub.f32 %v3262, %v3834
    %v3836 = vand.u32 %v3835, 4294901760
    %3837 = vmatpush1.msra.mxu0 %v3836
    %3838 = vmatprep.subr.mxu0 0.0
    %v3839 = vand.u32 %v3261, 4294901760
    %v3840 = vsub.f32 %v3261, %v3839
    %v3841 = vand.u32 %v3840, 4294901760
    %3842 = vmatpush1.msra.mxu0 %v3841
    %3843 = vmatprep.subr.mxu0 0.0
    %v3844 = vand.u32 %v3260, 4294901760
    %v3845 = vsub.f32 %v3260, %v3844
    %v3846 = vand.u32 %v3845, 4294901760
    %3847 = vmatpush1.msra.mxu0 %v3846
    %3848 = vmatprep.subr.mxu0 0.0
    %v3849 = vand.u32 %v3259, 4294901760
    %v3850 = vsub.f32 %v3259, %v3849
    %v3851 = vand.u32 %v3850, 4294901760
    %3852 = vmatpush1.msra.mxu0 %v3851
    %3853 = vmatprep.subr.mxu0 0.0
    %v3854 = vand.u32 %v3258, 4294901760
    %v3855 = vsub.f32 %v3258, %v3854
    %v3856 = vand.u32 %v3855, 4294901760
    %3857 = vmatpush1.msra.mxu0 %v3856
    %3858 = vmatprep.subr.mxu0 0.0
    %v3859 = vand.u32 %v3257, 4294901760
    %v3860 = vsub.f32 %v3257, %v3859
    %v3861 = vand.u32 %v3860, 4294901760
    %3862 = vmatpush1.msra.mxu0 %v3861
    %3863 = vmatprep.subr.mxu0 0.0
    %v3864 = vand.u32 %v3256, 4294901760
    %v3865 = vsub.f32 %v3256, %v3864
    %v3866 = vand.u32 %v3865, 4294901760
    %3867 = vmatpush1.msra.mxu0 %v3866
    %3868 = vmatprep.subr.mxu0 0.0
    %v3869 = vand.u32 %v3255, 4294901760
    %v3870 = vsub.f32 %v3255, %v3869
    %v3871 = vand.u32 %v3870, 4294901760
    %3872 = vmatpush1.msra.mxu0 %v3871
    %3873 = vmatprep.subr.mxu0 0.0
    %v3874 = vand.u32 %v3254, 4294901760
    %v3875 = vsub.f32 %v3254, %v3874
    %v3876 = vand.u32 %v3875, 4294901760
    %3877 = vmatpush1.msra.mxu0 %v3876
    %3878 = vmatprep.subr.mxu0 0.0
    %3879 = vmatpush2.msra.mxu0 0.0
    %3880 = vmatprep.subr.mxu0 0.0
    %3881 = vmatpush2.msra.mxu0 0.0
    %3882 = vmatprep.subr.mxu0 0.0
    %3883 = vmatpush2.msra.mxu0 0.0
    %3884 = vmatprep.subr.mxu0 0.0
    %3885 = vmatpush2.msra.mxu0 0.0
    %3886 = vmatprep.subr.mxu0 0.0
    %3887 = vmatpush2.msra.mxu0 0.0
    %3888 = vmatprep.subr.mxu0 0.0
    %3889 = vmatpush2.msra.mxu0 0.0
    %3890 = vmatprep.subr.mxu0 0.0
    %3891 = vmatpush2.msra.mxu0 0.0
    %3892 = vmatprep.subr.mxu0 0.0
    %3893 = vmatpush2.msra.mxu0 0.0
    %3894 = vmatprep.subr.mxu0 0.0
    %3895 = vmatpush2.msra.mxu0 0.0
    %3896 = vmatprep.subr.mxu0 0.0
    %3897 = vmatpush2.msra.mxu0 0.0
    %3898 = vmatprep.subr.mxu0 0.0
    %3899 = vmatpush2.msra.mxu0 0.0
    %3900 = vmatprep.subr.mxu0 0.0
    %3901 = vmatpush2.msra.mxu0 0.0
    %3902 = vmatprep.subr.mxu0 0.0
    %3903 = vmatpush2.msra.mxu0 0.0
    %3904 = vmatprep.subr.mxu0 0.0
    %3905 = vmatpush2.msra.mxu0 0.0
    %3906 = vmatprep.subr.mxu0 0.0
    %3907 = vmatpush2.msra.mxu0 0.0
    %3908 = vmatprep.subr.mxu0 0.0
    %3909 = vmatpush2.msra.mxu0 0.0
    %3910 = vmatprep.mubr.f32.mxu0 0.0
    %v3911 = vand.u32 %v3249, 4294901760
    %3912 = vmatmul.mubr.f32.gmra.mxu0 %v3911
    %v3913 = vpop.f32.mrf.mxu0
    %v3914 = vadd.f32 %v3771, %v3913
    %v3915 = vpop.f32.mrf.mxu0
    %3916 = vmatprep.mubr.f32.mxu0 0.0
    %v3917 = vand.u32 %v3250, 4294901760
    %3918 = vmatmul.mubr.f32.gmra.mxu0 %v3917
    %v3919 = vpop.f32.mrf.mxu0
    %v3920 = vadd.f32 %v3779, %v3919
    %v3921 = vpop.f32.mrf.mxu0
    %3922 = vmatprep.mubr.f32.mxu0 0.0
    %v3923 = vand.u32 %v3251, 4294901760
    %3924 = vmatmul.mubr.f32.gmra.mxu0 %v3923
    %v3925 = vpop.f32.mrf.mxu0
    %v3926 = vadd.f32 %v3787, %v3925
    %v3927 = vpop.f32.mrf.mxu0
    %3928 = vmatprep.mubr.f32.mxu0 0.0
    %v3929 = vand.u32 %v3252, 4294901760
    %3930 = vmatmul.mubr.f32.gmra.mxu0 %v3929
    %v3931 = vpop.f32.mrf.mxu0
    %v3932 = vadd.f32 %v3795, %v3931
    %v3933 = vpop.f32.mrf.mxu0
    %3934 = vdwg.mxu0
    %3935 = vmatprep.subr.mxu0 0.0
    %v3936 = vand.u32 %v3269, 4294901760
    %3937 = vmatpush1.msra.mxu0 %v3936
    %3938 = vmatprep.subr.mxu0 0.0
    %v3939 = vand.u32 %v3268, 4294901760
    %3940 = vmatpush1.msra.mxu0 %v3939
    %3941 = vmatprep.subr.mxu0 0.0
    %v3942 = vand.u32 %v3267, 4294901760
    %3943 = vmatpush1.msra.mxu0 %v3942
    %3944 = vmatprep.subr.mxu0 0.0
    %v3945 = vand.u32 %v3266, 4294901760
    %3946 = vmatpush1.msra.mxu0 %v3945
    %3947 = vmatprep.subr.mxu0 0.0
    %v3948 = vand.u32 %v3265, 4294901760
    %3949 = vmatpush1.msra.mxu0 %v3948
    %3950 = vmatprep.subr.mxu0 0.0
    %v3951 = vand.u32 %v3264, 4294901760
    %3952 = vmatpush1.msra.mxu0 %v3951
    %3953 = vmatprep.subr.mxu0 0.0
    %v3954 = vand.u32 %v3263, 4294901760
    %3955 = vmatpush1.msra.mxu0 %v3954
    %3956 = vmatprep.subr.mxu0 0.0
    %v3957 = vand.u32 %v3262, 4294901760
    %3958 = vmatpush1.msra.mxu0 %v3957
    %3959 = vmatprep.subr.mxu0 0.0
    %v3960 = vand.u32 %v3261, 4294901760
    %3961 = vmatpush1.msra.mxu0 %v3960
    %3962 = vmatprep.subr.mxu0 0.0
    %v3963 = vand.u32 %v3260, 4294901760
    %3964 = vmatpush1.msra.mxu0 %v3963
    %3965 = vmatprep.subr.mxu0 0.0
    %v3966 = vand.u32 %v3259, 4294901760
    %3967 = vmatpush1.msra.mxu0 %v3966
    %3968 = vmatprep.subr.mxu0 0.0
    %v3969 = vand.u32 %v3258, 4294901760
    %3970 = vmatpush1.msra.mxu0 %v3969
    %3971 = vmatprep.subr.mxu0 0.0
    %v3972 = vand.u32 %v3257, 4294901760
    %3973 = vmatpush1.msra.mxu0 %v3972
    %3974 = vmatprep.subr.mxu0 0.0
    %v3975 = vand.u32 %v3256, 4294901760
    %3976 = vmatpush1.msra.mxu0 %v3975
    %3977 = vmatprep.subr.mxu0 0.0
    %v3978 = vand.u32 %v3255, 4294901760
    %3979 = vmatpush1.msra.mxu0 %v3978
    %3980 = vmatprep.subr.mxu0 0.0
    %v3981 = vand.u32 %v3254, 4294901760
    %3982 = vmatpush1.msra.mxu0 %v3981
    %3983 = vmatprep.subr.mxu0 0.0
    %3984 = vmatpush2.msra.mxu0 0.0
    %3985 = vmatprep.subr.mxu0 0.0
    %3986 = vmatpush2.msra.mxu0 0.0
    %3987 = vmatprep.subr.mxu0 0.0
    %3988 = vmatpush2.msra.mxu0 0.0
    %3989 = vmatprep.subr.mxu0 0.0
    %3990 = vmatpush2.msra.mxu0 0.0
    %3991 = vmatprep.subr.mxu0 0.0
    %3992 = vmatpush2.msra.mxu0 0.0
    %3993 = vmatprep.subr.mxu0 0.0
    %3994 = vmatpush2.msra.mxu0 0.0
    %3995 = vmatprep.subr.mxu0 0.0
    %3996 = vmatpush2.msra.mxu0 0.0
    %3997 = vmatprep.subr.mxu0 0.0
    %3998 = vmatpush2.msra.mxu0 0.0
    %3999 = vmatprep.subr.mxu0 0.0
    %4000 = vmatpush2.msra.mxu0 0.0
    %4001 = vmatprep.subr.mxu0 0.0
    %4002 = vmatpush2.msra.mxu0 0.0
    %4003 = vmatprep.subr.mxu0 0.0
    %4004 = vmatpush2.msra.mxu0 0.0
    %4005 = vmatprep.subr.mxu0 0.0
    %4006 = vmatpush2.msra.mxu0 0.0
    %4007 = vmatprep.subr.mxu0 0.0
    %4008 = vmatpush2.msra.mxu0 0.0
    %4009 = vmatprep.subr.mxu0 0.0
    %4010 = vmatpush2.msra.mxu0 0.0
    %4011 = vmatprep.subr.mxu0 0.0
    %4012 = vmatpush2.msra.mxu0 0.0
    %4013 = vmatprep.subr.mxu0 0.0
    %4014 = vmatpush2.msra.mxu0 0.0
    %4015 = vmatprep.mubr.f32.mxu0 0.0
    %v4016 = vand.u32 %v3249, 4294901760
    %4017 = vmatmul.mubr.f32.gmra.mxu0 %v4016
    %v4018 = vpop.f32.mrf.mxu0
    %v4019 = vadd.f32 %v3914, %v4018
    %v4020 = vpop.f32.mrf.mxu0
    %4021 = vmatprep.mubr.f32.mxu0 0.0
    %v4022 = vand.u32 %v3250, 4294901760
    %4023 = vmatmul.mubr.f32.gmra.mxu0 %v4022
    %v4024 = vpop.f32.mrf.mxu0
    %v4025 = vadd.f32 %v3920, %v4024
    %v4026 = vpop.f32.mrf.mxu0
    %4027 = vmatprep.mubr.f32.mxu0 0.0
    %v4028 = vand.u32 %v3251, 4294901760
    %4029 = vmatmul.mubr.f32.gmra.mxu0 %v4028
    %v4030 = vpop.f32.mrf.mxu0
    %v4031 = vadd.f32 %v3926, %v4030
    %v4032 = vpop.f32.mrf.mxu0
    %4033 = vmatprep.mubr.f32.mxu0 0.0
    %v4034 = vand.u32 %v3252, 4294901760
    %4035 = vmatmul.mubr.f32.gmra.mxu0 %v4034
    %v4036 = vpop.f32.mrf.mxu0
    %v4037 = vadd.f32 %v3932, %v4036
    %v4038 = vpop.f32.mrf.mxu0
    %4039 = vdwg.mxu0
    %v4040 = vadd.f32 %v4019, %v4025
    %v4041 = vrot.slane %v4040, 4
    %v4042 = vadd.f32 %v4040, %v4041
    %v4043 = vrot.slane %v4042, 2
    %v4044 = vadd.f32 %v4042, %v4043
    %v4045 = vrot.slane %v4044, 1
    %v4046 = vadd.f32 %v4044, %v4045
    %v4047 = vadd.f32 %v4031, %v4037
    %v4048 = vrot.slane %v4047, 4
    %v4049 = vadd.f32 %v4047, %v4048
    %v4050 = vrot.slane %v4049, 2
    %v4051 = vadd.f32 %v4049, %v4050
    %v4052 = vrot.slane %v4051, 1
    %v4053 = vadd.f32 %v4051, %v4052
    %v4054 = vmul.f32 %v4046, %v1502
    %v4055 = vmul.f32 %v4053, %v1502
    %v4056 = vsub.f32 %v4019, %v4054
    %v4057 = vsub.f32 %v4025, %v4054
    %v4058 = vsub.f32 %v4031, %v4055
    %v4059 = vsub.f32 %v4037, %v4055
    %v4060 = vmul.f32 %v4056, %v4056
    %v4061 = vmul.f32 %v4057, %v4057
    %v4062 = vmul.f32 %v4058, %v4058
    %v4063 = vmul.f32 %v4059, %v4059
    %v4064 = vadd.f32 %v4060, %v4061
    %v4065 = vrot.slane %v4064, 4
    %v4066 = vadd.f32 %v4064, %v4065
    %v4067 = vrot.slane %v4066, 2
    %v4068 = vadd.f32 %v4066, %v4067
    %v4069 = vrot.slane %v4068, 1
    %v4070 = vadd.f32 %v4068, %v4069
    %v4071 = vadd.f32 %v4062, %v4063
    %v4072 = vrot.slane %v4071, 4
    %v4073 = vadd.f32 %v4071, %v4072
    %v4074 = vrot.slane %v4073, 2
    %v4075 = vadd.f32 %v4073, %v4074
    %v4076 = vrot.slane %v4075, 1
    %v4077 = vadd.f32 %v4075, %v4076
    %v4078 = vmul.f32 %v4070, %v1502
    %v4079 = vmul.f32 %v4077, %v1502
    %v4080 = vadd.f32 %v4078, 1e-05
    %v4081 = vadd.f32 %v4079, 1e-05
    %v4082 = vrsqrt.pop %v4080
    %v4083 = vrsqrt.pop %v4081
    %v4084 = vmul.f32 %v4078, %v4082
    %v4085 = vmul.f32 %v4079, %v4083
    %v4086 = vmul.f32 %v4084, %v4082
    %v4087 = vmul.f32 %v4085, %v4083
    %v4088 = vadd.f32 %v4086, %v4087
    %v4089 = vmul.f32 %v4088, %v1538
    %v4090 = vadd.f32 %v4089, 1e-05
    %v4091 = vrsqrt.pop %v4090
    %v4092 = vmul.f32 %v4082, %v4091
    %v4093 = vmul.f32 %v4083, %v4091
    %v4094 = vmul.f32 %v4056, %v4092
    %v4095 = vmul.f32 %v4057, %v4092
    %v4096 = vmul.f32 %v4058, %v4093
    %v4097 = vmul.f32 %v4059, %v4093
    %v4098 = vmax.f32 %v4094, 0.0
    %v4099 = vmax.f32 %v4095, 0.0
    %v4100 = vmax.f32 %v4096, 0.0
    %v4101 = vmax.f32 %v4097, 0.0
    %v4102 = vadd.f32 %v4098, %v2400
    %v4103 = vadd.f32 %v4099, %v2401
    %v4104 = vadd.f32 %v4100, %v2402
    %v4105 = vadd.f32 %v4101, %v2403
    %s4106 = scalar_lea.vmem [#allocation8], 256
    %v4107 = vld [vmem:[%s4106] sm:$0xff]
    %v4108 = vld [vmem:[%s4106 + $0x8] sm:$0xff]
    %v4109 = vld [vmem:[%s4106 + $0x10] sm:$0xff]
    %v4110 = vld [vmem:[%s4106 + $0x18] sm:$0xff]
    %v4111 = vld [vmem:[%s4106 + $0x20] sm:$0xff]
    %v4112 = vld [vmem:[%s4106 + $0x28] sm:$0xff]
    %v4113 = vld [vmem:[%s4106 + $0x30] sm:$0xff]
    %v4114 = vld [vmem:[%s4106 + $0x38] sm:$0xff]
    %v4115 = vld [vmem:[%s4106 + $0x40] sm:$0xff]
    %v4116 = vld [vmem:[%s4106 + $0x48] sm:$0xff]
    %v4117 = vld [vmem:[%s4106 + $0x50] sm:$0xff]
    %v4118 = vld [vmem:[%s4106 + $0x58] sm:$0xff]
    %v4119 = vld [vmem:[%s4106 + $0x60] sm:$0xff]
    %v4120 = vld [vmem:[%s4106 + $0x68] sm:$0xff]
    %v4121 = vld [vmem:[%s4106 + $0x70] sm:$0xff]
    %v4122 = vld [vmem:[%s4106 + $0x78] sm:$0xff]
    %4123 = vmatprep.subr.mxu0 0.0
    %v4124 = vand.u32 %v4122, 4294901760
    %4125 = vmatpush1.msra.mxu0 %v4124
    %4126 = vmatprep.subr.mxu0 0.0
    %v4127 = vand.u32 %v4121, 4294901760
    %4128 = vmatpush1.msra.mxu0 %v4127
    %4129 = vmatprep.subr.mxu0 0.0
    %v4130 = vand.u32 %v4120, 4294901760
    %4131 = vmatpush1.msra.mxu0 %v4130
    %4132 = vmatprep.subr.mxu0 0.0
    %v4133 = vand.u32 %v4119, 4294901760
    %4134 = vmatpush1.msra.mxu0 %v4133
    %4135 = vmatprep.subr.mxu0 0.0
    %v4136 = vand.u32 %v4118, 4294901760
    %4137 = vmatpush1.msra.mxu0 %v4136
    %4138 = vmatprep.subr.mxu0 0.0
    %v4139 = vand.u32 %v4117, 4294901760
    %4140 = vmatpush1.msra.mxu0 %v4139
    %4141 = vmatprep.subr.mxu0 0.0
    %v4142 = vand.u32 %v4116, 4294901760
    %4143 = vmatpush1.msra.mxu0 %v4142
    %4144 = vmatprep.subr.mxu0 0.0
    %v4145 = vand.u32 %v4115, 4294901760
    %4146 = vmatpush1.msra.mxu0 %v4145
    %4147 = vmatprep.subr.mxu0 0.0
    %v4148 = vand.u32 %v4114, 4294901760
    %4149 = vmatpush1.msra.mxu0 %v4148
    %4150 = vmatprep.subr.mxu0 0.0
    %v4151 = vand.u32 %v4113, 4294901760
    %4152 = vmatpush1.msra.mxu0 %v4151
    %4153 = vmatprep.subr.mxu0 0.0
    %v4154 = vand.u32 %v4112, 4294901760
    %4155 = vmatpush1.msra.mxu0 %v4154
    %4156 = vmatprep.subr.mxu0 0.0
    %v4157 = vand.u32 %v4111, 4294901760
    %4158 = vmatpush1.msra.mxu0 %v4157
    %4159 = vmatprep.subr.mxu0 0.0
    %v4160 = vand.u32 %v4110, 4294901760
    %4161 = vmatpush1.msra.mxu0 %v4160
    %4162 = vmatprep.subr.mxu0 0.0
    %v4163 = vand.u32 %v4109, 4294901760
    %4164 = vmatpush1.msra.mxu0 %v4163
    %4165 = vmatprep.subr.mxu0 0.0
    %v4166 = vand.u32 %v4108, 4294901760
    %4167 = vmatpush1.msra.mxu0 %v4166
    %4168 = vmatprep.subr.mxu0 0.0
    %v4169 = vand.u32 %v4107, 4294901760
    %4170 = vmatpush1.msra.mxu0 %v4169
    %4171 = vmatprep.subr.mxu0 0.0
    %4172 = vmatpush2.msra.mxu0 0.0
    %4173 = vmatprep.subr.mxu0 0.0
    %4174 = vmatpush2.msra.mxu0 0.0
    %4175 = vmatprep.subr.mxu0 0.0
    %4176 = vmatpush2.msra.mxu0 0.0
    %4177 = vmatprep.subr.mxu0 0.0
    %4178 = vmatpush2.msra.mxu0 0.0
    %4179 = vmatprep.subr.mxu0 0.0
    %4180 = vmatpush2.msra.mxu0 0.0
    %4181 = vmatprep.subr.mxu0 0.0
    %4182 = vmatpush2.msra.mxu0 0.0
    %4183 = vmatprep.subr.mxu0 0.0
    %4184 = vmatpush2.msra.mxu0 0.0
    %4185 = vmatprep.subr.mxu0 0.0
    %4186 = vmatpush2.msra.mxu0 0.0
    %4187 = vmatprep.subr.mxu0 0.0
    %4188 = vmatpush2.msra.mxu0 0.0
    %4189 = vmatprep.subr.mxu0 0.0
    %4190 = vmatpush2.msra.mxu0 0.0
    %4191 = vmatprep.subr.mxu0 0.0
    %4192 = vmatpush2.msra.mxu0 0.0
    %4193 = vmatprep.subr.mxu0 0.0
    %4194 = vmatpush2.msra.mxu0 0.0
    %4195 = vmatprep.subr.mxu0 0.0
    %4196 = vmatpush2.msra.mxu0 0.0
    %4197 = vmatprep.subr.mxu0 0.0
    %4198 = vmatpush2.msra.mxu0 0.0
    %4199 = vmatprep.subr.mxu0 0.0
    %4200 = vmatpush2.msra.mxu0 0.0
    %4201 = vmatprep.subr.mxu0 0.0
    %4202 = vmatpush2.msra.mxu0 0.0
    %4203 = vmatprep.mubr.f32.mxu0 0.0
    %v4204 = vand.u32 %v4102, 4294901760
    %v4205 = vsub.f32 %v4102, %v4204
    %v4206 = vand.u32 %v4205, 4294901760
    %v4207 = vsub.f32 %v4205, %v4206
    %v4208 = vand.u32 %v4207, 4294901760
    %4209 = vmatmul.mubr.f32.gmra.mxu0 %v4208
    %v4210 = vpop.f32.mrf.mxu0
    %v4211 = vadd.f32 0.0, %v4210
    %v4212 = vpop.f32.mrf.mxu0
    %4213 = vmatprep.mubr.f32.mxu0 0.0
    %v4214 = vand.u32 %v4103, 4294901760
    %v4215 = vsub.f32 %v4103, %v4214
    %v4216 = vand.u32 %v4215, 4294901760
    %v4217 = vsub.f32 %v4215, %v4216
    %v4218 = vand.u32 %v4217, 4294901760
    %4219 = vmatmul.mubr.f32.gmra.mxu0 %v4218
    %v4220 = vpop.f32.mrf.mxu0
    %v4221 = vadd.f32 0.0, %v4220
    %v4222 = vpop.f32.mrf.mxu0
    %4223 = vmatprep.mubr.f32.mxu0 0.0
    %v4224 = vand.u32 %v4104, 4294901760
    %v4225 = vsub.f32 %v4104, %v4224
    %v4226 = vand.u32 %v4225, 4294901760
    %v4227 = vsub.f32 %v4225, %v4226
    %v4228 = vand.u32 %v4227, 4294901760
    %4229 = vmatmul.mubr.f32.gmra.mxu0 %v4228
    %v4230 = vpop.f32.mrf.mxu0
    %v4231 = vadd.f32 0.0, %v4230
    %v4232 = vpop.f32.mrf.mxu0
    %4233 = vmatprep.mubr.f32.mxu0 0.0
    %v4234 = vand.u32 %v4105, 4294901760
    %v4235 = vsub.f32 %v4105, %v4234
    %v4236 = vand.u32 %v4235, 4294901760
    %v4237 = vsub.f32 %v4235, %v4236
    %v4238 = vand.u32 %v4237, 4294901760
    %4239 = vmatmul.mubr.f32.gmra.mxu0 %v4238
    %v4240 = vpop.f32.mrf.mxu0
    %v4241 = vadd.f32 0.0, %v4240
    %v4242 = vpop.f32.mrf.mxu0
    %4243 = vdwg.mxu0
    %4244 = vmatprep.subr.mxu0 0.0
    %v4245 = vand.u32 %v4122, 4294901760
    %v4246 = vsub.f32 %v4122, %v4245
    %v4247 = vand.u32 %v4246, 4294901760
    %v4248 = vsub.f32 %v4246, %v4247
    %v4249 = vand.u32 %v4248, 4294901760
    %4250 = vmatpush1.msra.mxu0 %v4249
    %4251 = vmatprep.subr.mxu0 0.0
    %v4252 = vand.u32 %v4121, 4294901760
    %v4253 = vsub.f32 %v4121, %v4252
    %v4254 = vand.u32 %v4253, 4294901760
    %v4255 = vsub.f32 %v4253, %v4254
    %v4256 = vand.u32 %v4255, 4294901760
    %4257 = vmatpush1.msra.mxu0 %v4256
    %4258 = vmatprep.subr.mxu0 0.0
    %v4259 = vand.u32 %v4120, 4294901760
    %v4260 = vsub.f32 %v4120, %v4259
    %v4261 = vand.u32 %v4260, 4294901760
    %v4262 = vsub.f32 %v4260, %v4261
    %v4263 = vand.u32 %v4262, 4294901760
    %4264 = vmatpush1.msra.mxu0 %v4263
    %4265 = vmatprep.subr.mxu0 0.0
    %v4266 = vand.u32 %v4119, 4294901760
    %v4267 = vsub.f32 %v4119, %v4266
    %v4268 = vand.u32 %v4267, 4294901760
    %v4269 = vsub.f32 %v4267, %v4268
    %v4270 = vand.u32 %v4269, 4294901760
    %4271 = vmatpush1.msra.mxu0 %v4270
    %4272 = vmatprep.subr.mxu0 0.0
    %v4273 = vand.u32 %v4118, 4294901760
    %v4274 = vsub.f32 %v4118, %v4273
    %v4275 = vand.u32 %v4274, 4294901760
    %v4276 = vsub.f32 %v4274, %v4275
    %v4277 = vand.u32 %v4276, 4294901760
    %4278 = vmatpush1.msra.mxu0 %v4277
    %4279 = vmatprep.subr.mxu0 0.0
    %v4280 = vand.u32 %v4117, 4294901760
    %v4281 = vsub.f32 %v4117, %v4280
    %v4282 = vand.u32 %v4281, 4294901760
    %v4283 = vsub.f32 %v4281, %v4282
    %v4284 = vand.u32 %v4283, 4294901760
    %4285 = vmatpush1.msra.mxu0 %v4284
    %4286 = vmatprep.subr.mxu0 0.0
    %v4287 = vand.u32 %v4116, 4294901760
    %v4288 = vsub.f32 %v4116, %v4287
    %v4289 = vand.u32 %v4288, 4294901760
    %v4290 = vsub.f32 %v4288, %v4289
    %v4291 = vand.u32 %v4290, 4294901760
    %4292 = vmatpush1.msra.mxu0 %v4291
    %4293 = vmatprep.subr.mxu0 0.0
    %v4294 = vand.u32 %v4115, 4294901760
    %v4295 = vsub.f32 %v4115, %v4294
    %v4296 = vand.u32 %v4295, 4294901760
    %v4297 = vsub.f32 %v4295, %v4296
    %v4298 = vand.u32 %v4297, 4294901760
    %4299 = vmatpush1.msra.mxu0 %v4298
    %4300 = vmatprep.subr.mxu0 0.0
    %v4301 = vand.u32 %v4114, 4294901760
    %v4302 = vsub.f32 %v4114, %v4301
    %v4303 = vand.u32 %v4302, 4294901760
    %v4304 = vsub.f32 %v4302, %v4303
    %v4305 = vand.u32 %v4304, 4294901760
    %4306 = vmatpush1.msra.mxu0 %v4305
    %4307 = vmatprep.subr.mxu0 0.0
    %v4308 = vand.u32 %v4113, 4294901760
    %v4309 = vsub.f32 %v4113, %v4308
    %v4310 = vand.u32 %v4309, 4294901760
    %v4311 = vsub.f32 %v4309, %v4310
    %v4312 = vand.u32 %v4311, 4294901760
    %4313 = vmatpush1.msra.mxu0 %v4312
    %4314 = vmatprep.subr.mxu0 0.0
    %v4315 = vand.u32 %v4112, 4294901760
    %v4316 = vsub.f32 %v4112, %v4315
    %v4317 = vand.u32 %v4316, 4294901760
    %v4318 = vsub.f32 %v4316, %v4317
    %v4319 = vand.u32 %v4318, 4294901760
    %4320 = vmatpush1.msra.mxu0 %v4319
    %4321 = vmatprep.subr.mxu0 0.0
    %v4322 = vand.u32 %v4111, 4294901760
    %v4323 = vsub.f32 %v4111, %v4322
    %v4324 = vand.u32 %v4323, 4294901760
    %v4325 = vsub.f32 %v4323, %v4324
    %v4326 = vand.u32 %v4325, 4294901760
    %4327 = vmatpush1.msra.mxu0 %v4326
    %4328 = vmatprep.subr.mxu0 0.0
    %v4329 = vand.u32 %v4110, 4294901760
    %v4330 = vsub.f32 %v4110, %v4329
    %v4331 = vand.u32 %v4330, 4294901760
    %v4332 = vsub.f32 %v4330, %v4331
    %v4333 = vand.u32 %v4332, 4294901760
    %4334 = vmatpush1.msra.mxu0 %v4333
    %4335 = vmatprep.subr.mxu0 0.0
    %v4336 = vand.u32 %v4109, 4294901760
    %v4337 = vsub.f32 %v4109, %v4336
    %v4338 = vand.u32 %v4337, 4294901760
    %v4339 = vsub.f32 %v4337, %v4338
    %v4340 = vand.u32 %v4339, 4294901760
    %4341 = vmatpush1.msra.mxu0 %v4340
    %4342 = vmatprep.subr.mxu0 0.0
    %v4343 = vand.u32 %v4108, 4294901760
    %v4344 = vsub.f32 %v4108, %v4343
    %v4345 = vand.u32 %v4344, 4294901760
    %v4346 = vsub.f32 %v4344, %v4345
    %v4347 = vand.u32 %v4346, 4294901760
    %4348 = vmatpush1.msra.mxu0 %v4347
    %4349 = vmatprep.subr.mxu0 0.0
    %v4350 = vand.u32 %v4107, 4294901760
    %v4351 = vsub.f32 %v4107, %v4350
    %v4352 = vand.u32 %v4351, 4294901760
    %v4353 = vsub.f32 %v4351, %v4352
    %v4354 = vand.u32 %v4353, 4294901760
    %4355 = vmatpush1.msra.mxu0 %v4354
    %4356 = vmatprep.subr.mxu0 0.0
    %4357 = vmatpush2.msra.mxu0 0.0
    %4358 = vmatprep.subr.mxu0 0.0
    %4359 = vmatpush2.msra.mxu0 0.0
    %4360 = vmatprep.subr.mxu0 0.0
    %4361 = vmatpush2.msra.mxu0 0.0
    %4362 = vmatprep.subr.mxu0 0.0
    %4363 = vmatpush2.msra.mxu0 0.0
    %4364 = vmatprep.subr.mxu0 0.0
    %4365 = vmatpush2.msra.mxu0 0.0
    %4366 = vmatprep.subr.mxu0 0.0
    %4367 = vmatpush2.msra.mxu0 0.0
    %4368 = vmatprep.subr.mxu0 0.0
    %4369 = vmatpush2.msra.mxu0 0.0
    %4370 = vmatprep.subr.mxu0 0.0
    %4371 = vmatpush2.msra.mxu0 0.0
    %4372 = vmatprep.subr.mxu0 0.0
    %4373 = vmatpush2.msra.mxu0 0.0
    %4374 = vmatprep.subr.mxu0 0.0
    %4375 = vmatpush2.msra.mxu0 0.0
    %4376 = vmatprep.subr.mxu0 0.0
    %4377 = vmatpush2.msra.mxu0 0.0
    %4378 = vmatprep.subr.mxu0 0.0
    %4379 = vmatpush2.msra.mxu0 0.0
    %4380 = vmatprep.subr.mxu0 0.0
    %4381 = vmatpush2.msra.mxu0 0.0
    %4382 = vmatprep.subr.mxu0 0.0
    %4383 = vmatpush2.msra.mxu0 0.0
    %4384 = vmatprep.subr.mxu0 0.0
    %4385 = vmatpush2.msra.mxu0 0.0
    %4386 = vmatprep.subr.mxu0 0.0
    %4387 = vmatpush2.msra.mxu0 0.0
    %4388 = vmatprep.mubr.f32.mxu0 0.0
    %v4389 = vand.u32 %v4102, 4294901760
    %4390 = vmatmul.mubr.f32.gmra.mxu0 %v4389
    %v4391 = vpop.f32.mrf.mxu0
    %v4392 = vadd.f32 %v4211, %v4391
    %v4393 = vpop.f32.mrf.mxu0
    %4394 = vmatprep.mubr.f32.mxu0 0.0
    %v4395 = vand.u32 %v4103, 4294901760
    %4396 = vmatmul.mubr.f32.gmra.mxu0 %v4395
    %v4397 = vpop.f32.mrf.mxu0
    %v4398 = vadd.f32 %v4221, %v4397
    %v4399 = vpop.f32.mrf.mxu0
    %4400 = vmatprep.mubr.f32.mxu0 0.0
    %v4401 = vand.u32 %v4104, 4294901760
    %4402 = vmatmul.mubr.f32.gmra.mxu0 %v4401
    %v4403 = vpop.f32.mrf.mxu0
    %v4404 = vadd.f32 %v4231, %v4403
    %v4405 = vpop.f32.mrf.mxu0
    %4406 = vmatprep.mubr.f32.mxu0 0.0
    %v4407 = vand.u32 %v4105, 4294901760
    %4408 = vmatmul.mubr.f32.gmra.mxu0 %v4407
    %v4409 = vpop.f32.mrf.mxu0
    %v4410 = vadd.f32 %v4241, %v4409
    %v4411 = vpop.f32.mrf.mxu0
    %4412 = vdwg.mxu0
    %4413 = vmatprep.subr.mxu0 0.0
    %v4414 = vand.u32 %v4122, 4294901760
    %v4415 = vsub.f32 %v4122, %v4414
    %4416 = vmatpush1.msra.mxu0 %v4415
    %4417 = vmatprep.subr.mxu0 0.0
    %v4418 = vand.u32 %v4121, 4294901760
    %v4419 = vsub.f32 %v4121, %v4418
    %4420 = vmatpush1.msra.mxu0 %v4419
    %4421 = vmatprep.subr.mxu0 0.0
    %v4422 = vand.u32 %v4120, 4294901760
    %v4423 = vsub.f32 %v4120, %v4422
    %4424 = vmatpush1.msra.mxu0 %v4423
    %4425 = vmatprep.subr.mxu0 0.0
    %v4426 = vand.u32 %v4119, 4294901760
    %v4427 = vsub.f32 %v4119, %v4426
    %4428 = vmatpush1.msra.mxu0 %v4427
    %4429 = vmatprep.subr.mxu0 0.0
    %v4430 = vand.u32 %v4118, 4294901760
    %v4431 = vsub.f32 %v4118, %v4430
    %4432 = vmatpush1.msra.mxu0 %v4431
    %4433 = vmatprep.subr.mxu0 0.0
    %v4434 = vand.u32 %v4117, 4294901760
    %v4435 = vsub.f32 %v4117, %v4434
    %4436 = vmatpush1.msra.mxu0 %v4435
    %4437 = vmatprep.subr.mxu0 0.0
    %v4438 = vand.u32 %v4116, 4294901760
    %v4439 = vsub.f32 %v4116, %v4438
    %4440 = vmatpush1.msra.mxu0 %v4439
    %4441 = vmatprep.subr.mxu0 0.0
    %v4442 = vand.u32 %v4115, 4294901760
    %v4443 = vsub.f32 %v4115, %v4442
    %4444 = vmatpush1.msra.mxu0 %v4443
    %4445 = vmatprep.subr.mxu0 0.0
    %v4446 = vand.u32 %v4114, 4294901760
    %v4447 = vsub.f32 %v4114, %v4446
    %4448 = vmatpush1.msra.mxu0 %v4447
    %4449 = vmatprep.subr.mxu0 0.0
    %v4450 = vand.u32 %v4113, 4294901760
    %v4451 = vsub.f32 %v4113, %v4450
    %4452 = vmatpush1.msra.mxu0 %v4451
    %4453 = vmatprep.subr.mxu0 0.0
    %v4454 = vand.u32 %v4112, 4294901760
    %v4455 = vsub.f32 %v4112, %v4454
    %4456 = vmatpush1.msra.mxu0 %v4455
    %4457 = vmatprep.subr.mxu0 0.0
    %v4458 = vand.u32 %v4111, 4294901760
    %v4459 = vsub.f32 %v4111, %v4458
    %4460 = vmatpush1.msra.mxu0 %v4459
    %4461 = vmatprep.subr.mxu0 0.0
    %v4462 = vand.u32 %v4110, 4294901760
    %v4463 = vsub.f32 %v4110, %v4462
    %4464 = vmatpush1.msra.mxu0 %v4463
    %4465 = vmatprep.subr.mxu0 0.0
    %v4466 = vand.u32 %v4109, 4294901760
    %v4467 = vsub.f32 %v4109, %v4466
    %4468 = vmatpush1.msra.mxu0 %v4467
    %4469 = vmatprep.subr.mxu0 0.0
    %v4470 = vand.u32 %v4108, 4294901760
    %v4471 = vsub.f32 %v4108, %v4470
    %4472 = vmatpush1.msra.mxu0 %v4471
    %4473 = vmatprep.subr.mxu0 0.0
    %v4474 = vand.u32 %v4107, 4294901760
    %v4475 = vsub.f32 %v4107, %v4474
    %4476 = vmatpush1.msra.mxu0 %v4475
    %4477 = vmatprep.subr.mxu0 0.0
    %4478 = vmatpush2.msra.mxu0 0.0
    %4479 = vmatprep.subr.mxu0 0.0
    %4480 = vmatpush2.msra.mxu0 0.0
    %4481 = vmatprep.subr.mxu0 0.0
    %4482 = vmatpush2.msra.mxu0 0.0
    %4483 = vmatprep.subr.mxu0 0.0
    %4484 = vmatpush2.msra.mxu0 0.0
    %4485 = vmatprep.subr.mxu0 0.0
    %4486 = vmatpush2.msra.mxu0 0.0
    %4487 = vmatprep.subr.mxu0 0.0
    %4488 = vmatpush2.msra.mxu0 0.0
    %4489 = vmatprep.subr.mxu0 0.0
    %4490 = vmatpush2.msra.mxu0 0.0
    %4491 = vmatprep.subr.mxu0 0.0
    %4492 = vmatpush2.msra.mxu0 0.0
    %4493 = vmatprep.subr.mxu0 0.0
    %4494 = vmatpush2.msra.mxu0 0.0
    %4495 = vmatprep.subr.mxu0 0.0
    %4496 = vmatpush2.msra.mxu0 0.0
    %4497 = vmatprep.subr.mxu0 0.0
    %4498 = vmatpush2.msra.mxu0 0.0
    %4499 = vmatprep.subr.mxu0 0.0
    %4500 = vmatpush2.msra.mxu0 0.0
    %4501 = vmatprep.subr.mxu0 0.0
    %4502 = vmatpush2.msra.mxu0 0.0
    %4503 = vmatprep.subr.mxu0 0.0
    %4504 = vmatpush2.msra.mxu0 0.0
    %4505 = vmatprep.subr.mxu0 0.0
    %4506 = vmatpush2.msra.mxu0 0.0
    %4507 = vmatprep.subr.mxu0 0.0
    %4508 = vmatpush2.msra.mxu0 0.0
    %4509 = vmatprep.mubr.f32.mxu0 0.0
    %v4510 = vand.u32 %v4102, 4294901760
    %v4511 = vsub.f32 %v4102, %v4510
    %4512 = vmatmul.mubr.f32.gmra.mxu0 %v4511
    %v4513 = vpop.f32.mrf.mxu0
    %v4514 = vadd.f32 %v4392, %v4513
    %v4515 = vpop.f32.mrf.mxu0
    %4516 = vmatprep.mubr.f32.mxu0 0.0
    %v4517 = vand.u32 %v4103, 4294901760
    %v4518 = vsub.f32 %v4103, %v4517
    %4519 = vmatmul.mubr.f32.gmra.mxu0 %v4518
    %v4520 = vpop.f32.mrf.mxu0
    %v4521 = vadd.f32 %v4398, %v4520
    %v4522 = vpop.f32.mrf.mxu0
    %4523 = vmatprep.mubr.f32.mxu0 0.0
    %v4524 = vand.u32 %v4104, 4294901760
    %v4525 = vsub.f32 %v4104, %v4524
    %4526 = vmatmul.mubr.f32.gmra.mxu0 %v4525
    %v4527 = vpop.f32.mrf.mxu0
    %v4528 = vadd.f32 %v4404, %v4527
    %v4529 = vpop.f32.mrf.mxu0
    %4530 = vmatprep.mubr.f32.mxu0 0.0
    %v4531 = vand.u32 %v4105, 4294901760
    %v4532 = vsub.f32 %v4105, %v4531
    %4533 = vmatmul.mubr.f32.gmra.mxu0 %v4532
    %v4534 = vpop.f32.mrf.mxu0
    %v4535 = vadd.f32 %v4410, %v4534
    %v4536 = vpop.f32.mrf.mxu0
    %4537 = vdwg.mxu0
    %4538 = vmatprep.subr.mxu0 0.0
    %v4539 = vand.u32 %v4122, 4294901760
    %4540 = vmatpush1.msra.mxu0 %v4539
    %4541 = vmatprep.subr.mxu0 0.0
    %v4542 = vand.u32 %v4121, 4294901760
    %4543 = vmatpush1.msra.mxu0 %v4542
    %4544 = vmatprep.subr.mxu0 0.0
    %v4545 = vand.u32 %v4120, 4294901760
    %4546 = vmatpush1.msra.mxu0 %v4545
    %4547 = vmatprep.subr.mxu0 0.0
    %v4548 = vand.u32 %v4119, 4294901760
    %4549 = vmatpush1.msra.mxu0 %v4548
    %4550 = vmatprep.subr.mxu0 0.0
    %v4551 = vand.u32 %v4118, 4294901760
    %4552 = vmatpush1.msra.mxu0 %v4551
    %4553 = vmatprep.subr.mxu0 0.0
    %v4554 = vand.u32 %v4117, 4294901760
    %4555 = vmatpush1.msra.mxu0 %v4554
    %4556 = vmatprep.subr.mxu0 0.0
    %v4557 = vand.u32 %v4116, 4294901760
    %4558 = vmatpush1.msra.mxu0 %v4557
    %4559 = vmatprep.subr.mxu0 0.0
    %v4560 = vand.u32 %v4115, 4294901760
    %4561 = vmatpush1.msra.mxu0 %v4560
    %4562 = vmatprep.subr.mxu0 0.0
    %v4563 = vand.u32 %v4114, 4294901760
    %4564 = vmatpush1.msra.mxu0 %v4563
    %4565 = vmatprep.subr.mxu0 0.0
    %v4566 = vand.u32 %v4113, 4294901760
    %4567 = vmatpush1.msra.mxu0 %v4566
    %4568 = vmatprep.subr.mxu0 0.0
    %v4569 = vand.u32 %v4112, 4294901760
    %4570 = vmatpush1.msra.mxu0 %v4569
    %4571 = vmatprep.subr.mxu0 0.0
    %v4572 = vand.u32 %v4111, 4294901760
    %4573 = vmatpush1.msra.mxu0 %v4572
    %4574 = vmatprep.subr.mxu0 0.0
    %v4575 = vand.u32 %v4110, 4294901760
    %4576 = vmatpush1.msra.mxu0 %v4575
    %4577 = vmatprep.subr.mxu0 0.0
    %v4578 = vand.u32 %v4109, 4294901760
    %4579 = vmatpush1.msra.mxu0 %v4578
    %4580 = vmatprep.subr.mxu0 0.0
    %v4581 = vand.u32 %v4108, 4294901760
    %4582 = vmatpush1.msra.mxu0 %v4581
    %4583 = vmatprep.subr.mxu0 0.0
    %v4584 = vand.u32 %v4107, 4294901760
    %4585 = vmatpush1.msra.mxu0 %v4584
    %4586 = vmatprep.subr.mxu0 0.0
    %4587 = vmatpush2.msra.mxu0 0.0
    %4588 = vmatprep.subr.mxu0 0.0
    %4589 = vmatpush2.msra.mxu0 0.0
    %4590 = vmatprep.subr.mxu0 0.0
    %4591 = vmatpush2.msra.mxu0 0.0
    %4592 = vmatprep.subr.mxu0 0.0
    %4593 = vmatpush2.msra.mxu0 0.0
    %4594 = vmatprep.subr.mxu0 0.0
    %4595 = vmatpush2.msra.mxu0 0.0
    %4596 = vmatprep.subr.mxu0 0.0
    %4597 = vmatpush2.msra.mxu0 0.0
    %4598 = vmatprep.subr.mxu0 0.0
    %4599 = vmatpush2.msra.mxu0 0.0
    %4600 = vmatprep.subr.mxu0 0.0
    %4601 = vmatpush2.msra.mxu0 0.0
    %4602 = vmatprep.subr.mxu0 0.0
    %4603 = vmatpush2.msra.mxu0 0.0
    %4604 = vmatprep.subr.mxu0 0.0
    %4605 = vmatpush2.msra.mxu0 0.0
    %4606 = vmatprep.subr.mxu0 0.0
    %4607 = vmatpush2.msra.mxu0 0.0
    %4608 = vmatprep.subr.mxu0 0.0
    %4609 = vmatpush2.msra.mxu0 0.0
    %4610 = vmatprep.subr.mxu0 0.0
    %4611 = vmatpush2.msra.mxu0 0.0
    %4612 = vmatprep.subr.mxu0 0.0
    %4613 = vmatpush2.msra.mxu0 0.0
    %4614 = vmatprep.subr.mxu0 0.0
    %4615 = vmatpush2.msra.mxu0 0.0
    %4616 = vmatprep.subr.mxu0 0.0
    %4617 = vmatpush2.msra.mxu0 0.0
    %4618 = vmatprep.mubr.f32.mxu0 0.0
    %v4619 = vand.u32 %v4102, 4294901760
    %v4620 = vsub.f32 %v4102, %v4619
    %v4621 = vand.u32 %v4620, 4294901760
    %4622 = vmatmul.mubr.f32.gmra.mxu0 %v4621
    %v4623 = vpop.f32.mrf.mxu0
    %v4624 = vadd.f32 %v4514, %v4623
    %v4625 = vpop.f32.mrf.mxu0
    %4626 = vmatprep.mubr.f32.mxu0 0.0
    %v4627 = vand.u32 %v4103, 4294901760
    %v4628 = vsub.f32 %v4103, %v4627
    %v4629 = vand.u32 %v4628, 4294901760
    %4630 = vmatmul.mubr.f32.gmra.mxu0 %v4629
    %v4631 = vpop.f32.mrf.mxu0
    %v4632 = vadd.f32 %v4521, %v4631
    %v4633 = vpop.f32.mrf.mxu0
    %4634 = vmatprep.mubr.f32.mxu0 0.0
    %v4635 = vand.u32 %v4104, 4294901760
    %v4636 = vsub.f32 %v4104, %v4635
    %v4637 = vand.u32 %v4636, 4294901760
    %4638 = vmatmul.mubr.f32.gmra.mxu0 %v4637
    %v4639 = vpop.f32.mrf.mxu0
    %v4640 = vadd.f32 %v4528, %v4639
    %v4641 = vpop.f32.mrf.mxu0
    %4642 = vmatprep.mubr.f32.mxu0 0.0
    %v4643 = vand.u32 %v4105, 4294901760
    %v4644 = vsub.f32 %v4105, %v4643
    %v4645 = vand.u32 %v4644, 4294901760
    %4646 = vmatmul.mubr.f32.gmra.mxu0 %v4645
    %v4647 = vpop.f32.mrf.mxu0
    %v4648 = vadd.f32 %v4535, %v4647
    %v4649 = vpop.f32.mrf.mxu0
    %4650 = vdwg.mxu0
    %4651 = vmatprep.subr.mxu0 0.0
    %v4652 = vand.u32 %v4122, 4294901760
    %v4653 = vsub.f32 %v4122, %v4652
    %v4654 = vand.u32 %v4653, 4294901760
    %4655 = vmatpush1.msra.mxu0 %v4654
    %4656 = vmatprep.subr.mxu0 0.0
    %v4657 = vand.u32 %v4121, 4294901760
    %v4658 = vsub.f32 %v4121, %v4657
    %v4659 = vand.u32 %v4658, 4294901760
    %4660 = vmatpush1.msra.mxu0 %v4659
    %4661 = vmatprep.subr.mxu0 0.0
    %v4662 = vand.u32 %v4120, 4294901760
    %v4663 = vsub.f32 %v4120, %v4662
    %v4664 = vand.u32 %v4663, 4294901760
    %4665 = vmatpush1.msra.mxu0 %v4664
    %4666 = vmatprep.subr.mxu0 0.0
    %v4667 = vand.u32 %v4119, 4294901760
    %v4668 = vsub.f32 %v4119, %v4667
    %v4669 = vand.u32 %v4668, 4294901760
    %4670 = vmatpush1.msra.mxu0 %v4669
    %4671 = vmatprep.subr.mxu0 0.0
    %v4672 = vand.u32 %v4118, 4294901760
    %v4673 = vsub.f32 %v4118, %v4672
    %v4674 = vand.u32 %v4673, 4294901760
    %4675 = vmatpush1.msra.mxu0 %v4674
    %4676 = vmatprep.subr.mxu0 0.0
    %v4677 = vand.u32 %v4117, 4294901760
    %v4678 = vsub.f32 %v4117, %v4677
    %v4679 = vand.u32 %v4678, 4294901760
    %4680 = vmatpush1.msra.mxu0 %v4679
    %4681 = vmatprep.subr.mxu0 0.0
    %v4682 = vand.u32 %v4116, 4294901760
    %v4683 = vsub.f32 %v4116, %v4682
    %v4684 = vand.u32 %v4683, 4294901760
    %4685 = vmatpush1.msra.mxu0 %v4684
    %4686 = vmatprep.subr.mxu0 0.0
    %v4687 = vand.u32 %v4115, 4294901760
    %v4688 = vsub.f32 %v4115, %v4687
    %v4689 = vand.u32 %v4688, 4294901760
    %4690 = vmatpush1.msra.mxu0 %v4689
    %4691 = vmatprep.subr.mxu0 0.0
    %v4692 = vand.u32 %v4114, 4294901760
    %v4693 = vsub.f32 %v4114, %v4692
    %v4694 = vand.u32 %v4693, 4294901760
    %4695 = vmatpush1.msra.mxu0 %v4694
    %4696 = vmatprep.subr.mxu0 0.0
    %v4697 = vand.u32 %v4113, 4294901760
    %v4698 = vsub.f32 %v4113, %v4697
    %v4699 = vand.u32 %v4698, 4294901760
    %4700 = vmatpush1.msra.mxu0 %v4699
    %4701 = vmatprep.subr.mxu0 0.0
    %v4702 = vand.u32 %v4112, 4294901760
    %v4703 = vsub.f32 %v4112, %v4702
    %v4704 = vand.u32 %v4703, 4294901760
    %4705 = vmatpush1.msra.mxu0 %v4704
    %4706 = vmatprep.subr.mxu0 0.0
    %v4707 = vand.u32 %v4111, 4294901760
    %v4708 = vsub.f32 %v4111, %v4707
    %v4709 = vand.u32 %v4708, 4294901760
    %4710 = vmatpush1.msra.mxu0 %v4709
    %4711 = vmatprep.subr.mxu0 0.0
    %v4712 = vand.u32 %v4110, 4294901760
    %v4713 = vsub.f32 %v4110, %v4712
    %v4714 = vand.u32 %v4713, 4294901760
    %4715 = vmatpush1.msra.mxu0 %v4714
    %4716 = vmatprep.subr.mxu0 0.0
    %v4717 = vand.u32 %v4109, 4294901760
    %v4718 = vsub.f32 %v4109, %v4717
    %v4719 = vand.u32 %v4718, 4294901760
    %4720 = vmatpush1.msra.mxu0 %v4719
    %4721 = vmatprep.subr.mxu0 0.0
    %v4722 = vand.u32 %v4108, 4294901760
    %v4723 = vsub.f32 %v4108, %v4722
    %v4724 = vand.u32 %v4723, 4294901760
    %4725 = vmatpush1.msra.mxu0 %v4724
    %4726 = vmatprep.subr.mxu0 0.0
    %v4727 = vand.u32 %v4107, 4294901760
    %v4728 = vsub.f32 %v4107, %v4727
    %v4729 = vand.u32 %v4728, 4294901760
    %4730 = vmatpush1.msra.mxu0 %v4729
    %4731 = vmatprep.subr.mxu0 0.0
    %4732 = vmatpush2.msra.mxu0 0.0
    %4733 = vmatprep.subr.mxu0 0.0
    %4734 = vmatpush2.msra.mxu0 0.0
    %4735 = vmatprep.subr.mxu0 0.0
    %4736 = vmatpush2.msra.mxu0 0.0
    %4737 = vmatprep.subr.mxu0 0.0
    %4738 = vmatpush2.msra.mxu0 0.0
    %4739 = vmatprep.subr.mxu0 0.0
    %4740 = vmatpush2.msra.mxu0 0.0
    %4741 = vmatprep.subr.mxu0 0.0
    %4742 = vmatpush2.msra.mxu0 0.0
    %4743 = vmatprep.subr.mxu0 0.0
    %4744 = vmatpush2.msra.mxu0 0.0
    %4745 = vmatprep.subr.mxu0 0.0
    %4746 = vmatpush2.msra.mxu0 0.0
    %4747 = vmatprep.subr.mxu0 0.0
    %4748 = vmatpush2.msra.mxu0 0.0
    %4749 = vmatprep.subr.mxu0 0.0
    %4750 = vmatpush2.msra.mxu0 0.0
    %4751 = vmatprep.subr.mxu0 0.0
    %4752 = vmatpush2.msra.mxu0 0.0
    %4753 = vmatprep.subr.mxu0 0.0
    %4754 = vmatpush2.msra.mxu0 0.0
    %4755 = vmatprep.subr.mxu0 0.0
    %4756 = vmatpush2.msra.mxu0 0.0
    %4757 = vmatprep.subr.mxu0 0.0
    %4758 = vmatpush2.msra.mxu0 0.0
    %4759 = vmatprep.subr.mxu0 0.0
    %4760 = vmatpush2.msra.mxu0 0.0
    %4761 = vmatprep.subr.mxu0 0.0
    %4762 = vmatpush2.msra.mxu0 0.0
    %4763 = vmatprep.mubr.f32.mxu0 0.0
    %v4764 = vand.u32 %v4102, 4294901760
    %4765 = vmatmul.mubr.f32.gmra.mxu0 %v4764
    %v4766 = vpop.f32.mrf.mxu0
    %v4767 = vadd.f32 %v4624, %v4766
    %v4768 = vpop.f32.mrf.mxu0
    %4769 = vmatprep.mubr.f32.mxu0 0.0
    %v4770 = vand.u32 %v4103, 4294901760
    %4771 = vmatmul.mubr.f32.gmra.mxu0 %v4770
    %v4772 = vpop.f32.mrf.mxu0
    %v4773 = vadd.f32 %v4632, %v4772
    %v4774 = vpop.f32.mrf.mxu0
    %4775 = vmatprep.mubr.f32.mxu0 0.0
    %v4776 = vand.u32 %v4104, 4294901760
    %4777 = vmatmul.mubr.f32.gmra.mxu0 %v4776
    %v4778 = vpop.f32.mrf.mxu0
    %v4779 = vadd.f32 %v4640, %v4778
    %v4780 = vpop.f32.mrf.mxu0
    %4781 = vmatprep.mubr.f32.mxu0 0.0
    %v4782 = vand.u32 %v4105, 4294901760
    %4783 = vmatmul.mubr.f32.gmra.mxu0 %v4782
    %v4784 = vpop.f32.mrf.mxu0
    %v4785 = vadd.f32 %v4648, %v4784
    %v4786 = vpop.f32.mrf.mxu0
    %4787 = vdwg.mxu0
    %4788 = vmatprep.subr.mxu0 0.0
    %v4789 = vand.u32 %v4122, 4294901760
    %4790 = vmatpush1.msra.mxu0 %v4789
    %4791 = vmatprep.subr.mxu0 0.0
    %v4792 = vand.u32 %v4121, 4294901760
    %4793 = vmatpush1.msra.mxu0 %v4792
    %4794 = vmatprep.subr.mxu0 0.0
    %v4795 = vand.u32 %v4120, 4294901760
    %4796 = vmatpush1.msra.mxu0 %v4795
    %4797 = vmatprep.subr.mxu0 0.0
    %v4798 = vand.u32 %v4119, 4294901760
    %4799 = vmatpush1.msra.mxu0 %v4798
    %4800 = vmatprep.subr.mxu0 0.0
    %v4801 = vand.u32 %v4118, 4294901760
    %4802 = vmatpush1.msra.mxu0 %v4801
    %4803 = vmatprep.subr.mxu0 0.0
    %v4804 = vand.u32 %v4117, 4294901760
    %4805 = vmatpush1.msra.mxu0 %v4804
    %4806 = vmatprep.subr.mxu0 0.0
    %v4807 = vand.u32 %v4116, 4294901760
    %4808 = vmatpush1.msra.mxu0 %v4807
    %4809 = vmatprep.subr.mxu0 0.0
    %v4810 = vand.u32 %v4115, 4294901760
    %4811 = vmatpush1.msra.mxu0 %v4810
    %4812 = vmatprep.subr.mxu0 0.0
    %v4813 = vand.u32 %v4114, 4294901760
    %4814 = vmatpush1.msra.mxu0 %v4813
    %4815 = vmatprep.subr.mxu0 0.0
    %v4816 = vand.u32 %v4113, 4294901760
    %4817 = vmatpush1.msra.mxu0 %v4816
    %4818 = vmatprep.subr.mxu0 0.0
    %v4819 = vand.u32 %v4112, 4294901760
    %4820 = vmatpush1.msra.mxu0 %v4819
    %4821 = vmatprep.subr.mxu0 0.0
    %v4822 = vand.u32 %v4111, 4294901760
    %4823 = vmatpush1.msra.mxu0 %v4822
    %4824 = vmatprep.subr.mxu0 0.0
    %v4825 = vand.u32 %v4110, 4294901760
    %4826 = vmatpush1.msra.mxu0 %v4825
    %4827 = vmatprep.subr.mxu0 0.0
    %v4828 = vand.u32 %v4109, 4294901760
    %4829 = vmatpush1.msra.mxu0 %v4828
    %4830 = vmatprep.subr.mxu0 0.0
    %v4831 = vand.u32 %v4108, 4294901760
    %4832 = vmatpush1.msra.mxu0 %v4831
    %4833 = vmatprep.subr.mxu0 0.0
    %v4834 = vand.u32 %v4107, 4294901760
    %4835 = vmatpush1.msra.mxu0 %v4834
    %4836 = vmatprep.subr.mxu0 0.0
    %4837 = vmatpush2.msra.mxu0 0.0
    %4838 = vmatprep.subr.mxu0 0.0
    %4839 = vmatpush2.msra.mxu0 0.0
    %4840 = vmatprep.subr.mxu0 0.0
    %4841 = vmatpush2.msra.mxu0 0.0
    %4842 = vmatprep.subr.mxu0 0.0
    %4843 = vmatpush2.msra.mxu0 0.0
    %4844 = vmatprep.subr.mxu0 0.0
    %4845 = vmatpush2.msra.mxu0 0.0
    %4846 = vmatprep.subr.mxu0 0.0
    %4847 = vmatpush2.msra.mxu0 0.0
    %4848 = vmatprep.subr.mxu0 0.0
    %4849 = vmatpush2.msra.mxu0 0.0
    %4850 = vmatprep.subr.mxu0 0.0
    %4851 = vmatpush2.msra.mxu0 0.0
    %4852 = vmatprep.subr.mxu0 0.0
    %4853 = vmatpush2.msra.mxu0 0.0
    %4854 = vmatprep.subr.mxu0 0.0
    %4855 = vmatpush2.msra.mxu0 0.0
    %4856 = vmatprep.subr.mxu0 0.0
    %4857 = vmatpush2.msra.mxu0 0.0
    %4858 = vmatprep.subr.mxu0 0.0
    %4859 = vmatpush2.msra.mxu0 0.0
    %4860 = vmatprep.subr.mxu0 0.0
    %4861 = vmatpush2.msra.mxu0 0.0
    %4862 = vmatprep.subr.mxu0 0.0
    %4863 = vmatpush2.msra.mxu0 0.0
    %4864 = vmatprep.subr.mxu0 0.0
    %4865 = vmatpush2.msra.mxu0 0.0
    %4866 = vmatprep.subr.mxu0 0.0
    %4867 = vmatpush2.msra.mxu0 0.0
    %4868 = vmatprep.mubr.f32.mxu0 0.0
    %v4869 = vand.u32 %v4102, 4294901760
    %4870 = vmatmul.mubr.f32.gmra.mxu0 %v4869
    %v4871 = vpop.f32.mrf.mxu0
    %v4872 = vadd.f32 %v4767, %v4871
    %v4873 = vpop.f32.mrf.mxu0
    %4874 = vmatprep.mubr.f32.mxu0 0.0
    %v4875 = vand.u32 %v4103, 4294901760
    %4876 = vmatmul.mubr.f32.gmra.mxu0 %v4875
    %v4877 = vpop.f32.mrf.mxu0
    %v4878 = vadd.f32 %v4773, %v4877
    %v4879 = vpop.f32.mrf.mxu0
    %4880 = vmatprep.mubr.f32.mxu0 0.0
    %v4881 = vand.u32 %v4104, 4294901760
    %4882 = vmatmul.mubr.f32.gmra.mxu0 %v4881
    %v4883 = vpop.f32.mrf.mxu0
    %v4884 = vadd.f32 %v4779, %v4883
    %v4885 = vpop.f32.mrf.mxu0
    %4886 = vmatprep.mubr.f32.mxu0 0.0
    %v4887 = vand.u32 %v4105, 4294901760
    %4888 = vmatmul.mubr.f32.gmra.mxu0 %v4887
    %v4889 = vpop.f32.mrf.mxu0
    %v4890 = vadd.f32 %v4785, %v4889
    %v4891 = vpop.f32.mrf.mxu0
    %4892 = vdwg.mxu0
    %v4893 = vadd.f32 %v4872, %v4878
    %v4894 = vrot.slane %v4893, 4
    %v4895 = vadd.f32 %v4893, %v4894
    %v4896 = vrot.slane %v4895, 2
    %v4897 = vadd.f32 %v4895, %v4896
    %v4898 = vrot.slane %v4897, 1
    %v4899 = vadd.f32 %v4897, %v4898
    %v4900 = vadd.f32 %v4884, %v4890
    %v4901 = vrot.slane %v4900, 4
    %v4902 = vadd.f32 %v4900, %v4901
    %v4903 = vrot.slane %v4902, 2
    %v4904 = vadd.f32 %v4902, %v4903
    %v4905 = vrot.slane %v4904, 1
    %v4906 = vadd.f32 %v4904, %v4905
    %v4907 = vmul.f32 %v4899, %v1502
    %v4908 = vmul.f32 %v4906, %v1502
    %v4909 = vsub.f32 %v4872, %v4907
    %v4910 = vsub.f32 %v4878, %v4907
    %v4911 = vsub.f32 %v4884, %v4908
    %v4912 = vsub.f32 %v4890, %v4908
    %v4913 = vmul.f32 %v4909, %v4909
    %v4914 = vmul.f32 %v4910, %v4910
    %v4915 = vmul.f32 %v4911, %v4911
    %v4916 = vmul.f32 %v4912, %v4912
    %v4917 = vadd.f32 %v4913, %v4914
    %v4918 = vrot.slane %v4917, 4
    %v4919 = vadd.f32 %v4917, %v4918
    %v4920 = vrot.slane %v4919, 2
    %v4921 = vadd.f32 %v4919, %v4920
    %v4922 = vrot.slane %v4921, 1
    %v4923 = vadd.f32 %v4921, %v4922
    %v4924 = vadd.f32 %v4915, %v4916
    %v4925 = vrot.slane %v4924, 4
    %v4926 = vadd.f32 %v4924, %v4925
    %v4927 = vrot.slane %v4926, 2
    %v4928 = vadd.f32 %v4926, %v4927
    %v4929 = vrot.slane %v4928, 1
    %v4930 = vadd.f32 %v4928, %v4929
    %v4931 = vmul.f32 %v4923, %v1502
    %v4932 = vmul.f32 %v4930, %v1502
    %v4933 = vadd.f32 %v4931, 1e-05
    %v4934 = vadd.f32 %v4932, 1e-05
    %v4935 = vrsqrt.pop %v4933
    %v4936 = vrsqrt.pop %v4934
    %v4937 = vmul.f32 %v4931, %v4935
    %v4938 = vmul.f32 %v4932, %v4936
    %v4939 = vmul.f32 %v4937, %v4935
    %v4940 = vmul.f32 %v4938, %v4936
    %v4941 = vadd.f32 %v4939, %v4940
    %v4942 = vmul.f32 %v4941, %v1538
    %v4943 = vadd.f32 %v4942, 1e-05
    %v4944 = vrsqrt.pop %v4943
    %v4945 = vmul.f32 %v4935, %v4944
    %v4946 = vmul.f32 %v4936, %v4944
    %v4947 = vmul.f32 %v4909, %v4945
    %v4948 = vmul.f32 %v4910, %v4945
    %v4949 = vmul.f32 %v4911, %v4946
    %v4950 = vmul.f32 %v4912, %v4946
    %v4951 = vmax.f32 %v4947, 0.0
    %v4952 = vmax.f32 %v4948, 0.0
    %v4953 = vmax.f32 %v4949, 0.0
    %v4954 = vmax.f32 %v4950, 0.0
    %s4955 = scalar_lea.vmem [#allocation9], 256
    %v4956 = vld [vmem:[%s4955] sm:$0xff]
    %v4957 = vld [vmem:[%s4955 + $0x8] sm:$0xff]
    %v4958 = vld [vmem:[%s4955 + $0x10] sm:$0xff]
    %v4959 = vld [vmem:[%s4955 + $0x18] sm:$0xff]
    %v4960 = vld [vmem:[%s4955 + $0x20] sm:$0xff]
    %v4961 = vld [vmem:[%s4955 + $0x28] sm:$0xff]
    %v4962 = vld [vmem:[%s4955 + $0x30] sm:$0xff]
    %v4963 = vld [vmem:[%s4955 + $0x38] sm:$0xff]
    %v4964 = vld [vmem:[%s4955 + $0x40] sm:$0xff]
    %v4965 = vld [vmem:[%s4955 + $0x48] sm:$0xff]
    %v4966 = vld [vmem:[%s4955 + $0x50] sm:$0xff]
    %v4967 = vld [vmem:[%s4955 + $0x58] sm:$0xff]
    %v4968 = vld [vmem:[%s4955 + $0x60] sm:$0xff]
    %v4969 = vld [vmem:[%s4955 + $0x68] sm:$0xff]
    %v4970 = vld [vmem:[%s4955 + $0x70] sm:$0xff]
    %v4971 = vld [vmem:[%s4955 + $0x78] sm:$0xff]
    %4972 = vmatprep.subr.mxu0 0.0
    %v4973 = vand.u32 %v4971, 4294901760
    %4974 = vmatpush1.msra.mxu0 %v4973
    %4975 = vmatprep.subr.mxu0 0.0
    %v4976 = vand.u32 %v4970, 4294901760
    %4977 = vmatpush1.msra.mxu0 %v4976
    %4978 = vmatprep.subr.mxu0 0.0
    %v4979 = vand.u32 %v4969, 4294901760
    %4980 = vmatpush1.msra.mxu0 %v4979
    %4981 = vmatprep.subr.mxu0 0.0
    %v4982 = vand.u32 %v4968, 4294901760
    %4983 = vmatpush1.msra.mxu0 %v4982
    %4984 = vmatprep.subr.mxu0 0.0
    %v4985 = vand.u32 %v4967, 4294901760
    %4986 = vmatpush1.msra.mxu0 %v4985
    %4987 = vmatprep.subr.mxu0 0.0
    %v4988 = vand.u32 %v4966, 4294901760
    %4989 = vmatpush1.msra.mxu0 %v4988
    %4990 = vmatprep.subr.mxu0 0.0
    %v4991 = vand.u32 %v4965, 4294901760
    %4992 = vmatpush1.msra.mxu0 %v4991
    %4993 = vmatprep.subr.mxu0 0.0
    %v4994 = vand.u32 %v4964, 4294901760
    %4995 = vmatpush1.msra.mxu0 %v4994
    %4996 = vmatprep.subr.mxu0 0.0
    %v4997 = vand.u32 %v4963, 4294901760
    %4998 = vmatpush1.msra.mxu0 %v4997
    %4999 = vmatprep.subr.mxu0 0.0
    %v5000 = vand.u32 %v4962, 4294901760
    %5001 = vmatpush1.msra.mxu0 %v5000
    %5002 = vmatprep.subr.mxu0 0.0
    %v5003 = vand.u32 %v4961, 4294901760
    %5004 = vmatpush1.msra.mxu0 %v5003
    %5005 = vmatprep.subr.mxu0 0.0
    %v5006 = vand.u32 %v4960, 4294901760
    %5007 = vmatpush1.msra.mxu0 %v5006
    %5008 = vmatprep.subr.mxu0 0.0
    %v5009 = vand.u32 %v4959, 4294901760
    %5010 = vmatpush1.msra.mxu0 %v5009
    %5011 = vmatprep.subr.mxu0 0.0
    %v5012 = vand.u32 %v4958, 4294901760
    %5013 = vmatpush1.msra.mxu0 %v5012
    %5014 = vmatprep.subr.mxu0 0.0
    %v5015 = vand.u32 %v4957, 4294901760
    %5016 = vmatpush1.msra.mxu0 %v5015
    %5017 = vmatprep.subr.mxu0 0.0
    %v5018 = vand.u32 %v4956, 4294901760
    %5019 = vmatpush1.msra.mxu0 %v5018
    %5020 = vmatprep.subr.mxu0 0.0
    %5021 = vmatpush2.msra.mxu0 0.0
    %5022 = vmatprep.subr.mxu0 0.0
    %5023 = vmatpush2.msra.mxu0 0.0
    %5024 = vmatprep.subr.mxu0 0.0
    %5025 = vmatpush2.msra.mxu0 0.0
    %5026 = vmatprep.subr.mxu0 0.0
    %5027 = vmatpush2.msra.mxu0 0.0
    %5028 = vmatprep.subr.mxu0 0.0
    %5029 = vmatpush2.msra.mxu0 0.0
    %5030 = vmatprep.subr.mxu0 0.0
    %5031 = vmatpush2.msra.mxu0 0.0
    %5032 = vmatprep.subr.mxu0 0.0
    %5033 = vmatpush2.msra.mxu0 0.0
    %5034 = vmatprep.subr.mxu0 0.0
    %5035 = vmatpush2.msra.mxu0 0.0
    %5036 = vmatprep.subr.mxu0 0.0
    %5037 = vmatpush2.msra.mxu0 0.0
    %5038 = vmatprep.subr.mxu0 0.0
    %5039 = vmatpush2.msra.mxu0 0.0
    %5040 = vmatprep.subr.mxu0 0.0
    %5041 = vmatpush2.msra.mxu0 0.0
    %5042 = vmatprep.subr.mxu0 0.0
    %5043 = vmatpush2.msra.mxu0 0.0
    %5044 = vmatprep.subr.mxu0 0.0
    %5045 = vmatpush2.msra.mxu0 0.0
    %5046 = vmatprep.subr.mxu0 0.0
    %5047 = vmatpush2.msra.mxu0 0.0
    %5048 = vmatprep.subr.mxu0 0.0
    %5049 = vmatpush2.msra.mxu0 0.0
    %5050 = vmatprep.subr.mxu0 0.0
    %5051 = vmatpush2.msra.mxu0 0.0
    %5052 = vmatprep.mubr.f32.mxu0 0.0
    %v5053 = vand.u32 %v4951, 4294901760
    %v5054 = vsub.f32 %v4951, %v5053
    %v5055 = vand.u32 %v5054, 4294901760
    %v5056 = vsub.f32 %v5054, %v5055
    %v5057 = vand.u32 %v5056, 4294901760
    %5058 = vmatmul.mubr.f32.gmra.mxu0 %v5057
    %v5059 = vpop.f32.mrf.mxu0
    %v5060 = vadd.f32 0.0, %v5059
    %v5061 = vpop.f32.mrf.mxu0
    %5062 = vmatprep.mubr.f32.mxu0 0.0
    %v5063 = vand.u32 %v4952, 4294901760
    %v5064 = vsub.f32 %v4952, %v5063
    %v5065 = vand.u32 %v5064, 4294901760
    %v5066 = vsub.f32 %v5064, %v5065
    %v5067 = vand.u32 %v5066, 4294901760
    %5068 = vmatmul.mubr.f32.gmra.mxu0 %v5067
    %v5069 = vpop.f32.mrf.mxu0
    %v5070 = vadd.f32 0.0, %v5069
    %v5071 = vpop.f32.mrf.mxu0
    %5072 = vmatprep.mubr.f32.mxu0 0.0
    %v5073 = vand.u32 %v4953, 4294901760
    %v5074 = vsub.f32 %v4953, %v5073
    %v5075 = vand.u32 %v5074, 4294901760
    %v5076 = vsub.f32 %v5074, %v5075
    %v5077 = vand.u32 %v5076, 4294901760
    %5078 = vmatmul.mubr.f32.gmra.mxu0 %v5077
    %v5079 = vpop.f32.mrf.mxu0
    %v5080 = vadd.f32 0.0, %v5079
    %v5081 = vpop.f32.mrf.mxu0
    %5082 = vmatprep.mubr.f32.mxu0 0.0
    %v5083 = vand.u32 %v4954, 4294901760
    %v5084 = vsub.f32 %v4954, %v5083
    %v5085 = vand.u32 %v5084, 4294901760
    %v5086 = vsub.f32 %v5084, %v5085
    %v5087 = vand.u32 %v5086, 4294901760
    %5088 = vmatmul.mubr.f32.gmra.mxu0 %v5087
    %v5089 = vpop.f32.mrf.mxu0
    %v5090 = vadd.f32 0.0, %v5089
    %v5091 = vpop.f32.mrf.mxu0
    %5092 = vdwg.mxu0
    %5093 = vmatprep.subr.mxu0 0.0
    %v5094 = vand.u32 %v4971, 4294901760
    %v5095 = vsub.f32 %v4971, %v5094
    %v5096 = vand.u32 %v5095, 4294901760
    %v5097 = vsub.f32 %v5095, %v5096
    %v5098 = vand.u32 %v5097, 4294901760
    %5099 = vmatpush1.msra.mxu0 %v5098
    %5100 = vmatprep.subr.mxu0 0.0
    %v5101 = vand.u32 %v4970, 4294901760
    %v5102 = vsub.f32 %v4970, %v5101
    %v5103 = vand.u32 %v5102, 4294901760
    %v5104 = vsub.f32 %v5102, %v5103
    %v5105 = vand.u32 %v5104, 4294901760
    %5106 = vmatpush1.msra.mxu0 %v5105
    %5107 = vmatprep.subr.mxu0 0.0
    %v5108 = vand.u32 %v4969, 4294901760
    %v5109 = vsub.f32 %v4969, %v5108
    %v5110 = vand.u32 %v5109, 4294901760
    %v5111 = vsub.f32 %v5109, %v5110
    %v5112 = vand.u32 %v5111, 4294901760
    %5113 = vmatpush1.msra.mxu0 %v5112
    %5114 = vmatprep.subr.mxu0 0.0
    %v5115 = vand.u32 %v4968, 4294901760
    %v5116 = vsub.f32 %v4968, %v5115
    %v5117 = vand.u32 %v5116, 4294901760
    %v5118 = vsub.f32 %v5116, %v5117
    %v5119 = vand.u32 %v5118, 4294901760
    %5120 = vmatpush1.msra.mxu0 %v5119
    %5121 = vmatprep.subr.mxu0 0.0
    %v5122 = vand.u32 %v4967, 4294901760
    %v5123 = vsub.f32 %v4967, %v5122
    %v5124 = vand.u32 %v5123, 4294901760
    %v5125 = vsub.f32 %v5123, %v5124
    %v5126 = vand.u32 %v5125, 4294901760
    %5127 = vmatpush1.msra.mxu0 %v5126
    %5128 = vmatprep.subr.mxu0 0.0
    %v5129 = vand.u32 %v4966, 4294901760
    %v5130 = vsub.f32 %v4966, %v5129
    %v5131 = vand.u32 %v5130, 4294901760
    %v5132 = vsub.f32 %v5130, %v5131
    %v5133 = vand.u32 %v5132, 4294901760
    %5134 = vmatpush1.msra.mxu0 %v5133
    %5135 = vmatprep.subr.mxu0 0.0
    %v5136 = vand.u32 %v4965, 4294901760
    %v5137 = vsub.f32 %v4965, %v5136
    %v5138 = vand.u32 %v5137, 4294901760
    %v5139 = vsub.f32 %v5137, %v5138
    %v5140 = vand.u32 %v5139, 4294901760
    %5141 = vmatpush1.msra.mxu0 %v5140
    %5142 = vmatprep.subr.mxu0 0.0
    %v5143 = vand.u32 %v4964, 4294901760
    %v5144 = vsub.f32 %v4964, %v5143
    %v5145 = vand.u32 %v5144, 4294901760
    %v5146 = vsub.f32 %v5144, %v5145
    %v5147 = vand.u32 %v5146, 4294901760
    %5148 = vmatpush1.msra.mxu0 %v5147
    %5149 = vmatprep.subr.mxu0 0.0
    %v5150 = vand.u32 %v4963, 4294901760
    %v5151 = vsub.f32 %v4963, %v5150
    %v5152 = vand.u32 %v5151, 4294901760
    %v5153 = vsub.f32 %v5151, %v5152
    %v5154 = vand.u32 %v5153, 4294901760
    %5155 = vmatpush1.msra.mxu0 %v5154
    %5156 = vmatprep.subr.mxu0 0.0
    %v5157 = vand.u32 %v4962, 4294901760
    %v5158 = vsub.f32 %v4962, %v5157
    %v5159 = vand.u32 %v5158, 4294901760
    %v5160 = vsub.f32 %v5158, %v5159
    %v5161 = vand.u32 %v5160, 4294901760
    %5162 = vmatpush1.msra.mxu0 %v5161
    %5163 = vmatprep.subr.mxu0 0.0
    %v5164 = vand.u32 %v4961, 4294901760
    %v5165 = vsub.f32 %v4961, %v5164
    %v5166 = vand.u32 %v5165, 4294901760
    %v5167 = vsub.f32 %v5165, %v5166
    %v5168 = vand.u32 %v5167, 4294901760
    %5169 = vmatpush1.msra.mxu0 %v5168
    %5170 = vmatprep.subr.mxu0 0.0
    %v5171 = vand.u32 %v4960, 4294901760
    %v5172 = vsub.f32 %v4960, %v5171
    %v5173 = vand.u32 %v5172, 4294901760
    %v5174 = vsub.f32 %v5172, %v5173
    %v5175 = vand.u32 %v5174, 4294901760
    %5176 = vmatpush1.msra.mxu0 %v5175
    %5177 = vmatprep.subr.mxu0 0.0
    %v5178 = vand.u32 %v4959, 4294901760
    %v5179 = vsub.f32 %v4959, %v5178
    %v5180 = vand.u32 %v5179, 4294901760
    %v5181 = vsub.f32 %v5179, %v5180
    %v5182 = vand.u32 %v5181, 4294901760
    %5183 = vmatpush1.msra.mxu0 %v5182
    %5184 = vmatprep.subr.mxu0 0.0
    %v5185 = vand.u32 %v4958, 4294901760
    %v5186 = vsub.f32 %v4958, %v5185
    %v5187 = vand.u32 %v5186, 4294901760
    %v5188 = vsub.f32 %v5186, %v5187
    %v5189 = vand.u32 %v5188, 4294901760
    %5190 = vmatpush1.msra.mxu0 %v5189
    %5191 = vmatprep.subr.mxu0 0.0
    %v5192 = vand.u32 %v4957, 4294901760
    %v5193 = vsub.f32 %v4957, %v5192
    %v5194 = vand.u32 %v5193, 4294901760
    %v5195 = vsub.f32 %v5193, %v5194
    %v5196 = vand.u32 %v5195, 4294901760
    %5197 = vmatpush1.msra.mxu0 %v5196
    %5198 = vmatprep.subr.mxu0 0.0
    %v5199 = vand.u32 %v4956, 4294901760
    %v5200 = vsub.f32 %v4956, %v5199
    %v5201 = vand.u32 %v5200, 4294901760
    %v5202 = vsub.f32 %v5200, %v5201
    %v5203 = vand.u32 %v5202, 4294901760
    %5204 = vmatpush1.msra.mxu0 %v5203
    %5205 = vmatprep.subr.mxu0 0.0
    %5206 = vmatpush2.msra.mxu0 0.0
    %5207 = vmatprep.subr.mxu0 0.0
    %5208 = vmatpush2.msra.mxu0 0.0
    %5209 = vmatprep.subr.mxu0 0.0
    %5210 = vmatpush2.msra.mxu0 0.0
    %5211 = vmatprep.subr.mxu0 0.0
    %5212 = vmatpush2.msra.mxu0 0.0
    %5213 = vmatprep.subr.mxu0 0.0
    %5214 = vmatpush2.msra.mxu0 0.0
    %5215 = vmatprep.subr.mxu0 0.0
    %5216 = vmatpush2.msra.mxu0 0.0
    %5217 = vmatprep.subr.mxu0 0.0
    %5218 = vmatpush2.msra.mxu0 0.0
    %5219 = vmatprep.subr.mxu0 0.0
    %5220 = vmatpush2.msra.mxu0 0.0
    %5221 = vmatprep.subr.mxu0 0.0
    %5222 = vmatpush2.msra.mxu0 0.0
    %5223 = vmatprep.subr.mxu0 0.0
    %5224 = vmatpush2.msra.mxu0 0.0
    %5225 = vmatprep.subr.mxu0 0.0
    %5226 = vmatpush2.msra.mxu0 0.0
    %5227 = vmatprep.subr.mxu0 0.0
    %5228 = vmatpush2.msra.mxu0 0.0
    %5229 = vmatprep.subr.mxu0 0.0
    %5230 = vmatpush2.msra.mxu0 0.0
    %5231 = vmatprep.subr.mxu0 0.0
    %5232 = vmatpush2.msra.mxu0 0.0
    %5233 = vmatprep.subr.mxu0 0.0
    %5234 = vmatpush2.msra.mxu0 0.0
    %5235 = vmatprep.subr.mxu0 0.0
    %5236 = vmatpush2.msra.mxu0 0.0
    %5237 = vmatprep.mubr.f32.mxu0 0.0
    %v5238 = vand.u32 %v4951, 4294901760
    %5239 = vmatmul.mubr.f32.gmra.mxu0 %v5238
    %v5240 = vpop.f32.mrf.mxu0
    %v5241 = vadd.f32 %v5060, %v5240
    %v5242 = vpop.f32.mrf.mxu0
    %5243 = vmatprep.mubr.f32.mxu0 0.0
    %v5244 = vand.u32 %v4952, 4294901760
    %5245 = vmatmul.mubr.f32.gmra.mxu0 %v5244
    %v5246 = vpop.f32.mrf.mxu0
    %v5247 = vadd.f32 %v5070, %v5246
    %v5248 = vpop.f32.mrf.mxu0
    %5249 = vmatprep.mubr.f32.mxu0 0.0
    %v5250 = vand.u32 %v4953, 4294901760
    %5251 = vmatmul.mubr.f32.gmra.mxu0 %v5250
    %v5252 = vpop.f32.mrf.mxu0
    %v5253 = vadd.f32 %v5080, %v5252
    %v5254 = vpop.f32.mrf.mxu0
    %5255 = vmatprep.mubr.f32.mxu0 0.0
    %v5256 = vand.u32 %v4954, 4294901760
    %5257 = vmatmul.mubr.f32.gmra.mxu0 %v5256
    %v5258 = vpop.f32.mrf.mxu0
    %v5259 = vadd.f32 %v5090, %v5258
    %v5260 = vpop.f32.mrf.mxu0
    %5261 = vdwg.mxu0
    %5262 = vmatprep.subr.mxu0 0.0
    %v5263 = vand.u32 %v4971, 4294901760
    %v5264 = vsub.f32 %v4971, %v5263
    %5265 = vmatpush1.msra.mxu0 %v5264
    %5266 = vmatprep.subr.mxu0 0.0
    %v5267 = vand.u32 %v4970, 4294901760
    %v5268 = vsub.f32 %v4970, %v5267
    %5269 = vmatpush1.msra.mxu0 %v5268
    %5270 = vmatprep.subr.mxu0 0.0
    %v5271 = vand.u32 %v4969, 4294901760
    %v5272 = vsub.f32 %v4969, %v5271
    %5273 = vmatpush1.msra.mxu0 %v5272
    %5274 = vmatprep.subr.mxu0 0.0
    %v5275 = vand.u32 %v4968, 4294901760
    %v5276 = vsub.f32 %v4968, %v5275
    %5277 = vmatpush1.msra.mxu0 %v5276
    %5278 = vmatprep.subr.mxu0 0.0
    %v5279 = vand.u32 %v4967, 4294901760
    %v5280 = vsub.f32 %v4967, %v5279
    %5281 = vmatpush1.msra.mxu0 %v5280
    %5282 = vmatprep.subr.mxu0 0.0
    %v5283 = vand.u32 %v4966, 4294901760
    %v5284 = vsub.f32 %v4966, %v5283
    %5285 = vmatpush1.msra.mxu0 %v5284
    %5286 = vmatprep.subr.mxu0 0.0
    %v5287 = vand.u32 %v4965, 4294901760
    %v5288 = vsub.f32 %v4965, %v5287
    %5289 = vmatpush1.msra.mxu0 %v5288
    %5290 = vmatprep.subr.mxu0 0.0
    %v5291 = vand.u32 %v4964, 4294901760
    %v5292 = vsub.f32 %v4964, %v5291
    %5293 = vmatpush1.msra.mxu0 %v5292
    %5294 = vmatprep.subr.mxu0 0.0
    %v5295 = vand.u32 %v4963, 4294901760
    %v5296 = vsub.f32 %v4963, %v5295
    %5297 = vmatpush1.msra.mxu0 %v5296
    %5298 = vmatprep.subr.mxu0 0.0
    %v5299 = vand.u32 %v4962, 4294901760
    %v5300 = vsub.f32 %v4962, %v5299
    %5301 = vmatpush1.msra.mxu0 %v5300
    %5302 = vmatprep.subr.mxu0 0.0
    %v5303 = vand.u32 %v4961, 4294901760
    %v5304 = vsub.f32 %v4961, %v5303
    %5305 = vmatpush1.msra.mxu0 %v5304
    %5306 = vmatprep.subr.mxu0 0.0
    %v5307 = vand.u32 %v4960, 4294901760
    %v5308 = vsub.f32 %v4960, %v5307
    %5309 = vmatpush1.msra.mxu0 %v5308
    %5310 = vmatprep.subr.mxu0 0.0
    %v5311 = vand.u32 %v4959, 4294901760
    %v5312 = vsub.f32 %v4959, %v5311
    %5313 = vmatpush1.msra.mxu0 %v5312
    %5314 = vmatprep.subr.mxu0 0.0
    %v5315 = vand.u32 %v4958, 4294901760
    %v5316 = vsub.f32 %v4958, %v5315
    %5317 = vmatpush1.msra.mxu0 %v5316
    %5318 = vmatprep.subr.mxu0 0.0
    %v5319 = vand.u32 %v4957, 4294901760
    %v5320 = vsub.f32 %v4957, %v5319
    %5321 = vmatpush1.msra.mxu0 %v5320
    %5322 = vmatprep.subr.mxu0 0.0
    %v5323 = vand.u32 %v4956, 4294901760
    %v5324 = vsub.f32 %v4956, %v5323
    %5325 = vmatpush1.msra.mxu0 %v5324
    %5326 = vmatprep.subr.mxu0 0.0
    %5327 = vmatpush2.msra.mxu0 0.0
    %5328 = vmatprep.subr.mxu0 0.0
    %5329 = vmatpush2.msra.mxu0 0.0
    %5330 = vmatprep.subr.mxu0 0.0
    %5331 = vmatpush2.msra.mxu0 0.0
    %5332 = vmatprep.subr.mxu0 0.0
    %5333 = vmatpush2.msra.mxu0 0.0
    %5334 = vmatprep.subr.mxu0 0.0
    %5335 = vmatpush2.msra.mxu0 0.0
    %5336 = vmatprep.subr.mxu0 0.0
    %5337 = vmatpush2.msra.mxu0 0.0
    %5338 = vmatprep.subr.mxu0 0.0
    %5339 = vmatpush2.msra.mxu0 0.0
    %5340 = vmatprep.subr.mxu0 0.0
    %5341 = vmatpush2.msra.mxu0 0.0
    %5342 = vmatprep.subr.mxu0 0.0
    %5343 = vmatpush2.msra.mxu0 0.0
    %5344 = vmatprep.subr.mxu0 0.0
    %5345 = vmatpush2.msra.mxu0 0.0
    %5346 = vmatprep.subr.mxu0 0.0
    %5347 = vmatpush2.msra.mxu0 0.0
    %5348 = vmatprep.subr.mxu0 0.0
    %5349 = vmatpush2.msra.mxu0 0.0
    %5350 = vmatprep.subr.mxu0 0.0
    %5351 = vmatpush2.msra.mxu0 0.0
    %5352 = vmatprep.subr.mxu0 0.0
    %5353 = vmatpush2.msra.mxu0 0.0
    %5354 = vmatprep.subr.mxu0 0.0
    %5355 = vmatpush2.msra.mxu0 0.0
    %5356 = vmatprep.subr.mxu0 0.0
    %5357 = vmatpush2.msra.mxu0 0.0
    %5358 = vmatprep.mubr.f32.mxu0 0.0
    %v5359 = vand.u32 %v4951, 4294901760
    %v5360 = vsub.f32 %v4951, %v5359
    %5361 = vmatmul.mubr.f32.gmra.mxu0 %v5360
    %v5362 = vpop.f32.mrf.mxu0
    %v5363 = vadd.f32 %v5241, %v5362
    %v5364 = vpop.f32.mrf.mxu0
    %5365 = vmatprep.mubr.f32.mxu0 0.0
    %v5366 = vand.u32 %v4952, 4294901760
    %v5367 = vsub.f32 %v4952, %v5366
    %5368 = vmatmul.mubr.f32.gmra.mxu0 %v5367
    %v5369 = vpop.f32.mrf.mxu0
    %v5370 = vadd.f32 %v5247, %v5369
    %v5371 = vpop.f32.mrf.mxu0
    %5372 = vmatprep.mubr.f32.mxu0 0.0
    %v5373 = vand.u32 %v4953, 4294901760
    %v5374 = vsub.f32 %v4953, %v5373
    %5375 = vmatmul.mubr.f32.gmra.mxu0 %v5374
    %v5376 = vpop.f32.mrf.mxu0
    %v5377 = vadd.f32 %v5253, %v5376
    %v5378 = vpop.f32.mrf.mxu0
    %5379 = vmatprep.mubr.f32.mxu0 0.0
    %v5380 = vand.u32 %v4954, 4294901760
    %v5381 = vsub.f32 %v4954, %v5380
    %5382 = vmatmul.mubr.f32.gmra.mxu0 %v5381
    %v5383 = vpop.f32.mrf.mxu0
    %v5384 = vadd.f32 %v5259, %v5383
    %v5385 = vpop.f32.mrf.mxu0
    %5386 = vdwg.mxu0
    %5387 = vmatprep.subr.mxu0 0.0
    %v5388 = vand.u32 %v4971, 4294901760
    %5389 = vmatpush1.msra.mxu0 %v5388
    %5390 = vmatprep.subr.mxu0 0.0
    %v5391 = vand.u32 %v4970, 4294901760
    %5392 = vmatpush1.msra.mxu0 %v5391
    %5393 = vmatprep.subr.mxu0 0.0
    %v5394 = vand.u32 %v4969, 4294901760
    %5395 = vmatpush1.msra.mxu0 %v5394
    %5396 = vmatprep.subr.mxu0 0.0
    %v5397 = vand.u32 %v4968, 4294901760
    %5398 = vmatpush1.msra.mxu0 %v5397
    %5399 = vmatprep.subr.mxu0 0.0
    %v5400 = vand.u32 %v4967, 4294901760
    %5401 = vmatpush1.msra.mxu0 %v5400
    %5402 = vmatprep.subr.mxu0 0.0
    %v5403 = vand.u32 %v4966, 4294901760
    %5404 = vmatpush1.msra.mxu0 %v5403
    %5405 = vmatprep.subr.mxu0 0.0
    %v5406 = vand.u32 %v4965, 4294901760
    %5407 = vmatpush1.msra.mxu0 %v5406
    %5408 = vmatprep.subr.mxu0 0.0
    %v5409 = vand.u32 %v4964, 4294901760
    %5410 = vmatpush1.msra.mxu0 %v5409
    %5411 = vmatprep.subr.mxu0 0.0
    %v5412 = vand.u32 %v4963, 4294901760
    %5413 = vmatpush1.msra.mxu0 %v5412
    %5414 = vmatprep.subr.mxu0 0.0
    %v5415 = vand.u32 %v4962, 4294901760
    %5416 = vmatpush1.msra.mxu0 %v5415
    %5417 = vmatprep.subr.mxu0 0.0
    %v5418 = vand.u32 %v4961, 4294901760
    %5419 = vmatpush1.msra.mxu0 %v5418
    %5420 = vmatprep.subr.mxu0 0.0
    %v5421 = vand.u32 %v4960, 4294901760
    %5422 = vmatpush1.msra.mxu0 %v5421
    %5423 = vmatprep.subr.mxu0 0.0
    %v5424 = vand.u32 %v4959, 4294901760
    %5425 = vmatpush1.msra.mxu0 %v5424
    %5426 = vmatprep.subr.mxu0 0.0
    %v5427 = vand.u32 %v4958, 4294901760
    %5428 = vmatpush1.msra.mxu0 %v5427
    %5429 = vmatprep.subr.mxu0 0.0
    %v5430 = vand.u32 %v4957, 4294901760
    %5431 = vmatpush1.msra.mxu0 %v5430
    %5432 = vmatprep.subr.mxu0 0.0
    %v5433 = vand.u32 %v4956, 4294901760
    %5434 = vmatpush1.msra.mxu0 %v5433
    %5435 = vmatprep.subr.mxu0 0.0
    %5436 = vmatpush2.msra.mxu0 0.0
    %5437 = vmatprep.subr.mxu0 0.0
    %5438 = vmatpush2.msra.mxu0 0.0
    %5439 = vmatprep.subr.mxu0 0.0
    %5440 = vmatpush2.msra.mxu0 0.0
    %5441 = vmatprep.subr.mxu0 0.0
    %5442 = vmatpush2.msra.mxu0 0.0
    %5443 = vmatprep.subr.mxu0 0.0
    %5444 = vmatpush2.msra.mxu0 0.0
    %5445 = vmatprep.subr.mxu0 0.0
    %5446 = vmatpush2.msra.mxu0 0.0
    %5447 = vmatprep.subr.mxu0 0.0
    %5448 = vmatpush2.msra.mxu0 0.0
    %5449 = vmatprep.subr.mxu0 0.0
    %5450 = vmatpush2.msra.mxu0 0.0
    %5451 = vmatprep.subr.mxu0 0.0
    %5452 = vmatpush2.msra.mxu0 0.0
    %5453 = vmatprep.subr.mxu0 0.0
    %5454 = vmatpush2.msra.mxu0 0.0
    %5455 = vmatprep.subr.mxu0 0.0
    %5456 = vmatpush2.msra.mxu0 0.0
    %5457 = vmatprep.subr.mxu0 0.0
    %5458 = vmatpush2.msra.mxu0 0.0
    %5459 = vmatprep.subr.mxu0 0.0
    %5460 = vmatpush2.msra.mxu0 0.0
    %5461 = vmatprep.subr.mxu0 0.0
    %5462 = vmatpush2.msra.mxu0 0.0
    %5463 = vmatprep.subr.mxu0 0.0
    %5464 = vmatpush2.msra.mxu0 0.0
    %5465 = vmatprep.subr.mxu0 0.0
    %5466 = vmatpush2.msra.mxu0 0.0
    %5467 = vmatprep.mubr.f32.mxu0 0.0
    %v5468 = vand.u32 %v4951, 4294901760
    %v5469 = vsub.f32 %v4951, %v5468
    %v5470 = vand.u32 %v5469, 4294901760
    %5471 = vmatmul.mubr.f32.gmra.mxu0 %v5470
    %v5472 = vpop.f32.mrf.mxu0
    %v5473 = vadd.f32 %v5363, %v5472
    %v5474 = vpop.f32.mrf.mxu0
    %5475 = vmatprep.mubr.f32.mxu0 0.0
    %v5476 = vand.u32 %v4952, 4294901760
    %v5477 = vsub.f32 %v4952, %v5476
    %v5478 = vand.u32 %v5477, 4294901760
    %5479 = vmatmul.mubr.f32.gmra.mxu0 %v5478
    %v5480 = vpop.f32.mrf.mxu0
    %v5481 = vadd.f32 %v5370, %v5480
    %v5482 = vpop.f32.mrf.mxu0
    %5483 = vmatprep.mubr.f32.mxu0 0.0
    %v5484 = vand.u32 %v4953, 4294901760
    %v5485 = vsub.f32 %v4953, %v5484
    %v5486 = vand.u32 %v5485, 4294901760
    %5487 = vmatmul.mubr.f32.gmra.mxu0 %v5486
    %v5488 = vpop.f32.mrf.mxu0
    %v5489 = vadd.f32 %v5377, %v5488
    %v5490 = vpop.f32.mrf.mxu0
    %5491 = vmatprep.mubr.f32.mxu0 0.0
    %v5492 = vand.u32 %v4954, 4294901760
    %v5493 = vsub.f32 %v4954, %v5492
    %v5494 = vand.u32 %v5493, 4294901760
    %5495 = vmatmul.mubr.f32.gmra.mxu0 %v5494
    %v5496 = vpop.f32.mrf.mxu0
    %v5497 = vadd.f32 %v5384, %v5496
    %v5498 = vpop.f32.mrf.mxu0
    %5499 = vdwg.mxu0
    %5500 = vmatprep.subr.mxu0 0.0
    %v5501 = vand.u32 %v4971, 4294901760
    %v5502 = vsub.f32 %v4971, %v5501
    %v5503 = vand.u32 %v5502, 4294901760
    %5504 = vmatpush1.msra.mxu0 %v5503
    %5505 = vmatprep.subr.mxu0 0.0
    %v5506 = vand.u32 %v4970, 4294901760
    %v5507 = vsub.f32 %v4970, %v5506
    %v5508 = vand.u32 %v5507, 4294901760
    %5509 = vmatpush1.msra.mxu0 %v5508
    %5510 = vmatprep.subr.mxu0 0.0
    %v5511 = vand.u32 %v4969, 4294901760
    %v5512 = vsub.f32 %v4969, %v5511
    %v5513 = vand.u32 %v5512, 4294901760
    %5514 = vmatpush1.msra.mxu0 %v5513
    %5515 = vmatprep.subr.mxu0 0.0
    %v5516 = vand.u32 %v4968, 4294901760
    %v5517 = vsub.f32 %v4968, %v5516
    %v5518 = vand.u32 %v5517, 4294901760
    %5519 = vmatpush1.msra.mxu0 %v5518
    %5520 = vmatprep.subr.mxu0 0.0
    %v5521 = vand.u32 %v4967, 4294901760
    %v5522 = vsub.f32 %v4967, %v5521
    %v5523 = vand.u32 %v5522, 4294901760
    %5524 = vmatpush1.msra.mxu0 %v5523
    %5525 = vmatprep.subr.mxu0 0.0
    %v5526 = vand.u32 %v4966, 4294901760
    %v5527 = vsub.f32 %v4966, %v5526
    %v5528 = vand.u32 %v5527, 4294901760
    %5529 = vmatpush1.msra.mxu0 %v5528
    %5530 = vmatprep.subr.mxu0 0.0
    %v5531 = vand.u32 %v4965, 4294901760
    %v5532 = vsub.f32 %v4965, %v5531
    %v5533 = vand.u32 %v5532, 4294901760
    %5534 = vmatpush1.msra.mxu0 %v5533
    %5535 = vmatprep.subr.mxu0 0.0
    %v5536 = vand.u32 %v4964, 4294901760
    %v5537 = vsub.f32 %v4964, %v5536
    %v5538 = vand.u32 %v5537, 4294901760
    %5539 = vmatpush1.msra.mxu0 %v5538
    %5540 = vmatprep.subr.mxu0 0.0
    %v5541 = vand.u32 %v4963, 4294901760
    %v5542 = vsub.f32 %v4963, %v5541
    %v5543 = vand.u32 %v5542, 4294901760
    %5544 = vmatpush1.msra.mxu0 %v5543
    %5545 = vmatprep.subr.mxu0 0.0
    %v5546 = vand.u32 %v4962, 4294901760
    %v5547 = vsub.f32 %v4962, %v5546
    %v5548 = vand.u32 %v5547, 4294901760
    %5549 = vmatpush1.msra.mxu0 %v5548
    %5550 = vmatprep.subr.mxu0 0.0
    %v5551 = vand.u32 %v4961, 4294901760
    %v5552 = vsub.f32 %v4961, %v5551
    %v5553 = vand.u32 %v5552, 4294901760
    %5554 = vmatpush1.msra.mxu0 %v5553
    %5555 = vmatprep.subr.mxu0 0.0
    %v5556 = vand.u32 %v4960, 4294901760
    %v5557 = vsub.f32 %v4960, %v5556
    %v5558 = vand.u32 %v5557, 4294901760
    %5559 = vmatpush1.msra.mxu0 %v5558
    %5560 = vmatprep.subr.mxu0 0.0
    %v5561 = vand.u32 %v4959, 4294901760
    %v5562 = vsub.f32 %v4959, %v5561
    %v5563 = vand.u32 %v5562, 4294901760
    %5564 = vmatpush1.msra.mxu0 %v5563
    %5565 = vmatprep.subr.mxu0 0.0
    %v5566 = vand.u32 %v4958, 4294901760
    %v5567 = vsub.f32 %v4958, %v5566
    %v5568 = vand.u32 %v5567, 4294901760
    %5569 = vmatpush1.msra.mxu0 %v5568
    %5570 = vmatprep.subr.mxu0 0.0
    %v5571 = vand.u32 %v4957, 4294901760
    %v5572 = vsub.f32 %v4957, %v5571
    %v5573 = vand.u32 %v5572, 4294901760
    %5574 = vmatpush1.msra.mxu0 %v5573
    %5575 = vmatprep.subr.mxu0 0.0
    %v5576 = vand.u32 %v4956, 4294901760
    %v5577 = vsub.f32 %v4956, %v5576
    %v5578 = vand.u32 %v5577, 4294901760
    %5579 = vmatpush1.msra.mxu0 %v5578
    %5580 = vmatprep.subr.mxu0 0.0
    %5581 = vmatpush2.msra.mxu0 0.0
    %5582 = vmatprep.subr.mxu0 0.0
    %5583 = vmatpush2.msra.mxu0 0.0
    %5584 = vmatprep.subr.mxu0 0.0
    %5585 = vmatpush2.msra.mxu0 0.0
    %5586 = vmatprep.subr.mxu0 0.0
    %5587 = vmatpush2.msra.mxu0 0.0
    %5588 = vmatprep.subr.mxu0 0.0
    %5589 = vmatpush2.msra.mxu0 0.0
    %5590 = vmatprep.subr.mxu0 0.0
    %5591 = vmatpush2.msra.mxu0 0.0
    %5592 = vmatprep.subr.mxu0 0.0
    %5593 = vmatpush2.msra.mxu0 0.0
    %5594 = vmatprep.subr.mxu0 0.0
    %5595 = vmatpush2.msra.mxu0 0.0
    %5596 = vmatprep.subr.mxu0 0.0
    %5597 = vmatpush2.msra.mxu0 0.0
    %5598 = vmatprep.subr.mxu0 0.0
    %5599 = vmatpush2.msra.mxu0 0.0
    %5600 = vmatprep.subr.mxu0 0.0
    %5601 = vmatpush2.msra.mxu0 0.0
    %5602 = vmatprep.subr.mxu0 0.0
    %5603 = vmatpush2.msra.mxu0 0.0
    %5604 = vmatprep.subr.mxu0 0.0
    %5605 = vmatpush2.msra.mxu0 0.0
    %5606 = vmatprep.subr.mxu0 0.0
    %5607 = vmatpush2.msra.mxu0 0.0
    %5608 = vmatprep.subr.mxu0 0.0
    %5609 = vmatpush2.msra.mxu0 0.0
    %5610 = vmatprep.subr.mxu0 0.0
    %5611 = vmatpush2.msra.mxu0 0.0
    %5612 = vmatprep.mubr.f32.mxu0 0.0
    %v5613 = vand.u32 %v4951, 4294901760
    %5614 = vmatmul.mubr.f32.gmra.mxu0 %v5613
    %v5615 = vpop.f32.mrf.mxu0
    %v5616 = vadd.f32 %v5473, %v5615
    %v5617 = vpop.f32.mrf.mxu0
    %5618 = vmatprep.mubr.f32.mxu0 0.0
    %v5619 = vand.u32 %v4952, 4294901760
    %5620 = vmatmul.mubr.f32.gmra.mxu0 %v5619
    %v5621 = vpop.f32.mrf.mxu0
    %v5622 = vadd.f32 %v5481, %v5621
    %v5623 = vpop.f32.mrf.mxu0
    %5624 = vmatprep.mubr.f32.mxu0 0.0
    %v5625 = vand.u32 %v4953, 4294901760
    %5626 = vmatmul.mubr.f32.gmra.mxu0 %v5625
    %v5627 = vpop.f32.mrf.mxu0
    %v5628 = vadd.f32 %v5489, %v5627
    %v5629 = vpop.f32.mrf.mxu0
    %5630 = vmatprep.mubr.f32.mxu0 0.0
    %v5631 = vand.u32 %v4954, 4294901760
    %5632 = vmatmul.mubr.f32.gmra.mxu0 %v5631
    %v5633 = vpop.f32.mrf.mxu0
    %v5634 = vadd.f32 %v5497, %v5633
    %v5635 = vpop.f32.mrf.mxu0
    %5636 = vdwg.mxu0
    %5637 = vmatprep.subr.mxu0 0.0
    %v5638 = vand.u32 %v4971, 4294901760
    %5639 = vmatpush1.msra.mxu0 %v5638
    %5640 = vmatprep.subr.mxu0 0.0
    %v5641 = vand.u32 %v4970, 4294901760
    %5642 = vmatpush1.msra.mxu0 %v5641
    %5643 = vmatprep.subr.mxu0 0.0
    %v5644 = vand.u32 %v4969, 4294901760
    %5645 = vmatpush1.msra.mxu0 %v5644
    %5646 = vmatprep.subr.mxu0 0.0
    %v5647 = vand.u32 %v4968, 4294901760
    %5648 = vmatpush1.msra.mxu0 %v5647
    %5649 = vmatprep.subr.mxu0 0.0
    %v5650 = vand.u32 %v4967, 4294901760
    %5651 = vmatpush1.msra.mxu0 %v5650
    %5652 = vmatprep.subr.mxu0 0.0
    %v5653 = vand.u32 %v4966, 4294901760
    %5654 = vmatpush1.msra.mxu0 %v5653
    %5655 = vmatprep.subr.mxu0 0.0
    %v5656 = vand.u32 %v4965, 4294901760
    %5657 = vmatpush1.msra.mxu0 %v5656
    %5658 = vmatprep.subr.mxu0 0.0
    %v5659 = vand.u32 %v4964, 4294901760
    %5660 = vmatpush1.msra.mxu0 %v5659
    %5661 = vmatprep.subr.mxu0 0.0
    %v5662 = vand.u32 %v4963, 4294901760
    %5663 = vmatpush1.msra.mxu0 %v5662
    %5664 = vmatprep.subr.mxu0 0.0
    %v5665 = vand.u32 %v4962, 4294901760
    %5666 = vmatpush1.msra.mxu0 %v5665
    %5667 = vmatprep.subr.mxu0 0.0
    %v5668 = vand.u32 %v4961, 4294901760
    %5669 = vmatpush1.msra.mxu0 %v5668
    %5670 = vmatprep.subr.mxu0 0.0
    %v5671 = vand.u32 %v4960, 4294901760
    %5672 = vmatpush1.msra.mxu0 %v5671
    %5673 = vmatprep.subr.mxu0 0.0
    %v5674 = vand.u32 %v4959, 4294901760
    %5675 = vmatpush1.msra.mxu0 %v5674
    %5676 = vmatprep.subr.mxu0 0.0
    %v5677 = vand.u32 %v4958, 4294901760
    %5678 = vmatpush1.msra.mxu0 %v5677
    %5679 = vmatprep.subr.mxu0 0.0
    %v5680 = vand.u32 %v4957, 4294901760
    %5681 = vmatpush1.msra.mxu0 %v5680
    %5682 = vmatprep.subr.mxu0 0.0
    %v5683 = vand.u32 %v4956, 4294901760
    %5684 = vmatpush1.msra.mxu0 %v5683
    %5685 = vmatprep.subr.mxu0 0.0
    %5686 = vmatpush2.msra.mxu0 0.0
    %5687 = vmatprep.subr.mxu0 0.0
    %5688 = vmatpush2.msra.mxu0 0.0
    %5689 = vmatprep.subr.mxu0 0.0
    %5690 = vmatpush2.msra.mxu0 0.0
    %5691 = vmatprep.subr.mxu0 0.0
    %5692 = vmatpush2.msra.mxu0 0.0
    %5693 = vmatprep.subr.mxu0 0.0
    %5694 = vmatpush2.msra.mxu0 0.0
    %5695 = vmatprep.subr.mxu0 0.0
    %5696 = vmatpush2.msra.mxu0 0.0
    %5697 = vmatprep.subr.mxu0 0.0
    %5698 = vmatpush2.msra.mxu0 0.0
    %5699 = vmatprep.subr.mxu0 0.0
    %5700 = vmatpush2.msra.mxu0 0.0
    %5701 = vmatprep.subr.mxu0 0.0
    %5702 = vmatpush2.msra.mxu0 0.0
    %5703 = vmatprep.subr.mxu0 0.0
    %5704 = vmatpush2.msra.mxu0 0.0
    %5705 = vmatprep.subr.mxu0 0.0
    %5706 = vmatpush2.msra.mxu0 0.0
    %5707 = vmatprep.subr.mxu0 0.0
    %5708 = vmatpush2.msra.mxu0 0.0
    %5709 = vmatprep.subr.mxu0 0.0
    %5710 = vmatpush2.msra.mxu0 0.0
    %5711 = vmatprep.subr.mxu0 0.0
    %5712 = vmatpush2.msra.mxu0 0.0
    %5713 = vmatprep.subr.mxu0 0.0
    %5714 = vmatpush2.msra.mxu0 0.0
    %5715 = vmatprep.subr.mxu0 0.0
    %5716 = vmatpush2.msra.mxu0 0.0
    %5717 = vmatprep.mubr.f32.mxu0 0.0
    %v5718 = vand.u32 %v4951, 4294901760
    %5719 = vmatmul.mubr.f32.gmra.mxu0 %v5718
    %v5720 = vpop.f32.mrf.mxu0
    %v5721 = vadd.f32 %v5616, %v5720
    %v5722 = vpop.f32.mrf.mxu0
    %5723 = vmatprep.mubr.f32.mxu0 0.0
    %v5724 = vand.u32 %v4952, 4294901760
    %5725 = vmatmul.mubr.f32.gmra.mxu0 %v5724
    %v5726 = vpop.f32.mrf.mxu0
    %v5727 = vadd.f32 %v5622, %v5726
    %v5728 = vpop.f32.mrf.mxu0
    %5729 = vmatprep.mubr.f32.mxu0 0.0
    %v5730 = vand.u32 %v4953, 4294901760
    %5731 = vmatmul.mubr.f32.gmra.mxu0 %v5730
    %v5732 = vpop.f32.mrf.mxu0
    %v5733 = vadd.f32 %v5628, %v5732
    %v5734 = vpop.f32.mrf.mxu0
    %5735 = vmatprep.mubr.f32.mxu0 0.0
    %v5736 = vand.u32 %v4954, 4294901760
    %5737 = vmatmul.mubr.f32.gmra.mxu0 %v5736
    %v5738 = vpop.f32.mrf.mxu0
    %v5739 = vadd.f32 %v5634, %v5738
    %v5740 = vpop.f32.mrf.mxu0
    %5741 = vdwg.mxu0
    %v5742 = vadd.f32 %v5721, %v5727
    %v5743 = vrot.slane %v5742, 4
    %v5744 = vadd.f32 %v5742, %v5743
    %v5745 = vrot.slane %v5744, 2
    %v5746 = vadd.f32 %v5744, %v5745
    %v5747 = vrot.slane %v5746, 1
    %v5748 = vadd.f32 %v5746, %v5747
    %v5749 = vadd.f32 %v5733, %v5739
    %v5750 = vrot.slane %v5749, 4
    %v5751 = vadd.f32 %v5749, %v5750
    %v5752 = vrot.slane %v5751, 2
    %v5753 = vadd.f32 %v5751, %v5752
    %v5754 = vrot.slane %v5753, 1
    %v5755 = vadd.f32 %v5753, %v5754
    %v5756 = vmul.f32 %v5748, %v1502
    %v5757 = vmul.f32 %v5755, %v1502
    %v5758 = vsub.f32 %v5721, %v5756
    %v5759 = vsub.f32 %v5727, %v5756
    %v5760 = vsub.f32 %v5733, %v5757
    %v5761 = vsub.f32 %v5739, %v5757
    %v5762 = vmul.f32 %v5758, %v5758
    %v5763 = vmul.f32 %v5759, %v5759
    %v5764 = vmul.f32 %v5760, %v5760
    %v5765 = vmul.f32 %v5761, %v5761
    %v5766 = vadd.f32 %v5762, %v5763
    %v5767 = vrot.slane %v5766, 4
    %v5768 = vadd.f32 %v5766, %v5767
    %v5769 = vrot.slane %v5768, 2
    %v5770 = vadd.f32 %v5768, %v5769
    %v5771 = vrot.slane %v5770, 1
    %v5772 = vadd.f32 %v5770, %v5771
    %v5773 = vadd.f32 %v5764, %v5765
    %v5774 = vrot.slane %v5773, 4
    %v5775 = vadd.f32 %v5773, %v5774
    %v5776 = vrot.slane %v5775, 2
    %v5777 = vadd.f32 %v5775, %v5776
    %v5778 = vrot.slane %v5777, 1
    %v5779 = vadd.f32 %v5777, %v5778
    %v5780 = vmul.f32 %v5772, %v1502
    %v5781 = vmul.f32 %v5779, %v1502
    %v5782 = vadd.f32 %v5780, 1e-05
    %v5783 = vadd.f32 %v5781, 1e-05
    %v5784 = vrsqrt.pop %v5782
    %v5785 = vrsqrt.pop %v5783
    %v5786 = vmul.f32 %v5780, %v5784
    %v5787 = vmul.f32 %v5781, %v5785
    %v5788 = vmul.f32 %v5786, %v5784
    %v5789 = vmul.f32 %v5787, %v5785
    %v5790 = vadd.f32 %v5788, %v5789
    %v5791 = vmul.f32 %v5790, %v1538
    %v5792 = vadd.f32 %v5791, 1e-05
    %v5793 = vrsqrt.pop %v5792
    %v5794 = vmul.f32 %v5784, %v5793
    %v5795 = vmul.f32 %v5785, %v5793
    %v5796 = vmul.f32 %v5758, %v5794
    %v5797 = vmul.f32 %v5759, %v5794
    %v5798 = vmul.f32 %v5760, %v5795
    %v5799 = vmul.f32 %v5761, %v5795
    %v5800 = vmax.f32 %v5796, 0.0
    %v5801 = vmax.f32 %v5797, 0.0
    %v5802 = vmax.f32 %v5798, 0.0
    %v5803 = vmax.f32 %v5799, 0.0
    %v5804 = vadd.f32 %v5800, %v4102
    %v5805 = vadd.f32 %v5801, %v4103
    %v5806 = vadd.f32 %v5802, %v4104
    %v5807 = vadd.f32 %v5803, %v4105
    %s5808 = scalar_lea.vmem [#allocation8], 384
    %v5809 = vld [vmem:[%s5808] sm:$0xff]
    %v5810 = vld [vmem:[%s5808 + $0x8] sm:$0xff]
    %v5811 = vld [vmem:[%s5808 + $0x10] sm:$0xff]
    %v5812 = vld [vmem:[%s5808 + $0x18] sm:$0xff]
    %v5813 = vld [vmem:[%s5808 + $0x20] sm:$0xff]
    %v5814 = vld [vmem:[%s5808 + $0x28] sm:$0xff]
    %v5815 = vld [vmem:[%s5808 + $0x30] sm:$0xff]
    %v5816 = vld [vmem:[%s5808 + $0x38] sm:$0xff]
    %v5817 = vld [vmem:[%s5808 + $0x40] sm:$0xff]
    %v5818 = vld [vmem:[%s5808 + $0x48] sm:$0xff]
    %v5819 = vld [vmem:[%s5808 + $0x50] sm:$0xff]
    %v5820 = vld [vmem:[%s5808 + $0x58] sm:$0xff]
    %v5821 = vld [vmem:[%s5808 + $0x60] sm:$0xff]
    %v5822 = vld [vmem:[%s5808 + $0x68] sm:$0xff]
    %v5823 = vld [vmem:[%s5808 + $0x70] sm:$0xff]
    %v5824 = vld [vmem:[%s5808 + $0x78] sm:$0xff]
    %5825 = vmatprep.subr.mxu0 0.0
    %v5826 = vand.u32 %v5824, 4294901760
    %5827 = vmatpush1.msra.mxu0 %v5826
    %5828 = vmatprep.subr.mxu0 0.0
    %v5829 = vand.u32 %v5823, 4294901760
    %5830 = vmatpush1.msra.mxu0 %v5829
    %5831 = vmatprep.subr.mxu0 0.0
    %v5832 = vand.u32 %v5822, 4294901760
    %5833 = vmatpush1.msra.mxu0 %v5832
    %5834 = vmatprep.subr.mxu0 0.0
    %v5835 = vand.u32 %v5821, 4294901760
    %5836 = vmatpush1.msra.mxu0 %v5835
    %5837 = vmatprep.subr.mxu0 0.0
    %v5838 = vand.u32 %v5820, 4294901760
    %5839 = vmatpush1.msra.mxu0 %v5838
    %5840 = vmatprep.subr.mxu0 0.0
    %v5841 = vand.u32 %v5819, 4294901760
    %5842 = vmatpush1.msra.mxu0 %v5841
    %5843 = vmatprep.subr.mxu0 0.0
    %v5844 = vand.u32 %v5818, 4294901760
    %5845 = vmatpush1.msra.mxu0 %v5844
    %5846 = vmatprep.subr.mxu0 0.0
    %v5847 = vand.u32 %v5817, 4294901760
    %5848 = vmatpush1.msra.mxu0 %v5847
    %5849 = vmatprep.subr.mxu0 0.0
    %v5850 = vand.u32 %v5816, 4294901760
    %5851 = vmatpush1.msra.mxu0 %v5850
    %5852 = vmatprep.subr.mxu0 0.0
    %v5853 = vand.u32 %v5815, 4294901760
    %5854 = vmatpush1.msra.mxu0 %v5853
    %5855 = vmatprep.subr.mxu0 0.0
    %v5856 = vand.u32 %v5814, 4294901760
    %5857 = vmatpush1.msra.mxu0 %v5856
    %5858 = vmatprep.subr.mxu0 0.0
    %v5859 = vand.u32 %v5813, 4294901760
    %5860 = vmatpush1.msra.mxu0 %v5859
    %5861 = vmatprep.subr.mxu0 0.0
    %v5862 = vand.u32 %v5812, 4294901760
    %5863 = vmatpush1.msra.mxu0 %v5862
    %5864 = vmatprep.subr.mxu0 0.0
    %v5865 = vand.u32 %v5811, 4294901760
    %5866 = vmatpush1.msra.mxu0 %v5865
    %5867 = vmatprep.subr.mxu0 0.0
    %v5868 = vand.u32 %v5810, 4294901760
    %5869 = vmatpush1.msra.mxu0 %v5868
    %5870 = vmatprep.subr.mxu0 0.0
    %v5871 = vand.u32 %v5809, 4294901760
    %5872 = vmatpush1.msra.mxu0 %v5871
    %5873 = vmatprep.subr.mxu0 0.0
    %5874 = vmatpush2.msra.mxu0 0.0
    %5875 = vmatprep.subr.mxu0 0.0
    %5876 = vmatpush2.msra.mxu0 0.0
    %5877 = vmatprep.subr.mxu0 0.0
    %5878 = vmatpush2.msra.mxu0 0.0
    %5879 = vmatprep.subr.mxu0 0.0
    %5880 = vmatpush2.msra.mxu0 0.0
    %5881 = vmatprep.subr.mxu0 0.0
    %5882 = vmatpush2.msra.mxu0 0.0
    %5883 = vmatprep.subr.mxu0 0.0
    %5884 = vmatpush2.msra.mxu0 0.0
    %5885 = vmatprep.subr.mxu0 0.0
    %5886 = vmatpush2.msra.mxu0 0.0
    %5887 = vmatprep.subr.mxu0 0.0
    %5888 = vmatpush2.msra.mxu0 0.0
    %5889 = vmatprep.subr.mxu0 0.0
    %5890 = vmatpush2.msra.mxu0 0.0
    %5891 = vmatprep.subr.mxu0 0.0
    %5892 = vmatpush2.msra.mxu0 0.0
    %5893 = vmatprep.subr.mxu0 0.0
    %5894 = vmatpush2.msra.mxu0 0.0
    %5895 = vmatprep.subr.mxu0 0.0
    %5896 = vmatpush2.msra.mxu0 0.0
    %5897 = vmatprep.subr.mxu0 0.0
    %5898 = vmatpush2.msra.mxu0 0.0
    %5899 = vmatprep.subr.mxu0 0.0
    %5900 = vmatpush2.msra.mxu0 0.0
    %5901 = vmatprep.subr.mxu0 0.0
    %5902 = vmatpush2.msra.mxu0 0.0
    %5903 = vmatprep.subr.mxu0 0.0
    %5904 = vmatpush2.msra.mxu0 0.0
    %5905 = vmatprep.mubr.f32.mxu0 0.0
    %v5906 = vand.u32 %v5804, 4294901760
    %v5907 = vsub.f32 %v5804, %v5906
    %v5908 = vand.u32 %v5907, 4294901760
    %v5909 = vsub.f32 %v5907, %v5908
    %v5910 = vand.u32 %v5909, 4294901760
    %5911 = vmatmul.mubr.f32.gmra.mxu0 %v5910
    %v5912 = vpop.f32.mrf.mxu0
    %v5913 = vadd.f32 0.0, %v5912
    %v5914 = vpop.f32.mrf.mxu0
    %5915 = vmatprep.mubr.f32.mxu0 0.0
    %v5916 = vand.u32 %v5805, 4294901760
    %v5917 = vsub.f32 %v5805, %v5916
    %v5918 = vand.u32 %v5917, 4294901760
    %v5919 = vsub.f32 %v5917, %v5918
    %v5920 = vand.u32 %v5919, 4294901760
    %5921 = vmatmul.mubr.f32.gmra.mxu0 %v5920
    %v5922 = vpop.f32.mrf.mxu0
    %v5923 = vadd.f32 0.0, %v5922
    %v5924 = vpop.f32.mrf.mxu0
    %5925 = vmatprep.mubr.f32.mxu0 0.0
    %v5926 = vand.u32 %v5806, 4294901760
    %v5927 = vsub.f32 %v5806, %v5926
    %v5928 = vand.u32 %v5927, 4294901760
    %v5929 = vsub.f32 %v5927, %v5928
    %v5930 = vand.u32 %v5929, 4294901760
    %5931 = vmatmul.mubr.f32.gmra.mxu0 %v5930
    %v5932 = vpop.f32.mrf.mxu0
    %v5933 = vadd.f32 0.0, %v5932
    %v5934 = vpop.f32.mrf.mxu0
    %5935 = vmatprep.mubr.f32.mxu0 0.0
    %v5936 = vand.u32 %v5807, 4294901760
    %v5937 = vsub.f32 %v5807, %v5936
    %v5938 = vand.u32 %v5937, 4294901760
    %v5939 = vsub.f32 %v5937, %v5938
    %v5940 = vand.u32 %v5939, 4294901760
    %5941 = vmatmul.mubr.f32.gmra.mxu0 %v5940
    %v5942 = vpop.f32.mrf.mxu0
    %v5943 = vadd.f32 0.0, %v5942
    %v5944 = vpop.f32.mrf.mxu0
    %5945 = vdwg.mxu0
    %5946 = vmatprep.subr.mxu0 0.0
    %v5947 = vand.u32 %v5824, 4294901760
    %v5948 = vsub.f32 %v5824, %v5947
    %v5949 = vand.u32 %v5948, 4294901760
    %v5950 = vsub.f32 %v5948, %v5949
    %v5951 = vand.u32 %v5950, 4294901760
    %5952 = vmatpush1.msra.mxu0 %v5951
    %5953 = vmatprep.subr.mxu0 0.0
    %v5954 = vand.u32 %v5823, 4294901760
    %v5955 = vsub.f32 %v5823, %v5954
    %v5956 = vand.u32 %v5955, 4294901760
    %v5957 = vsub.f32 %v5955, %v5956
    %v5958 = vand.u32 %v5957, 4294901760
    %5959 = vmatpush1.msra.mxu0 %v5958
    %5960 = vmatprep.subr.mxu0 0.0
    %v5961 = vand.u32 %v5822, 4294901760
    %v5962 = vsub.f32 %v5822, %v5961
    %v5963 = vand.u32 %v5962, 4294901760
    %v5964 = vsub.f32 %v5962, %v5963
    %v5965 = vand.u32 %v5964, 4294901760
    %5966 = vmatpush1.msra.mxu0 %v5965
    %5967 = vmatprep.subr.mxu0 0.0
    %v5968 = vand.u32 %v5821, 4294901760
    %v5969 = vsub.f32 %v5821, %v5968
    %v5970 = vand.u32 %v5969, 4294901760
    %v5971 = vsub.f32 %v5969, %v5970
    %v5972 = vand.u32 %v5971, 4294901760
    %5973 = vmatpush1.msra.mxu0 %v5972
    %5974 = vmatprep.subr.mxu0 0.0
    %v5975 = vand.u32 %v5820, 4294901760
    %v5976 = vsub.f32 %v5820, %v5975
    %v5977 = vand.u32 %v5976, 4294901760
    %v5978 = vsub.f32 %v5976, %v5977
    %v5979 = vand.u32 %v5978, 4294901760
    %5980 = vmatpush1.msra.mxu0 %v5979
    %5981 = vmatprep.subr.mxu0 0.0
    %v5982 = vand.u32 %v5819, 4294901760
    %v5983 = vsub.f32 %v5819, %v5982
    %v5984 = vand.u32 %v5983, 4294901760
    %v5985 = vsub.f32 %v5983, %v5984
    %v5986 = vand.u32 %v5985, 4294901760
    %5987 = vmatpush1.msra.mxu0 %v5986
    %5988 = vmatprep.subr.mxu0 0.0
    %v5989 = vand.u32 %v5818, 4294901760
    %v5990 = vsub.f32 %v5818, %v5989
    %v5991 = vand.u32 %v5990, 4294901760
    %v5992 = vsub.f32 %v5990, %v5991
    %v5993 = vand.u32 %v5992, 4294901760
    %5994 = vmatpush1.msra.mxu0 %v5993
    %5995 = vmatprep.subr.mxu0 0.0
    %v5996 = vand.u32 %v5817, 4294901760
    %v5997 = vsub.f32 %v5817, %v5996
    %v5998 = vand.u32 %v5997, 4294901760
    %v5999 = vsub.f32 %v5997, %v5998
    %v6000 = vand.u32 %v5999, 4294901760
    %6001 = vmatpush1.msra.mxu0 %v6000
    %6002 = vmatprep.subr.mxu0 0.0
    %v6003 = vand.u32 %v5816, 4294901760
    %v6004 = vsub.f32 %v5816, %v6003
    %v6005 = vand.u32 %v6004, 4294901760
    %v6006 = vsub.f32 %v6004, %v6005
    %v6007 = vand.u32 %v6006, 4294901760
    %6008 = vmatpush1.msra.mxu0 %v6007
    %6009 = vmatprep.subr.mxu0 0.0
    %v6010 = vand.u32 %v5815, 4294901760
    %v6011 = vsub.f32 %v5815, %v6010
    %v6012 = vand.u32 %v6011, 4294901760
    %v6013 = vsub.f32 %v6011, %v6012
    %v6014 = vand.u32 %v6013, 4294901760
    %6015 = vmatpush1.msra.mxu0 %v6014
    %6016 = vmatprep.subr.mxu0 0.0
    %v6017 = vand.u32 %v5814, 4294901760
    %v6018 = vsub.f32 %v5814, %v6017
    %v6019 = vand.u32 %v6018, 4294901760
    %v6020 = vsub.f32 %v6018, %v6019
    %v6021 = vand.u32 %v6020, 4294901760
    %6022 = vmatpush1.msra.mxu0 %v6021
    %6023 = vmatprep.subr.mxu0 0.0
    %v6024 = vand.u32 %v5813, 4294901760
    %v6025 = vsub.f32 %v5813, %v6024
    %v6026 = vand.u32 %v6025, 4294901760
    %v6027 = vsub.f32 %v6025, %v6026
    %v6028 = vand.u32 %v6027, 4294901760
    %6029 = vmatpush1.msra.mxu0 %v6028
    %6030 = vmatprep.subr.mxu0 0.0
    %v6031 = vand.u32 %v5812, 4294901760
    %v6032 = vsub.f32 %v5812, %v6031
    %v6033 = vand.u32 %v6032, 4294901760
    %v6034 = vsub.f32 %v6032, %v6033
    %v6035 = vand.u32 %v6034, 4294901760
    %6036 = vmatpush1.msra.mxu0 %v6035
    %6037 = vmatprep.subr.mxu0 0.0
    %v6038 = vand.u32 %v5811, 4294901760
    %v6039 = vsub.f32 %v5811, %v6038
    %v6040 = vand.u32 %v6039, 4294901760
    %v6041 = vsub.f32 %v6039, %v6040
    %v6042 = vand.u32 %v6041, 4294901760
    %6043 = vmatpush1.msra.mxu0 %v6042
    %6044 = vmatprep.subr.mxu0 0.0
    %v6045 = vand.u32 %v5810, 4294901760
    %v6046 = vsub.f32 %v5810, %v6045
    %v6047 = vand.u32 %v6046, 4294901760
    %v6048 = vsub.f32 %v6046, %v6047
    %v6049 = vand.u32 %v6048, 4294901760
    %6050 = vmatpush1.msra.mxu0 %v6049
    %6051 = vmatprep.subr.mxu0 0.0
    %v6052 = vand.u32 %v5809, 4294901760
    %v6053 = vsub.f32 %v5809, %v6052
    %v6054 = vand.u32 %v6053, 4294901760
    %v6055 = vsub.f32 %v6053, %v6054
    %v6056 = vand.u32 %v6055, 4294901760
    %6057 = vmatpush1.msra.mxu0 %v6056
    %6058 = vmatprep.subr.mxu0 0.0
    %6059 = vmatpush2.msra.mxu0 0.0
    %6060 = vmatprep.subr.mxu0 0.0
    %6061 = vmatpush2.msra.mxu0 0.0
    %6062 = vmatprep.subr.mxu0 0.0
    %6063 = vmatpush2.msra.mxu0 0.0
    %6064 = vmatprep.subr.mxu0 0.0
    %6065 = vmatpush2.msra.mxu0 0.0
    %6066 = vmatprep.subr.mxu0 0.0
    %6067 = vmatpush2.msra.mxu0 0.0
    %6068 = vmatprep.subr.mxu0 0.0
    %6069 = vmatpush2.msra.mxu0 0.0
    %6070 = vmatprep.subr.mxu0 0.0
    %6071 = vmatpush2.msra.mxu0 0.0
    %6072 = vmatprep.subr.mxu0 0.0
    %6073 = vmatpush2.msra.mxu0 0.0
    %6074 = vmatprep.subr.mxu0 0.0
    %6075 = vmatpush2.msra.mxu0 0.0
    %6076 = vmatprep.subr.mxu0 0.0
    %6077 = vmatpush2.msra.mxu0 0.0
    %6078 = vmatprep.subr.mxu0 0.0
    %6079 = vmatpush2.msra.mxu0 0.0
    %6080 = vmatprep.subr.mxu0 0.0
    %6081 = vmatpush2.msra.mxu0 0.0
    %6082 = vmatprep.subr.mxu0 0.0
    %6083 = vmatpush2.msra.mxu0 0.0
    %6084 = vmatprep.subr.mxu0 0.0
    %6085 = vmatpush2.msra.mxu0 0.0
    %6086 = vmatprep.subr.mxu0 0.0
    %6087 = vmatpush2.msra.mxu0 0.0
    %6088 = vmatprep.subr.mxu0 0.0
    %6089 = vmatpush2.msra.mxu0 0.0
    %6090 = vmatprep.mubr.f32.mxu0 0.0
    %v6091 = vand.u32 %v5804, 4294901760
    %6092 = vmatmul.mubr.f32.gmra.mxu0 %v6091
    %v6093 = vpop.f32.mrf.mxu0
    %v6094 = vadd.f32 %v5913, %v6093
    %v6095 = vpop.f32.mrf.mxu0
    %6096 = vmatprep.mubr.f32.mxu0 0.0
    %v6097 = vand.u32 %v5805, 4294901760
    %6098 = vmatmul.mubr.f32.gmra.mxu0 %v6097
    %v6099 = vpop.f32.mrf.mxu0
    %v6100 = vadd.f32 %v5923, %v6099
    %v6101 = vpop.f32.mrf.mxu0
    %6102 = vmatprep.mubr.f32.mxu0 0.0
    %v6103 = vand.u32 %v5806, 4294901760
    %6104 = vmatmul.mubr.f32.gmra.mxu0 %v6103
    %v6105 = vpop.f32.mrf.mxu0
    %v6106 = vadd.f32 %v5933, %v6105
    %v6107 = vpop.f32.mrf.mxu0
    %6108 = vmatprep.mubr.f32.mxu0 0.0
    %v6109 = vand.u32 %v5807, 4294901760
    %6110 = vmatmul.mubr.f32.gmra.mxu0 %v6109
    %v6111 = vpop.f32.mrf.mxu0
    %v6112 = vadd.f32 %v5943, %v6111
    %v6113 = vpop.f32.mrf.mxu0
    %6114 = vdwg.mxu0
    %6115 = vmatprep.subr.mxu0 0.0
    %v6116 = vand.u32 %v5824, 4294901760
    %v6117 = vsub.f32 %v5824, %v6116
    %6118 = vmatpush1.msra.mxu0 %v6117
    %6119 = vmatprep.subr.mxu0 0.0
    %v6120 = vand.u32 %v5823, 4294901760
    %v6121 = vsub.f32 %v5823, %v6120
    %6122 = vmatpush1.msra.mxu0 %v6121
    %6123 = vmatprep.subr.mxu0 0.0
    %v6124 = vand.u32 %v5822, 4294901760
    %v6125 = vsub.f32 %v5822, %v6124
    %6126 = vmatpush1.msra.mxu0 %v6125
    %6127 = vmatprep.subr.mxu0 0.0
    %v6128 = vand.u32 %v5821, 4294901760
    %v6129 = vsub.f32 %v5821, %v6128
    %6130 = vmatpush1.msra.mxu0 %v6129
    %6131 = vmatprep.subr.mxu0 0.0
    %v6132 = vand.u32 %v5820, 4294901760
    %v6133 = vsub.f32 %v5820, %v6132
    %6134 = vmatpush1.msra.mxu0 %v6133
    %6135 = vmatprep.subr.mxu0 0.0
    %v6136 = vand.u32 %v5819, 4294901760
    %v6137 = vsub.f32 %v5819, %v6136
    %6138 = vmatpush1.msra.mxu0 %v6137
    %6139 = vmatprep.subr.mxu0 0.0
    %v6140 = vand.u32 %v5818, 4294901760
    %v6141 = vsub.f32 %v5818, %v6140
    %6142 = vmatpush1.msra.mxu0 %v6141
    %6143 = vmatprep.subr.mxu0 0.0
    %v6144 = vand.u32 %v5817, 4294901760
    %v6145 = vsub.f32 %v5817, %v6144
    %6146 = vmatpush1.msra.mxu0 %v6145
    %6147 = vmatprep.subr.mxu0 0.0
    %v6148 = vand.u32 %v5816, 4294901760
    %v6149 = vsub.f32 %v5816, %v6148
    %6150 = vmatpush1.msra.mxu0 %v6149
    %6151 = vmatprep.subr.mxu0 0.0
    %v6152 = vand.u32 %v5815, 4294901760
    %v6153 = vsub.f32 %v5815, %v6152
    %6154 = vmatpush1.msra.mxu0 %v6153
    %6155 = vmatprep.subr.mxu0 0.0
    %v6156 = vand.u32 %v5814, 4294901760
    %v6157 = vsub.f32 %v5814, %v6156
    %6158 = vmatpush1.msra.mxu0 %v6157
    %6159 = vmatprep.subr.mxu0 0.0
    %v6160 = vand.u32 %v5813, 4294901760
    %v6161 = vsub.f32 %v5813, %v6160
    %6162 = vmatpush1.msra.mxu0 %v6161
    %6163 = vmatprep.subr.mxu0 0.0
    %v6164 = vand.u32 %v5812, 4294901760
    %v6165 = vsub.f32 %v5812, %v6164
    %6166 = vmatpush1.msra.mxu0 %v6165
    %6167 = vmatprep.subr.mxu0 0.0
    %v6168 = vand.u32 %v5811, 4294901760
    %v6169 = vsub.f32 %v5811, %v6168
    %6170 = vmatpush1.msra.mxu0 %v6169
    %6171 = vmatprep.subr.mxu0 0.0
    %v6172 = vand.u32 %v5810, 4294901760
    %v6173 = vsub.f32 %v5810, %v6172
    %6174 = vmatpush1.msra.mxu0 %v6173
    %6175 = vmatprep.subr.mxu0 0.0
    %v6176 = vand.u32 %v5809, 4294901760
    %v6177 = vsub.f32 %v5809, %v6176
    %6178 = vmatpush1.msra.mxu0 %v6177
    %6179 = vmatprep.subr.mxu0 0.0
    %6180 = vmatpush2.msra.mxu0 0.0
    %6181 = vmatprep.subr.mxu0 0.0
    %6182 = vmatpush2.msra.mxu0 0.0
    %6183 = vmatprep.subr.mxu0 0.0
    %6184 = vmatpush2.msra.mxu0 0.0
    %6185 = vmatprep.subr.mxu0 0.0
    %6186 = vmatpush2.msra.mxu0 0.0
    %6187 = vmatprep.subr.mxu0 0.0
    %6188 = vmatpush2.msra.mxu0 0.0
    %6189 = vmatprep.subr.mxu0 0.0
    %6190 = vmatpush2.msra.mxu0 0.0
    %6191 = vmatprep.subr.mxu0 0.0
    %6192 = vmatpush2.msra.mxu0 0.0
    %6193 = vmatprep.subr.mxu0 0.0
    %6194 = vmatpush2.msra.mxu0 0.0
    %6195 = vmatprep.subr.mxu0 0.0
    %6196 = vmatpush2.msra.mxu0 0.0
    %6197 = vmatprep.subr.mxu0 0.0
    %6198 = vmatpush2.msra.mxu0 0.0
    %6199 = vmatprep.subr.mxu0 0.0
    %6200 = vmatpush2.msra.mxu0 0.0
    %6201 = vmatprep.subr.mxu0 0.0
    %6202 = vmatpush2.msra.mxu0 0.0
    %6203 = vmatprep.subr.mxu0 0.0
    %6204 = vmatpush2.msra.mxu0 0.0
    %6205 = vmatprep.subr.mxu0 0.0
    %6206 = vmatpush2.msra.mxu0 0.0
    %6207 = vmatprep.subr.mxu0 0.0
    %6208 = vmatpush2.msra.mxu0 0.0
    %6209 = vmatprep.subr.mxu0 0.0
    %6210 = vmatpush2.msra.mxu0 0.0
    %6211 = vmatprep.mubr.f32.mxu0 0.0
    %v6212 = vand.u32 %v5804, 4294901760
    %v6213 = vsub.f32 %v5804, %v6212
    %6214 = vmatmul.mubr.f32.gmra.mxu0 %v6213
    %v6215 = vpop.f32.mrf.mxu0
    %v6216 = vadd.f32 %v6094, %v6215
    %v6217 = vpop.f32.mrf.mxu0
    %6218 = vmatprep.mubr.f32.mxu0 0.0
    %v6219 = vand.u32 %v5805, 4294901760
    %v6220 = vsub.f32 %v5805, %v6219
    %6221 = vmatmul.mubr.f32.gmra.mxu0 %v6220
    %v6222 = vpop.f32.mrf.mxu0
    %v6223 = vadd.f32 %v6100, %v6222
    %v6224 = vpop.f32.mrf.mxu0
    %6225 = vmatprep.mubr.f32.mxu0 0.0
    %v6226 = vand.u32 %v5806, 4294901760
    %v6227 = vsub.f32 %v5806, %v6226
    %6228 = vmatmul.mubr.f32.gmra.mxu0 %v6227
    %v6229 = vpop.f32.mrf.mxu0
    %v6230 = vadd.f32 %v6106, %v6229
    %v6231 = vpop.f32.mrf.mxu0
    %6232 = vmatprep.mubr.f32.mxu0 0.0
    %v6233 = vand.u32 %v5807, 4294901760
    %v6234 = vsub.f32 %v5807, %v6233
    %6235 = vmatmul.mubr.f32.gmra.mxu0 %v6234
    %v6236 = vpop.f32.mrf.mxu0
    %v6237 = vadd.f32 %v6112, %v6236
    %v6238 = vpop.f32.mrf.mxu0
    %6239 = vdwg.mxu0
    %6240 = vmatprep.subr.mxu0 0.0
    %v6241 = vand.u32 %v5824, 4294901760
    %6242 = vmatpush1.msra.mxu0 %v6241
    %6243 = vmatprep.subr.mxu0 0.0
    %v6244 = vand.u32 %v5823, 4294901760
    %6245 = vmatpush1.msra.mxu0 %v6244
    %6246 = vmatprep.subr.mxu0 0.0
    %v6247 = vand.u32 %v5822, 4294901760
    %6248 = vmatpush1.msra.mxu0 %v6247
    %6249 = vmatprep.subr.mxu0 0.0
    %v6250 = vand.u32 %v5821, 4294901760
    %6251 = vmatpush1.msra.mxu0 %v6250
    %6252 = vmatprep.subr.mxu0 0.0
    %v6253 = vand.u32 %v5820, 4294901760
    %6254 = vmatpush1.msra.mxu0 %v6253
    %6255 = vmatprep.subr.mxu0 0.0
    %v6256 = vand.u32 %v5819, 4294901760
    %6257 = vmatpush1.msra.mxu0 %v6256
    %6258 = vmatprep.subr.mxu0 0.0
    %v6259 = vand.u32 %v5818, 4294901760
    %6260 = vmatpush1.msra.mxu0 %v6259
    %6261 = vmatprep.subr.mxu0 0.0
    %v6262 = vand.u32 %v5817, 4294901760
    %6263 = vmatpush1.msra.mxu0 %v6262
    %6264 = vmatprep.subr.mxu0 0.0
    %v6265 = vand.u32 %v5816, 4294901760
    %6266 = vmatpush1.msra.mxu0 %v6265
    %6267 = vmatprep.subr.mxu0 0.0
    %v6268 = vand.u32 %v5815, 4294901760
    %6269 = vmatpush1.msra.mxu0 %v6268
    %6270 = vmatprep.subr.mxu0 0.0
    %v6271 = vand.u32 %v5814, 4294901760
    %6272 = vmatpush1.msra.mxu0 %v6271
    %6273 = vmatprep.subr.mxu0 0.0
    %v6274 = vand.u32 %v5813, 4294901760
    %6275 = vmatpush1.msra.mxu0 %v6274
    %6276 = vmatprep.subr.mxu0 0.0
    %v6277 = vand.u32 %v5812, 4294901760
    %6278 = vmatpush1.msra.mxu0 %v6277
    %6279 = vmatprep.subr.mxu0 0.0
    %v6280 = vand.u32 %v5811, 4294901760
    %6281 = vmatpush1.msra.mxu0 %v6280
    %6282 = vmatprep.subr.mxu0 0.0
    %v6283 = vand.u32 %v5810, 4294901760
    %6284 = vmatpush1.msra.mxu0 %v6283
    %6285 = vmatprep.subr.mxu0 0.0
    %v6286 = vand.u32 %v5809, 4294901760
    %6287 = vmatpush1.msra.mxu0 %v6286
    %6288 = vmatprep.subr.mxu0 0.0
    %6289 = vmatpush2.msra.mxu0 0.0
    %6290 = vmatprep.subr.mxu0 0.0
    %6291 = vmatpush2.msra.mxu0 0.0
    %6292 = vmatprep.subr.mxu0 0.0
    %6293 = vmatpush2.msra.mxu0 0.0
    %6294 = vmatprep.subr.mxu0 0.0
    %6295 = vmatpush2.msra.mxu0 0.0
    %6296 = vmatprep.subr.mxu0 0.0
    %6297 = vmatpush2.msra.mxu0 0.0
    %6298 = vmatprep.subr.mxu0 0.0
    %6299 = vmatpush2.msra.mxu0 0.0
    %6300 = vmatprep.subr.mxu0 0.0
    %6301 = vmatpush2.msra.mxu0 0.0
    %6302 = vmatprep.subr.mxu0 0.0
    %6303 = vmatpush2.msra.mxu0 0.0
    %6304 = vmatprep.subr.mxu0 0.0
    %6305 = vmatpush2.msra.mxu0 0.0
    %6306 = vmatprep.subr.mxu0 0.0
    %6307 = vmatpush2.msra.mxu0 0.0
    %6308 = vmatprep.subr.mxu0 0.0
    %6309 = vmatpush2.msra.mxu0 0.0
    %6310 = vmatprep.subr.mxu0 0.0
    %6311 = vmatpush2.msra.mxu0 0.0
    %6312 = vmatprep.subr.mxu0 0.0
    %6313 = vmatpush2.msra.mxu0 0.0
    %6314 = vmatprep.subr.mxu0 0.0
    %6315 = vmatpush2.msra.mxu0 0.0
    %6316 = vmatprep.subr.mxu0 0.0
    %6317 = vmatpush2.msra.mxu0 0.0
    %6318 = vmatprep.subr.mxu0 0.0
    %6319 = vmatpush2.msra.mxu0 0.0
    %6320 = vmatprep.mubr.f32.mxu0 0.0
    %v6321 = vand.u32 %v5804, 4294901760
    %v6322 = vsub.f32 %v5804, %v6321
    %v6323 = vand.u32 %v6322, 4294901760
    %6324 = vmatmul.mubr.f32.gmra.mxu0 %v6323
    %v6325 = vpop.f32.mrf.mxu0
    %v6326 = vadd.f32 %v6216, %v6325
    %v6327 = vpop.f32.mrf.mxu0
    %6328 = vmatprep.mubr.f32.mxu0 0.0
    %v6329 = vand.u32 %v5805, 4294901760
    %v6330 = vsub.f32 %v5805, %v6329
    %v6331 = vand.u32 %v6330, 4294901760
    %6332 = vmatmul.mubr.f32.gmra.mxu0 %v6331
    %v6333 = vpop.f32.mrf.mxu0
    %v6334 = vadd.f32 %v6223, %v6333
    %v6335 = vpop.f32.mrf.mxu0
    %6336 = vmatprep.mubr.f32.mxu0 0.0
    %v6337 = vand.u32 %v5806, 4294901760
    %v6338 = vsub.f32 %v5806, %v6337
    %v6339 = vand.u32 %v6338, 4294901760
    %6340 = vmatmul.mubr.f32.gmra.mxu0 %v6339
    %v6341 = vpop.f32.mrf.mxu0
    %v6342 = vadd.f32 %v6230, %v6341
    %v6343 = vpop.f32.mrf.mxu0
    %6344 = vmatprep.mubr.f32.mxu0 0.0
    %v6345 = vand.u32 %v5807, 4294901760
    %v6346 = vsub.f32 %v5807, %v6345
    %v6347 = vand.u32 %v6346, 4294901760
    %6348 = vmatmul.mubr.f32.gmra.mxu0 %v6347
    %v6349 = vpop.f32.mrf.mxu0
    %v6350 = vadd.f32 %v6237, %v6349
    %v6351 = vpop.f32.mrf.mxu0
    %6352 = vdwg.mxu0
    %6353 = vmatprep.subr.mxu0 0.0
    %v6354 = vand.u32 %v5824, 4294901760
    %v6355 = vsub.f32 %v5824, %v6354
    %v6356 = vand.u32 %v6355, 4294901760
    %6357 = vmatpush1.msra.mxu0 %v6356
    %6358 = vmatprep.subr.mxu0 0.0
    %v6359 = vand.u32 %v5823, 4294901760
    %v6360 = vsub.f32 %v5823, %v6359
    %v6361 = vand.u32 %v6360, 4294901760
    %6362 = vmatpush1.msra.mxu0 %v6361
    %6363 = vmatprep.subr.mxu0 0.0
    %v6364 = vand.u32 %v5822, 4294901760
    %v6365 = vsub.f32 %v5822, %v6364
    %v6366 = vand.u32 %v6365, 4294901760
    %6367 = vmatpush1.msra.mxu0 %v6366
    %6368 = vmatprep.subr.mxu0 0.0
    %v6369 = vand.u32 %v5821, 4294901760
    %v6370 = vsub.f32 %v5821, %v6369
    %v6371 = vand.u32 %v6370, 4294901760
    %6372 = vmatpush1.msra.mxu0 %v6371
    %6373 = vmatprep.subr.mxu0 0.0
    %v6374 = vand.u32 %v5820, 4294901760
    %v6375 = vsub.f32 %v5820, %v6374
    %v6376 = vand.u32 %v6375, 4294901760
    %6377 = vmatpush1.msra.mxu0 %v6376
    %6378 = vmatprep.subr.mxu0 0.0
    %v6379 = vand.u32 %v5819, 4294901760
    %v6380 = vsub.f32 %v5819, %v6379
    %v6381 = vand.u32 %v6380, 4294901760
    %6382 = vmatpush1.msra.mxu0 %v6381
    %6383 = vmatprep.subr.mxu0 0.0
    %v6384 = vand.u32 %v5818, 4294901760
    %v6385 = vsub.f32 %v5818, %v6384
    %v6386 = vand.u32 %v6385, 4294901760
    %6387 = vmatpush1.msra.mxu0 %v6386
    %6388 = vmatprep.subr.mxu0 0.0
    %v6389 = vand.u32 %v5817, 4294901760
    %v6390 = vsub.f32 %v5817, %v6389
    %v6391 = vand.u32 %v6390, 4294901760
    %6392 = vmatpush1.msra.mxu0 %v6391
    %6393 = vmatprep.subr.mxu0 0.0
    %v6394 = vand.u32 %v5816, 4294901760
    %v6395 = vsub.f32 %v5816, %v6394
    %v6396 = vand.u32 %v6395, 4294901760
    %6397 = vmatpush1.msra.mxu0 %v6396
    %6398 = vmatprep.subr.mxu0 0.0
    %v6399 = vand.u32 %v5815, 4294901760
    %v6400 = vsub.f32 %v5815, %v6399
    %v6401 = vand.u32 %v6400, 4294901760
    %6402 = vmatpush1.msra.mxu0 %v6401
    %6403 = vmatprep.subr.mxu0 0.0
    %v6404 = vand.u32 %v5814, 4294901760
    %v6405 = vsub.f32 %v5814, %v6404
    %v6406 = vand.u32 %v6405, 4294901760
    %6407 = vmatpush1.msra.mxu0 %v6406
    %6408 = vmatprep.subr.mxu0 0.0
    %v6409 = vand.u32 %v5813, 4294901760
    %v6410 = vsub.f32 %v5813, %v6409
    %v6411 = vand.u32 %v6410, 4294901760
    %6412 = vmatpush1.msra.mxu0 %v6411
    %6413 = vmatprep.subr.mxu0 0.0
    %v6414 = vand.u32 %v5812, 4294901760
    %v6415 = vsub.f32 %v5812, %v6414
    %v6416 = vand.u32 %v6415, 4294901760
    %6417 = vmatpush1.msra.mxu0 %v6416
    %6418 = vmatprep.subr.mxu0 0.0
    %v6419 = vand.u32 %v5811, 4294901760
    %v6420 = vsub.f32 %v5811, %v6419
    %v6421 = vand.u32 %v6420, 4294901760
    %6422 = vmatpush1.msra.mxu0 %v6421
    %6423 = vmatprep.subr.mxu0 0.0
    %v6424 = vand.u32 %v5810, 4294901760
    %v6425 = vsub.f32 %v5810, %v6424
    %v6426 = vand.u32 %v6425, 4294901760
    %6427 = vmatpush1.msra.mxu0 %v6426
    %6428 = vmatprep.subr.mxu0 0.0
    %v6429 = vand.u32 %v5809, 4294901760
    %v6430 = vsub.f32 %v5809, %v6429
    %v6431 = vand.u32 %v6430, 4294901760
    %6432 = vmatpush1.msra.mxu0 %v6431
    %6433 = vmatprep.subr.mxu0 0.0
    %6434 = vmatpush2.msra.mxu0 0.0
    %6435 = vmatprep.subr.mxu0 0.0
    %6436 = vmatpush2.msra.mxu0 0.0
    %6437 = vmatprep.subr.mxu0 0.0
    %6438 = vmatpush2.msra.mxu0 0.0
    %6439 = vmatprep.subr.mxu0 0.0
    %6440 = vmatpush2.msra.mxu0 0.0
    %6441 = vmatprep.subr.mxu0 0.0
    %6442 = vmatpush2.msra.mxu0 0.0
    %6443 = vmatprep.subr.mxu0 0.0
    %6444 = vmatpush2.msra.mxu0 0.0
    %6445 = vmatprep.subr.mxu0 0.0
    %6446 = vmatpush2.msra.mxu0 0.0
    %6447 = vmatprep.subr.mxu0 0.0
    %6448 = vmatpush2.msra.mxu0 0.0
    %6449 = vmatprep.subr.mxu0 0.0
    %6450 = vmatpush2.msra.mxu0 0.0
    %6451 = vmatprep.subr.mxu0 0.0
    %6452 = vmatpush2.msra.mxu0 0.0
    %6453 = vmatprep.subr.mxu0 0.0
    %6454 = vmatpush2.msra.mxu0 0.0
    %6455 = vmatprep.subr.mxu0 0.0
    %6456 = vmatpush2.msra.mxu0 0.0
    %6457 = vmatprep.subr.mxu0 0.0
    %6458 = vmatpush2.msra.mxu0 0.0
    %6459 = vmatprep.subr.mxu0 0.0
    %6460 = vmatpush2.msra.mxu0 0.0
    %6461 = vmatprep.subr.mxu0 0.0
    %6462 = vmatpush2.msra.mxu0 0.0
    %6463 = vmatprep.subr.mxu0 0.0
    %6464 = vmatpush2.msra.mxu0 0.0
    %6465 = vmatprep.mubr.f32.mxu0 0.0
    %v6466 = vand.u32 %v5804, 4294901760
    %6467 = vmatmul.mubr.f32.gmra.mxu0 %v6466
    %v6468 = vpop.f32.mrf.mxu0
    %v6469 = vadd.f32 %v6326, %v6468
    %v6470 = vpop.f32.mrf.mxu0
    %6471 = vmatprep.mubr.f32.mxu0 0.0
    %v6472 = vand.u32 %v5805, 4294901760
    %6473 = vmatmul.mubr.f32.gmra.mxu0 %v6472
    %v6474 = vpop.f32.mrf.mxu0
    %v6475 = vadd.f32 %v6334, %v6474
    %v6476 = vpop.f32.mrf.mxu0
    %6477 = vmatprep.mubr.f32.mxu0 0.0
    %v6478 = vand.u32 %v5806, 4294901760
    %6479 = vmatmul.mubr.f32.gmra.mxu0 %v6478
    %v6480 = vpop.f32.mrf.mxu0
    %v6481 = vadd.f32 %v6342, %v6480
    %v6482 = vpop.f32.mrf.mxu0
    %6483 = vmatprep.mubr.f32.mxu0 0.0
    %v6484 = vand.u32 %v5807, 4294901760
    %6485 = vmatmul.mubr.f32.gmra.mxu0 %v6484
    %v6486 = vpop.f32.mrf.mxu0
    %v6487 = vadd.f32 %v6350, %v6486
    %v6488 = vpop.f32.mrf.mxu0
    %6489 = vdwg.mxu0
    %6490 = vmatprep.subr.mxu0 0.0
    %v6491 = vand.u32 %v5824, 4294901760
    %6492 = vmatpush1.msra.mxu0 %v6491
    %6493 = vmatprep.subr.mxu0 0.0
    %v6494 = vand.u32 %v5823, 4294901760
    %6495 = vmatpush1.msra.mxu0 %v6494
    %6496 = vmatprep.subr.mxu0 0.0
    %v6497 = vand.u32 %v5822, 4294901760
    %6498 = vmatpush1.msra.mxu0 %v6497
    %6499 = vmatprep.subr.mxu0 0.0
    %v6500 = vand.u32 %v5821, 4294901760
    %6501 = vmatpush1.msra.mxu0 %v6500
    %6502 = vmatprep.subr.mxu0 0.0
    %v6503 = vand.u32 %v5820, 4294901760
    %6504 = vmatpush1.msra.mxu0 %v6503
    %6505 = vmatprep.subr.mxu0 0.0
    %v6506 = vand.u32 %v5819, 4294901760
    %6507 = vmatpush1.msra.mxu0 %v6506
    %6508 = vmatprep.subr.mxu0 0.0
    %v6509 = vand.u32 %v5818, 4294901760
    %6510 = vmatpush1.msra.mxu0 %v6509
    %6511 = vmatprep.subr.mxu0 0.0
    %v6512 = vand.u32 %v5817, 4294901760
    %6513 = vmatpush1.msra.mxu0 %v6512
    %6514 = vmatprep.subr.mxu0 0.0
    %v6515 = vand.u32 %v5816, 4294901760
    %6516 = vmatpush1.msra.mxu0 %v6515
    %6517 = vmatprep.subr.mxu0 0.0
    %v6518 = vand.u32 %v5815, 4294901760
    %6519 = vmatpush1.msra.mxu0 %v6518
    %6520 = vmatprep.subr.mxu0 0.0
    %v6521 = vand.u32 %v5814, 4294901760
    %6522 = vmatpush1.msra.mxu0 %v6521
    %6523 = vmatprep.subr.mxu0 0.0
    %v6524 = vand.u32 %v5813, 4294901760
    %6525 = vmatpush1.msra.mxu0 %v6524
    %6526 = vmatprep.subr.mxu0 0.0
    %v6527 = vand.u32 %v5812, 4294901760
    %6528 = vmatpush1.msra.mxu0 %v6527
    %6529 = vmatprep.subr.mxu0 0.0
    %v6530 = vand.u32 %v5811, 4294901760
    %6531 = vmatpush1.msra.mxu0 %v6530
    %6532 = vmatprep.subr.mxu0 0.0
    %v6533 = vand.u32 %v5810, 4294901760
    %6534 = vmatpush1.msra.mxu0 %v6533
    %6535 = vmatprep.subr.mxu0 0.0
    %v6536 = vand.u32 %v5809, 4294901760
    %6537 = vmatpush1.msra.mxu0 %v6536
    %6538 = vmatprep.subr.mxu0 0.0
    %6539 = vmatpush2.msra.mxu0 0.0
    %6540 = vmatprep.subr.mxu0 0.0
    %6541 = vmatpush2.msra.mxu0 0.0
    %6542 = vmatprep.subr.mxu0 0.0
    %6543 = vmatpush2.msra.mxu0 0.0
    %6544 = vmatprep.subr.mxu0 0.0
    %6545 = vmatpush2.msra.mxu0 0.0
    %6546 = vmatprep.subr.mxu0 0.0
    %6547 = vmatpush2.msra.mxu0 0.0
    %6548 = vmatprep.subr.mxu0 0.0
    %6549 = vmatpush2.msra.mxu0 0.0
    %6550 = vmatprep.subr.mxu0 0.0
    %6551 = vmatpush2.msra.mxu0 0.0
    %6552 = vmatprep.subr.mxu0 0.0
    %6553 = vmatpush2.msra.mxu0 0.0
    %6554 = vmatprep.subr.mxu0 0.0
    %6555 = vmatpush2.msra.mxu0 0.0
    %6556 = vmatprep.subr.mxu0 0.0
    %6557 = vmatpush2.msra.mxu0 0.0
    %6558 = vmatprep.subr.mxu0 0.0
    %6559 = vmatpush2.msra.mxu0 0.0
    %6560 = vmatprep.subr.mxu0 0.0
    %6561 = vmatpush2.msra.mxu0 0.0
    %6562 = vmatprep.subr.mxu0 0.0
    %6563 = vmatpush2.msra.mxu0 0.0
    %6564 = vmatprep.subr.mxu0 0.0
    %6565 = vmatpush2.msra.mxu0 0.0
    %6566 = vmatprep.subr.mxu0 0.0
    %6567 = vmatpush2.msra.mxu0 0.0
    %6568 = vmatprep.subr.mxu0 0.0
    %6569 = vmatpush2.msra.mxu0 0.0
    %6570 = vmatprep.mubr.f32.mxu0 0.0
    %v6571 = vand.u32 %v5804, 4294901760
    %6572 = vmatmul.mubr.f32.gmra.mxu0 %v6571
    %v6573 = vpop.f32.mrf.mxu0
    %v6574 = vadd.f32 %v6469, %v6573
    %v6575 = vpop.f32.mrf.mxu0
    %6576 = vmatprep.mubr.f32.mxu0 0.0
    %v6577 = vand.u32 %v5805, 4294901760
    %6578 = vmatmul.mubr.f32.gmra.mxu0 %v6577
    %v6579 = vpop.f32.mrf.mxu0
    %v6580 = vadd.f32 %v6475, %v6579
    %v6581 = vpop.f32.mrf.mxu0
    %6582 = vmatprep.mubr.f32.mxu0 0.0
    %v6583 = vand.u32 %v5806, 4294901760
    %6584 = vmatmul.mubr.f32.gmra.mxu0 %v6583
    %v6585 = vpop.f32.mrf.mxu0
    %v6586 = vadd.f32 %v6481, %v6585
    %v6587 = vpop.f32.mrf.mxu0
    %6588 = vmatprep.mubr.f32.mxu0 0.0
    %v6589 = vand.u32 %v5807, 4294901760
    %6590 = vmatmul.mubr.f32.gmra.mxu0 %v6589
    %v6591 = vpop.f32.mrf.mxu0
    %v6592 = vadd.f32 %v6487, %v6591
    %v6593 = vpop.f32.mrf.mxu0
    %6594 = vdwg.mxu0
    %v6595 = vadd.f32 %v6574, %v6580
    %v6596 = vrot.slane %v6595, 4
    %v6597 = vadd.f32 %v6595, %v6596
    %v6598 = vrot.slane %v6597, 2
    %v6599 = vadd.f32 %v6597, %v6598
    %v6600 = vrot.slane %v6599, 1
    %v6601 = vadd.f32 %v6599, %v6600
    %v6602 = vadd.f32 %v6586, %v6592
    %v6603 = vrot.slane %v6602, 4
    %v6604 = vadd.f32 %v6602, %v6603
    %v6605 = vrot.slane %v6604, 2
    %v6606 = vadd.f32 %v6604, %v6605
    %v6607 = vrot.slane %v6606, 1
    %v6608 = vadd.f32 %v6606, %v6607
    %v6609 = vmul.f32 %v6601, %v1502
    %v6610 = vmul.f32 %v6608, %v1502
    %v6611 = vsub.f32 %v6574, %v6609
    %v6612 = vsub.f32 %v6580, %v6609
    %v6613 = vsub.f32 %v6586, %v6610
    %v6614 = vsub.f32 %v6592, %v6610
    %v6615 = vmul.f32 %v6611, %v6611
    %v6616 = vmul.f32 %v6612, %v6612
    %v6617 = vmul.f32 %v6613, %v6613
    %v6618 = vmul.f32 %v6614, %v6614
    %v6619 = vadd.f32 %v6615, %v6616
    %v6620 = vrot.slane %v6619, 4
    %v6621 = vadd.f32 %v6619, %v6620
    %v6622 = vrot.slane %v6621, 2
    %v6623 = vadd.f32 %v6621, %v6622
    %v6624 = vrot.slane %v6623, 1
    %v6625 = vadd.f32 %v6623, %v6624
    %v6626 = vadd.f32 %v6617, %v6618
    %v6627 = vrot.slane %v6626, 4
    %v6628 = vadd.f32 %v6626, %v6627
    %v6629 = vrot.slane %v6628, 2
    %v6630 = vadd.f32 %v6628, %v6629
    %v6631 = vrot.slane %v6630, 1
    %v6632 = vadd.f32 %v6630, %v6631
    %v6633 = vmul.f32 %v6625, %v1502
    %v6634 = vmul.f32 %v6632, %v1502
    %v6635 = vadd.f32 %v6633, 1e-05
    %v6636 = vadd.f32 %v6634, 1e-05
    %v6637 = vrsqrt.pop %v6635
    %v6638 = vrsqrt.pop %v6636
    %v6639 = vmul.f32 %v6633, %v6637
    %v6640 = vmul.f32 %v6634, %v6638
    %v6641 = vmul.f32 %v6639, %v6637
    %v6642 = vmul.f32 %v6640, %v6638
    %v6643 = vadd.f32 %v6641, %v6642
    %v6644 = vmul.f32 %v6643, %v1538
    %v6645 = vadd.f32 %v6644, 1e-05
    %v6646 = vrsqrt.pop %v6645
    %v6647 = vmul.f32 %v6637, %v6646
    %v6648 = vmul.f32 %v6638, %v6646
    %v6649 = vmul.f32 %v6611, %v6647
    %v6650 = vmul.f32 %v6612, %v6647
    %v6651 = vmul.f32 %v6613, %v6648
    %v6652 = vmul.f32 %v6614, %v6648
    %v6653 = vmax.f32 %v6649, 0.0
    %v6654 = vmax.f32 %v6650, 0.0
    %v6655 = vmax.f32 %v6651, 0.0
    %v6656 = vmax.f32 %v6652, 0.0
    %s6657 = scalar_lea.vmem [#allocation9], 384
    %v6658 = vld [vmem:[%s6657] sm:$0xff]
    %v6659 = vld [vmem:[%s6657 + $0x8] sm:$0xff]
    %v6660 = vld [vmem:[%s6657 + $0x10] sm:$0xff]
    %v6661 = vld [vmem:[%s6657 + $0x18] sm:$0xff]
    %v6662 = vld [vmem:[%s6657 + $0x20] sm:$0xff]
    %v6663 = vld [vmem:[%s6657 + $0x28] sm:$0xff]
    %v6664 = vld [vmem:[%s6657 + $0x30] sm:$0xff]
    %v6665 = vld [vmem:[%s6657 + $0x38] sm:$0xff]
    %v6666 = vld [vmem:[%s6657 + $0x40] sm:$0xff]
    %v6667 = vld [vmem:[%s6657 + $0x48] sm:$0xff]
    %v6668 = vld [vmem:[%s6657 + $0x50] sm:$0xff]
    %v6669 = vld [vmem:[%s6657 + $0x58] sm:$0xff]
    %v6670 = vld [vmem:[%s6657 + $0x60] sm:$0xff]
    %v6671 = vld [vmem:[%s6657 + $0x68] sm:$0xff]
    %v6672 = vld [vmem:[%s6657 + $0x70] sm:$0xff]
    %v6673 = vld [vmem:[%s6657 + $0x78] sm:$0xff]
    %6674 = vmatprep.subr.mxu0 0.0
    %v6675 = vand.u32 %v6673, 4294901760
    %6676 = vmatpush1.msra.mxu0 %v6675
    %6677 = vmatprep.subr.mxu0 0.0
    %v6678 = vand.u32 %v6672, 4294901760
    %6679 = vmatpush1.msra.mxu0 %v6678
    %6680 = vmatprep.subr.mxu0 0.0
    %v6681 = vand.u32 %v6671, 4294901760
    %6682 = vmatpush1.msra.mxu0 %v6681
    %6683 = vmatprep.subr.mxu0 0.0
    %v6684 = vand.u32 %v6670, 4294901760
    %6685 = vmatpush1.msra.mxu0 %v6684
    %6686 = vmatprep.subr.mxu0 0.0
    %v6687 = vand.u32 %v6669, 4294901760
    %6688 = vmatpush1.msra.mxu0 %v6687
    %6689 = vmatprep.subr.mxu0 0.0
    %v6690 = vand.u32 %v6668, 4294901760
    %6691 = vmatpush1.msra.mxu0 %v6690
    %6692 = vmatprep.subr.mxu0 0.0
    %v6693 = vand.u32 %v6667, 4294901760
    %6694 = vmatpush1.msra.mxu0 %v6693
    %6695 = vmatprep.subr.mxu0 0.0
    %v6696 = vand.u32 %v6666, 4294901760
    %6697 = vmatpush1.msra.mxu0 %v6696
    %6698 = vmatprep.subr.mxu0 0.0
    %v6699 = vand.u32 %v6665, 4294901760
    %6700 = vmatpush1.msra.mxu0 %v6699
    %6701 = vmatprep.subr.mxu0 0.0
    %v6702 = vand.u32 %v6664, 4294901760
    %6703 = vmatpush1.msra.mxu0 %v6702
    %6704 = vmatprep.subr.mxu0 0.0
    %v6705 = vand.u32 %v6663, 4294901760
    %6706 = vmatpush1.msra.mxu0 %v6705
    %6707 = vmatprep.subr.mxu0 0.0
    %v6708 = vand.u32 %v6662, 4294901760
    %6709 = vmatpush1.msra.mxu0 %v6708
    %6710 = vmatprep.subr.mxu0 0.0
    %v6711 = vand.u32 %v6661, 4294901760
    %6712 = vmatpush1.msra.mxu0 %v6711
    %6713 = vmatprep.subr.mxu0 0.0
    %v6714 = vand.u32 %v6660, 4294901760
    %6715 = vmatpush1.msra.mxu0 %v6714
    %6716 = vmatprep.subr.mxu0 0.0
    %v6717 = vand.u32 %v6659, 4294901760
    %6718 = vmatpush1.msra.mxu0 %v6717
    %6719 = vmatprep.subr.mxu0 0.0
    %v6720 = vand.u32 %v6658, 4294901760
    %6721 = vmatpush1.msra.mxu0 %v6720
    %6722 = vmatprep.subr.mxu0 0.0
    %6723 = vmatpush2.msra.mxu0 0.0
    %6724 = vmatprep.subr.mxu0 0.0
    %6725 = vmatpush2.msra.mxu0 0.0
    %6726 = vmatprep.subr.mxu0 0.0
    %6727 = vmatpush2.msra.mxu0 0.0
    %6728 = vmatprep.subr.mxu0 0.0
    %6729 = vmatpush2.msra.mxu0 0.0
    %6730 = vmatprep.subr.mxu0 0.0
    %6731 = vmatpush2.msra.mxu0 0.0
    %6732 = vmatprep.subr.mxu0 0.0
    %6733 = vmatpush2.msra.mxu0 0.0
    %6734 = vmatprep.subr.mxu0 0.0
    %6735 = vmatpush2.msra.mxu0 0.0
    %6736 = vmatprep.subr.mxu0 0.0
    %6737 = vmatpush2.msra.mxu0 0.0
    %6738 = vmatprep.subr.mxu0 0.0
    %6739 = vmatpush2.msra.mxu0 0.0
    %6740 = vmatprep.subr.mxu0 0.0
    %6741 = vmatpush2.msra.mxu0 0.0
    %6742 = vmatprep.subr.mxu0 0.0
    %6743 = vmatpush2.msra.mxu0 0.0
    %6744 = vmatprep.subr.mxu0 0.0
    %6745 = vmatpush2.msra.mxu0 0.0
    %6746 = vmatprep.subr.mxu0 0.0
    %6747 = vmatpush2.msra.mxu0 0.0
    %6748 = vmatprep.subr.mxu0 0.0
    %6749 = vmatpush2.msra.mxu0 0.0
    %6750 = vmatprep.subr.mxu0 0.0
    %6751 = vmatpush2.msra.mxu0 0.0
    %6752 = vmatprep.subr.mxu0 0.0
    %6753 = vmatpush2.msra.mxu0 0.0
    %6754 = vmatprep.mubr.f32.mxu0 0.0
    %v6755 = vand.u32 %v6653, 4294901760
    %v6756 = vsub.f32 %v6653, %v6755
    %v6757 = vand.u32 %v6756, 4294901760
    %v6758 = vsub.f32 %v6756, %v6757
    %v6759 = vand.u32 %v6758, 4294901760
    %6760 = vmatmul.mubr.f32.gmra.mxu0 %v6759
    %v6761 = vpop.f32.mrf.mxu0
    %v6762 = vadd.f32 0.0, %v6761
    %v6763 = vpop.f32.mrf.mxu0
    %6764 = vmatprep.mubr.f32.mxu0 0.0
    %v6765 = vand.u32 %v6654, 4294901760
    %v6766 = vsub.f32 %v6654, %v6765
    %v6767 = vand.u32 %v6766, 4294901760
    %v6768 = vsub.f32 %v6766, %v6767
    %v6769 = vand.u32 %v6768, 4294901760
    %6770 = vmatmul.mubr.f32.gmra.mxu0 %v6769
    %v6771 = vpop.f32.mrf.mxu0
    %v6772 = vadd.f32 0.0, %v6771
    %v6773 = vpop.f32.mrf.mxu0
    %6774 = vmatprep.mubr.f32.mxu0 0.0
    %v6775 = vand.u32 %v6655, 4294901760
    %v6776 = vsub.f32 %v6655, %v6775
    %v6777 = vand.u32 %v6776, 4294901760
    %v6778 = vsub.f32 %v6776, %v6777
    %v6779 = vand.u32 %v6778, 4294901760
    %6780 = vmatmul.mubr.f32.gmra.mxu0 %v6779
    %v6781 = vpop.f32.mrf.mxu0
    %v6782 = vadd.f32 0.0, %v6781
    %v6783 = vpop.f32.mrf.mxu0
    %6784 = vmatprep.mubr.f32.mxu0 0.0
    %v6785 = vand.u32 %v6656, 4294901760
    %v6786 = vsub.f32 %v6656, %v6785
    %v6787 = vand.u32 %v6786, 4294901760
    %v6788 = vsub.f32 %v6786, %v6787
    %v6789 = vand.u32 %v6788, 4294901760
    %6790 = vmatmul.mubr.f32.gmra.mxu0 %v6789
    %v6791 = vpop.f32.mrf.mxu0
    %v6792 = vadd.f32 0.0, %v6791
    %v6793 = vpop.f32.mrf.mxu0
    %6794 = vdwg.mxu0
    %6795 = vmatprep.subr.mxu0 0.0
    %v6796 = vand.u32 %v6673, 4294901760
    %v6797 = vsub.f32 %v6673, %v6796
    %v6798 = vand.u32 %v6797, 4294901760
    %v6799 = vsub.f32 %v6797, %v6798
    %v6800 = vand.u32 %v6799, 4294901760
    %6801 = vmatpush1.msra.mxu0 %v6800
    %6802 = vmatprep.subr.mxu0 0.0
    %v6803 = vand.u32 %v6672, 4294901760
    %v6804 = vsub.f32 %v6672, %v6803
    %v6805 = vand.u32 %v6804, 4294901760
    %v6806 = vsub.f32 %v6804, %v6805
    %v6807 = vand.u32 %v6806, 4294901760
    %6808 = vmatpush1.msra.mxu0 %v6807
    %6809 = vmatprep.subr.mxu0 0.0
    %v6810 = vand.u32 %v6671, 4294901760
    %v6811 = vsub.f32 %v6671, %v6810
    %v6812 = vand.u32 %v6811, 4294901760
    %v6813 = vsub.f32 %v6811, %v6812
    %v6814 = vand.u32 %v6813, 4294901760
    %6815 = vmatpush1.msra.mxu0 %v6814
    %6816 = vmatprep.subr.mxu0 0.0
    %v6817 = vand.u32 %v6670, 4294901760
    %v6818 = vsub.f32 %v6670, %v6817
    %v6819 = vand.u32 %v6818, 4294901760
    %v6820 = vsub.f32 %v6818, %v6819
    %v6821 = vand.u32 %v6820, 4294901760
    %6822 = vmatpush1.msra.mxu0 %v6821
    %6823 = vmatprep.subr.mxu0 0.0
    %v6824 = vand.u32 %v6669, 4294901760
    %v6825 = vsub.f32 %v6669, %v6824
    %v6826 = vand.u32 %v6825, 4294901760
    %v6827 = vsub.f32 %v6825, %v6826
    %v6828 = vand.u32 %v6827, 4294901760
    %6829 = vmatpush1.msra.mxu0 %v6828
    %6830 = vmatprep.subr.mxu0 0.0
    %v6831 = vand.u32 %v6668, 4294901760
    %v6832 = vsub.f32 %v6668, %v6831
    %v6833 = vand.u32 %v6832, 4294901760
    %v6834 = vsub.f32 %v6832, %v6833
    %v6835 = vand.u32 %v6834, 4294901760
    %6836 = vmatpush1.msra.mxu0 %v6835
    %6837 = vmatprep.subr.mxu0 0.0
    %v6838 = vand.u32 %v6667, 4294901760
    %v6839 = vsub.f32 %v6667, %v6838
    %v6840 = vand.u32 %v6839, 4294901760
    %v6841 = vsub.f32 %v6839, %v6840
    %v6842 = vand.u32 %v6841, 4294901760
    %6843 = vmatpush1.msra.mxu0 %v6842
    %6844 = vmatprep.subr.mxu0 0.0
    %v6845 = vand.u32 %v6666, 4294901760
    %v6846 = vsub.f32 %v6666, %v6845
    %v6847 = vand.u32 %v6846, 4294901760
    %v6848 = vsub.f32 %v6846, %v6847
    %v6849 = vand.u32 %v6848, 4294901760
    %6850 = vmatpush1.msra.mxu0 %v6849
    %6851 = vmatprep.subr.mxu0 0.0
    %v6852 = vand.u32 %v6665, 4294901760
    %v6853 = vsub.f32 %v6665, %v6852
    %v6854 = vand.u32 %v6853, 4294901760
    %v6855 = vsub.f32 %v6853, %v6854
    %v6856 = vand.u32 %v6855, 4294901760
    %6857 = vmatpush1.msra.mxu0 %v6856
    %6858 = vmatprep.subr.mxu0 0.0
    %v6859 = vand.u32 %v6664, 4294901760
    %v6860 = vsub.f32 %v6664, %v6859
    %v6861 = vand.u32 %v6860, 4294901760
    %v6862 = vsub.f32 %v6860, %v6861
    %v6863 = vand.u32 %v6862, 4294901760
    %6864 = vmatpush1.msra.mxu0 %v6863
    %6865 = vmatprep.subr.mxu0 0.0
    %v6866 = vand.u32 %v6663, 4294901760
    %v6867 = vsub.f32 %v6663, %v6866
    %v6868 = vand.u32 %v6867, 4294901760
    %v6869 = vsub.f32 %v6867, %v6868
    %v6870 = vand.u32 %v6869, 4294901760
    %6871 = vmatpush1.msra.mxu0 %v6870
    %6872 = vmatprep.subr.mxu0 0.0
    %v6873 = vand.u32 %v6662, 4294901760
    %v6874 = vsub.f32 %v6662, %v6873
    %v6875 = vand.u32 %v6874, 4294901760
    %v6876 = vsub.f32 %v6874, %v6875
    %v6877 = vand.u32 %v6876, 4294901760
    %6878 = vmatpush1.msra.mxu0 %v6877
    %6879 = vmatprep.subr.mxu0 0.0
    %v6880 = vand.u32 %v6661, 4294901760
    %v6881 = vsub.f32 %v6661, %v6880
    %v6882 = vand.u32 %v6881, 4294901760
    %v6883 = vsub.f32 %v6881, %v6882
    %v6884 = vand.u32 %v6883, 4294901760
    %6885 = vmatpush1.msra.mxu0 %v6884
    %6886 = vmatprep.subr.mxu0 0.0
    %v6887 = vand.u32 %v6660, 4294901760
    %v6888 = vsub.f32 %v6660, %v6887
    %v6889 = vand.u32 %v6888, 4294901760
    %v6890 = vsub.f32 %v6888, %v6889
    %v6891 = vand.u32 %v6890, 4294901760
    %6892 = vmatpush1.msra.mxu0 %v6891
    %6893 = vmatprep.subr.mxu0 0.0
    %v6894 = vand.u32 %v6659, 4294901760
    %v6895 = vsub.f32 %v6659, %v6894
    %v6896 = vand.u32 %v6895, 4294901760
    %v6897 = vsub.f32 %v6895, %v6896
    %v6898 = vand.u32 %v6897, 4294901760
    %6899 = vmatpush1.msra.mxu0 %v6898
    %6900 = vmatprep.subr.mxu0 0.0
    %v6901 = vand.u32 %v6658, 4294901760
    %v6902 = vsub.f32 %v6658, %v6901
    %v6903 = vand.u32 %v6902, 4294901760
    %v6904 = vsub.f32 %v6902, %v6903
    %v6905 = vand.u32 %v6904, 4294901760
    %6906 = vmatpush1.msra.mxu0 %v6905
    %6907 = vmatprep.subr.mxu0 0.0
    %6908 = vmatpush2.msra.mxu0 0.0
    %6909 = vmatprep.subr.mxu0 0.0
    %6910 = vmatpush2.msra.mxu0 0.0
    %6911 = vmatprep.subr.mxu0 0.0
    %6912 = vmatpush2.msra.mxu0 0.0
    %6913 = vmatprep.subr.mxu0 0.0
    %6914 = vmatpush2.msra.mxu0 0.0
    %6915 = vmatprep.subr.mxu0 0.0
    %6916 = vmatpush2.msra.mxu0 0.0
    %6917 = vmatprep.subr.mxu0 0.0
    %6918 = vmatpush2.msra.mxu0 0.0
    %6919 = vmatprep.subr.mxu0 0.0
    %6920 = vmatpush2.msra.mxu0 0.0
    %6921 = vmatprep.subr.mxu0 0.0
    %6922 = vmatpush2.msra.mxu0 0.0
    %6923 = vmatprep.subr.mxu0 0.0
    %6924 = vmatpush2.msra.mxu0 0.0
    %6925 = vmatprep.subr.mxu0 0.0
    %6926 = vmatpush2.msra.mxu0 0.0
    %6927 = vmatprep.subr.mxu0 0.0
    %6928 = vmatpush2.msra.mxu0 0.0
    %6929 = vmatprep.subr.mxu0 0.0
    %6930 = vmatpush2.msra.mxu0 0.0
    %6931 = vmatprep.subr.mxu0 0.0
    %6932 = vmatpush2.msra.mxu0 0.0
    %6933 = vmatprep.subr.mxu0 0.0
    %6934 = vmatpush2.msra.mxu0 0.0
    %6935 = vmatprep.subr.mxu0 0.0
    %6936 = vmatpush2.msra.mxu0 0.0
    %6937 = vmatprep.subr.mxu0 0.0
    %6938 = vmatpush2.msra.mxu0 0.0
    %6939 = vmatprep.mubr.f32.mxu0 0.0
    %v6940 = vand.u32 %v6653, 4294901760
    %6941 = vmatmul.mubr.f32.gmra.mxu0 %v6940
    %v6942 = vpop.f32.mrf.mxu0
    %v6943 = vadd.f32 %v6762, %v6942
    %v6944 = vpop.f32.mrf.mxu0
    %6945 = vmatprep.mubr.f32.mxu0 0.0
    %v6946 = vand.u32 %v6654, 4294901760
    %6947 = vmatmul.mubr.f32.gmra.mxu0 %v6946
    %v6948 = vpop.f32.mrf.mxu0
    %v6949 = vadd.f32 %v6772, %v6948
    %v6950 = vpop.f32.mrf.mxu0
    %6951 = vmatprep.mubr.f32.mxu0 0.0
    %v6952 = vand.u32 %v6655, 4294901760
    %6953 = vmatmul.mubr.f32.gmra.mxu0 %v6952
    %v6954 = vpop.f32.mrf.mxu0
    %v6955 = vadd.f32 %v6782, %v6954
    %v6956 = vpop.f32.mrf.mxu0
    %6957 = vmatprep.mubr.f32.mxu0 0.0
    %v6958 = vand.u32 %v6656, 4294901760
    %6959 = vmatmul.mubr.f32.gmra.mxu0 %v6958
    %v6960 = vpop.f32.mrf.mxu0
    %v6961 = vadd.f32 %v6792, %v6960
    %v6962 = vpop.f32.mrf.mxu0
    %6963 = vdwg.mxu0
    %6964 = vmatprep.subr.mxu0 0.0
    %v6965 = vand.u32 %v6673, 4294901760
    %v6966 = vsub.f32 %v6673, %v6965
    %6967 = vmatpush1.msra.mxu0 %v6966
    %6968 = vmatprep.subr.mxu0 0.0
    %v6969 = vand.u32 %v6672, 4294901760
    %v6970 = vsub.f32 %v6672, %v6969
    %6971 = vmatpush1.msra.mxu0 %v6970
    %6972 = vmatprep.subr.mxu0 0.0
    %v6973 = vand.u32 %v6671, 4294901760
    %v6974 = vsub.f32 %v6671, %v6973
    %6975 = vmatpush1.msra.mxu0 %v6974
    %6976 = vmatprep.subr.mxu0 0.0
    %v6977 = vand.u32 %v6670, 4294901760
    %v6978 = vsub.f32 %v6670, %v6977
    %6979 = vmatpush1.msra.mxu0 %v6978
    %6980 = vmatprep.subr.mxu0 0.0
    %v6981 = vand.u32 %v6669, 4294901760
    %v6982 = vsub.f32 %v6669, %v6981
    %6983 = vmatpush1.msra.mxu0 %v6982
    %6984 = vmatprep.subr.mxu0 0.0
    %v6985 = vand.u32 %v6668, 4294901760
    %v6986 = vsub.f32 %v6668, %v6985
    %6987 = vmatpush1.msra.mxu0 %v6986
    %6988 = vmatprep.subr.mxu0 0.0
    %v6989 = vand.u32 %v6667, 4294901760
    %v6990 = vsub.f32 %v6667, %v6989
    %6991 = vmatpush1.msra.mxu0 %v6990
    %6992 = vmatprep.subr.mxu0 0.0
    %v6993 = vand.u32 %v6666, 4294901760
    %v6994 = vsub.f32 %v6666, %v6993
    %6995 = vmatpush1.msra.mxu0 %v6994
    %6996 = vmatprep.subr.mxu0 0.0
    %v6997 = vand.u32 %v6665, 4294901760
    %v6998 = vsub.f32 %v6665, %v6997
    %6999 = vmatpush1.msra.mxu0 %v6998
    %7000 = vmatprep.subr.mxu0 0.0
    %v7001 = vand.u32 %v6664, 4294901760
    %v7002 = vsub.f32 %v6664, %v7001
    %7003 = vmatpush1.msra.mxu0 %v7002
    %7004 = vmatprep.subr.mxu0 0.0
    %v7005 = vand.u32 %v6663, 4294901760
    %v7006 = vsub.f32 %v6663, %v7005
    %7007 = vmatpush1.msra.mxu0 %v7006
    %7008 = vmatprep.subr.mxu0 0.0
    %v7009 = vand.u32 %v6662, 4294901760
    %v7010 = vsub.f32 %v6662, %v7009
    %7011 = vmatpush1.msra.mxu0 %v7010
    %7012 = vmatprep.subr.mxu0 0.0
    %v7013 = vand.u32 %v6661, 4294901760
    %v7014 = vsub.f32 %v6661, %v7013
    %7015 = vmatpush1.msra.mxu0 %v7014
    %7016 = vmatprep.subr.mxu0 0.0
    %v7017 = vand.u32 %v6660, 4294901760
    %v7018 = vsub.f32 %v6660, %v7017
    %7019 = vmatpush1.msra.mxu0 %v7018
    %7020 = vmatprep.subr.mxu0 0.0
    %v7021 = vand.u32 %v6659, 4294901760
    %v7022 = vsub.f32 %v6659, %v7021
    %7023 = vmatpush1.msra.mxu0 %v7022
    %7024 = vmatprep.subr.mxu0 0.0
    %v7025 = vand.u32 %v6658, 4294901760
    %v7026 = vsub.f32 %v6658, %v7025
    %7027 = vmatpush1.msra.mxu0 %v7026
    %7028 = vmatprep.subr.mxu0 0.0
    %7029 = vmatpush2.msra.mxu0 0.0
    %7030 = vmatprep.subr.mxu0 0.0
    %7031 = vmatpush2.msra.mxu0 0.0
    %7032 = vmatprep.subr.mxu0 0.0
    %7033 = vmatpush2.msra.mxu0 0.0
    %7034 = vmatprep.subr.mxu0 0.0
    %7035 = vmatpush2.msra.mxu0 0.0
    %7036 = vmatprep.subr.mxu0 0.0
    %7037 = vmatpush2.msra.mxu0 0.0
    %7038 = vmatprep.subr.mxu0 0.0
    %7039 = vmatpush2.msra.mxu0 0.0
    %7040 = vmatprep.subr.mxu0 0.0
    %7041 = vmatpush2.msra.mxu0 0.0
    %7042 = vmatprep.subr.mxu0 0.0
    %7043 = vmatpush2.msra.mxu0 0.0
    %7044 = vmatprep.subr.mxu0 0.0
    %7045 = vmatpush2.msra.mxu0 0.0
    %7046 = vmatprep.subr.mxu0 0.0
    %7047 = vmatpush2.msra.mxu0 0.0
    %7048 = vmatprep.subr.mxu0 0.0
    %7049 = vmatpush2.msra.mxu0 0.0
    %7050 = vmatprep.subr.mxu0 0.0
    %7051 = vmatpush2.msra.mxu0 0.0
    %7052 = vmatprep.subr.mxu0 0.0
    %7053 = vmatpush2.msra.mxu0 0.0
    %7054 = vmatprep.subr.mxu0 0.0
    %7055 = vmatpush2.msra.mxu0 0.0
    %7056 = vmatprep.subr.mxu0 0.0
    %7057 = vmatpush2.msra.mxu0 0.0
    %7058 = vmatprep.subr.mxu0 0.0
    %7059 = vmatpush2.msra.mxu0 0.0
    %7060 = vmatprep.mubr.f32.mxu0 0.0
    %v7061 = vand.u32 %v6653, 4294901760
    %v7062 = vsub.f32 %v6653, %v7061
    %7063 = vmatmul.mubr.f32.gmra.mxu0 %v7062
    %v7064 = vpop.f32.mrf.mxu0
    %v7065 = vadd.f32 %v6943, %v7064
    %v7066 = vpop.f32.mrf.mxu0
    %7067 = vmatprep.mubr.f32.mxu0 0.0
    %v7068 = vand.u32 %v6654, 4294901760
    %v7069 = vsub.f32 %v6654, %v7068
    %7070 = vmatmul.mubr.f32.gmra.mxu0 %v7069
    %v7071 = vpop.f32.mrf.mxu0
    %v7072 = vadd.f32 %v6949, %v7071
    %v7073 = vpop.f32.mrf.mxu0
    %7074 = vmatprep.mubr.f32.mxu0 0.0
    %v7075 = vand.u32 %v6655, 4294901760
    %v7076 = vsub.f32 %v6655, %v7075
    %7077 = vmatmul.mubr.f32.gmra.mxu0 %v7076
    %v7078 = vpop.f32.mrf.mxu0
    %v7079 = vadd.f32 %v6955, %v7078
    %v7080 = vpop.f32.mrf.mxu0
    %7081 = vmatprep.mubr.f32.mxu0 0.0
    %v7082 = vand.u32 %v6656, 4294901760
    %v7083 = vsub.f32 %v6656, %v7082
    %7084 = vmatmul.mubr.f32.gmra.mxu0 %v7083
    %v7085 = vpop.f32.mrf.mxu0
    %v7086 = vadd.f32 %v6961, %v7085
    %v7087 = vpop.f32.mrf.mxu0
    %7088 = vdwg.mxu0
    %7089 = vmatprep.subr.mxu0 0.0
    %v7090 = vand.u32 %v6673, 4294901760
    %7091 = vmatpush1.msra.mxu0 %v7090
    %7092 = vmatprep.subr.mxu0 0.0
    %v7093 = vand.u32 %v6672, 4294901760
    %7094 = vmatpush1.msra.mxu0 %v7093
    %7095 = vmatprep.subr.mxu0 0.0
    %v7096 = vand.u32 %v6671, 4294901760
    %7097 = vmatpush1.msra.mxu0 %v7096
    %7098 = vmatprep.subr.mxu0 0.0
    %v7099 = vand.u32 %v6670, 4294901760
    %7100 = vmatpush1.msra.mxu0 %v7099
    %7101 = vmatprep.subr.mxu0 0.0
    %v7102 = vand.u32 %v6669, 4294901760
    %7103 = vmatpush1.msra.mxu0 %v7102
    %7104 = vmatprep.subr.mxu0 0.0
    %v7105 = vand.u32 %v6668, 4294901760
    %7106 = vmatpush1.msra.mxu0 %v7105
    %7107 = vmatprep.subr.mxu0 0.0
    %v7108 = vand.u32 %v6667, 4294901760
    %7109 = vmatpush1.msra.mxu0 %v7108
    %7110 = vmatprep.subr.mxu0 0.0
    %v7111 = vand.u32 %v6666, 4294901760
    %7112 = vmatpush1.msra.mxu0 %v7111
    %7113 = vmatprep.subr.mxu0 0.0
    %v7114 = vand.u32 %v6665, 4294901760
    %7115 = vmatpush1.msra.mxu0 %v7114
    %7116 = vmatprep.subr.mxu0 0.0
    %v7117 = vand.u32 %v6664, 4294901760
    %7118 = vmatpush1.msra.mxu0 %v7117
    %7119 = vmatprep.subr.mxu0 0.0
    %v7120 = vand.u32 %v6663, 4294901760
    %7121 = vmatpush1.msra.mxu0 %v7120
    %7122 = vmatprep.subr.mxu0 0.0
    %v7123 = vand.u32 %v6662, 4294901760
    %7124 = vmatpush1.msra.mxu0 %v7123
    %7125 = vmatprep.subr.mxu0 0.0
    %v7126 = vand.u32 %v6661, 4294901760
    %7127 = vmatpush1.msra.mxu0 %v7126
    %7128 = vmatprep.subr.mxu0 0.0
    %v7129 = vand.u32 %v6660, 4294901760
    %7130 = vmatpush1.msra.mxu0 %v7129
    %7131 = vmatprep.subr.mxu0 0.0
    %v7132 = vand.u32 %v6659, 4294901760
    %7133 = vmatpush1.msra.mxu0 %v7132
    %7134 = vmatprep.subr.mxu0 0.0
    %v7135 = vand.u32 %v6658, 4294901760
    %7136 = vmatpush1.msra.mxu0 %v7135
    %7137 = vmatprep.subr.mxu0 0.0
    %7138 = vmatpush2.msra.mxu0 0.0
    %7139 = vmatprep.subr.mxu0 0.0
    %7140 = vmatpush2.msra.mxu0 0.0
    %7141 = vmatprep.subr.mxu0 0.0
    %7142 = vmatpush2.msra.mxu0 0.0
    %7143 = vmatprep.subr.mxu0 0.0
    %7144 = vmatpush2.msra.mxu0 0.0
    %7145 = vmatprep.subr.mxu0 0.0
    %7146 = vmatpush2.msra.mxu0 0.0
    %7147 = vmatprep.subr.mxu0 0.0
    %7148 = vmatpush2.msra.mxu0 0.0
    %7149 = vmatprep.subr.mxu0 0.0
    %7150 = vmatpush2.msra.mxu0 0.0
    %7151 = vmatprep.subr.mxu0 0.0
    %7152 = vmatpush2.msra.mxu0 0.0
    %7153 = vmatprep.subr.mxu0 0.0
    %7154 = vmatpush2.msra.mxu0 0.0
    %7155 = vmatprep.subr.mxu0 0.0
    %7156 = vmatpush2.msra.mxu0 0.0
    %7157 = vmatprep.subr.mxu0 0.0
    %7158 = vmatpush2.msra.mxu0 0.0
    %7159 = vmatprep.subr.mxu0 0.0
    %7160 = vmatpush2.msra.mxu0 0.0
    %7161 = vmatprep.subr.mxu0 0.0
    %7162 = vmatpush2.msra.mxu0 0.0
    %7163 = vmatprep.subr.mxu0 0.0
    %7164 = vmatpush2.msra.mxu0 0.0
    %7165 = vmatprep.subr.mxu0 0.0
    %7166 = vmatpush2.msra.mxu0 0.0
    %7167 = vmatprep.subr.mxu0 0.0
    %7168 = vmatpush2.msra.mxu0 0.0
    %7169 = vmatprep.mubr.f32.mxu0 0.0
    %v7170 = vand.u32 %v6653, 4294901760
    %v7171 = vsub.f32 %v6653, %v7170
    %v7172 = vand.u32 %v7171, 4294901760
    %7173 = vmatmul.mubr.f32.gmra.mxu0 %v7172
    %v7174 = vpop.f32.mrf.mxu0
    %v7175 = vadd.f32 %v7065, %v7174
    %v7176 = vpop.f32.mrf.mxu0
    %7177 = vmatprep.mubr.f32.mxu0 0.0
    %v7178 = vand.u32 %v6654, 4294901760
    %v7179 = vsub.f32 %v6654, %v7178
    %v7180 = vand.u32 %v7179, 4294901760
    %7181 = vmatmul.mubr.f32.gmra.mxu0 %v7180
    %v7182 = vpop.f32.mrf.mxu0
    %v7183 = vadd.f32 %v7072, %v7182
    %v7184 = vpop.f32.mrf.mxu0
    %7185 = vmatprep.mubr.f32.mxu0 0.0
    %v7186 = vand.u32 %v6655, 4294901760
    %v7187 = vsub.f32 %v6655, %v7186
    %v7188 = vand.u32 %v7187, 4294901760
    %7189 = vmatmul.mubr.f32.gmra.mxu0 %v7188
    %v7190 = vpop.f32.mrf.mxu0
    %v7191 = vadd.f32 %v7079, %v7190
    %v7192 = vpop.f32.mrf.mxu0
    %7193 = vmatprep.mubr.f32.mxu0 0.0
    %v7194 = vand.u32 %v6656, 4294901760
    %v7195 = vsub.f32 %v6656, %v7194
    %v7196 = vand.u32 %v7195, 4294901760
    %7197 = vmatmul.mubr.f32.gmra.mxu0 %v7196
    %v7198 = vpop.f32.mrf.mxu0
    %v7199 = vadd.f32 %v7086, %v7198
    %v7200 = vpop.f32.mrf.mxu0
    %7201 = vdwg.mxu0
    %7202 = vmatprep.subr.mxu0 0.0
    %v7203 = vand.u32 %v6673, 4294901760
    %v7204 = vsub.f32 %v6673, %v7203
    %v7205 = vand.u32 %v7204, 4294901760
    %7206 = vmatpush1.msra.mxu0 %v7205
    %7207 = vmatprep.subr.mxu0 0.0
    %v7208 = vand.u32 %v6672, 4294901760
    %v7209 = vsub.f32 %v6672, %v7208
    %v7210 = vand.u32 %v7209, 4294901760
    %7211 = vmatpush1.msra.mxu0 %v7210
    %7212 = vmatprep.subr.mxu0 0.0
    %v7213 = vand.u32 %v6671, 4294901760
    %v7214 = vsub.f32 %v6671, %v7213
    %v7215 = vand.u32 %v7214, 4294901760
    %7216 = vmatpush1.msra.mxu0 %v7215
    %7217 = vmatprep.subr.mxu0 0.0
    %v7218 = vand.u32 %v6670, 4294901760
    %v7219 = vsub.f32 %v6670, %v7218
    %v7220 = vand.u32 %v7219, 4294901760
    %7221 = vmatpush1.msra.mxu0 %v7220
    %7222 = vmatprep.subr.mxu0 0.0
    %v7223 = vand.u32 %v6669, 4294901760
    %v7224 = vsub.f32 %v6669, %v7223
    %v7225 = vand.u32 %v7224, 4294901760
    %7226 = vmatpush1.msra.mxu0 %v7225
    %7227 = vmatprep.subr.mxu0 0.0
    %v7228 = vand.u32 %v6668, 4294901760
    %v7229 = vsub.f32 %v6668, %v7228
    %v7230 = vand.u32 %v7229, 4294901760
    %7231 = vmatpush1.msra.mxu0 %v7230
    %7232 = vmatprep.subr.mxu0 0.0
    %v7233 = vand.u32 %v6667, 4294901760
    %v7234 = vsub.f32 %v6667, %v7233
    %v7235 = vand.u32 %v7234, 4294901760
    %7236 = vmatpush1.msra.mxu0 %v7235
    %7237 = vmatprep.subr.mxu0 0.0
    %v7238 = vand.u32 %v6666, 4294901760
    %v7239 = vsub.f32 %v6666, %v7238
    %v7240 = vand.u32 %v7239, 4294901760
    %7241 = vmatpush1.msra.mxu0 %v7240
    %7242 = vmatprep.subr.mxu0 0.0
    %v7243 = vand.u32 %v6665, 4294901760
    %v7244 = vsub.f32 %v6665, %v7243
    %v7245 = vand.u32 %v7244, 4294901760
    %7246 = vmatpush1.msra.mxu0 %v7245
    %7247 = vmatprep.subr.mxu0 0.0
    %v7248 = vand.u32 %v6664, 4294901760
    %v7249 = vsub.f32 %v6664, %v7248
    %v7250 = vand.u32 %v7249, 4294901760
    %7251 = vmatpush1.msra.mxu0 %v7250
    %7252 = vmatprep.subr.mxu0 0.0
    %v7253 = vand.u32 %v6663, 4294901760
    %v7254 = vsub.f32 %v6663, %v7253
    %v7255 = vand.u32 %v7254, 4294901760
    %7256 = vmatpush1.msra.mxu0 %v7255
    %7257 = vmatprep.subr.mxu0 0.0
    %v7258 = vand.u32 %v6662, 4294901760
    %v7259 = vsub.f32 %v6662, %v7258
    %v7260 = vand.u32 %v7259, 4294901760
    %7261 = vmatpush1.msra.mxu0 %v7260
    %7262 = vmatprep.subr.mxu0 0.0
    %v7263 = vand.u32 %v6661, 4294901760
    %v7264 = vsub.f32 %v6661, %v7263
    %v7265 = vand.u32 %v7264, 4294901760
    %7266 = vmatpush1.msra.mxu0 %v7265
    %7267 = vmatprep.subr.mxu0 0.0
    %v7268 = vand.u32 %v6660, 4294901760
    %v7269 = vsub.f32 %v6660, %v7268
    %v7270 = vand.u32 %v7269, 4294901760
    %7271 = vmatpush1.msra.mxu0 %v7270
    %7272 = vmatprep.subr.mxu0 0.0
    %v7273 = vand.u32 %v6659, 4294901760
    %v7274 = vsub.f32 %v6659, %v7273
    %v7275 = vand.u32 %v7274, 4294901760
    %7276 = vmatpush1.msra.mxu0 %v7275
    %7277 = vmatprep.subr.mxu0 0.0
    %v7278 = vand.u32 %v6658, 4294901760
    %v7279 = vsub.f32 %v6658, %v7278
    %v7280 = vand.u32 %v7279, 4294901760
    %7281 = vmatpush1.msra.mxu0 %v7280
    %7282 = vmatprep.subr.mxu0 0.0
    %7283 = vmatpush2.msra.mxu0 0.0
    %7284 = vmatprep.subr.mxu0 0.0
    %7285 = vmatpush2.msra.mxu0 0.0
    %7286 = vmatprep.subr.mxu0 0.0
    %7287 = vmatpush2.msra.mxu0 0.0
    %7288 = vmatprep.subr.mxu0 0.0
    %7289 = vmatpush2.msra.mxu0 0.0
    %7290 = vmatprep.subr.mxu0 0.0
    %7291 = vmatpush2.msra.mxu0 0.0
    %7292 = vmatprep.subr.mxu0 0.0
    %7293 = vmatpush2.msra.mxu0 0.0
    %7294 = vmatprep.subr.mxu0 0.0
    %7295 = vmatpush2.msra.mxu0 0.0
    %7296 = vmatprep.subr.mxu0 0.0
    %7297 = vmatpush2.msra.mxu0 0.0
    %7298 = vmatprep.subr.mxu0 0.0
    %7299 = vmatpush2.msra.mxu0 0.0
    %7300 = vmatprep.subr.mxu0 0.0
    %7301 = vmatpush2.msra.mxu0 0.0
    %7302 = vmatprep.subr.mxu0 0.0
    %7303 = vmatpush2.msra.mxu0 0.0
    %7304 = vmatprep.subr.mxu0 0.0
    %7305 = vmatpush2.msra.mxu0 0.0
    %7306 = vmatprep.subr.mxu0 0.0
    %7307 = vmatpush2.msra.mxu0 0.0
    %7308 = vmatprep.subr.mxu0 0.0
    %7309 = vmatpush2.msra.mxu0 0.0
    %7310 = vmatprep.subr.mxu0 0.0
    %7311 = vmatpush2.msra.mxu0 0.0
    %7312 = vmatprep.subr.mxu0 0.0
    %7313 = vmatpush2.msra.mxu0 0.0
    %7314 = vmatprep.mubr.f32.mxu0 0.0
    %v7315 = vand.u32 %v6653, 4294901760
    %7316 = vmatmul.mubr.f32.gmra.mxu0 %v7315
    %v7317 = vpop.f32.mrf.mxu0
    %v7318 = vadd.f32 %v7175, %v7317
    %v7319 = vpop.f32.mrf.mxu0
    %7320 = vmatprep.mubr.f32.mxu0 0.0
    %v7321 = vand.u32 %v6654, 4294901760
    %7322 = vmatmul.mubr.f32.gmra.mxu0 %v7321
    %v7323 = vpop.f32.mrf.mxu0
    %v7324 = vadd.f32 %v7183, %v7323
    %v7325 = vpop.f32.mrf.mxu0
    %7326 = vmatprep.mubr.f32.mxu0 0.0
    %v7327 = vand.u32 %v6655, 4294901760
    %7328 = vmatmul.mubr.f32.gmra.mxu0 %v7327
    %v7329 = vpop.f32.mrf.mxu0
    %v7330 = vadd.f32 %v7191, %v7329
    %v7331 = vpop.f32.mrf.mxu0
    %7332 = vmatprep.mubr.f32.mxu0 0.0
    %v7333 = vand.u32 %v6656, 4294901760
    %7334 = vmatmul.mubr.f32.gmra.mxu0 %v7333
    %v7335 = vpop.f32.mrf.mxu0
    %v7336 = vadd.f32 %v7199, %v7335
    %v7337 = vpop.f32.mrf.mxu0
    %7338 = vdwg.mxu0
    %7339 = vmatprep.subr.mxu0 0.0
    %v7340 = vand.u32 %v6673, 4294901760
    %7341 = vmatpush1.msra.mxu0 %v7340
    %7342 = vmatprep.subr.mxu0 0.0
    %v7343 = vand.u32 %v6672, 4294901760
    %7344 = vmatpush1.msra.mxu0 %v7343
    %7345 = vmatprep.subr.mxu0 0.0
    %v7346 = vand.u32 %v6671, 4294901760
    %7347 = vmatpush1.msra.mxu0 %v7346
    %7348 = vmatprep.subr.mxu0 0.0
    %v7349 = vand.u32 %v6670, 4294901760
    %7350 = vmatpush1.msra.mxu0 %v7349
    %7351 = vmatprep.subr.mxu0 0.0
    %v7352 = vand.u32 %v6669, 4294901760
    %7353 = vmatpush1.msra.mxu0 %v7352
    %7354 = vmatprep.subr.mxu0 0.0
    %v7355 = vand.u32 %v6668, 4294901760
    %7356 = vmatpush1.msra.mxu0 %v7355
    %7357 = vmatprep.subr.mxu0 0.0
    %v7358 = vand.u32 %v6667, 4294901760
    %7359 = vmatpush1.msra.mxu0 %v7358
    %7360 = vmatprep.subr.mxu0 0.0
    %v7361 = vand.u32 %v6666, 4294901760
    %7362 = vmatpush1.msra.mxu0 %v7361
    %7363 = vmatprep.subr.mxu0 0.0
    %v7364 = vand.u32 %v6665, 4294901760
    %7365 = vmatpush1.msra.mxu0 %v7364
    %7366 = vmatprep.subr.mxu0 0.0
    %v7367 = vand.u32 %v6664, 4294901760
    %7368 = vmatpush1.msra.mxu0 %v7367
    %7369 = vmatprep.subr.mxu0 0.0
    %v7370 = vand.u32 %v6663, 4294901760
    %7371 = vmatpush1.msra.mxu0 %v7370
    %7372 = vmatprep.subr.mxu0 0.0
    %v7373 = vand.u32 %v6662, 4294901760
    %7374 = vmatpush1.msra.mxu0 %v7373
    %7375 = vmatprep.subr.mxu0 0.0
    %v7376 = vand.u32 %v6661, 4294901760
    %7377 = vmatpush1.msra.mxu0 %v7376
    %7378 = vmatprep.subr.mxu0 0.0
    %v7379 = vand.u32 %v6660, 4294901760
    %7380 = vmatpush1.msra.mxu0 %v7379
    %7381 = vmatprep.subr.mxu0 0.0
    %v7382 = vand.u32 %v6659, 4294901760
    %7383 = vmatpush1.msra.mxu0 %v7382
    %7384 = vmatprep.subr.mxu0 0.0
    %v7385 = vand.u32 %v6658, 4294901760
    %7386 = vmatpush1.msra.mxu0 %v7385
    %7387 = vmatprep.subr.mxu0 0.0
    %7388 = vmatpush2.msra.mxu0 0.0
    %7389 = vmatprep.subr.mxu0 0.0
    %7390 = vmatpush2.msra.mxu0 0.0
    %7391 = vmatprep.subr.mxu0 0.0
    %7392 = vmatpush2.msra.mxu0 0.0
    %7393 = vmatprep.subr.mxu0 0.0
    %7394 = vmatpush2.msra.mxu0 0.0
    %7395 = vmatprep.subr.mxu0 0.0
    %7396 = vmatpush2.msra.mxu0 0.0
    %7397 = vmatprep.subr.mxu0 0.0
    %7398 = vmatpush2.msra.mxu0 0.0
    %7399 = vmatprep.subr.mxu0 0.0
    %7400 = vmatpush2.msra.mxu0 0.0
    %7401 = vmatprep.subr.mxu0 0.0
    %7402 = vmatpush2.msra.mxu0 0.0
    %7403 = vmatprep.subr.mxu0 0.0
    %7404 = vmatpush2.msra.mxu0 0.0
    %7405 = vmatprep.subr.mxu0 0.0
    %7406 = vmatpush2.msra.mxu0 0.0
    %7407 = vmatprep.subr.mxu0 0.0
    %7408 = vmatpush2.msra.mxu0 0.0
    %7409 = vmatprep.subr.mxu0 0.0
    %7410 = vmatpush2.msra.mxu0 0.0
    %7411 = vmatprep.subr.mxu0 0.0
    %7412 = vmatpush2.msra.mxu0 0.0
    %7413 = vmatprep.subr.mxu0 0.0
    %7414 = vmatpush2.msra.mxu0 0.0
    %7415 = vmatprep.subr.mxu0 0.0
    %7416 = vmatpush2.msra.mxu0 0.0
    %7417 = vmatprep.subr.mxu0 0.0
    %7418 = vmatpush2.msra.mxu0 0.0
    %7419 = vmatprep.mubr.f32.mxu0 0.0
    %v7420 = vand.u32 %v6653, 4294901760
    %7421 = vmatmul.mubr.f32.gmra.mxu0 %v7420
    %v7422 = vpop.f32.mrf.mxu0
    %v7423 = vadd.f32 %v7318, %v7422
    %v7424 = vpop.f32.mrf.mxu0
    %7425 = vmatprep.mubr.f32.mxu0 0.0
    %v7426 = vand.u32 %v6654, 4294901760
    %7427 = vmatmul.mubr.f32.gmra.mxu0 %v7426
    %v7428 = vpop.f32.mrf.mxu0
    %v7429 = vadd.f32 %v7324, %v7428
    %v7430 = vpop.f32.mrf.mxu0
    %7431 = vmatprep.mubr.f32.mxu0 0.0
    %v7432 = vand.u32 %v6655, 4294901760
    %7433 = vmatmul.mubr.f32.gmra.mxu0 %v7432
    %v7434 = vpop.f32.mrf.mxu0
    %v7435 = vadd.f32 %v7330, %v7434
    %v7436 = vpop.f32.mrf.mxu0
    %7437 = vmatprep.mubr.f32.mxu0 0.0
    %v7438 = vand.u32 %v6656, 4294901760
    %7439 = vmatmul.mubr.f32.gmra.mxu0 %v7438
    %v7440 = vpop.f32.mrf.mxu0
    %v7441 = vadd.f32 %v7336, %v7440
    %v7442 = vpop.f32.mrf.mxu0
    %7443 = vdwg.mxu0
    %v7444 = vadd.f32 %v7423, %v7429
    %v7445 = vrot.slane %v7444, 4
    %v7446 = vadd.f32 %v7444, %v7445
    %v7447 = vrot.slane %v7446, 2
    %v7448 = vadd.f32 %v7446, %v7447
    %v7449 = vrot.slane %v7448, 1
    %v7450 = vadd.f32 %v7448, %v7449
    %v7451 = vadd.f32 %v7435, %v7441
    %v7452 = vrot.slane %v7451, 4
    %v7453 = vadd.f32 %v7451, %v7452
    %v7454 = vrot.slane %v7453, 2
    %v7455 = vadd.f32 %v7453, %v7454
    %v7456 = vrot.slane %v7455, 1
    %v7457 = vadd.f32 %v7455, %v7456
    %v7458 = vmul.f32 %v7450, %v1502
    %v7459 = vmul.f32 %v7457, %v1502
    %v7460 = vsub.f32 %v7423, %v7458
    %v7461 = vsub.f32 %v7429, %v7458
    %v7462 = vsub.f32 %v7435, %v7459
    %v7463 = vsub.f32 %v7441, %v7459
    %v7464 = vmul.f32 %v7460, %v7460
    %v7465 = vmul.f32 %v7461, %v7461
    %v7466 = vmul.f32 %v7462, %v7462
    %v7467 = vmul.f32 %v7463, %v7463
    %v7468 = vadd.f32 %v7464, %v7465
    %v7469 = vrot.slane %v7468, 4
    %v7470 = vadd.f32 %v7468, %v7469
    %v7471 = vrot.slane %v7470, 2
    %v7472 = vadd.f32 %v7470, %v7471
    %v7473 = vrot.slane %v7472, 1
    %v7474 = vadd.f32 %v7472, %v7473
    %v7475 = vadd.f32 %v7466, %v7467
    %v7476 = vrot.slane %v7475, 4
    %v7477 = vadd.f32 %v7475, %v7476
    %v7478 = vrot.slane %v7477, 2
    %v7479 = vadd.f32 %v7477, %v7478
    %v7480 = vrot.slane %v7479, 1
    %v7481 = vadd.f32 %v7479, %v7480
    %v7482 = vmul.f32 %v7474, %v1502
    %v7483 = vmul.f32 %v7481, %v1502
    %v7484 = vadd.f32 %v7482, 1e-05
    %v7485 = vadd.f32 %v7483, 1e-05
    %v7486 = vrsqrt.pop %v7484
    %v7487 = vrsqrt.pop %v7485
    %v7488 = vmul.f32 %v7482, %v7486
    %v7489 = vmul.f32 %v7483, %v7487
    %v7490 = vmul.f32 %v7488, %v7486
    %v7491 = vmul.f32 %v7489, %v7487
    %v7492 = vadd.f32 %v7490, %v7491
    %v7493 = vmul.f32 %v7492, %v1538
    %v7494 = vadd.f32 %v7493, 1e-05
    %v7495 = vrsqrt.pop %v7494
    %v7496 = vmul.f32 %v7486, %v7495
    %v7497 = vmul.f32 %v7487, %v7495
    %v7498 = vmul.f32 %v7460, %v7496
    %v7499 = vmul.f32 %v7461, %v7496
    %v7500 = vmul.f32 %v7462, %v7497
    %v7501 = vmul.f32 %v7463, %v7497
    %v7502 = vmax.f32 %v7498, 0.0
    %v7503 = vmax.f32 %v7499, 0.0
    %v7504 = vmax.f32 %v7500, 0.0
    %v7505 = vmax.f32 %v7501, 0.0
    %v7506 = vadd.f32 %v7502, %v5804
    %v7507 = vadd.f32 %v7503, %v5805
    %v7508 = vadd.f32 %v7504, %v5806
    %v7509 = vadd.f32 %v7505, %v5807
    %s7510 = scalar_lea.vmem [#allocation8], 512
    %v7511 = vld [vmem:[%s7510] sm:$0xff]
    %v7512 = vld [vmem:[%s7510 + $0x8] sm:$0xff]
    %v7513 = vld [vmem:[%s7510 + $0x10] sm:$0xff]
    %v7514 = vld [vmem:[%s7510 + $0x18] sm:$0xff]
    %v7515 = vld [vmem:[%s7510 + $0x20] sm:$0xff]
    %v7516 = vld [vmem:[%s7510 + $0x28] sm:$0xff]
    %v7517 = vld [vmem:[%s7510 + $0x30] sm:$0xff]
    %v7518 = vld [vmem:[%s7510 + $0x38] sm:$0xff]
    %v7519 = vld [vmem:[%s7510 + $0x40] sm:$0xff]
    %v7520 = vld [vmem:[%s7510 + $0x48] sm:$0xff]
    %v7521 = vld [vmem:[%s7510 + $0x50] sm:$0xff]
    %v7522 = vld [vmem:[%s7510 + $0x58] sm:$0xff]
    %v7523 = vld [vmem:[%s7510 + $0x60] sm:$0xff]
    %v7524 = vld [vmem:[%s7510 + $0x68] sm:$0xff]
    %v7525 = vld [vmem:[%s7510 + $0x70] sm:$0xff]
    %v7526 = vld [vmem:[%s7510 + $0x78] sm:$0xff]
    %7527 = vmatprep.subr.mxu0 0.0
    %v7528 = vand.u32 %v7526, 4294901760
    %7529 = vmatpush1.msra.mxu0 %v7528
    %7530 = vmatprep.subr.mxu0 0.0
    %v7531 = vand.u32 %v7525, 4294901760
    %7532 = vmatpush1.msra.mxu0 %v7531
    %7533 = vmatprep.subr.mxu0 0.0
    %v7534 = vand.u32 %v7524, 4294901760
    %7535 = vmatpush1.msra.mxu0 %v7534
    %7536 = vmatprep.subr.mxu0 0.0
    %v7537 = vand.u32 %v7523, 4294901760
    %7538 = vmatpush1.msra.mxu0 %v7537
    %7539 = vmatprep.subr.mxu0 0.0
    %v7540 = vand.u32 %v7522, 4294901760
    %7541 = vmatpush1.msra.mxu0 %v7540
    %7542 = vmatprep.subr.mxu0 0.0
    %v7543 = vand.u32 %v7521, 4294901760
    %7544 = vmatpush1.msra.mxu0 %v7543
    %7545 = vmatprep.subr.mxu0 0.0
    %v7546 = vand.u32 %v7520, 4294901760
    %7547 = vmatpush1.msra.mxu0 %v7546
    %7548 = vmatprep.subr.mxu0 0.0
    %v7549 = vand.u32 %v7519, 4294901760
    %7550 = vmatpush1.msra.mxu0 %v7549
    %7551 = vmatprep.subr.mxu0 0.0
    %v7552 = vand.u32 %v7518, 4294901760
    %7553 = vmatpush1.msra.mxu0 %v7552
    %7554 = vmatprep.subr.mxu0 0.0
    %v7555 = vand.u32 %v7517, 4294901760
    %7556 = vmatpush1.msra.mxu0 %v7555
    %7557 = vmatprep.subr.mxu0 0.0
    %v7558 = vand.u32 %v7516, 4294901760
    %7559 = vmatpush1.msra.mxu0 %v7558
    %7560 = vmatprep.subr.mxu0 0.0
    %v7561 = vand.u32 %v7515, 4294901760
    %7562 = vmatpush1.msra.mxu0 %v7561
    %7563 = vmatprep.subr.mxu0 0.0
    %v7564 = vand.u32 %v7514, 4294901760
    %7565 = vmatpush1.msra.mxu0 %v7564
    %7566 = vmatprep.subr.mxu0 0.0
    %v7567 = vand.u32 %v7513, 4294901760
    %7568 = vmatpush1.msra.mxu0 %v7567
    %7569 = vmatprep.subr.mxu0 0.0
    %v7570 = vand.u32 %v7512, 4294901760
    %7571 = vmatpush1.msra.mxu0 %v7570
    %7572 = vmatprep.subr.mxu0 0.0
    %v7573 = vand.u32 %v7511, 4294901760
    %7574 = vmatpush1.msra.mxu0 %v7573
    %7575 = vmatprep.subr.mxu0 0.0
    %7576 = vmatpush2.msra.mxu0 0.0
    %7577 = vmatprep.subr.mxu0 0.0
    %7578 = vmatpush2.msra.mxu0 0.0
    %7579 = vmatprep.subr.mxu0 0.0
    %7580 = vmatpush2.msra.mxu0 0.0
    %7581 = vmatprep.subr.mxu0 0.0
    %7582 = vmatpush2.msra.mxu0 0.0
    %7583 = vmatprep.subr.mxu0 0.0
    %7584 = vmatpush2.msra.mxu0 0.0
    %7585 = vmatprep.subr.mxu0 0.0
    %7586 = vmatpush2.msra.mxu0 0.0
    %7587 = vmatprep.subr.mxu0 0.0
    %7588 = vmatpush2.msra.mxu0 0.0
    %7589 = vmatprep.subr.mxu0 0.0
    %7590 = vmatpush2.msra.mxu0 0.0
    %7591 = vmatprep.subr.mxu0 0.0
    %7592 = vmatpush2.msra.mxu0 0.0
    %7593 = vmatprep.subr.mxu0 0.0
    %7594 = vmatpush2.msra.mxu0 0.0
    %7595 = vmatprep.subr.mxu0 0.0
    %7596 = vmatpush2.msra.mxu0 0.0
    %7597 = vmatprep.subr.mxu0 0.0
    %7598 = vmatpush2.msra.mxu0 0.0
    %7599 = vmatprep.subr.mxu0 0.0
    %7600 = vmatpush2.msra.mxu0 0.0
    %7601 = vmatprep.subr.mxu0 0.0
    %7602 = vmatpush2.msra.mxu0 0.0
    %7603 = vmatprep.subr.mxu0 0.0
    %7604 = vmatpush2.msra.mxu0 0.0
    %7605 = vmatprep.subr.mxu0 0.0
    %7606 = vmatpush2.msra.mxu0 0.0
    %7607 = vmatprep.mubr.f32.mxu0 0.0
    %v7608 = vand.u32 %v7506, 4294901760
    %v7609 = vsub.f32 %v7506, %v7608
    %v7610 = vand.u32 %v7609, 4294901760
    %v7611 = vsub.f32 %v7609, %v7610
    %v7612 = vand.u32 %v7611, 4294901760
    %7613 = vmatmul.mubr.f32.gmra.mxu0 %v7612
    %v7614 = vpop.f32.mrf.mxu0
    %v7615 = vadd.f32 0.0, %v7614
    %v7616 = vpop.f32.mrf.mxu0
    %7617 = vmatprep.mubr.f32.mxu0 0.0
    %v7618 = vand.u32 %v7507, 4294901760
    %v7619 = vsub.f32 %v7507, %v7618
    %v7620 = vand.u32 %v7619, 4294901760
    %v7621 = vsub.f32 %v7619, %v7620
    %v7622 = vand.u32 %v7621, 4294901760
    %7623 = vmatmul.mubr.f32.gmra.mxu0 %v7622
    %v7624 = vpop.f32.mrf.mxu0
    %v7625 = vadd.f32 0.0, %v7624
    %v7626 = vpop.f32.mrf.mxu0
    %7627 = vmatprep.mubr.f32.mxu0 0.0
    %v7628 = vand.u32 %v7508, 4294901760
    %v7629 = vsub.f32 %v7508, %v7628
    %v7630 = vand.u32 %v7629, 4294901760
    %v7631 = vsub.f32 %v7629, %v7630
    %v7632 = vand.u32 %v7631, 4294901760
    %7633 = vmatmul.mubr.f32.gmra.mxu0 %v7632
    %v7634 = vpop.f32.mrf.mxu0
    %v7635 = vadd.f32 0.0, %v7634
    %v7636 = vpop.f32.mrf.mxu0
    %7637 = vmatprep.mubr.f32.mxu0 0.0
    %v7638 = vand.u32 %v7509, 4294901760
    %v7639 = vsub.f32 %v7509, %v7638
    %v7640 = vand.u32 %v7639, 4294901760
    %v7641 = vsub.f32 %v7639, %v7640
    %v7642 = vand.u32 %v7641, 4294901760
    %7643 = vmatmul.mubr.f32.gmra.mxu0 %v7642
    %v7644 = vpop.f32.mrf.mxu0
    %v7645 = vadd.f32 0.0, %v7644
    %v7646 = vpop.f32.mrf.mxu0
    %7647 = vdwg.mxu0
    %7648 = vmatprep.subr.mxu0 0.0
    %v7649 = vand.u32 %v7526, 4294901760
    %v7650 = vsub.f32 %v7526, %v7649
    %v7651 = vand.u32 %v7650, 4294901760
    %v7652 = vsub.f32 %v7650, %v7651
    %v7653 = vand.u32 %v7652, 4294901760
    %7654 = vmatpush1.msra.mxu0 %v7653
    %7655 = vmatprep.subr.mxu0 0.0
    %v7656 = vand.u32 %v7525, 4294901760
    %v7657 = vsub.f32 %v7525, %v7656
    %v7658 = vand.u32 %v7657, 4294901760
    %v7659 = vsub.f32 %v7657, %v7658
    %v7660 = vand.u32 %v7659, 4294901760
    %7661 = vmatpush1.msra.mxu0 %v7660
    %7662 = vmatprep.subr.mxu0 0.0
    %v7663 = vand.u32 %v7524, 4294901760
    %v7664 = vsub.f32 %v7524, %v7663
    %v7665 = vand.u32 %v7664, 4294901760
    %v7666 = vsub.f32 %v7664, %v7665
    %v7667 = vand.u32 %v7666, 4294901760
    %7668 = vmatpush1.msra.mxu0 %v7667
    %7669 = vmatprep.subr.mxu0 0.0
    %v7670 = vand.u32 %v7523, 4294901760
    %v7671 = vsub.f32 %v7523, %v7670
    %v7672 = vand.u32 %v7671, 4294901760
    %v7673 = vsub.f32 %v7671, %v7672
    %v7674 = vand.u32 %v7673, 4294901760
    %7675 = vmatpush1.msra.mxu0 %v7674
    %7676 = vmatprep.subr.mxu0 0.0
    %v7677 = vand.u32 %v7522, 4294901760
    %v7678 = vsub.f32 %v7522, %v7677
    %v7679 = vand.u32 %v7678, 4294901760
    %v7680 = vsub.f32 %v7678, %v7679
    %v7681 = vand.u32 %v7680, 4294901760
    %7682 = vmatpush1.msra.mxu0 %v7681
    %7683 = vmatprep.subr.mxu0 0.0
    %v7684 = vand.u32 %v7521, 4294901760
    %v7685 = vsub.f32 %v7521, %v7684
    %v7686 = vand.u32 %v7685, 4294901760
    %v7687 = vsub.f32 %v7685, %v7686
    %v7688 = vand.u32 %v7687, 4294901760
    %7689 = vmatpush1.msra.mxu0 %v7688
    %7690 = vmatprep.subr.mxu0 0.0
    %v7691 = vand.u32 %v7520, 4294901760
    %v7692 = vsub.f32 %v7520, %v7691
    %v7693 = vand.u32 %v7692, 4294901760
    %v7694 = vsub.f32 %v7692, %v7693
    %v7695 = vand.u32 %v7694, 4294901760
    %7696 = vmatpush1.msra.mxu0 %v7695
    %7697 = vmatprep.subr.mxu0 0.0
    %v7698 = vand.u32 %v7519, 4294901760
    %v7699 = vsub.f32 %v7519, %v7698
    %v7700 = vand.u32 %v7699, 4294901760
    %v7701 = vsub.f32 %v7699, %v7700
    %v7702 = vand.u32 %v7701, 4294901760
    %7703 = vmatpush1.msra.mxu0 %v7702
    %7704 = vmatprep.subr.mxu0 0.0
    %v7705 = vand.u32 %v7518, 4294901760
    %v7706 = vsub.f32 %v7518, %v7705
    %v7707 = vand.u32 %v7706, 4294901760
    %v7708 = vsub.f32 %v7706, %v7707
    %v7709 = vand.u32 %v7708, 4294901760
    %7710 = vmatpush1.msra.mxu0 %v7709
    %7711 = vmatprep.subr.mxu0 0.0
    %v7712 = vand.u32 %v7517, 4294901760
    %v7713 = vsub.f32 %v7517, %v7712
    %v7714 = vand.u32 %v7713, 4294901760
    %v7715 = vsub.f32 %v7713, %v7714
    %v7716 = vand.u32 %v7715, 4294901760
    %7717 = vmatpush1.msra.mxu0 %v7716
    %7718 = vmatprep.subr.mxu0 0.0
    %v7719 = vand.u32 %v7516, 4294901760
    %v7720 = vsub.f32 %v7516, %v7719
    %v7721 = vand.u32 %v7720, 4294901760
    %v7722 = vsub.f32 %v7720, %v7721
    %v7723 = vand.u32 %v7722, 4294901760
    %7724 = vmatpush1.msra.mxu0 %v7723
    %7725 = vmatprep.subr.mxu0 0.0
    %v7726 = vand.u32 %v7515, 4294901760
    %v7727 = vsub.f32 %v7515, %v7726
    %v7728 = vand.u32 %v7727, 4294901760
    %v7729 = vsub.f32 %v7727, %v7728
    %v7730 = vand.u32 %v7729, 4294901760
    %7731 = vmatpush1.msra.mxu0 %v7730
    %7732 = vmatprep.subr.mxu0 0.0
    %v7733 = vand.u32 %v7514, 4294901760
    %v7734 = vsub.f32 %v7514, %v7733
    %v7735 = vand.u32 %v7734, 4294901760
    %v7736 = vsub.f32 %v7734, %v7735
    %v7737 = vand.u32 %v7736, 4294901760
    %7738 = vmatpush1.msra.mxu0 %v7737
    %7739 = vmatprep.subr.mxu0 0.0
    %v7740 = vand.u32 %v7513, 4294901760
    %v7741 = vsub.f32 %v7513, %v7740
    %v7742 = vand.u32 %v7741, 4294901760
    %v7743 = vsub.f32 %v7741, %v7742
    %v7744 = vand.u32 %v7743, 4294901760
    %7745 = vmatpush1.msra.mxu0 %v7744
    %7746 = vmatprep.subr.mxu0 0.0
    %v7747 = vand.u32 %v7512, 4294901760
    %v7748 = vsub.f32 %v7512, %v7747
    %v7749 = vand.u32 %v7748, 4294901760
    %v7750 = vsub.f32 %v7748, %v7749
    %v7751 = vand.u32 %v7750, 4294901760
    %7752 = vmatpush1.msra.mxu0 %v7751
    %7753 = vmatprep.subr.mxu0 0.0
    %v7754 = vand.u32 %v7511, 4294901760
    %v7755 = vsub.f32 %v7511, %v7754
    %v7756 = vand.u32 %v7755, 4294901760
    %v7757 = vsub.f32 %v7755, %v7756
    %v7758 = vand.u32 %v7757, 4294901760
    %7759 = vmatpush1.msra.mxu0 %v7758
    %7760 = vmatprep.subr.mxu0 0.0
    %7761 = vmatpush2.msra.mxu0 0.0
    %7762 = vmatprep.subr.mxu0 0.0
    %7763 = vmatpush2.msra.mxu0 0.0
    %7764 = vmatprep.subr.mxu0 0.0
    %7765 = vmatpush2.msra.mxu0 0.0
    %7766 = vmatprep.subr.mxu0 0.0
    %7767 = vmatpush2.msra.mxu0 0.0
    %7768 = vmatprep.subr.mxu0 0.0
    %7769 = vmatpush2.msra.mxu0 0.0
    %7770 = vmatprep.subr.mxu0 0.0
    %7771 = vmatpush2.msra.mxu0 0.0
    %7772 = vmatprep.subr.mxu0 0.0
    %7773 = vmatpush2.msra.mxu0 0.0
    %7774 = vmatprep.subr.mxu0 0.0
    %7775 = vmatpush2.msra.mxu0 0.0
    %7776 = vmatprep.subr.mxu0 0.0
    %7777 = vmatpush2.msra.mxu0 0.0
    %7778 = vmatprep.subr.mxu0 0.0
    %7779 = vmatpush2.msra.mxu0 0.0
    %7780 = vmatprep.subr.mxu0 0.0
    %7781 = vmatpush2.msra.mxu0 0.0
    %7782 = vmatprep.subr.mxu0 0.0
    %7783 = vmatpush2.msra.mxu0 0.0
    %7784 = vmatprep.subr.mxu0 0.0
    %7785 = vmatpush2.msra.mxu0 0.0
    %7786 = vmatprep.subr.mxu0 0.0
    %7787 = vmatpush2.msra.mxu0 0.0
    %7788 = vmatprep.subr.mxu0 0.0
    %7789 = vmatpush2.msra.mxu0 0.0
    %7790 = vmatprep.subr.mxu0 0.0
    %7791 = vmatpush2.msra.mxu0 0.0
    %7792 = vmatprep.mubr.f32.mxu0 0.0
    %v7793 = vand.u32 %v7506, 4294901760
    %7794 = vmatmul.mubr.f32.gmra.mxu0 %v7793
    %v7795 = vpop.f32.mrf.mxu0
    %v7796 = vadd.f32 %v7615, %v7795
    %v7797 = vpop.f32.mrf.mxu0
    %7798 = vmatprep.mubr.f32.mxu0 0.0
    %v7799 = vand.u32 %v7507, 4294901760
    %7800 = vmatmul.mubr.f32.gmra.mxu0 %v7799
    %v7801 = vpop.f32.mrf.mxu0
    %v7802 = vadd.f32 %v7625, %v7801
    %v7803 = vpop.f32.mrf.mxu0
    %7804 = vmatprep.mubr.f32.mxu0 0.0
    %v7805 = vand.u32 %v7508, 4294901760
    %7806 = vmatmul.mubr.f32.gmra.mxu0 %v7805
    %v7807 = vpop.f32.mrf.mxu0
    %v7808 = vadd.f32 %v7635, %v7807
    %v7809 = vpop.f32.mrf.mxu0
    %7810 = vmatprep.mubr.f32.mxu0 0.0
    %v7811 = vand.u32 %v7509, 4294901760
    %7812 = vmatmul.mubr.f32.gmra.mxu0 %v7811
    %v7813 = vpop.f32.mrf.mxu0
    %v7814 = vadd.f32 %v7645, %v7813
    %v7815 = vpop.f32.mrf.mxu0
    %7816 = vdwg.mxu0
    %7817 = vmatprep.subr.mxu0 0.0
    %v7818 = vand.u32 %v7526, 4294901760
    %v7819 = vsub.f32 %v7526, %v7818
    %7820 = vmatpush1.msra.mxu0 %v7819
    %7821 = vmatprep.subr.mxu0 0.0
    %v7822 = vand.u32 %v7525, 4294901760
    %v7823 = vsub.f32 %v7525, %v7822
    %7824 = vmatpush1.msra.mxu0 %v7823
    %7825 = vmatprep.subr.mxu0 0.0
    %v7826 = vand.u32 %v7524, 4294901760
    %v7827 = vsub.f32 %v7524, %v7826
    %7828 = vmatpush1.msra.mxu0 %v7827
    %7829 = vmatprep.subr.mxu0 0.0
    %v7830 = vand.u32 %v7523, 4294901760
    %v7831 = vsub.f32 %v7523, %v7830
    %7832 = vmatpush1.msra.mxu0 %v7831
    %7833 = vmatprep.subr.mxu0 0.0
    %v7834 = vand.u32 %v7522, 4294901760
    %v7835 = vsub.f32 %v7522, %v7834
    %7836 = vmatpush1.msra.mxu0 %v7835
    %7837 = vmatprep.subr.mxu0 0.0
    %v7838 = vand.u32 %v7521, 4294901760
    %v7839 = vsub.f32 %v7521, %v7838
    %7840 = vmatpush1.msra.mxu0 %v7839
    %7841 = vmatprep.subr.mxu0 0.0
    %v7842 = vand.u32 %v7520, 4294901760
    %v7843 = vsub.f32 %v7520, %v7842
    %7844 = vmatpush1.msra.mxu0 %v7843
    %7845 = vmatprep.subr.mxu0 0.0
    %v7846 = vand.u32 %v7519, 4294901760
    %v7847 = vsub.f32 %v7519, %v7846
    %7848 = vmatpush1.msra.mxu0 %v7847
    %7849 = vmatprep.subr.mxu0 0.0
    %v7850 = vand.u32 %v7518, 4294901760
    %v7851 = vsub.f32 %v7518, %v7850
    %7852 = vmatpush1.msra.mxu0 %v7851
    %7853 = vmatprep.subr.mxu0 0.0
    %v7854 = vand.u32 %v7517, 4294901760
    %v7855 = vsub.f32 %v7517, %v7854
    %7856 = vmatpush1.msra.mxu0 %v7855
    %7857 = vmatprep.subr.mxu0 0.0
    %v7858 = vand.u32 %v7516, 4294901760
    %v7859 = vsub.f32 %v7516, %v7858
    %7860 = vmatpush1.msra.mxu0 %v7859
    %7861 = vmatprep.subr.mxu0 0.0
    %v7862 = vand.u32 %v7515, 4294901760
    %v7863 = vsub.f32 %v7515, %v7862
    %7864 = vmatpush1.msra.mxu0 %v7863
    %7865 = vmatprep.subr.mxu0 0.0
    %v7866 = vand.u32 %v7514, 4294901760
    %v7867 = vsub.f32 %v7514, %v7866
    %7868 = vmatpush1.msra.mxu0 %v7867
    %7869 = vmatprep.subr.mxu0 0.0
    %v7870 = vand.u32 %v7513, 4294901760
    %v7871 = vsub.f32 %v7513, %v7870
    %7872 = vmatpush1.msra.mxu0 %v7871
    %7873 = vmatprep.subr.mxu0 0.0
    %v7874 = vand.u32 %v7512, 4294901760
    %v7875 = vsub.f32 %v7512, %v7874
    %7876 = vmatpush1.msra.mxu0 %v7875
    %7877 = vmatprep.subr.mxu0 0.0
    %v7878 = vand.u32 %v7511, 4294901760
    %v7879 = vsub.f32 %v7511, %v7878
    %7880 = vmatpush1.msra.mxu0 %v7879
    %7881 = vmatprep.subr.mxu0 0.0
    %7882 = vmatpush2.msra.mxu0 0.0
    %7883 = vmatprep.subr.mxu0 0.0
    %7884 = vmatpush2.msra.mxu0 0.0
    %7885 = vmatprep.subr.mxu0 0.0
    %7886 = vmatpush2.msra.mxu0 0.0
    %7887 = vmatprep.subr.mxu0 0.0
    %7888 = vmatpush2.msra.mxu0 0.0
    %7889 = vmatprep.subr.mxu0 0.0
    %7890 = vmatpush2.msra.mxu0 0.0
    %7891 = vmatprep.subr.mxu0 0.0
    %7892 = vmatpush2.msra.mxu0 0.0
    %7893 = vmatprep.subr.mxu0 0.0
    %7894 = vmatpush2.msra.mxu0 0.0
    %7895 = vmatprep.subr.mxu0 0.0
    %7896 = vmatpush2.msra.mxu0 0.0
    %7897 = vmatprep.subr.mxu0 0.0
    %7898 = vmatpush2.msra.mxu0 0.0
    %7899 = vmatprep.subr.mxu0 0.0
    %7900 = vmatpush2.msra.mxu0 0.0
    %7901 = vmatprep.subr.mxu0 0.0
    %7902 = vmatpush2.msra.mxu0 0.0
    %7903 = vmatprep.subr.mxu0 0.0
    %7904 = vmatpush2.msra.mxu0 0.0
    %7905 = vmatprep.subr.mxu0 0.0
    %7906 = vmatpush2.msra.mxu0 0.0
    %7907 = vmatprep.subr.mxu0 0.0
    %7908 = vmatpush2.msra.mxu0 0.0
    %7909 = vmatprep.subr.mxu0 0.0
    %7910 = vmatpush2.msra.mxu0 0.0
    %7911 = vmatprep.subr.mxu0 0.0
    %7912 = vmatpush2.msra.mxu0 0.0
    %7913 = vmatprep.mubr.f32.mxu0 0.0
    %v7914 = vand.u32 %v7506, 4294901760
    %v7915 = vsub.f32 %v7506, %v7914
    %7916 = vmatmul.mubr.f32.gmra.mxu0 %v7915
    %v7917 = vpop.f32.mrf.mxu0
    %v7918 = vadd.f32 %v7796, %v7917
    %v7919 = vpop.f32.mrf.mxu0
    %7920 = vmatprep.mubr.f32.mxu0 0.0
    %v7921 = vand.u32 %v7507, 4294901760
    %v7922 = vsub.f32 %v7507, %v7921
    %7923 = vmatmul.mubr.f32.gmra.mxu0 %v7922
    %v7924 = vpop.f32.mrf.mxu0
    %v7925 = vadd.f32 %v7802, %v7924
    %v7926 = vpop.f32.mrf.mxu0
    %7927 = vmatprep.mubr.f32.mxu0 0.0
    %v7928 = vand.u32 %v7508, 4294901760
    %v7929 = vsub.f32 %v7508, %v7928
    %7930 = vmatmul.mubr.f32.gmra.mxu0 %v7929
    %v7931 = vpop.f32.mrf.mxu0
    %v7932 = vadd.f32 %v7808, %v7931
    %v7933 = vpop.f32.mrf.mxu0
    %7934 = vmatprep.mubr.f32.mxu0 0.0
    %v7935 = vand.u32 %v7509, 4294901760
    %v7936 = vsub.f32 %v7509, %v7935
    %7937 = vmatmul.mubr.f32.gmra.mxu0 %v7936
    %v7938 = vpop.f32.mrf.mxu0
    %v7939 = vadd.f32 %v7814, %v7938
    %v7940 = vpop.f32.mrf.mxu0
    %7941 = vdwg.mxu0
    %7942 = vmatprep.subr.mxu0 0.0
    %v7943 = vand.u32 %v7526, 4294901760
    %7944 = vmatpush1.msra.mxu0 %v7943
    %7945 = vmatprep.subr.mxu0 0.0
    %v7946 = vand.u32 %v7525, 4294901760
    %7947 = vmatpush1.msra.mxu0 %v7946
    %7948 = vmatprep.subr.mxu0 0.0
    %v7949 = vand.u32 %v7524, 4294901760
    %7950 = vmatpush1.msra.mxu0 %v7949
    %7951 = vmatprep.subr.mxu0 0.0
    %v7952 = vand.u32 %v7523, 4294901760
    %7953 = vmatpush1.msra.mxu0 %v7952
    %7954 = vmatprep.subr.mxu0 0.0
    %v7955 = vand.u32 %v7522, 4294901760
    %7956 = vmatpush1.msra.mxu0 %v7955
    %7957 = vmatprep.subr.mxu0 0.0
    %v7958 = vand.u32 %v7521, 4294901760
    %7959 = vmatpush1.msra.mxu0 %v7958
    %7960 = vmatprep.subr.mxu0 0.0
    %v7961 = vand.u32 %v7520, 4294901760
    %7962 = vmatpush1.msra.mxu0 %v7961
    %7963 = vmatprep.subr.mxu0 0.0
    %v7964 = vand.u32 %v7519, 4294901760
    %7965 = vmatpush1.msra.mxu0 %v7964
    %7966 = vmatprep.subr.mxu0 0.0
    %v7967 = vand.u32 %v7518, 4294901760
    %7968 = vmatpush1.msra.mxu0 %v7967
    %7969 = vmatprep.subr.mxu0 0.0
    %v7970 = vand.u32 %v7517, 4294901760
    %7971 = vmatpush1.msra.mxu0 %v7970
    %7972 = vmatprep.subr.mxu0 0.0
    %v7973 = vand.u32 %v7516, 4294901760
    %7974 = vmatpush1.msra.mxu0 %v7973
    %7975 = vmatprep.subr.mxu0 0.0
    %v7976 = vand.u32 %v7515, 4294901760
    %7977 = vmatpush1.msra.mxu0 %v7976
    %7978 = vmatprep.subr.mxu0 0.0
    %v7979 = vand.u32 %v7514, 4294901760
    %7980 = vmatpush1.msra.mxu0 %v7979
    %7981 = vmatprep.subr.mxu0 0.0
    %v7982 = vand.u32 %v7513, 4294901760
    %7983 = vmatpush1.msra.mxu0 %v7982
    %7984 = vmatprep.subr.mxu0 0.0
    %v7985 = vand.u32 %v7512, 4294901760
    %7986 = vmatpush1.msra.mxu0 %v7985
    %7987 = vmatprep.subr.mxu0 0.0
    %v7988 = vand.u32 %v7511, 4294901760
    %7989 = vmatpush1.msra.mxu0 %v7988
    %7990 = vmatprep.subr.mxu0 0.0
    %7991 = vmatpush2.msra.mxu0 0.0
    %7992 = vmatprep.subr.mxu0 0.0
    %7993 = vmatpush2.msra.mxu0 0.0
    %7994 = vmatprep.subr.mxu0 0.0
    %7995 = vmatpush2.msra.mxu0 0.0
    %7996 = vmatprep.subr.mxu0 0.0
    %7997 = vmatpush2.msra.mxu0 0.0
    %7998 = vmatprep.subr.mxu0 0.0
    %7999 = vmatpush2.msra.mxu0 0.0
    %8000 = vmatprep.subr.mxu0 0.0
    %8001 = vmatpush2.msra.mxu0 0.0
    %8002 = vmatprep.subr.mxu0 0.0
    %8003 = vmatpush2.msra.mxu0 0.0
    %8004 = vmatprep.subr.mxu0 0.0
    %8005 = vmatpush2.msra.mxu0 0.0
    %8006 = vmatprep.subr.mxu0 0.0
    %8007 = vmatpush2.msra.mxu0 0.0
    %8008 = vmatprep.subr.mxu0 0.0
    %8009 = vmatpush2.msra.mxu0 0.0
    %8010 = vmatprep.subr.mxu0 0.0
    %8011 = vmatpush2.msra.mxu0 0.0
    %8012 = vmatprep.subr.mxu0 0.0
    %8013 = vmatpush2.msra.mxu0 0.0
    %8014 = vmatprep.subr.mxu0 0.0
    %8015 = vmatpush2.msra.mxu0 0.0
    %8016 = vmatprep.subr.mxu0 0.0
    %8017 = vmatpush2.msra.mxu0 0.0
    %8018 = vmatprep.subr.mxu0 0.0
    %8019 = vmatpush2.msra.mxu0 0.0
    %8020 = vmatprep.subr.mxu0 0.0
    %8021 = vmatpush2.msra.mxu0 0.0
    %8022 = vmatprep.mubr.f32.mxu0 0.0
    %v8023 = vand.u32 %v7506, 4294901760
    %v8024 = vsub.f32 %v7506, %v8023
    %v8025 = vand.u32 %v8024, 4294901760
    %8026 = vmatmul.mubr.f32.gmra.mxu0 %v8025
    %v8027 = vpop.f32.mrf.mxu0
    %v8028 = vadd.f32 %v7918, %v8027
    %v8029 = vpop.f32.mrf.mxu0
    %8030 = vmatprep.mubr.f32.mxu0 0.0
    %v8031 = vand.u32 %v7507, 4294901760
    %v8032 = vsub.f32 %v7507, %v8031
    %v8033 = vand.u32 %v8032, 4294901760
    %8034 = vmatmul.mubr.f32.gmra.mxu0 %v8033
    %v8035 = vpop.f32.mrf.mxu0
    %v8036 = vadd.f32 %v7925, %v8035
    %v8037 = vpop.f32.mrf.mxu0
    %8038 = vmatprep.mubr.f32.mxu0 0.0
    %v8039 = vand.u32 %v7508, 4294901760
    %v8040 = vsub.f32 %v7508, %v8039
    %v8041 = vand.u32 %v8040, 4294901760
    %8042 = vmatmul.mubr.f32.gmra.mxu0 %v8041
    %v8043 = vpop.f32.mrf.mxu0
    %v8044 = vadd.f32 %v7932, %v8043
    %v8045 = vpop.f32.mrf.mxu0
    %8046 = vmatprep.mubr.f32.mxu0 0.0
    %v8047 = vand.u32 %v7509, 4294901760
    %v8048 = vsub.f32 %v7509, %v8047
    %v8049 = vand.u32 %v8048, 4294901760
    %8050 = vmatmul.mubr.f32.gmra.mxu0 %v8049
    %v8051 = vpop.f32.mrf.mxu0
    %v8052 = vadd.f32 %v7939, %v8051
    %v8053 = vpop.f32.mrf.mxu0
    %8054 = vdwg.mxu0
    %8055 = vmatprep.subr.mxu0 0.0
    %v8056 = vand.u32 %v7526, 4294901760
    %v8057 = vsub.f32 %v7526, %v8056
    %v8058 = vand.u32 %v8057, 4294901760
    %8059 = vmatpush1.msra.mxu0 %v8058
    %8060 = vmatprep.subr.mxu0 0.0
    %v8061 = vand.u32 %v7525, 4294901760
    %v8062 = vsub.f32 %v7525, %v8061
    %v8063 = vand.u32 %v8062, 4294901760
    %8064 = vmatpush1.msra.mxu0 %v8063
    %8065 = vmatprep.subr.mxu0 0.0
    %v8066 = vand.u32 %v7524, 4294901760
    %v8067 = vsub.f32 %v7524, %v8066
    %v8068 = vand.u32 %v8067, 4294901760
    %8069 = vmatpush1.msra.mxu0 %v8068
    %8070 = vmatprep.subr.mxu0 0.0
    %v8071 = vand.u32 %v7523, 4294901760
    %v8072 = vsub.f32 %v7523, %v8071
    %v8073 = vand.u32 %v8072, 4294901760
    %8074 = vmatpush1.msra.mxu0 %v8073
    %8075 = vmatprep.subr.mxu0 0.0
    %v8076 = vand.u32 %v7522, 4294901760
    %v8077 = vsub.f32 %v7522, %v8076
    %v8078 = vand.u32 %v8077, 4294901760
    %8079 = vmatpush1.msra.mxu0 %v8078
    %8080 = vmatprep.subr.mxu0 0.0
    %v8081 = vand.u32 %v7521, 4294901760
    %v8082 = vsub.f32 %v7521, %v8081
    %v8083 = vand.u32 %v8082, 4294901760
    %8084 = vmatpush1.msra.mxu0 %v8083
    %8085 = vmatprep.subr.mxu0 0.0
    %v8086 = vand.u32 %v7520, 4294901760
    %v8087 = vsub.f32 %v7520, %v8086
    %v8088 = vand.u32 %v8087, 4294901760
    %8089 = vmatpush1.msra.mxu0 %v8088
    %8090 = vmatprep.subr.mxu0 0.0
    %v8091 = vand.u32 %v7519, 4294901760
    %v8092 = vsub.f32 %v7519, %v8091
    %v8093 = vand.u32 %v8092, 4294901760
    %8094 = vmatpush1.msra.mxu0 %v8093
    %8095 = vmatprep.subr.mxu0 0.0
    %v8096 = vand.u32 %v7518, 4294901760
    %v8097 = vsub.f32 %v7518, %v8096
    %v8098 = vand.u32 %v8097, 4294901760
    %8099 = vmatpush1.msra.mxu0 %v8098
    %8100 = vmatprep.subr.mxu0 0.0
    %v8101 = vand.u32 %v7517, 4294901760
    %v8102 = vsub.f32 %v7517, %v8101
    %v8103 = vand.u32 %v8102, 4294901760
    %8104 = vmatpush1.msra.mxu0 %v8103
    %8105 = vmatprep.subr.mxu0 0.0
    %v8106 = vand.u32 %v7516, 4294901760
    %v8107 = vsub.f32 %v7516, %v8106
    %v8108 = vand.u32 %v8107, 4294901760
    %8109 = vmatpush1.msra.mxu0 %v8108
    %8110 = vmatprep.subr.mxu0 0.0
    %v8111 = vand.u32 %v7515, 4294901760
    %v8112 = vsub.f32 %v7515, %v8111
    %v8113 = vand.u32 %v8112, 4294901760
    %8114 = vmatpush1.msra.mxu0 %v8113
    %8115 = vmatprep.subr.mxu0 0.0
    %v8116 = vand.u32 %v7514, 4294901760
    %v8117 = vsub.f32 %v7514, %v8116
    %v8118 = vand.u32 %v8117, 4294901760
    %8119 = vmatpush1.msra.mxu0 %v8118
    %8120 = vmatprep.subr.mxu0 0.0
    %v8121 = vand.u32 %v7513, 4294901760
    %v8122 = vsub.f32 %v7513, %v8121
    %v8123 = vand.u32 %v8122, 4294901760
    %8124 = vmatpush1.msra.mxu0 %v8123
    %8125 = vmatprep.subr.mxu0 0.0
    %v8126 = vand.u32 %v7512, 4294901760
    %v8127 = vsub.f32 %v7512, %v8126
    %v8128 = vand.u32 %v8127, 4294901760
    %8129 = vmatpush1.msra.mxu0 %v8128
    %8130 = vmatprep.subr.mxu0 0.0
    %v8131 = vand.u32 %v7511, 4294901760
    %v8132 = vsub.f32 %v7511, %v8131
    %v8133 = vand.u32 %v8132, 4294901760
    %8134 = vmatpush1.msra.mxu0 %v8133
    %8135 = vmatprep.subr.mxu0 0.0
    %8136 = vmatpush2.msra.mxu0 0.0
    %8137 = vmatprep.subr.mxu0 0.0
    %8138 = vmatpush2.msra.mxu0 0.0
    %8139 = vmatprep.subr.mxu0 0.0
    %8140 = vmatpush2.msra.mxu0 0.0
    %8141 = vmatprep.subr.mxu0 0.0
    %8142 = vmatpush2.msra.mxu0 0.0
    %8143 = vmatprep.subr.mxu0 0.0
    %8144 = vmatpush2.msra.mxu0 0.0
    %8145 = vmatprep.subr.mxu0 0.0
    %8146 = vmatpush2.msra.mxu0 0.0
    %8147 = vmatprep.subr.mxu0 0.0
    %8148 = vmatpush2.msra.mxu0 0.0
    %8149 = vmatprep.subr.mxu0 0.0
    %8150 = vmatpush2.msra.mxu0 0.0
    %8151 = vmatprep.subr.mxu0 0.0
    %8152 = vmatpush2.msra.mxu0 0.0
    %8153 = vmatprep.subr.mxu0 0.0
    %8154 = vmatpush2.msra.mxu0 0.0
    %8155 = vmatprep.subr.mxu0 0.0
    %8156 = vmatpush2.msra.mxu0 0.0
    %8157 = vmatprep.subr.mxu0 0.0
    %8158 = vmatpush2.msra.mxu0 0.0
    %8159 = vmatprep.subr.mxu0 0.0
    %8160 = vmatpush2.msra.mxu0 0.0
    %8161 = vmatprep.subr.mxu0 0.0
    %8162 = vmatpush2.msra.mxu0 0.0
    %8163 = vmatprep.subr.mxu0 0.0
    %8164 = vmatpush2.msra.mxu0 0.0
    %8165 = vmatprep.subr.mxu0 0.0
    %8166 = vmatpush2.msra.mxu0 0.0
    %8167 = vmatprep.mubr.f32.mxu0 0.0
    %v8168 = vand.u32 %v7506, 4294901760
    %8169 = vmatmul.mubr.f32.gmra.mxu0 %v8168
    %v8170 = vpop.f32.mrf.mxu0
    %v8171 = vadd.f32 %v8028, %v8170
    %v8172 = vpop.f32.mrf.mxu0
    %8173 = vmatprep.mubr.f32.mxu0 0.0
    %v8174 = vand.u32 %v7507, 4294901760
    %8175 = vmatmul.mubr.f32.gmra.mxu0 %v8174
    %v8176 = vpop.f32.mrf.mxu0
    %v8177 = vadd.f32 %v8036, %v8176
    %v8178 = vpop.f32.mrf.mxu0
    %8179 = vmatprep.mubr.f32.mxu0 0.0
    %v8180 = vand.u32 %v7508, 4294901760
    %8181 = vmatmul.mubr.f32.gmra.mxu0 %v8180
    %v8182 = vpop.f32.mrf.mxu0
    %v8183 = vadd.f32 %v8044, %v8182
    %v8184 = vpop.f32.mrf.mxu0
    %8185 = vmatprep.mubr.f32.mxu0 0.0
    %v8186 = vand.u32 %v7509, 4294901760
    %8187 = vmatmul.mubr.f32.gmra.mxu0 %v8186
    %v8188 = vpop.f32.mrf.mxu0
    %v8189 = vadd.f32 %v8052, %v8188
    %v8190 = vpop.f32.mrf.mxu0
    %8191 = vdwg.mxu0
    %8192 = vmatprep.subr.mxu0 0.0
    %v8193 = vand.u32 %v7526, 4294901760
    %8194 = vmatpush1.msra.mxu0 %v8193
    %8195 = vmatprep.subr.mxu0 0.0
    %v8196 = vand.u32 %v7525, 4294901760
    %8197 = vmatpush1.msra.mxu0 %v8196
    %8198 = vmatprep.subr.mxu0 0.0
    %v8199 = vand.u32 %v7524, 4294901760
    %8200 = vmatpush1.msra.mxu0 %v8199
    %8201 = vmatprep.subr.mxu0 0.0
    %v8202 = vand.u32 %v7523, 4294901760
    %8203 = vmatpush1.msra.mxu0 %v8202
    %8204 = vmatprep.subr.mxu0 0.0
    %v8205 = vand.u32 %v7522, 4294901760
    %8206 = vmatpush1.msra.mxu0 %v8205
    %8207 = vmatprep.subr.mxu0 0.0
    %v8208 = vand.u32 %v7521, 4294901760
    %8209 = vmatpush1.msra.mxu0 %v8208
    %8210 = vmatprep.subr.mxu0 0.0
    %v8211 = vand.u32 %v7520, 4294901760
    %8212 = vmatpush1.msra.mxu0 %v8211
    %8213 = vmatprep.subr.mxu0 0.0
    %v8214 = vand.u32 %v7519, 4294901760
    %8215 = vmatpush1.msra.mxu0 %v8214
    %8216 = vmatprep.subr.mxu0 0.0
    %v8217 = vand.u32 %v7518, 4294901760
    %8218 = vmatpush1.msra.mxu0 %v8217
    %8219 = vmatprep.subr.mxu0 0.0
    %v8220 = vand.u32 %v7517, 4294901760
    %8221 = vmatpush1.msra.mxu0 %v8220
    %8222 = vmatprep.subr.mxu0 0.0
    %v8223 = vand.u32 %v7516, 4294901760
    %8224 = vmatpush1.msra.mxu0 %v8223
    %8225 = vmatprep.subr.mxu0 0.0
    %v8226 = vand.u32 %v7515, 4294901760
    %8227 = vmatpush1.msra.mxu0 %v8226
    %8228 = vmatprep.subr.mxu0 0.0
    %v8229 = vand.u32 %v7514, 4294901760
    %8230 = vmatpush1.msra.mxu0 %v8229
    %8231 = vmatprep.subr.mxu0 0.0
    %v8232 = vand.u32 %v7513, 4294901760
    %8233 = vmatpush1.msra.mxu0 %v8232
    %8234 = vmatprep.subr.mxu0 0.0
    %v8235 = vand.u32 %v7512, 4294901760
    %8236 = vmatpush1.msra.mxu0 %v8235
    %8237 = vmatprep.subr.mxu0 0.0
    %v8238 = vand.u32 %v7511, 4294901760
    %8239 = vmatpush1.msra.mxu0 %v8238
    %8240 = vmatprep.subr.mxu0 0.0
    %8241 = vmatpush2.msra.mxu0 0.0
    %8242 = vmatprep.subr.mxu0 0.0
    %8243 = vmatpush2.msra.mxu0 0.0
    %8244 = vmatprep.subr.mxu0 0.0
    %8245 = vmatpush2.msra.mxu0 0.0
    %8246 = vmatprep.subr.mxu0 0.0
    %8247 = vmatpush2.msra.mxu0 0.0
    %8248 = vmatprep.subr.mxu0 0.0
    %8249 = vmatpush2.msra.mxu0 0.0
    %8250 = vmatprep.subr.mxu0 0.0
    %8251 = vmatpush2.msra.mxu0 0.0
    %8252 = vmatprep.subr.mxu0 0.0
    %8253 = vmatpush2.msra.mxu0 0.0
    %8254 = vmatprep.subr.mxu0 0.0
    %8255 = vmatpush2.msra.mxu0 0.0
    %8256 = vmatprep.subr.mxu0 0.0
    %8257 = vmatpush2.msra.mxu0 0.0
    %8258 = vmatprep.subr.mxu0 0.0
    %8259 = vmatpush2.msra.mxu0 0.0
    %8260 = vmatprep.subr.mxu0 0.0
    %8261 = vmatpush2.msra.mxu0 0.0
    %8262 = vmatprep.subr.mxu0 0.0
    %8263 = vmatpush2.msra.mxu0 0.0
    %8264 = vmatprep.subr.mxu0 0.0
    %8265 = vmatpush2.msra.mxu0 0.0
    %8266 = vmatprep.subr.mxu0 0.0
    %8267 = vmatpush2.msra.mxu0 0.0
    %8268 = vmatprep.subr.mxu0 0.0
    %8269 = vmatpush2.msra.mxu0 0.0
    %8270 = vmatprep.subr.mxu0 0.0
    %8271 = vmatpush2.msra.mxu0 0.0
    %8272 = vmatprep.mubr.f32.mxu0 0.0
    %v8273 = vand.u32 %v7506, 4294901760
    %8274 = vmatmul.mubr.f32.gmra.mxu0 %v8273
    %v8275 = vpop.f32.mrf.mxu0
    %v8276 = vadd.f32 %v8171, %v8275
    %v8277 = vpop.f32.mrf.mxu0
    %8278 = vmatprep.mubr.f32.mxu0 0.0
    %v8279 = vand.u32 %v7507, 4294901760
    %8280 = vmatmul.mubr.f32.gmra.mxu0 %v8279
    %v8281 = vpop.f32.mrf.mxu0
    %v8282 = vadd.f32 %v8177, %v8281
    %v8283 = vpop.f32.mrf.mxu0
    %8284 = vmatprep.mubr.f32.mxu0 0.0
    %v8285 = vand.u32 %v7508, 4294901760
    %8286 = vmatmul.mubr.f32.gmra.mxu0 %v8285
    %v8287 = vpop.f32.mrf.mxu0
    %v8288 = vadd.f32 %v8183, %v8287
    %v8289 = vpop.f32.mrf.mxu0
    %8290 = vmatprep.mubr.f32.mxu0 0.0
    %v8291 = vand.u32 %v7509, 4294901760
    %8292 = vmatmul.mubr.f32.gmra.mxu0 %v8291
    %v8293 = vpop.f32.mrf.mxu0
    %v8294 = vadd.f32 %v8189, %v8293
    %v8295 = vpop.f32.mrf.mxu0
    %8296 = vdwg.mxu0
    %v8297 = vadd.f32 %v8276, %v8282
    %v8298 = vrot.slane %v8297, 4
    %v8299 = vadd.f32 %v8297, %v8298
    %v8300 = vrot.slane %v8299, 2
    %v8301 = vadd.f32 %v8299, %v8300
    %v8302 = vrot.slane %v8301, 1
    %v8303 = vadd.f32 %v8301, %v8302
    %v8304 = vadd.f32 %v8288, %v8294
    %v8305 = vrot.slane %v8304, 4
    %v8306 = vadd.f32 %v8304, %v8305
    %v8307 = vrot.slane %v8306, 2
    %v8308 = vadd.f32 %v8306, %v8307
    %v8309 = vrot.slane %v8308, 1
    %v8310 = vadd.f32 %v8308, %v8309
    %v8311 = vmul.f32 %v8303, %v1502
    %v8312 = vmul.f32 %v8310, %v1502
    %v8313 = vsub.f32 %v8276, %v8311
    %v8314 = vsub.f32 %v8282, %v8311
    %v8315 = vsub.f32 %v8288, %v8312
    %v8316 = vsub.f32 %v8294, %v8312
    %v8317 = vmul.f32 %v8313, %v8313
    %v8318 = vmul.f32 %v8314, %v8314
    %v8319 = vmul.f32 %v8315, %v8315
    %v8320 = vmul.f32 %v8316, %v8316
    %v8321 = vadd.f32 %v8317, %v8318
    %v8322 = vrot.slane %v8321, 4
    %v8323 = vadd.f32 %v8321, %v8322
    %v8324 = vrot.slane %v8323, 2
    %v8325 = vadd.f32 %v8323, %v8324
    %v8326 = vrot.slane %v8325, 1
    %v8327 = vadd.f32 %v8325, %v8326
    %v8328 = vadd.f32 %v8319, %v8320
    %v8329 = vrot.slane %v8328, 4
    %v8330 = vadd.f32 %v8328, %v8329
    %v8331 = vrot.slane %v8330, 2
    %v8332 = vadd.f32 %v8330, %v8331
    %v8333 = vrot.slane %v8332, 1
    %v8334 = vadd.f32 %v8332, %v8333
    %v8335 = vmul.f32 %v8327, %v1502
    %v8336 = vmul.f32 %v8334, %v1502
    %v8337 = vadd.f32 %v8335, 1e-05
    %v8338 = vadd.f32 %v8336, 1e-05
    %v8339 = vrsqrt.pop %v8337
    %v8340 = vrsqrt.pop %v8338
    %v8341 = vmul.f32 %v8335, %v8339
    %v8342 = vmul.f32 %v8336, %v8340
    %v8343 = vmul.f32 %v8341, %v8339
    %v8344 = vmul.f32 %v8342, %v8340
    %v8345 = vadd.f32 %v8343, %v8344
    %v8346 = vmul.f32 %v8345, %v1538
    %v8347 = vadd.f32 %v8346, 1e-05
    %v8348 = vrsqrt.pop %v8347
    %v8349 = vmul.f32 %v8339, %v8348
    %v8350 = vmul.f32 %v8340, %v8348
    %v8351 = vmul.f32 %v8313, %v8349
    %v8352 = vmul.f32 %v8314, %v8349
    %v8353 = vmul.f32 %v8315, %v8350
    %v8354 = vmul.f32 %v8316, %v8350
    %v8355 = vmax.f32 %v8351, 0.0
    %v8356 = vmax.f32 %v8352, 0.0
    %v8357 = vmax.f32 %v8353, 0.0
    %v8358 = vmax.f32 %v8354, 0.0
    %s8359 = scalar_lea.vmem [#allocation9], 512
    %v8360 = vld [vmem:[%s8359] sm:$0xff]
    %v8361 = vld [vmem:[%s8359 + $0x8] sm:$0xff]
    %v8362 = vld [vmem:[%s8359 + $0x10] sm:$0xff]
    %v8363 = vld [vmem:[%s8359 + $0x18] sm:$0xff]
    %v8364 = vld [vmem:[%s8359 + $0x20] sm:$0xff]
    %v8365 = vld [vmem:[%s8359 + $0x28] sm:$0xff]
    %v8366 = vld [vmem:[%s8359 + $0x30] sm:$0xff]
    %v8367 = vld [vmem:[%s8359 + $0x38] sm:$0xff]
    %v8368 = vld [vmem:[%s8359 + $0x40] sm:$0xff]
    %v8369 = vld [vmem:[%s8359 + $0x48] sm:$0xff]
    %v8370 = vld [vmem:[%s8359 + $0x50] sm:$0xff]
    %v8371 = vld [vmem:[%s8359 + $0x58] sm:$0xff]
    %v8372 = vld [vmem:[%s8359 + $0x60] sm:$0xff]
    %v8373 = vld [vmem:[%s8359 + $0x68] sm:$0xff]
    %v8374 = vld [vmem:[%s8359 + $0x70] sm:$0xff]
    %v8375 = vld [vmem:[%s8359 + $0x78] sm:$0xff]
    %8376 = vmatprep.subr.mxu0 0.0
    %v8377 = vand.u32 %v8375, 4294901760
    %8378 = vmatpush1.msra.mxu0 %v8377
    %8379 = vmatprep.subr.mxu0 0.0
    %v8380 = vand.u32 %v8374, 4294901760
    %8381 = vmatpush1.msra.mxu0 %v8380
    %8382 = vmatprep.subr.mxu0 0.0
    %v8383 = vand.u32 %v8373, 4294901760
    %8384 = vmatpush1.msra.mxu0 %v8383
    %8385 = vmatprep.subr.mxu0 0.0
    %v8386 = vand.u32 %v8372, 4294901760
    %8387 = vmatpush1.msra.mxu0 %v8386
    %8388 = vmatprep.subr.mxu0 0.0
    %v8389 = vand.u32 %v8371, 4294901760
    %8390 = vmatpush1.msra.mxu0 %v8389
    %8391 = vmatprep.subr.mxu0 0.0
    %v8392 = vand.u32 %v8370, 4294901760
    %8393 = vmatpush1.msra.mxu0 %v8392
    %8394 = vmatprep.subr.mxu0 0.0
    %v8395 = vand.u32 %v8369, 4294901760
    %8396 = vmatpush1.msra.mxu0 %v8395
    %8397 = vmatprep.subr.mxu0 0.0
    %v8398 = vand.u32 %v8368, 4294901760
    %8399 = vmatpush1.msra.mxu0 %v8398
    %8400 = vmatprep.subr.mxu0 0.0
    %v8401 = vand.u32 %v8367, 4294901760
    %8402 = vmatpush1.msra.mxu0 %v8401
    %8403 = vmatprep.subr.mxu0 0.0
    %v8404 = vand.u32 %v8366, 4294901760
    %8405 = vmatpush1.msra.mxu0 %v8404
    %8406 = vmatprep.subr.mxu0 0.0
    %v8407 = vand.u32 %v8365, 4294901760
    %8408 = vmatpush1.msra.mxu0 %v8407
    %8409 = vmatprep.subr.mxu0 0.0
    %v8410 = vand.u32 %v8364, 4294901760
    %8411 = vmatpush1.msra.mxu0 %v8410
    %8412 = vmatprep.subr.mxu0 0.0
    %v8413 = vand.u32 %v8363, 4294901760
    %8414 = vmatpush1.msra.mxu0 %v8413
    %8415 = vmatprep.subr.mxu0 0.0
    %v8416 = vand.u32 %v8362, 4294901760
    %8417 = vmatpush1.msra.mxu0 %v8416
    %8418 = vmatprep.subr.mxu0 0.0
    %v8419 = vand.u32 %v8361, 4294901760
    %8420 = vmatpush1.msra.mxu0 %v8419
    %8421 = vmatprep.subr.mxu0 0.0
    %v8422 = vand.u32 %v8360, 4294901760
    %8423 = vmatpush1.msra.mxu0 %v8422
    %8424 = vmatprep.subr.mxu0 0.0
    %8425 = vmatpush2.msra.mxu0 0.0
    %8426 = vmatprep.subr.mxu0 0.0
    %8427 = vmatpush2.msra.mxu0 0.0
    %8428 = vmatprep.subr.mxu0 0.0
    %8429 = vmatpush2.msra.mxu0 0.0
    %8430 = vmatprep.subr.mxu0 0.0
    %8431 = vmatpush2.msra.mxu0 0.0
    %8432 = vmatprep.subr.mxu0 0.0
    %8433 = vmatpush2.msra.mxu0 0.0
    %8434 = vmatprep.subr.mxu0 0.0
    %8435 = vmatpush2.msra.mxu0 0.0
    %8436 = vmatprep.subr.mxu0 0.0
    %8437 = vmatpush2.msra.mxu0 0.0
    %8438 = vmatprep.subr.mxu0 0.0
    %8439 = vmatpush2.msra.mxu0 0.0
    %8440 = vmatprep.subr.mxu0 0.0
    %8441 = vmatpush2.msra.mxu0 0.0
    %8442 = vmatprep.subr.mxu0 0.0
    %8443 = vmatpush2.msra.mxu0 0.0
    %8444 = vmatprep.subr.mxu0 0.0
    %8445 = vmatpush2.msra.mxu0 0.0
    %8446 = vmatprep.subr.mxu0 0.0
    %8447 = vmatpush2.msra.mxu0 0.0
    %8448 = vmatprep.subr.mxu0 0.0
    %8449 = vmatpush2.msra.mxu0 0.0
    %8450 = vmatprep.subr.mxu0 0.0
    %8451 = vmatpush2.msra.mxu0 0.0
    %8452 = vmatprep.subr.mxu0 0.0
    %8453 = vmatpush2.msra.mxu0 0.0
    %8454 = vmatprep.subr.mxu0 0.0
    %8455 = vmatpush2.msra.mxu0 0.0
    %8456 = vmatprep.mubr.f32.mxu0 0.0
    %v8457 = vand.u32 %v8355, 4294901760
    %v8458 = vsub.f32 %v8355, %v8457
    %v8459 = vand.u32 %v8458, 4294901760
    %v8460 = vsub.f32 %v8458, %v8459
    %v8461 = vand.u32 %v8460, 4294901760
    %8462 = vmatmul.mubr.f32.gmra.mxu0 %v8461
    %v8463 = vpop.f32.mrf.mxu0
    %v8464 = vadd.f32 0.0, %v8463
    %v8465 = vpop.f32.mrf.mxu0
    %8466 = vmatprep.mubr.f32.mxu0 0.0
    %v8467 = vand.u32 %v8356, 4294901760
    %v8468 = vsub.f32 %v8356, %v8467
    %v8469 = vand.u32 %v8468, 4294901760
    %v8470 = vsub.f32 %v8468, %v8469
    %v8471 = vand.u32 %v8470, 4294901760
    %8472 = vmatmul.mubr.f32.gmra.mxu0 %v8471
    %v8473 = vpop.f32.mrf.mxu0
    %v8474 = vadd.f32 0.0, %v8473
    %v8475 = vpop.f32.mrf.mxu0
    %8476 = vmatprep.mubr.f32.mxu0 0.0
    %v8477 = vand.u32 %v8357, 4294901760
    %v8478 = vsub.f32 %v8357, %v8477
    %v8479 = vand.u32 %v8478, 4294901760
    %v8480 = vsub.f32 %v8478, %v8479
    %v8481 = vand.u32 %v8480, 4294901760
    %8482 = vmatmul.mubr.f32.gmra.mxu0 %v8481
    %v8483 = vpop.f32.mrf.mxu0
    %v8484 = vadd.f32 0.0, %v8483
    %v8485 = vpop.f32.mrf.mxu0
    %8486 = vmatprep.mubr.f32.mxu0 0.0
    %v8487 = vand.u32 %v8358, 4294901760
    %v8488 = vsub.f32 %v8358, %v8487
    %v8489 = vand.u32 %v8488, 4294901760
    %v8490 = vsub.f32 %v8488, %v8489
    %v8491 = vand.u32 %v8490, 4294901760
    %8492 = vmatmul.mubr.f32.gmra.mxu0 %v8491
    %v8493 = vpop.f32.mrf.mxu0
    %v8494 = vadd.f32 0.0, %v8493
    %v8495 = vpop.f32.mrf.mxu0
    %8496 = vdwg.mxu0
    %8497 = vmatprep.subr.mxu0 0.0
    %v8498 = vand.u32 %v8375, 4294901760
    %v8499 = vsub.f32 %v8375, %v8498
    %v8500 = vand.u32 %v8499, 4294901760
    %v8501 = vsub.f32 %v8499, %v8500
    %v8502 = vand.u32 %v8501, 4294901760
    %8503 = vmatpush1.msra.mxu0 %v8502
    %8504 = vmatprep.subr.mxu0 0.0
    %v8505 = vand.u32 %v8374, 4294901760
    %v8506 = vsub.f32 %v8374, %v8505
    %v8507 = vand.u32 %v8506, 4294901760
    %v8508 = vsub.f32 %v8506, %v8507
    %v8509 = vand.u32 %v8508, 4294901760
    %8510 = vmatpush1.msra.mxu0 %v8509
    %8511 = vmatprep.subr.mxu0 0.0
    %v8512 = vand.u32 %v8373, 4294901760
    %v8513 = vsub.f32 %v8373, %v8512
    %v8514 = vand.u32 %v8513, 4294901760
    %v8515 = vsub.f32 %v8513, %v8514
    %v8516 = vand.u32 %v8515, 4294901760
    %8517 = vmatpush1.msra.mxu0 %v8516
    %8518 = vmatprep.subr.mxu0 0.0
    %v8519 = vand.u32 %v8372, 4294901760
    %v8520 = vsub.f32 %v8372, %v8519
    %v8521 = vand.u32 %v8520, 4294901760
    %v8522 = vsub.f32 %v8520, %v8521
    %v8523 = vand.u32 %v8522, 4294901760
    %8524 = vmatpush1.msra.mxu0 %v8523
    %8525 = vmatprep.subr.mxu0 0.0
    %v8526 = vand.u32 %v8371, 4294901760
    %v8527 = vsub.f32 %v8371, %v8526
    %v8528 = vand.u32 %v8527, 4294901760
    %v8529 = vsub.f32 %v8527, %v8528
    %v8530 = vand.u32 %v8529, 4294901760
    %8531 = vmatpush1.msra.mxu0 %v8530
    %8532 = vmatprep.subr.mxu0 0.0
    %v8533 = vand.u32 %v8370, 4294901760
    %v8534 = vsub.f32 %v8370, %v8533
    %v8535 = vand.u32 %v8534, 4294901760
    %v8536 = vsub.f32 %v8534, %v8535
    %v8537 = vand.u32 %v8536, 4294901760
    %8538 = vmatpush1.msra.mxu0 %v8537
    %8539 = vmatprep.subr.mxu0 0.0
    %v8540 = vand.u32 %v8369, 4294901760
    %v8541 = vsub.f32 %v8369, %v8540
    %v8542 = vand.u32 %v8541, 4294901760
    %v8543 = vsub.f32 %v8541, %v8542
    %v8544 = vand.u32 %v8543, 4294901760
    %8545 = vmatpush1.msra.mxu0 %v8544
    %8546 = vmatprep.subr.mxu0 0.0
    %v8547 = vand.u32 %v8368, 4294901760
    %v8548 = vsub.f32 %v8368, %v8547
    %v8549 = vand.u32 %v8548, 4294901760
    %v8550 = vsub.f32 %v8548, %v8549
    %v8551 = vand.u32 %v8550, 4294901760
    %8552 = vmatpush1.msra.mxu0 %v8551
    %8553 = vmatprep.subr.mxu0 0.0
    %v8554 = vand.u32 %v8367, 4294901760
    %v8555 = vsub.f32 %v8367, %v8554
    %v8556 = vand.u32 %v8555, 4294901760
    %v8557 = vsub.f32 %v8555, %v8556
    %v8558 = vand.u32 %v8557, 4294901760
    %8559 = vmatpush1.msra.mxu0 %v8558
    %8560 = vmatprep.subr.mxu0 0.0
    %v8561 = vand.u32 %v8366, 4294901760
    %v8562 = vsub.f32 %v8366, %v8561
    %v8563 = vand.u32 %v8562, 4294901760
    %v8564 = vsub.f32 %v8562, %v8563
    %v8565 = vand.u32 %v8564, 4294901760
    %8566 = vmatpush1.msra.mxu0 %v8565
    %8567 = vmatprep.subr.mxu0 0.0
    %v8568 = vand.u32 %v8365, 4294901760
    %v8569 = vsub.f32 %v8365, %v8568
    %v8570 = vand.u32 %v8569, 4294901760
    %v8571 = vsub.f32 %v8569, %v8570
    %v8572 = vand.u32 %v8571, 4294901760
    %8573 = vmatpush1.msra.mxu0 %v8572
    %8574 = vmatprep.subr.mxu0 0.0
    %v8575 = vand.u32 %v8364, 4294901760
    %v8576 = vsub.f32 %v8364, %v8575
    %v8577 = vand.u32 %v8576, 4294901760
    %v8578 = vsub.f32 %v8576, %v8577
    %v8579 = vand.u32 %v8578, 4294901760
    %8580 = vmatpush1.msra.mxu0 %v8579
    %8581 = vmatprep.subr.mxu0 0.0
    %v8582 = vand.u32 %v8363, 4294901760
    %v8583 = vsub.f32 %v8363, %v8582
    %v8584 = vand.u32 %v8583, 4294901760
    %v8585 = vsub.f32 %v8583, %v8584
    %v8586 = vand.u32 %v8585, 4294901760
    %8587 = vmatpush1.msra.mxu0 %v8586
    %8588 = vmatprep.subr.mxu0 0.0
    %v8589 = vand.u32 %v8362, 4294901760
    %v8590 = vsub.f32 %v8362, %v8589
    %v8591 = vand.u32 %v8590, 4294901760
    %v8592 = vsub.f32 %v8590, %v8591
    %v8593 = vand.u32 %v8592, 4294901760
    %8594 = vmatpush1.msra.mxu0 %v8593
    %8595 = vmatprep.subr.mxu0 0.0
    %v8596 = vand.u32 %v8361, 4294901760
    %v8597 = vsub.f32 %v8361, %v8596
    %v8598 = vand.u32 %v8597, 4294901760
    %v8599 = vsub.f32 %v8597, %v8598
    %v8600 = vand.u32 %v8599, 4294901760
    %8601 = vmatpush1.msra.mxu0 %v8600
    %8602 = vmatprep.subr.mxu0 0.0
    %v8603 = vand.u32 %v8360, 4294901760
    %v8604 = vsub.f32 %v8360, %v8603
    %v8605 = vand.u32 %v8604, 4294901760
    %v8606 = vsub.f32 %v8604, %v8605
    %v8607 = vand.u32 %v8606, 4294901760
    %8608 = vmatpush1.msra.mxu0 %v8607
    %8609 = vmatprep.subr.mxu0 0.0
    %8610 = vmatpush2.msra.mxu0 0.0
    %8611 = vmatprep.subr.mxu0 0.0
    %8612 = vmatpush2.msra.mxu0 0.0
    %8613 = vmatprep.subr.mxu0 0.0
    %8614 = vmatpush2.msra.mxu0 0.0
    %8615 = vmatprep.subr.mxu0 0.0
    %8616 = vmatpush2.msra.mxu0 0.0
    %8617 = vmatprep.subr.mxu0 0.0
    %8618 = vmatpush2.msra.mxu0 0.0
    %8619 = vmatprep.subr.mxu0 0.0
    %8620 = vmatpush2.msra.mxu0 0.0
    %8621 = vmatprep.subr.mxu0 0.0
    %8622 = vmatpush2.msra.mxu0 0.0
    %8623 = vmatprep.subr.mxu0 0.0
    %8624 = vmatpush2.msra.mxu0 0.0
    %8625 = vmatprep.subr.mxu0 0.0
    %8626 = vmatpush2.msra.mxu0 0.0
    %8627 = vmatprep.subr.mxu0 0.0
    %8628 = vmatpush2.msra.mxu0 0.0
    %8629 = vmatprep.subr.mxu0 0.0
    %8630 = vmatpush2.msra.mxu0 0.0
    %8631 = vmatprep.subr.mxu0 0.0
    %8632 = vmatpush2.msra.mxu0 0.0
    %8633 = vmatprep.subr.mxu0 0.0
    %8634 = vmatpush2.msra.mxu0 0.0
    %8635 = vmatprep.subr.mxu0 0.0
    %8636 = vmatpush2.msra.mxu0 0.0
    %8637 = vmatprep.subr.mxu0 0.0
    %8638 = vmatpush2.msra.mxu0 0.0
    %8639 = vmatprep.subr.mxu0 0.0
    %8640 = vmatpush2.msra.mxu0 0.0
    %8641 = vmatprep.mubr.f32.mxu0 0.0
    %v8642 = vand.u32 %v8355, 4294901760
    %8643 = vmatmul.mubr.f32.gmra.mxu0 %v8642
    %v8644 = vpop.f32.mrf.mxu0
    %v8645 = vadd.f32 %v8464, %v8644
    %v8646 = vpop.f32.mrf.mxu0
    %8647 = vmatprep.mubr.f32.mxu0 0.0
    %v8648 = vand.u32 %v8356, 4294901760
    %8649 = vmatmul.mubr.f32.gmra.mxu0 %v8648
    %v8650 = vpop.f32.mrf.mxu0
    %v8651 = vadd.f32 %v8474, %v8650
    %v8652 = vpop.f32.mrf.mxu0
    %8653 = vmatprep.mubr.f32.mxu0 0.0
    %v8654 = vand.u32 %v8357, 4294901760
    %8655 = vmatmul.mubr.f32.gmra.mxu0 %v8654
    %v8656 = vpop.f32.mrf.mxu0
    %v8657 = vadd.f32 %v8484, %v8656
    %v8658 = vpop.f32.mrf.mxu0
    %8659 = vmatprep.mubr.f32.mxu0 0.0
    %v8660 = vand.u32 %v8358, 4294901760
    %8661 = vmatmul.mubr.f32.gmra.mxu0 %v8660
    %v8662 = vpop.f32.mrf.mxu0
    %v8663 = vadd.f32 %v8494, %v8662
    %v8664 = vpop.f32.mrf.mxu0
    %8665 = vdwg.mxu0
    %8666 = vmatprep.subr.mxu0 0.0
    %v8667 = vand.u32 %v8375, 4294901760
    %v8668 = vsub.f32 %v8375, %v8667
    %8669 = vmatpush1.msra.mxu0 %v8668
    %8670 = vmatprep.subr.mxu0 0.0
    %v8671 = vand.u32 %v8374, 4294901760
    %v8672 = vsub.f32 %v8374, %v8671
    %8673 = vmatpush1.msra.mxu0 %v8672
    %8674 = vmatprep.subr.mxu0 0.0
    %v8675 = vand.u32 %v8373, 4294901760
    %v8676 = vsub.f32 %v8373, %v8675
    %8677 = vmatpush1.msra.mxu0 %v8676
    %8678 = vmatprep.subr.mxu0 0.0
    %v8679 = vand.u32 %v8372, 4294901760
    %v8680 = vsub.f32 %v8372, %v8679
    %8681 = vmatpush1.msra.mxu0 %v8680
    %8682 = vmatprep.subr.mxu0 0.0
    %v8683 = vand.u32 %v8371, 4294901760
    %v8684 = vsub.f32 %v8371, %v8683
    %8685 = vmatpush1.msra.mxu0 %v8684
    %8686 = vmatprep.subr.mxu0 0.0
    %v8687 = vand.u32 %v8370, 4294901760
    %v8688 = vsub.f32 %v8370, %v8687
    %8689 = vmatpush1.msra.mxu0 %v8688
    %8690 = vmatprep.subr.mxu0 0.0
    %v8691 = vand.u32 %v8369, 4294901760
    %v8692 = vsub.f32 %v8369, %v8691
    %8693 = vmatpush1.msra.mxu0 %v8692
    %8694 = vmatprep.subr.mxu0 0.0
    %v8695 = vand.u32 %v8368, 4294901760
    %v8696 = vsub.f32 %v8368, %v8695
    %8697 = vmatpush1.msra.mxu0 %v8696
    %8698 = vmatprep.subr.mxu0 0.0
    %v8699 = vand.u32 %v8367, 4294901760
    %v8700 = vsub.f32 %v8367, %v8699
    %8701 = vmatpush1.msra.mxu0 %v8700
    %8702 = vmatprep.subr.mxu0 0.0
    %v8703 = vand.u32 %v8366, 4294901760
    %v8704 = vsub.f32 %v8366, %v8703
    %8705 = vmatpush1.msra.mxu0 %v8704
    %8706 = vmatprep.subr.mxu0 0.0
    %v8707 = vand.u32 %v8365, 4294901760
    %v8708 = vsub.f32 %v8365, %v8707
    %8709 = vmatpush1.msra.mxu0 %v8708
    %8710 = vmatprep.subr.mxu0 0.0
    %v8711 = vand.u32 %v8364, 4294901760
    %v8712 = vsub.f32 %v8364, %v8711
    %8713 = vmatpush1.msra.mxu0 %v8712
    %8714 = vmatprep.subr.mxu0 0.0
    %v8715 = vand.u32 %v8363, 4294901760
    %v8716 = vsub.f32 %v8363, %v8715
    %8717 = vmatpush1.msra.mxu0 %v8716
    %8718 = vmatprep.subr.mxu0 0.0
    %v8719 = vand.u32 %v8362, 4294901760
    %v8720 = vsub.f32 %v8362, %v8719
    %8721 = vmatpush1.msra.mxu0 %v8720
    %8722 = vmatprep.subr.mxu0 0.0
    %v8723 = vand.u32 %v8361, 4294901760
    %v8724 = vsub.f32 %v8361, %v8723
    %8725 = vmatpush1.msra.mxu0 %v8724
    %8726 = vmatprep.subr.mxu0 0.0
    %v8727 = vand.u32 %v8360, 4294901760
    %v8728 = vsub.f32 %v8360, %v8727
    %8729 = vmatpush1.msra.mxu0 %v8728
    %8730 = vmatprep.subr.mxu0 0.0
    %8731 = vmatpush2.msra.mxu0 0.0
    %8732 = vmatprep.subr.mxu0 0.0
    %8733 = vmatpush2.msra.mxu0 0.0
    %8734 = vmatprep.subr.mxu0 0.0
    %8735 = vmatpush2.msra.mxu0 0.0
    %8736 = vmatprep.subr.mxu0 0.0
    %8737 = vmatpush2.msra.mxu0 0.0
    %8738 = vmatprep.subr.mxu0 0.0
    %8739 = vmatpush2.msra.mxu0 0.0
    %8740 = vmatprep.subr.mxu0 0.0
    %8741 = vmatpush2.msra.mxu0 0.0
    %8742 = vmatprep.subr.mxu0 0.0
    %8743 = vmatpush2.msra.mxu0 0.0
    %8744 = vmatprep.subr.mxu0 0.0
    %8745 = vmatpush2.msra.mxu0 0.0
    %8746 = vmatprep.subr.mxu0 0.0
    %8747 = vmatpush2.msra.mxu0 0.0
    %8748 = vmatprep.subr.mxu0 0.0
    %8749 = vmatpush2.msra.mxu0 0.0
    %8750 = vmatprep.subr.mxu0 0.0
    %8751 = vmatpush2.msra.mxu0 0.0
    %8752 = vmatprep.subr.mxu0 0.0
    %8753 = vmatpush2.msra.mxu0 0.0
    %8754 = vmatprep.subr.mxu0 0.0
    %8755 = vmatpush2.msra.mxu0 0.0
    %8756 = vmatprep.subr.mxu0 0.0
    %8757 = vmatpush2.msra.mxu0 0.0
    %8758 = vmatprep.subr.mxu0 0.0
    %8759 = vmatpush2.msra.mxu0 0.0
    %8760 = vmatprep.subr.mxu0 0.0
    %8761 = vmatpush2.msra.mxu0 0.0
    %8762 = vmatprep.mubr.f32.mxu0 0.0
    %v8763 = vand.u32 %v8355, 4294901760
    %v8764 = vsub.f32 %v8355, %v8763
    %8765 = vmatmul.mubr.f32.gmra.mxu0 %v8764
    %v8766 = vpop.f32.mrf.mxu0
    %v8767 = vadd.f32 %v8645, %v8766
    %v8768 = vpop.f32.mrf.mxu0
    %8769 = vmatprep.mubr.f32.mxu0 0.0
    %v8770 = vand.u32 %v8356, 4294901760
    %v8771 = vsub.f32 %v8356, %v8770
    %8772 = vmatmul.mubr.f32.gmra.mxu0 %v8771
    %v8773 = vpop.f32.mrf.mxu0
    %v8774 = vadd.f32 %v8651, %v8773
    %v8775 = vpop.f32.mrf.mxu0
    %8776 = vmatprep.mubr.f32.mxu0 0.0
    %v8777 = vand.u32 %v8357, 4294901760
    %v8778 = vsub.f32 %v8357, %v8777
    %8779 = vmatmul.mubr.f32.gmra.mxu0 %v8778
    %v8780 = vpop.f32.mrf.mxu0
    %v8781 = vadd.f32 %v8657, %v8780
    %v8782 = vpop.f32.mrf.mxu0
    %8783 = vmatprep.mubr.f32.mxu0 0.0
    %v8784 = vand.u32 %v8358, 4294901760
    %v8785 = vsub.f32 %v8358, %v8784
    %8786 = vmatmul.mubr.f32.gmra.mxu0 %v8785
    %v8787 = vpop.f32.mrf.mxu0
    %v8788 = vadd.f32 %v8663, %v8787
    %v8789 = vpop.f32.mrf.mxu0
    %8790 = vdwg.mxu0
    %8791 = vmatprep.subr.mxu0 0.0
    %v8792 = vand.u32 %v8375, 4294901760
    %8793 = vmatpush1.msra.mxu0 %v8792
    %8794 = vmatprep.subr.mxu0 0.0
    %v8795 = vand.u32 %v8374, 4294901760
    %8796 = vmatpush1.msra.mxu0 %v8795
    %8797 = vmatprep.subr.mxu0 0.0
    %v8798 = vand.u32 %v8373, 4294901760
    %8799 = vmatpush1.msra.mxu0 %v8798
    %8800 = vmatprep.subr.mxu0 0.0
    %v8801 = vand.u32 %v8372, 4294901760
    %8802 = vmatpush1.msra.mxu0 %v8801
    %8803 = vmatprep.subr.mxu0 0.0
    %v8804 = vand.u32 %v8371, 4294901760
    %8805 = vmatpush1.msra.mxu0 %v8804
    %8806 = vmatprep.subr.mxu0 0.0
    %v8807 = vand.u32 %v8370, 4294901760
    %8808 = vmatpush1.msra.mxu0 %v8807
    %8809 = vmatprep.subr.mxu0 0.0
    %v8810 = vand.u32 %v8369, 4294901760
    %8811 = vmatpush1.msra.mxu0 %v8810
    %8812 = vmatprep.subr.mxu0 0.0
    %v8813 = vand.u32 %v8368, 4294901760
    %8814 = vmatpush1.msra.mxu0 %v8813
    %8815 = vmatprep.subr.mxu0 0.0
    %v8816 = vand.u32 %v8367, 4294901760
    %8817 = vmatpush1.msra.mxu0 %v8816
    %8818 = vmatprep.subr.mxu0 0.0
    %v8819 = vand.u32 %v8366, 4294901760
    %8820 = vmatpush1.msra.mxu0 %v8819
    %8821 = vmatprep.subr.mxu0 0.0
    %v8822 = vand.u32 %v8365, 4294901760
    %8823 = vmatpush1.msra.mxu0 %v8822
    %8824 = vmatprep.subr.mxu0 0.0
    %v8825 = vand.u32 %v8364, 4294901760
    %8826 = vmatpush1.msra.mxu0 %v8825
    %8827 = vmatprep.subr.mxu0 0.0
    %v8828 = vand.u32 %v8363, 4294901760
    %8829 = vmatpush1.msra.mxu0 %v8828
    %8830 = vmatprep.subr.mxu0 0.0
    %v8831 = vand.u32 %v8362, 4294901760
    %8832 = vmatpush1.msra.mxu0 %v8831
    %8833 = vmatprep.subr.mxu0 0.0
    %v8834 = vand.u32 %v8361, 4294901760
    %8835 = vmatpush1.msra.mxu0 %v8834
    %8836 = vmatprep.subr.mxu0 0.0
    %v8837 = vand.u32 %v8360, 4294901760
    %8838 = vmatpush1.msra.mxu0 %v8837
    %8839 = vmatprep.subr.mxu0 0.0
    %8840 = vmatpush2.msra.mxu0 0.0
    %8841 = vmatprep.subr.mxu0 0.0
    %8842 = vmatpush2.msra.mxu0 0.0
    %8843 = vmatprep.subr.mxu0 0.0
    %8844 = vmatpush2.msra.mxu0 0.0
    %8845 = vmatprep.subr.mxu0 0.0
    %8846 = vmatpush2.msra.mxu0 0.0
    %8847 = vmatprep.subr.mxu0 0.0
    %8848 = vmatpush2.msra.mxu0 0.0
    %8849 = vmatprep.subr.mxu0 0.0
    %8850 = vmatpush2.msra.mxu0 0.0
    %8851 = vmatprep.subr.mxu0 0.0
    %8852 = vmatpush2.msra.mxu0 0.0
    %8853 = vmatprep.subr.mxu0 0.0
    %8854 = vmatpush2.msra.mxu0 0.0
    %8855 = vmatprep.subr.mxu0 0.0
    %8856 = vmatpush2.msra.mxu0 0.0
    %8857 = vmatprep.subr.mxu0 0.0
    %8858 = vmatpush2.msra.mxu0 0.0
    %8859 = vmatprep.subr.mxu0 0.0
    %8860 = vmatpush2.msra.mxu0 0.0
    %8861 = vmatprep.subr.mxu0 0.0
    %8862 = vmatpush2.msra.mxu0 0.0
    %8863 = vmatprep.subr.mxu0 0.0
    %8864 = vmatpush2.msra.mxu0 0.0
    %8865 = vmatprep.subr.mxu0 0.0
    %8866 = vmatpush2.msra.mxu0 0.0
    %8867 = vmatprep.subr.mxu0 0.0
    %8868 = vmatpush2.msra.mxu0 0.0
    %8869 = vmatprep.subr.mxu0 0.0
    %8870 = vmatpush2.msra.mxu0 0.0
    %8871 = vmatprep.mubr.f32.mxu0 0.0
    %v8872 = vand.u32 %v8355, 4294901760
    %v8873 = vsub.f32 %v8355, %v8872
    %v8874 = vand.u32 %v8873, 4294901760
    %8875 = vmatmul.mubr.f32.gmra.mxu0 %v8874
    %v8876 = vpop.f32.mrf.mxu0
    %v8877 = vadd.f32 %v8767, %v8876
    %v8878 = vpop.f32.mrf.mxu0
    %8879 = vmatprep.mubr.f32.mxu0 0.0
    %v8880 = vand.u32 %v8356, 4294901760
    %v8881 = vsub.f32 %v8356, %v8880
    %v8882 = vand.u32 %v8881, 4294901760
    %8883 = vmatmul.mubr.f32.gmra.mxu0 %v8882
    %v8884 = vpop.f32.mrf.mxu0
    %v8885 = vadd.f32 %v8774, %v8884
    %v8886 = vpop.f32.mrf.mxu0
    %8887 = vmatprep.mubr.f32.mxu0 0.0
    %v8888 = vand.u32 %v8357, 4294901760
    %v8889 = vsub.f32 %v8357, %v8888
    %v8890 = vand.u32 %v8889, 4294901760
    %8891 = vmatmul.mubr.f32.gmra.mxu0 %v8890
    %v8892 = vpop.f32.mrf.mxu0
    %v8893 = vadd.f32 %v8781, %v8892
    %v8894 = vpop.f32.mrf.mxu0
    %8895 = vmatprep.mubr.f32.mxu0 0.0
    %v8896 = vand.u32 %v8358, 4294901760
    %v8897 = vsub.f32 %v8358, %v8896
    %v8898 = vand.u32 %v8897, 4294901760
    %8899 = vmatmul.mubr.f32.gmra.mxu0 %v8898
    %v8900 = vpop.f32.mrf.mxu0
    %v8901 = vadd.f32 %v8788, %v8900
    %v8902 = vpop.f32.mrf.mxu0
    %8903 = vdwg.mxu0
    %8904 = vmatprep.subr.mxu0 0.0
    %v8905 = vand.u32 %v8375, 4294901760
    %v8906 = vsub.f32 %v8375, %v8905
    %v8907 = vand.u32 %v8906, 4294901760
    %8908 = vmatpush1.msra.mxu0 %v8907
    %8909 = vmatprep.subr.mxu0 0.0
    %v8910 = vand.u32 %v8374, 4294901760
    %v8911 = vsub.f32 %v8374, %v8910
    %v8912 = vand.u32 %v8911, 4294901760
    %8913 = vmatpush1.msra.mxu0 %v8912
    %8914 = vmatprep.subr.mxu0 0.0
    %v8915 = vand.u32 %v8373, 4294901760
    %v8916 = vsub.f32 %v8373, %v8915
    %v8917 = vand.u32 %v8916, 4294901760
    %8918 = vmatpush1.msra.mxu0 %v8917
    %8919 = vmatprep.subr.mxu0 0.0
    %v8920 = vand.u32 %v8372, 4294901760
    %v8921 = vsub.f32 %v8372, %v8920
    %v8922 = vand.u32 %v8921, 4294901760
    %8923 = vmatpush1.msra.mxu0 %v8922
    %8924 = vmatprep.subr.mxu0 0.0
    %v8925 = vand.u32 %v8371, 4294901760
    %v8926 = vsub.f32 %v8371, %v8925
    %v8927 = vand.u32 %v8926, 4294901760
    %8928 = vmatpush1.msra.mxu0 %v8927
    %8929 = vmatprep.subr.mxu0 0.0
    %v8930 = vand.u32 %v8370, 4294901760
    %v8931 = vsub.f32 %v8370, %v8930
    %v8932 = vand.u32 %v8931, 4294901760
    %8933 = vmatpush1.msra.mxu0 %v8932
    %8934 = vmatprep.subr.mxu0 0.0
    %v8935 = vand.u32 %v8369, 4294901760
    %v8936 = vsub.f32 %v8369, %v8935
    %v8937 = vand.u32 %v8936, 4294901760
    %8938 = vmatpush1.msra.mxu0 %v8937
    %8939 = vmatprep.subr.mxu0 0.0
    %v8940 = vand.u32 %v8368, 4294901760
    %v8941 = vsub.f32 %v8368, %v8940
    %v8942 = vand.u32 %v8941, 4294901760
    %8943 = vmatpush1.msra.mxu0 %v8942
    %8944 = vmatprep.subr.mxu0 0.0
    %v8945 = vand.u32 %v8367, 4294901760
    %v8946 = vsub.f32 %v8367, %v8945
    %v8947 = vand.u32 %v8946, 4294901760
    %8948 = vmatpush1.msra.mxu0 %v8947
    %8949 = vmatprep.subr.mxu0 0.0
    %v8950 = vand.u32 %v8366, 4294901760
    %v8951 = vsub.f32 %v8366, %v8950
    %v8952 = vand.u32 %v8951, 4294901760
    %8953 = vmatpush1.msra.mxu0 %v8952
    %8954 = vmatprep.subr.mxu0 0.0
    %v8955 = vand.u32 %v8365, 4294901760
    %v8956 = vsub.f32 %v8365, %v8955
    %v8957 = vand.u32 %v8956, 4294901760
    %8958 = vmatpush1.msra.mxu0 %v8957
    %8959 = vmatprep.subr.mxu0 0.0
    %v8960 = vand.u32 %v8364, 4294901760
    %v8961 = vsub.f32 %v8364, %v8960
    %v8962 = vand.u32 %v8961, 4294901760
    %8963 = vmatpush1.msra.mxu0 %v8962
    %8964 = vmatprep.subr.mxu0 0.0
    %v8965 = vand.u32 %v8363, 4294901760
    %v8966 = vsub.f32 %v8363, %v8965
    %v8967 = vand.u32 %v8966, 4294901760
    %8968 = vmatpush1.msra.mxu0 %v8967
    %8969 = vmatprep.subr.mxu0 0.0
    %v8970 = vand.u32 %v8362, 4294901760
    %v8971 = vsub.f32 %v8362, %v8970
    %v8972 = vand.u32 %v8971, 4294901760
    %8973 = vmatpush1.msra.mxu0 %v8972
    %8974 = vmatprep.subr.mxu0 0.0
    %v8975 = vand.u32 %v8361, 4294901760
    %v8976 = vsub.f32 %v8361, %v8975
    %v8977 = vand.u32 %v8976, 4294901760
    %8978 = vmatpush1.msra.mxu0 %v8977
    %8979 = vmatprep.subr.mxu0 0.0
    %v8980 = vand.u32 %v8360, 4294901760
    %v8981 = vsub.f32 %v8360, %v8980
    %v8982 = vand.u32 %v8981, 4294901760
    %8983 = vmatpush1.msra.mxu0 %v8982
    %8984 = vmatprep.subr.mxu0 0.0
    %8985 = vmatpush2.msra.mxu0 0.0
    %8986 = vmatprep.subr.mxu0 0.0
    %8987 = vmatpush2.msra.mxu0 0.0
    %8988 = vmatprep.subr.mxu0 0.0
    %8989 = vmatpush2.msra.mxu0 0.0
    %8990 = vmatprep.subr.mxu0 0.0
    %8991 = vmatpush2.msra.mxu0 0.0
    %8992 = vmatprep.subr.mxu0 0.0
    %8993 = vmatpush2.msra.mxu0 0.0
    %8994 = vmatprep.subr.mxu0 0.0
    %8995 = vmatpush2.msra.mxu0 0.0
    %8996 = vmatprep.subr.mxu0 0.0
    %8997 = vmatpush2.msra.mxu0 0.0
    %8998 = vmatprep.subr.mxu0 0.0
    %8999 = vmatpush2.msra.mxu0 0.0
    %9000 = vmatprep.subr.mxu0 0.0
    %9001 = vmatpush2.msra.mxu0 0.0
    %9002 = vmatprep.subr.mxu0 0.0
    %9003 = vmatpush2.msra.mxu0 0.0
    %9004 = vmatprep.subr.mxu0 0.0
    %9005 = vmatpush2.msra.mxu0 0.0
    %9006 = vmatprep.subr.mxu0 0.0
    %9007 = vmatpush2.msra.mxu0 0.0
    %9008 = vmatprep.subr.mxu0 0.0
    %9009 = vmatpush2.msra.mxu0 0.0
    %9010 = vmatprep.subr.mxu0 0.0
    %9011 = vmatpush2.msra.mxu0 0.0
    %9012 = vmatprep.subr.mxu0 0.0
    %9013 = vmatpush2.msra.mxu0 0.0
    %9014 = vmatprep.subr.mxu0 0.0
    %9015 = vmatpush2.msra.mxu0 0.0
    %9016 = vmatprep.mubr.f32.mxu0 0.0
    %v9017 = vand.u32 %v8355, 4294901760
    %9018 = vmatmul.mubr.f32.gmra.mxu0 %v9017
    %v9019 = vpop.f32.mrf.mxu0
    %v9020 = vadd.f32 %v8877, %v9019
    %v9021 = vpop.f32.mrf.mxu0
    %9022 = vmatprep.mubr.f32.mxu0 0.0
    %v9023 = vand.u32 %v8356, 4294901760
    %9024 = vmatmul.mubr.f32.gmra.mxu0 %v9023
    %v9025 = vpop.f32.mrf.mxu0
    %v9026 = vadd.f32 %v8885, %v9025
    %v9027 = vpop.f32.mrf.mxu0
    %9028 = vmatprep.mubr.f32.mxu0 0.0
    %v9029 = vand.u32 %v8357, 4294901760
    %9030 = vmatmul.mubr.f32.gmra.mxu0 %v9029
    %v9031 = vpop.f32.mrf.mxu0
    %v9032 = vadd.f32 %v8893, %v9031
    %v9033 = vpop.f32.mrf.mxu0
    %9034 = vmatprep.mubr.f32.mxu0 0.0
    %v9035 = vand.u32 %v8358, 4294901760
    %9036 = vmatmul.mubr.f32.gmra.mxu0 %v9035
    %v9037 = vpop.f32.mrf.mxu0
    %v9038 = vadd.f32 %v8901, %v9037
    %v9039 = vpop.f32.mrf.mxu0
    %9040 = vdwg.mxu0
    %9041 = vmatprep.subr.mxu0 0.0
    %v9042 = vand.u32 %v8375, 4294901760
    %9043 = vmatpush1.msra.mxu0 %v9042
    %9044 = vmatprep.subr.mxu0 0.0
    %v9045 = vand.u32 %v8374, 4294901760
    %9046 = vmatpush1.msra.mxu0 %v9045
    %9047 = vmatprep.subr.mxu0 0.0
    %v9048 = vand.u32 %v8373, 4294901760
    %9049 = vmatpush1.msra.mxu0 %v9048
    %9050 = vmatprep.subr.mxu0 0.0
    %v9051 = vand.u32 %v8372, 4294901760
    %9052 = vmatpush1.msra.mxu0 %v9051
    %9053 = vmatprep.subr.mxu0 0.0
    %v9054 = vand.u32 %v8371, 4294901760
    %9055 = vmatpush1.msra.mxu0 %v9054
    %9056 = vmatprep.subr.mxu0 0.0
    %v9057 = vand.u32 %v8370, 4294901760
    %9058 = vmatpush1.msra.mxu0 %v9057
    %9059 = vmatprep.subr.mxu0 0.0
    %v9060 = vand.u32 %v8369, 4294901760
    %9061 = vmatpush1.msra.mxu0 %v9060
    %9062 = vmatprep.subr.mxu0 0.0
    %v9063 = vand.u32 %v8368, 4294901760
    %9064 = vmatpush1.msra.mxu0 %v9063
    %9065 = vmatprep.subr.mxu0 0.0
    %v9066 = vand.u32 %v8367, 4294901760
    %9067 = vmatpush1.msra.mxu0 %v9066
    %9068 = vmatprep.subr.mxu0 0.0
    %v9069 = vand.u32 %v8366, 4294901760
    %9070 = vmatpush1.msra.mxu0 %v9069
    %9071 = vmatprep.subr.mxu0 0.0
    %v9072 = vand.u32 %v8365, 4294901760
    %9073 = vmatpush1.msra.mxu0 %v9072
    %9074 = vmatprep.subr.mxu0 0.0
    %v9075 = vand.u32 %v8364, 4294901760
    %9076 = vmatpush1.msra.mxu0 %v9075
    %9077 = vmatprep.subr.mxu0 0.0
    %v9078 = vand.u32 %v8363, 4294901760
    %9079 = vmatpush1.msra.mxu0 %v9078
    %9080 = vmatprep.subr.mxu0 0.0
    %v9081 = vand.u32 %v8362, 4294901760
    %9082 = vmatpush1.msra.mxu0 %v9081
    %9083 = vmatprep.subr.mxu0 0.0
    %v9084 = vand.u32 %v8361, 4294901760
    %9085 = vmatpush1.msra.mxu0 %v9084
    %9086 = vmatprep.subr.mxu0 0.0
    %v9087 = vand.u32 %v8360, 4294901760
    %9088 = vmatpush1.msra.mxu0 %v9087
    %9089 = vmatprep.subr.mxu0 0.0
    %9090 = vmatpush2.msra.mxu0 0.0
    %9091 = vmatprep.subr.mxu0 0.0
    %9092 = vmatpush2.msra.mxu0 0.0
    %9093 = vmatprep.subr.mxu0 0.0
    %9094 = vmatpush2.msra.mxu0 0.0
    %9095 = vmatprep.subr.mxu0 0.0
    %9096 = vmatpush2.msra.mxu0 0.0
    %9097 = vmatprep.subr.mxu0 0.0
    %9098 = vmatpush2.msra.mxu0 0.0
    %9099 = vmatprep.subr.mxu0 0.0
    %9100 = vmatpush2.msra.mxu0 0.0
    %9101 = vmatprep.subr.mxu0 0.0
    %9102 = vmatpush2.msra.mxu0 0.0
    %9103 = vmatprep.subr.mxu0 0.0
    %9104 = vmatpush2.msra.mxu0 0.0
    %9105 = vmatprep.subr.mxu0 0.0
    %9106 = vmatpush2.msra.mxu0 0.0
    %9107 = vmatprep.subr.mxu0 0.0
    %9108 = vmatpush2.msra.mxu0 0.0
    %9109 = vmatprep.subr.mxu0 0.0
    %9110 = vmatpush2.msra.mxu0 0.0
    %9111 = vmatprep.subr.mxu0 0.0
    %9112 = vmatpush2.msra.mxu0 0.0
    %9113 = vmatprep.subr.mxu0 0.0
    %9114 = vmatpush2.msra.mxu0 0.0
    %9115 = vmatprep.subr.mxu0 0.0
    %9116 = vmatpush2.msra.mxu0 0.0
    %9117 = vmatprep.subr.mxu0 0.0
    %9118 = vmatpush2.msra.mxu0 0.0
    %9119 = vmatprep.subr.mxu0 0.0
    %9120 = vmatpush2.msra.mxu0 0.0
    %9121 = vmatprep.mubr.f32.mxu0 0.0
    %v9122 = vand.u32 %v8355, 4294901760
    %9123 = vmatmul.mubr.f32.gmra.mxu0 %v9122
    %v9124 = vpop.f32.mrf.mxu0
    %v9125 = vadd.f32 %v9020, %v9124
    %v9126 = vpop.f32.mrf.mxu0
    %9127 = vmatprep.mubr.f32.mxu0 0.0
    %v9128 = vand.u32 %v8356, 4294901760
    %9129 = vmatmul.mubr.f32.gmra.mxu0 %v9128
    %v9130 = vpop.f32.mrf.mxu0
    %v9131 = vadd.f32 %v9026, %v9130
    %v9132 = vpop.f32.mrf.mxu0
    %9133 = vmatprep.mubr.f32.mxu0 0.0
    %v9134 = vand.u32 %v8357, 4294901760
    %9135 = vmatmul.mubr.f32.gmra.mxu0 %v9134
    %v9136 = vpop.f32.mrf.mxu0
    %v9137 = vadd.f32 %v9032, %v9136
    %v9138 = vpop.f32.mrf.mxu0
    %9139 = vmatprep.mubr.f32.mxu0 0.0
    %v9140 = vand.u32 %v8358, 4294901760
    %9141 = vmatmul.mubr.f32.gmra.mxu0 %v9140
    %v9142 = vpop.f32.mrf.mxu0
    %v9143 = vadd.f32 %v9038, %v9142
    %v9144 = vpop.f32.mrf.mxu0
    %9145 = vdwg.mxu0
    %v9146 = vadd.f32 %v9125, %v9131
    %v9147 = vrot.slane %v9146, 4
    %v9148 = vadd.f32 %v9146, %v9147
    %v9149 = vrot.slane %v9148, 2
    %v9150 = vadd.f32 %v9148, %v9149
    %v9151 = vrot.slane %v9150, 1
    %v9152 = vadd.f32 %v9150, %v9151
    %v9153 = vadd.f32 %v9137, %v9143
    %v9154 = vrot.slane %v9153, 4
    %v9155 = vadd.f32 %v9153, %v9154
    %v9156 = vrot.slane %v9155, 2
    %v9157 = vadd.f32 %v9155, %v9156
    %v9158 = vrot.slane %v9157, 1
    %v9159 = vadd.f32 %v9157, %v9158
    %v9160 = vmul.f32 %v9152, %v1502
    %v9161 = vmul.f32 %v9159, %v1502
    %v9162 = vsub.f32 %v9125, %v9160
    %v9163 = vsub.f32 %v9131, %v9160
    %v9164 = vsub.f32 %v9137, %v9161
    %v9165 = vsub.f32 %v9143, %v9161
    %v9166 = vmul.f32 %v9162, %v9162
    %v9167 = vmul.f32 %v9163, %v9163
    %v9168 = vmul.f32 %v9164, %v9164
    %v9169 = vmul.f32 %v9165, %v9165
    %v9170 = vadd.f32 %v9166, %v9167
    %v9171 = vrot.slane %v9170, 4
    %v9172 = vadd.f32 %v9170, %v9171
    %v9173 = vrot.slane %v9172, 2
    %v9174 = vadd.f32 %v9172, %v9173
    %v9175 = vrot.slane %v9174, 1
    %v9176 = vadd.f32 %v9174, %v9175
    %v9177 = vadd.f32 %v9168, %v9169
    %v9178 = vrot.slane %v9177, 4
    %v9179 = vadd.f32 %v9177, %v9178
    %v9180 = vrot.slane %v9179, 2
    %v9181 = vadd.f32 %v9179, %v9180
    %v9182 = vrot.slane %v9181, 1
    %v9183 = vadd.f32 %v9181, %v9182
    %v9184 = vmul.f32 %v9176, %v1502
    %v9185 = vmul.f32 %v9183, %v1502
    %v9186 = vadd.f32 %v9184, 1e-05
    %v9187 = vadd.f32 %v9185, 1e-05
    %v9188 = vrsqrt.pop %v9186
    %v9189 = vrsqrt.pop %v9187
    %v9190 = vmul.f32 %v9184, %v9188
    %v9191 = vmul.f32 %v9185, %v9189
    %v9192 = vmul.f32 %v9190, %v9188
    %v9193 = vmul.f32 %v9191, %v9189
    %v9194 = vadd.f32 %v9192, %v9193
    %v9195 = vmul.f32 %v9194, %v1538
    %v9196 = vadd.f32 %v9195, 1e-05
    %v9197 = vrsqrt.pop %v9196
    %v9198 = vmul.f32 %v9188, %v9197
    %v9199 = vmul.f32 %v9189, %v9197
    %v9200 = vmul.f32 %v9162, %v9198
    %v9201 = vmul.f32 %v9163, %v9198
    %v9202 = vmul.f32 %v9164, %v9199
    %v9203 = vmul.f32 %v9165, %v9199
    %v9204 = vmax.f32 %v9200, 0.0
    %v9205 = vmax.f32 %v9201, 0.0
    %v9206 = vmax.f32 %v9202, 0.0
    %v9207 = vmax.f32 %v9203, 0.0
    %v9208 = vadd.f32 %v9204, %v7506
    %v9209 = vadd.f32 %v9205, %v7507
    %v9210 = vadd.f32 %v9206, %v7508
    %v9211 = vadd.f32 %v9207, %v7509
    %v9212 = vld [vmem:[%s5] sm:$0x1]
    %v9214 = vlaneseq
    %v9215 = vshrl.u32 %v9214, 7
    %v9216 = vsub.s32 0, %v9215
    %v9217 = vrot.slane %v9212, %v9216
    %v9219 = vmul.f32 %v9208, %v9217
    %v9220 = vmul.f32 %v9209, %v9217
    %v9221 = vmul.f32 %v9210, %v9217
    %v9222 = vmul.f32 %v9211, %v9217
    %9223 = vadd.xlane.f32.xlu0 %v9219
    %v9224 = vpop.xlane.xlu0 %9223
    %9225 = vadd.xlane.f32.xlu0 %v9220
    %v9226 = vpop.xlane.xlu0 %9225
    %9227 = vadd.xlane.f32.xlu0 %v9221
    %v9228 = vpop.xlane.xlu0 %9227
    %9229 = vadd.xlane.f32.xlu0 %v9222
    %v9230 = vpop.xlane.xlu0 %9229
    %v9231 = vld [vmem:[#allocation2] sm:$0x1]
    %v9233 = vlaneseq
    %v9234 = vshrl.u32 %v9233, 7
    %v9235 = vsub.s32 0, %v9234
    %v9236 = vrot.slane %v9231, %v9235
    %9237 = vset.pattern.permute.xlu0 0
    %9238 = vperm.xlu0 %9237, %v9236
    %v9239 = vpop.permute.xlu0 %9238
    %v9241 = vadd.f32 %v9224, %v9239
    %v9242 = vadd.f32 %v9226, %v9239
    %v9243 = vadd.f32 %v9228, %v9239
    %v9244 = vadd.f32 %v9230, %v9239
    %v9245 = vtanh.pop %v9241
    %v9246 = vtanh.pop %v9242
    %v9247 = vtanh.pop %v9243
    %v9248 = vtanh.pop %v9244
    %v9249 = vmax.f32 %v9245, 0.0
    %v9250 = vmax.f32 %v9246, 0.0
    %v9251 = vmax.f32 %v9247, 0.0
    %v9252 = vmax.f32 %v9248, 0.0
    %v9257 = vlaneseq
    %v9258 = vand.u32 %v9257, 127
    %v9259 = vlaneseq
    %v9260 = vshrl.u32 %v9259, 7
    %v9261 = vsub.s32 %v9258, %v9260
    %v9262 = vrot.slane %v9249, %v9261
    %v9263 = vadd.s32 %v9258, 4294967288
    %v9264 = vlaneseq
    %v9265 = vshrl.u32 %v9264, 7
    %v9266 = vsub.s32 %v9263, %v9265
    %v9267 = vrot.slane %v9250, %v9266
    %vm9268 = vcmask 130112
    %v9269 = vsel %vm9268, %v9267, %v9262
    %v9270 = vlaneseq
    %v9271 = vshrl.u32 %v9270, 7
    %v9272 = vsub.s32 %v9258, %v9271
    %v9273 = vrot.slane %v9251, %v9272
    %v9274 = vlaneseq
    %v9275 = vshrl.u32 %v9274, 7
    %v9276 = vsub.s32 %v9263, %v9275
    %v9277 = vrot.slane %v9252, %v9276
    %v9278 = vsel %vm9268, %v9277, %v9273
    %vm9279 = vcmask 1041409
    %v9280 = vsel %vm9279, %v9278, %v9269
    %vm9282 = vcmask 123904
    %9283 = vst.msk [vmem:[#allocation11] sm:$0x3] %vm9282, %v9280
    // Predicated region
    $region46: #{tpu_custom_call.1} parent=1 // pred_check
      _
    $region47: #{tpu_custom_call.1} parent=1 // pred_check_branch
      %9285 = sbr.rel (0) target = $region49
    $region48: #{tpu_custom_call.1} parent=1 // pred_region
      %s9287 = ssub.s32 32, 32
      %9288 = vsyncadd [#allocation5], %s9287
      %s9290 = sshll.u32 [#allocation11], 4
      %s9291 = int_to_ptr.vmem [resolvable:$true] %s9290
      %9293 = dma.vmem_to_hbm [thread:$0]  %s9291, 32, %s7, [#allocation5]
    $region49: #{tpu_custom_call.1} parent=1 // pred_fallthru
      _
    // Predicated region
    $region50: #{tpu_custom_call.1} parent=1 // pred_check
      _
    $region51: #{tpu_custom_call.1} parent=1 // pred_check_branch
      %9295 = sbr.rel (0) target = $region53
    $region52: #{tpu_custom_call.1} parent=1 // pred_region
      %9296 = dma.done [#allocation5], 32
    $region53: #{tpu_custom_call.1} parent=1 // pred_fallthru
      _
    %9297 = vsyncpa [#allocation4], 1
    %9298 = vsyncpa [#allocation7], 1
    %9299 = vsyncpa [#allocation10], 1
    %9300 = vsyncpa [#allocation5], 1

</llo_original>
